<compile_context>
chip_gen: v6e
topology: v6e:2x2x1
jax: 0.10.0
libtpu: 0.0.40
codegen_flags: <defaults>
</compile_context>

<pallas_src>
import functools

import jax
import jax.numpy as jnp
from jax.experimental import pallas as pl
from jax.experimental.pallas import tpu as pltpu


# ---------------------------------------------------------------------------
# Kernel 1: fused conv (odd kernel, stride 1, 'same') + bias + ReLU
#           + BN batch-stat accumulation.
#
# Layout: each grid step processes `nb` images.  The padded image is flattened
# to (L, C_in) rows; output rows use a "wide" layout of H*(W+2*pw) rows per
# image (the extra columns per row are junk and are masked out of the stats
# and sliced off in the wrapper).  For each (i, j) tap the needed patch is a
# contiguous row-slice of the flattened padded input, so the conv is just
# KH*KW shifted (rows, C_in) @ (C_in, C_out_padded) matmuls.
# ---------------------------------------------------------------------------
def conv_relu_stats_kernel(x_ref, w_ref, b_ref, m_ref, y_ref, sum_ref, sq_ref,
                           *, wp, nb, kh, kw):
    rows = y_ref.shape[1]
    cp = y_ref.shape[-1]

    @pl.when(pl.program_id(0) == 0)
    def _():
        sum_ref[...] = jnp.zeros_like(sum_ref)
        sq_ref[...] = jnp.zeros_like(sq_ref)

    valid = m_ref[...]                       # (rows, 1) 0/1 column-valid mask

    for b in range(nb):                      # static unroll over images in block
        acc = jnp.zeros((rows, cp), jnp.float32)
        for i in range(kh):
            for j in range(kw):
                # contiguous row window of the flattened padded image
                patch = x_ref[b, pl.ds(i * wp + j, rows), :]
                acc = acc + jnp.dot(patch.astype(jnp.bfloat16),
                                    w_ref[i * kw + j],
                                    preferred_element_type=jnp.float32)
        acc = jnp.maximum(acc + b_ref[...], 0.0)          # bias + ReLU (VPU)
        y_ref[b] = acc                                    # lane-dense store
        masked = acc * valid
        sum_ref[...] += jnp.sum(masked, axis=0, keepdims=True)
        sq_ref[...] += jnp.sum(masked * acc, axis=0, keepdims=True)


# ---------------------------------------------------------------------------
# Kernel 2: BatchNorm apply  y * a + b   with  a = gamma*rsqrt(var+eps),
#           b = beta - mean*a   (a, b precomputed on tiny (1, Cp) vectors).
# ---------------------------------------------------------------------------
def bn_apply_kernel(y_ref, a_ref, b_ref, o_ref):
    o_ref[...] = y_ref[...] * a_ref[...] + b_ref[...]


# ---------------------------------------------------------------------------
# Wrapper (NCHW in / NCHW out, PyTorch convention)
# ---------------------------------------------------------------------------
def basic_conv2d_g(x_nchw, weight, bias, gamma, beta, *, eps=1e-3, tm=1024):
    n, c_in, h, w = x_nchw.shape
    c_out, c_in_w, kh, kw = weight.shape
    assert c_in == c_in_w and kh % 2 == 1 and kw % 2 == 1
    ph, pw = kh // 2, kw // 2                 # 'same' padding (stride 1)
    wp = w + 2 * pw                           # "wide" row width
    rows_per_img = h * wp
    cp = ((c_out + 127) // 128) * 128         # lane-dense channel padding
    c_in_p = -(-c_in // 8) * 8                # sublane-friendly K padding

    # ---- input: NHWC, zero-padded, flattened per image (+ small tail pad) ----
    x_nhwc = jnp.transpose(x_nchw, (0, 2, 3, 1)).astype(jnp.float32)
    x_pad = jnp.pad(x_nhwc, ((0, 0), (ph, ph), (pw, pw), (0, c_in_p - c_in)))
    flat_len = (h + 2 * ph) * wp
    x_flat = jnp.pad(x_pad.reshape(n, flat_len, c_in_p),
                     ((0, 0), (0, kw - 1), (0, 0)))       # tail for last tap
    L = flat_len + (kw - 1)

    # ---- weights / params: (KH*KW, Cin_p, Cp) bf16, (1, Cp) f32 ----
    w_r = jnp.transpose(weight, (2, 3, 1, 0)).reshape(kh * kw, c_in, c_out)
    w_p = jnp.pad(w_r, ((0, 0), (0, c_in_p - c_in), (0, cp - c_out)))
    w_p = w_p.astype(jnp.bfloat16)
    bias_p = jnp.pad(bias.astype(jnp.float32), (0, cp - c_out)).reshape(1, cp)
    gamma_p = jnp.pad(gamma.astype(jnp.float32), (0, cp - c_out),
                      constant_values=1.0).reshape(1, cp)
    beta_p = jnp.pad(beta.astype(jnp.float32), (0, cp - c_out)).reshape(1, cp)

    # valid-column mask for the wide row layout (passed in, reused every step)
    col = jnp.arange(rows_per_img, dtype=jnp.int32) % wp
    mask = (col < w).astype(jnp.float32).reshape(rows_per_img, 1)

    # ---- images per grid step (keep the (rows, Cp) f32 tile ~<= 2K rows) ----
    # TODO(synk): very large H*W per image would additionally need H-tiling.
    nb = max(1, min(n, max(1, 2048 // rows_per_img)))
    while n % nb:
        nb -= 1
    grid_n = n // nb

    # ---- pass 1: conv + bias + ReLU + BN-stat accumulation ----
    y_wide, s, sq = pl.pallas_call(
        functools.partial(conv_relu_stats_kernel, wp=wp, nb=nb, kh=kh, kw=kw),
        out_shape=(jax.ShapeDtypeStruct((n, rows_per_img, cp), jnp.float32),
                   jax.ShapeDtypeStruct((1, cp), jnp.float32),
                   jax.ShapeDtypeStruct((1, cp), jnp.float32)),
        grid=(grid_n,),
        in_specs=[
            pl.BlockSpec((nb, L, c_in_p), lambda b: (b, 0, 0)),
            pl.BlockSpec((kh * kw, c_in_p, cp), lambda b: (0, 0, 0)),
            pl.BlockSpec((1, cp), lambda b: (0, 0)),
            pl.BlockSpec((rows_per_img, 1), lambda b: (0, 0)),
        ],
        out_specs=(
            pl.BlockSpec((nb, rows_per_img, cp), lambda b: (b, 0, 0)),
            pl.BlockSpec((1, cp), lambda b: (0, 0)),
            pl.BlockSpec((1, cp), lambda b: (0, 0)),
        ),
        # The fused BN stats make the batch axis a reduction -> 'arbitrary'.
        # TODO(synk): on v7x, per-core partial sums would keep this 'parallel'
        # for megacore sharding.
        compiler_params=pltpu.CompilerParams(
            dimension_semantics=("arbitrary",)),
    )(x_flat, w_p, bias_p, mask)

    # ---- batch statistics (train-mode BatchNorm2d, biased variance) ----
    count = float(n * h * w)
    mean = s / count
    # E[x^2]-E[x]^2 in f32; clamp guards against tiny negative cancellation.
    var = jnp.maximum(sq / count - mean * mean, 0.0)
    inv = jax.lax.rsqrt(var + eps)
    a2d = gamma_p * inv
    b2d = beta_p - mean * a2d

    # ---- pass 2: normalize (y * a + b) over the flattened lane-dense slab ----
    m_wide = n * rows_per_img
    y_flat = y_wide.reshape(m_wide, cp)        # metadata-only reshape
    tm_eff = m_wide if m_wide <= tm else tm    # big tiles; cdiv handles tails
    out_flat = pl.pallas_call(
        bn_apply_kernel,
        out_shape=jax.ShapeDtypeStruct((m_wide, cp), jnp.float32),
        grid=(pl.cdiv(m_wide, tm_eff),),
        in_specs=[
            pl.BlockSpec((tm_eff, cp), lambda i: (i, 0)),
            pl.BlockSpec((1, cp), lambda i: (0, 0)),
            pl.BlockSpec((1, cp), lambda i: (0, 0)),
        ],
        out_specs=pl.BlockSpec((tm_eff, cp), lambda i: (i, 0)),
        compiler_params=pltpu.CompilerParams(
            dimension_semantics=("parallel",)),
    )(y_flat, a2d, b2d)

    # Dropout(p=opt.dropout): p=0 (default / eval) -> identity.
    # TODO(synk): non-zero dropout would need a pltpu.prng_* mask kernel.

    # Strip width/channel padding and return NCHW (PyTorch layout).
    # TODO(synk): returning NHWC would save this final XLA transpose for a
    # fused downstream consumer; kept for module-semantics parity.
    out = out_flat.reshape(n, h, wp, cp)[:, :, :w, :c_out]
    return jnp.transpose(out, (0, 3, 1, 2))


# ---------------------------------------------------------------------------
# Reference (for silent correctness check)
# ---------------------------------------------------------------------------
def _reference(x, weight, bias, gamma, beta, eps=1e-3, mxu_bf16=True):
    kh, kw = weight.shape[2], weight.shape[3]
    if mxu_bf16:   # match the kernel's MXU input precision (f32 accumulation)
        xc, wc = x.astype(jnp.bfloat16), weight.astype(jnp.bfloat16)
    else:
        xc, wc = x, weight
    y = jax.lax.conv_general_dilated(
        xc, wc, window_strides=(1, 1),
        padding=[(kh // 2, kh // 2), (kw // 2, kw // 2)],
        dimension_numbers=("NCHW", "OIHW", "NCHW"),
        preferred_element_type=jnp.float32)
    y = y + bias.reshape(1, -1, 1, 1)
    y = jnp.maximum(y, 0.0)
    mean = jnp.mean(y, axis=(0, 2, 3), keepdims=True)
    var = jnp.mean(jnp.square(y - mean), axis=(0, 2, 3), keepdims=True)
    return ((y - mean) * jax.lax.rsqrt(var + eps)
            * gamma.reshape(1, -1, 1, 1) + beta.reshape(1, -1, 1, 1))


if __name__ == "__main__":
    key = jax.random.PRNGKey(0)
    k1, k2, k3 = jax.random.split(key, 3)

    N, C_in, H, W = 2, 4, 16, 16
    C_out, KH, KW = 8, 3, 3

    x = jax.random.normal(k1, (N, C_in, H, W), jnp.float32)
    weight = jax.random.normal(k2, (C_out, C_in, KH, KW), jnp.float32) * 0.1
    bias = jax.random.normal(k3, (C_out,), jnp.float32) * 0.1
    gamma = jnp.ones((C_out,), jnp.float32)
    beta = jnp.zeros((C_out,), jnp.float32)

    out = basic_conv2d_g(x, weight, bias, gamma, beta)
    jax.block_until_ready(out)
    assert out.shape == (N, C_out, H, W)

    # Precision-matched reference (bf16 MXU inputs, f32 accumulation + f32 BN).
    ref_bf16 = _reference(x, weight, bias, gamma, beta, mxu_bf16=True)
    assert jnp.max(jnp.abs(out - ref_bf16)) < 5e-3
    # Full-f32 reference: only the bf16 input quantization separates us.
    ref_f32 = _reference(x, weight, bias, gamma, beta, mxu_bf16=False)
    assert jnp.max(jnp.abs(out - ref_f32)) < 1e-1

    print("KERNEL_OK")
</pallas_src>

<mosaic_0001>
module attributes {stable_mosaic.version = 11 : i64} {
  func.func @conv_relu_stats_kernel(%arg0: i32, %arg1: memref<2x326x8xf32, #tpu.memory_space<vmem>>, %arg2: memref<9x8x128xbf16, #tpu.memory_space<vmem>>, %arg3: memref<1x128xf32, #tpu.memory_space<vmem>>, %arg4: memref<288x1xf32, #tpu.memory_space<vmem>>, %arg5: memref<2x288x128xf32, #tpu.memory_space<vmem>>, %arg6: memref<1x128xf32, #tpu.memory_space<vmem>>, %arg7: memref<1x128xf32, #tpu.memory_space<vmem>>) attributes {dimension_semantics = [#tpu.dimension_semantics<arbitrary>], iteration_bounds = array<i64: 1>, scalar_prefetch = 0 : i64, scratch_operands = 0 : i64, tpu.core_type = #tpu.core_type<tc>, window_params = [{transform_indices = @transform_0, window_bounds = array<i64: 2, 326, 8>}, {pipeline_mode = #tpu.pipeline_mode<synchronous>, transform_indices = @transform_1, window_bounds = array<i64: 9, 8, 128>}, {pipeline_mode = #tpu.pipeline_mode<synchronous>, transform_indices = @transform_2, window_bounds = array<i64: 1, 128>}, {pipeline_mode = #tpu.pipeline_mode<synchronous>, transform_indices = @transform_3, window_bounds = array<i64: 288, 1>}, {transform_indices = @transform_4, window_bounds = array<i64: 2, 288, 128>}, {pipeline_mode = #tpu.pipeline_mode<synchronous>, transform_indices = @transform_5, window_bounds = array<i64: 1, 128>}, {pipeline_mode = #tpu.pipeline_mode<synchronous>, transform_indices = @transform_6, window_bounds = array<i64: 1, 128>}]} {
    %c0_i32 = arith.constant 0 : i32
    %0 = arith.cmpi eq, %arg0, %c0_i32 : i32
    %1 = arith.extui %0 : i1 to i32
    %c0_i32_0 = arith.constant 0 : i32
    %2 = arith.cmpi ne, %1, %c0_i32_0 : i32
    scf.if %2 {
      %cst_147 = arith.constant 0.000000e+00 : f32
      %174 = vector.broadcast %cst_147 : f32 to vector<1x128xf32>
      %c0_148 = arith.constant 0 : index
      %c0_149 = arith.constant 0 : index
      %175 = vector.load %arg6[%c0_148, %c0_149] : memref<1x128xf32, #tpu.memory_space<vmem>>, vector<1x128xf32>
      tpu.vector_store %arg6[%c0_148, %c0_149], %174 {strides = array<i32>} : memref<1x128xf32, #tpu.memory_space<vmem>>, vector<1x128xf32>,
      %cst_150 = arith.constant 0.000000e+00 : f32
      %176 = vector.broadcast %cst_150 : f32 to vector<1x128xf32>
      %c0_151 = arith.constant 0 : index
      %c0_152 = arith.constant 0 : index
      %177 = vector.load %arg7[%c0_151, %c0_152] : memref<1x128xf32, #tpu.memory_space<vmem>>, vector<1x128xf32>
      tpu.vector_store %arg7[%c0_151, %c0_152], %176 {strides = array<i32>} : memref<1x128xf32, #tpu.memory_space<vmem>>, vector<1x128xf32>,
    } else {
    }
    %c0 = arith.constant 0 : index
    %c0_1 = arith.constant 0 : index
    %3 = vector.load %arg4[%c0, %c0_1] : memref<288x1xf32, #tpu.memory_space<vmem>>, vector<288x1xf32>
    %cst = arith.constant 0.000000e+00 : f32
    %4 = vector.broadcast %cst : f32 to vector<288x128xf32>
    %c0_2 = arith.constant 0 : index
    %c0_3 = arith.constant 0 : index
    %c0_4 = arith.constant 0 : index
    %5 = vector.load %arg1[%c0_2, %c0_3, %c0_4] : memref<2x326x8xf32, #tpu.memory_space<vmem>>, vector<1x288x8xf32>
    %6 = vector.shape_cast %5 : vector<1x288x8xf32> to vector<288x8xf32>
    %7 = arith.truncf %6 : vector<288x8xf32> to vector<288x8xbf16>
    %c0_5 = arith.constant 0 : index
    %c0_6 = arith.constant 0 : index
    %c0_7 = arith.constant 0 : index
    %8 = vector.load %arg2[%c0_5, %c0_6, %c0_7] : memref<9x8x128xbf16, #tpu.memory_space<vmem>>, vector<1x8x128xbf16>
    %9 = vector.shape_cast %8 : vector<1x8x128xbf16> to vector<8x128xbf16>
    %cst_8 = arith.constant dense<0.000000e+00> : vector<288x128xf32>
    %10 = tpu.matmul %7, %9, %cst_8 {dimension_numbers = #tpu.dot_dimension_numbers<[1], [0], [0], [1], [0, 0, 1, 1], [], []>} : vector<288x8xbf16>, vector<8x128xbf16>, vector<288x128xf32> -> vector<288x128xf32>
    %11 = arith.addf %4, %10 : vector<288x128xf32>
    %c0_9 = arith.constant 0 : index
    %c1 = arith.constant 1 : index
    %c0_10 = arith.constant 0 : index
    %12 = vector.load %arg1[%c0_9, %c1, %c0_10] : memref<2x326x8xf32, #tpu.memory_space<vmem>>, vector<1x288x8xf32>
    %13 = vector.shape_cast %12 : vector<1x288x8xf32> to vector<288x8xf32>
    %14 = arith.truncf %13 : vector<288x8xf32> to vector<288x8xbf16>
    %c1_11 = arith.constant 1 : index
    %c0_12 = arith.constant 0 : index
    %c0_13 = arith.constant 0 : index
    %15 = vector.load %arg2[%c1_11, %c0_12, %c0_13] : memref<9x8x128xbf16, #tpu.memory_space<vmem>>, vector<1x8x128xbf16>
    %16 = vector.shape_cast %15 : vector<1x8x128xbf16> to vector<8x128xbf16>
    %cst_14 = arith.constant dense<0.000000e+00> : vector<288x128xf32>
    %17 = tpu.matmul %14, %16, %cst_14 {dimension_numbers = #tpu.dot_dimension_numbers<[1], [0], [0], [1], [0, 0, 1, 1], [], []>} : vector<288x8xbf16>, vector<8x128xbf16>, vector<288x128xf32> -> vector<288x128xf32>
    %18 = arith.addf %11, %17 : vector<288x128xf32>
    %c0_15 = arith.constant 0 : index
    %c2 = arith.constant 2 : index
    %c0_16 = arith.constant 0 : index
    %19 = vector.load %arg1[%c0_15, %c2, %c0_16] : memref<2x326x8xf32, #tpu.memory_space<vmem>>, vector<1x288x8xf32>
    %20 = vector.shape_cast %19 : vector<1x288x8xf32> to vector<288x8xf32>
    %21 = arith.truncf %20 : vector<288x8xf32> to vector<288x8xbf16>
    %c2_17 = arith.constant 2 : index
    %c0_18 = arith.constant 0 : index
    %c0_19 = arith.constant 0 : index
    %22 = vector.load %arg2[%c2_17, %c0_18, %c0_19] : memref<9x8x128xbf16, #tpu.memory_space<vmem>>, vector<1x8x128xbf16>
    %23 = vector.shape_cast %22 : vector<1x8x128xbf16> to vector<8x128xbf16>
    %cst_20 = arith.constant dense<0.000000e+00> : vector<288x128xf32>
    %24 = tpu.matmul %21, %23, %cst_20 {dimension_numbers = #tpu.dot_dimension_numbers<[1], [0], [0], [1], [0, 0, 1, 1], [], []>} : vector<288x8xbf16>, vector<8x128xbf16>, vector<288x128xf32> -> vector<288x128xf32>
    %25 = arith.addf %18, %24 : vector<288x128xf32>
    %c0_21 = arith.constant 0 : index
    %c18 = arith.constant 18 : index
    %c0_22 = arith.constant 0 : index
    %26 = vector.load %arg1[%c0_21, %c18, %c0_22] : memref<2x326x8xf32, #tpu.memory_space<vmem>>, vector<1x288x8xf32>
    %27 = vector.shape_cast %26 : vector<1x288x8xf32> to vector<288x8xf32>
    %28 = arith.truncf %27 : vector<288x8xf32> to vector<288x8xbf16>
    %c3 = arith.constant 3 : index
    %c0_23 = arith.constant 0 : index
    %c0_24 = arith.constant 0 : index
    %29 = vector.load %arg2[%c3, %c0_23, %c0_24] : memref<9x8x128xbf16, #tpu.memory_space<vmem>>, vector<1x8x128xbf16>
    %30 = vector.shape_cast %29 : vector<1x8x128xbf16> to vector<8x128xbf16>
    %cst_25 = arith.constant dense<0.000000e+00> : vector<288x128xf32>
    %31 = tpu.matmul %28, %30, %cst_25 {dimension_numbers = #tpu.dot_dimension_numbers<[1], [0], [0], [1], [0, 0, 1, 1], [], []>} : vector<288x8xbf16>, vector<8x128xbf16>, vector<288x128xf32> -> vector<288x128xf32>
    %32 = arith.addf %25, %31 : vector<288x128xf32>
    %c0_26 = arith.constant 0 : index
    %c19 = arith.constant 19 : index
    %c0_27 = arith.constant 0 : index
    %33 = vector.load %arg1[%c0_26, %c19, %c0_27] : memref<2x326x8xf32, #tpu.memory_space<vmem>>, vector<1x288x8xf32>
    %34 = vector.shape_cast %33 : vector<1x288x8xf32> to vector<288x8xf32>
    %35 = arith.truncf %34 : vector<288x8xf32> to vector<288x8xbf16>
    %c4 = arith.constant 4 : index
    %c0_28 = arith.constant 0 : index
    %c0_29 = arith.constant 0 : index
    %36 = vector.load %arg2[%c4, %c0_28, %c0_29] : memref<9x8x128xbf16, #tpu.memory_space<vmem>>, vector<1x8x128xbf16>
    %37 = vector.shape_cast %36 : vector<1x8x128xbf16> to vector<8x128xbf16>
    %cst_30 = arith.constant dense<0.000000e+00> : vector<288x128xf32>
    %38 = tpu.matmul %35, %37, %cst_30 {dimension_numbers = #tpu.dot_dimension_numbers<[1], [0], [0], [1], [0, 0, 1, 1], [], []>} : vector<288x8xbf16>, vector<8x128xbf16>, vector<288x128xf32> -> vector<288x128xf32>
    %39 = arith.addf %32, %38 : vector<288x128xf32>
    %c0_31 = arith.constant 0 : index
    %c20 = arith.constant 20 : index
    %c0_32 = arith.constant 0 : index
    %40 = vector.load %arg1[%c0_31, %c20, %c0_32] : memref<2x326x8xf32, #tpu.memory_space<vmem>>, vector<1x288x8xf32>
    %41 = vector.shape_cast %40 : vector<1x288x8xf32> to vector<288x8xf32>
    %42 = arith.truncf %41 : vector<288x8xf32> to vector<288x8xbf16>
    %c5 = arith.constant 5 : index
    %c0_33 = arith.constant 0 : index
    %c0_34 = arith.constant 0 : index
    %43 = vector.load %arg2[%c5, %c0_33, %c0_34] : memref<9x8x128xbf16, #tpu.memory_space<vmem>>, vector<1x8x128xbf16>
    %44 = vector.shape_cast %43 : vector<1x8x128xbf16> to vector<8x128xbf16>
    %cst_35 = arith.constant dense<0.000000e+00> : vector<288x128xf32>
    %45 = tpu.matmul %42, %44, %cst_35 {dimension_numbers = #tpu.dot_dimension_numbers<[1], [0], [0], [1], [0, 0, 1, 1], [], []>} : vector<288x8xbf16>, vector<8x128xbf16>, vector<288x128xf32> -> vector<288x128xf32>
    %46 = arith.addf %39, %45 : vector<288x128xf32>
    %c0_36 = arith.constant 0 : index
    %c36 = arith.constant 36 : index
    %c0_37 = arith.constant 0 : index
    %47 = vector.load %arg1[%c0_36, %c36, %c0_37] : memref<2x326x8xf32, #tpu.memory_space<vmem>>, vector<1x288x8xf32>
    %48 = vector.shape_cast %47 : vector<1x288x8xf32> to vector<288x8xf32>
    %49 = arith.truncf %48 : vector<288x8xf32> to vector<288x8xbf16>
    %c6 = arith.constant 6 : index
    %c0_38 = arith.constant 0 : index
    %c0_39 = arith.constant 0 : index
    %50 = vector.load %arg2[%c6, %c0_38, %c0_39] : memref<9x8x128xbf16, #tpu.memory_space<vmem>>, vector<1x8x128xbf16>
    %51 = vector.shape_cast %50 : vector<1x8x128xbf16> to vector<8x128xbf16>
    %cst_40 = arith.constant dense<0.000000e+00> : vector<288x128xf32>
    %52 = tpu.matmul %49, %51, %cst_40 {dimension_numbers = #tpu.dot_dimension_numbers<[1], [0], [0], [1], [0, 0, 1, 1], [], []>} : vector<288x8xbf16>, vector<8x128xbf16>, vector<288x128xf32> -> vector<288x128xf32>
    %53 = arith.addf %46, %52 : vector<288x128xf32>
    %c0_41 = arith.constant 0 : index
    %c37 = arith.constant 37 : index
    %c0_42 = arith.constant 0 : index
    %54 = vector.load %arg1[%c0_41, %c37, %c0_42] : memref<2x326x8xf32, #tpu.memory_space<vmem>>, vector<1x288x8xf32>
    %55 = vector.shape_cast %54 : vector<1x288x8xf32> to vector<288x8xf32>
    %56 = arith.truncf %55 : vector<288x8xf32> to vector<288x8xbf16>
    %c7 = arith.constant 7 : index
    %c0_43 = arith.constant 0 : index
    %c0_44 = arith.constant 0 : index
    %57 = vector.load %arg2[%c7, %c0_43, %c0_44] : memref<9x8x128xbf16, #tpu.memory_space<vmem>>, vector<1x8x128xbf16>
    %58 = vector.shape_cast %57 : vector<1x8x128xbf16> to vector<8x128xbf16>
    %cst_45 = arith.constant dense<0.000000e+00> : vector<288x128xf32>
    %59 = tpu.matmul %56, %58, %cst_45 {dimension_numbers = #tpu.dot_dimension_numbers<[1], [0], [0], [1], [0, 0, 1, 1], [], []>} : vector<288x8xbf16>, vector<8x128xbf16>, vector<288x128xf32> -> vector<288x128xf32>
    %60 = arith.addf %53, %59 : vector<288x128xf32>
    %c0_46 = arith.constant 0 : index
    %c38 = arith.constant 38 : index
    %c0_47 = arith.constant 0 : index
    %61 = vector.load %arg1[%c0_46, %c38, %c0_47] : memref<2x326x8xf32, #tpu.memory_space<vmem>>, vector<1x288x8xf32>
    %62 = vector.shape_cast %61 : vector<1x288x8xf32> to vector<288x8xf32>
    %63 = arith.truncf %62 : vector<288x8xf32> to vector<288x8xbf16>
    %c8 = arith.constant 8 : index
    %c0_48 = arith.constant 0 : index
    %c0_49 = arith.constant 0 : index
    %64 = vector.load %arg2[%c8, %c0_48, %c0_49] : memref<9x8x128xbf16, #tpu.memory_space<vmem>>, vector<1x8x128xbf16>
    %65 = vector.shape_cast %64 : vector<1x8x128xbf16> to vector<8x128xbf16>
    %cst_50 = arith.constant dense<0.000000e+00> : vector<288x128xf32>
    %66 = tpu.matmul %63, %65, %cst_50 {dimension_numbers = #tpu.dot_dimension_numbers<[1], [0], [0], [1], [0, 0, 1, 1], [], []>} : vector<288x8xbf16>, vector<8x128xbf16>, vector<288x128xf32> -> vector<288x128xf32>
    %67 = arith.addf %60, %66 : vector<288x128xf32>
    %c0_51 = arith.constant 0 : index
    %c0_52 = arith.constant 0 : index
    %68 = vector.load %arg3[%c0_51, %c0_52] : memref<1x128xf32, #tpu.memory_space<vmem>>, vector<1x128xf32>
    %69 = vector.broadcast %68 : vector<1x128xf32> to vector<288x128xf32>
    %70 = arith.addf %67, %69 : vector<288x128xf32>
    %cst_53 = arith.constant 0.000000e+00 : f32
    %71 = vector.broadcast %cst_53 : f32 to vector<288x128xf32>
    %72 = arith.maximumf %70, %71 : vector<288x128xf32>
    %c0_54 = arith.constant 0 : index
    %c0_55 = arith.constant 0 : index
    %c0_56 = arith.constant 0 : index
    %73 = vector.load %arg5[%c0_54, %c0_55, %c0_56] : memref<2x288x128xf32, #tpu.memory_space<vmem>>, vector<1x288x128xf32>
    %74 = vector.shape_cast %73 : vector<1x288x128xf32> to vector<288x128xf32>
    %75 = vector.shape_cast %72 : vector<288x128xf32> to vector<1x288x128xf32>
    tpu.vector_store %arg5[%c0_54, %c0_55, %c0_56], %75 {strides = array<i32>} : memref<2x288x128xf32, #tpu.memory_space<vmem>>, vector<1x288x128xf32>,
    %76 = vector.broadcast %3 : vector<288x1xf32> to vector<288x128xf32>
    %77 = arith.mulf %72, %76 : vector<288x128xf32>
    %c0_57 = arith.constant 0 : index
    %c0_58 = arith.constant 0 : index
    %78 = vector.load %arg6[%c0_57, %c0_58] : memref<1x128xf32, #tpu.memory_space<vmem>>, vector<1x128xf32>
    %cst_59 = arith.constant dense<0.000000e+00> : vector<128xf32>
    %79 = vector.multi_reduction <add>, %77, %cst_59 [0] : vector<288x128xf32> to vector<128xf32>
    %80 = vector.shape_cast %79 : vector<128xf32> to vector<1x128xf32>
    %81 = arith.addf %78, %80 : vector<1x128xf32>
    %c0_60 = arith.constant 0 : index
    %c0_61 = arith.constant 0 : index
    %82 = vector.load %arg6[%c0_60, %c0_61] : memref<1x128xf32, #tpu.memory_space<vmem>>, vector<1x128xf32>
    tpu.vector_store %arg6[%c0_60, %c0_61], %81 {strides = array<i32>} : memref<1x128xf32, #tpu.memory_space<vmem>>, vector<1x128xf32>,
    %c0_62 = arith.constant 0 : index
    %c0_63 = arith.constant 0 : index
    %83 = vector.load %arg7[%c0_62, %c0_63] : memref<1x128xf32, #tpu.memory_space<vmem>>, vector<1x128xf32>
    %84 = arith.mulf %77, %72 : vector<288x128xf32>
    %cst_64 = arith.constant dense<0.000000e+00> : vector<128xf32>
    %85 = vector.multi_reduction <add>, %84, %cst_64 [0] : vector<288x128xf32> to vector<128xf32>
    %86 = vector.shape_cast %85 : vector<128xf32> to vector<1x128xf32>
    %87 = arith.addf %83, %86 : vector<1x128xf32>
    %c0_65 = arith.constant 0 : index
    %c0_66 = arith.constant 0 : index
    %88 = vector.load %arg7[%c0_65, %c0_66] : memref<1x128xf32, #tpu.memory_space<vmem>>, vector<1x128xf32>
    tpu.vector_store %arg7[%c0_65, %c0_66], %87 {strides = array<i32>} : memref<1x128xf32, #tpu.memory_space<vmem>>, vector<1x128xf32>,
    %cst_67 = arith.constant 0.000000e+00 : f32
    %89 = vector.broadcast %cst_67 : f32 to vector<288x128xf32>
    %c1_68 = arith.constant 1 : index
    %c0_69 = arith.constant 0 : index
    %c0_70 = arith.constant 0 : index
    %90 = vector.load %arg1[%c1_68, %c0_69, %c0_70] : memref<2x326x8xf32, #tpu.memory_space<vmem>>, vector<1x288x8xf32>
    %91 = vector.shape_cast %90 : vector<1x288x8xf32> to vector<288x8xf32>
    %92 = arith.truncf %91 : vector<288x8xf32> to vector<288x8xbf16>
    %c0_71 = arith.constant 0 : index
    %c0_72 = arith.constant 0 : index
    %c0_73 = arith.constant 0 : index
    %93 = vector.load %arg2[%c0_71, %c0_72, %c0_73] : memref<9x8x128xbf16, #tpu.memory_space<vmem>>, vector<1x8x128xbf16>
    %94 = vector.shape_cast %93 : vector<1x8x128xbf16> to vector<8x128xbf16>
    %cst_74 = arith.constant dense<0.000000e+00> : vector<288x128xf32>
    %95 = tpu.matmul %92, %94, %cst_74 {dimension_numbers = #tpu.dot_dimension_numbers<[1], [0], [0], [1], [0, 0, 1, 1], [], []>} : vector<288x8xbf16>, vector<8x128xbf16>, vector<288x128xf32> -> vector<288x128xf32>
    %96 = arith.addf %89, %95 : vector<288x128xf32>
    %c1_75 = arith.constant 1 : index
    %c1_76 = arith.constant 1 : index
    %c0_77 = arith.constant 0 : index
    %97 = vector.load %arg1[%c1_75, %c1_76, %c0_77] : memref<2x326x8xf32, #tpu.memory_space<vmem>>, vector<1x288x8xf32>
    %98 = vector.shape_cast %97 : vector<1x288x8xf32> to vector<288x8xf32>
    %99 = arith.truncf %98 : vector<288x8xf32> to vector<288x8xbf16>
    %c1_78 = arith.constant 1 : index
    %c0_79 = arith.constant 0 : index
    %c0_80 = arith.constant 0 : index
    %100 = vector.load %arg2[%c1_78, %c0_79, %c0_80] : memref<9x8x128xbf16, #tpu.memory_space<vmem>>, vector<1x8x128xbf16>
    %101 = vector.shape_cast %100 : vector<1x8x128xbf16> to vector<8x128xbf16>
    %cst_81 = arith.constant dense<0.000000e+00> : vector<288x128xf32>
    %102 = tpu.matmul %99, %101, %cst_81 {dimension_numbers = #tpu.dot_dimension_numbers<[1], [0], [0], [1], [0, 0, 1, 1], [], []>} : vector<288x8xbf16>, vector<8x128xbf16>, vector<288x128xf32> -> vector<288x128xf32>
    %103 = arith.addf %96, %102 : vector<288x128xf32>
    %c1_82 = arith.constant 1 : index
    %c2_83 = arith.constant 2 : index
    %c0_84 = arith.constant 0 : index
    %104 = vector.load %arg1[%c1_82, %c2_83, %c0_84] : memref<2x326x8xf32, #tpu.memory_space<vmem>>, vector<1x288x8xf32>
    %105 = vector.shape_cast %104 : vector<1x288x8xf32> to vector<288x8xf32>
    %106 = arith.truncf %105 : vector<288x8xf32> to vector<288x8xbf16>
    %c2_85 = arith.constant 2 : index
    %c0_86 = arith.constant 0 : index
    %c0_87 = arith.constant 0 : index
    %107 = vector.load %arg2[%c2_85, %c0_86, %c0_87] : memref<9x8x128xbf16, #tpu.memory_space<vmem>>, vector<1x8x128xbf16>
    %108 = vector.shape_cast %107 : vector<1x8x128xbf16> to vector<8x128xbf16>
    %cst_88 = arith.constant dense<0.000000e+00> : vector<288x128xf32>
    %109 = tpu.matmul %106, %108, %cst_88 {dimension_numbers = #tpu.dot_dimension_numbers<[1], [0], [0], [1], [0, 0, 1, 1], [], []>} : vector<288x8xbf16>, vector<8x128xbf16>, vector<288x128xf32> -> vector<288x128xf32>
    %110 = arith.addf %103, %109 : vector<288x128xf32>
    %c1_89 = arith.constant 1 : index
    %c18_90 = arith.constant 18 : index
    %c0_91 = arith.constant 0 : index
    %111 = vector.load %arg1[%c1_89, %c18_90, %c0_91] : memref<2x326x8xf32, #tpu.memory_space<vmem>>, vector<1x288x8xf32>
    %112 = vector.shape_cast %111 : vector<1x288x8xf32> to vector<288x8xf32>
    %113 = arith.truncf %112 : vector<288x8xf32> to vector<288x8xbf16>
    %c3_92 = arith.constant 3 : index
    %c0_93 = arith.constant 0 : index
    %c0_94 = arith.constant 0 : index
    %114 = vector.load %arg2[%c3_92, %c0_93, %c0_94] : memref<9x8x128xbf16, #tpu.memory_space<vmem>>, vector<1x8x128xbf16>
    %115 = vector.shape_cast %114 : vector<1x8x128xbf16> to vector<8x128xbf16>
    %cst_95 = arith.constant dense<0.000000e+00> : vector<288x128xf32>
    %116 = tpu.matmul %113, %115, %cst_95 {dimension_numbers = #tpu.dot_dimension_numbers<[1], [0], [0], [1], [0, 0, 1, 1], [], []>} : vector<288x8xbf16>, vector<8x128xbf16>, vector<288x128xf32> -> vector<288x128xf32>
    %117 = arith.addf %110, %116 : vector<288x128xf32>
    %c1_96 = arith.constant 1 : index
    %c19_97 = arith.constant 19 : index
    %c0_98 = arith.constant 0 : index
    %118 = vector.load %arg1[%c1_96, %c19_97, %c0_98] : memref<2x326x8xf32, #tpu.memory_space<vmem>>, vector<1x288x8xf32>
    %119 = vector.shape_cast %118 : vector<1x288x8xf32> to vector<288x8xf32>
    %120 = arith.truncf %119 : vector<288x8xf32> to vector<288x8xbf16>
    %c4_99 = arith.constant 4 : index
    %c0_100 = arith.constant 0 : index
    %c0_101 = arith.constant 0 : index
    %121 = vector.load %arg2[%c4_99, %c0_100, %c0_101] : memref<9x8x128xbf16, #tpu.memory_space<vmem>>, vector<1x8x128xbf16>
    %122 = vector.shape_cast %121 : vector<1x8x128xbf16> to vector<8x128xbf16>
    %cst_102 = arith.constant dense<0.000000e+00> : vector<288x128xf32>
    %123 = tpu.matmul %120, %122, %cst_102 {dimension_numbers = #tpu.dot_dimension_numbers<[1], [0], [0], [1], [0, 0, 1, 1], [], []>} : vector<288x8xbf16>, vector<8x128xbf16>, vector<288x128xf32> -> vector<288x128xf32>
    %124 = arith.addf %117, %123 : vector<288x128xf32>
    %c1_103 = arith.constant 1 : index
    %c20_104 = arith.constant 20 : index
    %c0_105 = arith.constant 0 : index
    %125 = vector.load %arg1[%c1_103, %c20_104, %c0_105] : memref<2x326x8xf32, #tpu.memory_space<vmem>>, vector<1x288x8xf32>
    %126 = vector.shape_cast %125 : vector<1x288x8xf32> to vector<288x8xf32>
    %127 = arith.truncf %126 : vector<288x8xf32> to vector<288x8xbf16>
    %c5_106 = arith.constant 5 : index
    %c0_107 = arith.constant 0 : index
    %c0_108 = arith.constant 0 : index
    %128 = vector.load %arg2[%c5_106, %c0_107, %c0_108] : memref<9x8x128xbf16, #tpu.memory_space<vmem>>, vector<1x8x128xbf16>
    %129 = vector.shape_cast %128 : vector<1x8x128xbf16> to vector<8x128xbf16>
    %cst_109 = arith.constant dense<0.000000e+00> : vector<288x128xf32>
    %130 = tpu.matmul %127, %129, %cst_109 {dimension_numbers = #tpu.dot_dimension_numbers<[1], [0], [0], [1], [0, 0, 1, 1], [], []>} : vector<288x8xbf16>, vector<8x128xbf16>, vector<288x128xf32> -> vector<288x128xf32>
    %131 = arith.addf %124, %130 : vector<288x128xf32>
    %c1_110 = arith.constant 1 : index
    %c36_111 = arith.constant 36 : index
    %c0_112 = arith.constant 0 : index
    %132 = vector.load %arg1[%c1_110, %c36_111, %c0_112] : memref<2x326x8xf32, #tpu.memory_space<vmem>>, vector<1x288x8xf32>
    %133 = vector.shape_cast %132 : vector<1x288x8xf32> to vector<288x8xf32>
    %134 = arith.truncf %133 : vector<288x8xf32> to vector<288x8xbf16>
    %c6_113 = arith.constant 6 : index
    %c0_114 = arith.constant 0 : index
    %c0_115 = arith.constant 0 : index
    %135 = vector.load %arg2[%c6_113, %c0_114, %c0_115] : memref<9x8x128xbf16, #tpu.memory_space<vmem>>, vector<1x8x128xbf16>
    %136 = vector.shape_cast %135 : vector<1x8x128xbf16> to vector<8x128xbf16>
    %cst_116 = arith.constant dense<0.000000e+00> : vector<288x128xf32>
    %137 = tpu.matmul %134, %136, %cst_116 {dimension_numbers = #tpu.dot_dimension_numbers<[1], [0], [0], [1], [0, 0, 1, 1], [], []>} : vector<288x8xbf16>, vector<8x128xbf16>, vector<288x128xf32> -> vector<288x128xf32>
    %138 = arith.addf %131, %137 : vector<288x128xf32>
    %c1_117 = arith.constant 1 : index
    %c37_118 = arith.constant 37 : index
    %c0_119 = arith.constant 0 : index
    %139 = vector.load %arg1[%c1_117, %c37_118, %c0_119] : memref<2x326x8xf32, #tpu.memory_space<vmem>>, vector<1x288x8xf32>
    %140 = vector.shape_cast %139 : vector<1x288x8xf32> to vector<288x8xf32>
    %141 = arith.truncf %140 : vector<288x8xf32> to vector<288x8xbf16>
    %c7_120 = arith.constant 7 : index
    %c0_121 = arith.constant 0 : index
    %c0_122 = arith.constant 0 : index
    %142 = vector.load %arg2[%c7_120, %c0_121, %c0_122] : memref<9x8x128xbf16, #tpu.memory_space<vmem>>, vector<1x8x128xbf16>
    %143 = vector.shape_cast %142 : vector<1x8x128xbf16> to vector<8x128xbf16>
    %cst_123 = arith.constant dense<0.000000e+00> : vector<288x128xf32>
    %144 = tpu.matmul %141, %143, %cst_123 {dimension_numbers = #tpu.dot_dimension_numbers<[1], [0], [0], [1], [0, 0, 1, 1], [], []>} : vector<288x8xbf16>, vector<8x128xbf16>, vector<288x128xf32> -> vector<288x128xf32>
    %145 = arith.addf %138, %144 : vector<288x128xf32>
    %c1_124 = arith.constant 1 : index
    %c38_125 = arith.constant 38 : index
    %c0_126 = arith.constant 0 : index
    %146 = vector.load %arg1[%c1_124, %c38_125, %c0_126] : memref<2x326x8xf32, #tpu.memory_space<vmem>>, vector<1x288x8xf32>
    %147 = vector.shape_cast %146 : vector<1x288x8xf32> to vector<288x8xf32>
    %148 = arith.truncf %147 : vector<288x8xf32> to vector<288x8xbf16>
    %c8_127 = arith.constant 8 : index
    %c0_128 = arith.constant 0 : index
    %c0_129 = arith.constant 0 : index
    %149 = vector.load %arg2[%c8_127, %c0_128, %c0_129] : memref<9x8x128xbf16, #tpu.memory_space<vmem>>, vector<1x8x128xbf16>
    %150 = vector.shape_cast %149 : vector<1x8x128xbf16> to vector<8x128xbf16>
    %cst_130 = arith.constant dense<0.000000e+00> : vector<288x128xf32>
    %151 = tpu.matmul %148, %150, %cst_130 {dimension_numbers = #tpu.dot_dimension_numbers<[1], [0], [0], [1], [0, 0, 1, 1], [], []>} : vector<288x8xbf16>, vector<8x128xbf16>, vector<288x128xf32> -> vector<288x128xf32>
    %152 = arith.addf %145, %151 : vector<288x128xf32>
    %c0_131 = arith.constant 0 : index
    %c0_132 = arith.constant 0 : index
    %153 = vector.load %arg3[%c0_131, %c0_132] : memref<1x128xf32, #tpu.memory_space<vmem>>, vector<1x128xf32>
    %154 = vector.broadcast %153 : vector<1x128xf32> to vector<288x128xf32>
    %155 = arith.addf %152, %154 : vector<288x128xf32>
    %cst_133 = arith.constant 0.000000e+00 : f32
    %156 = vector.broadcast %cst_133 : f32 to vector<288x128xf32>
    %157 = arith.maximumf %155, %156 : vector<288x128xf32>
    %c1_134 = arith.constant 1 : index
    %c0_135 = arith.constant 0 : index
    %c0_136 = arith.constant 0 : index
    %158 = vector.load %arg5[%c1_134, %c0_135, %c0_136] : memref<2x288x128xf32, #tpu.memory_space<vmem>>, vector<1x288x128xf32>
    %159 = vector.shape_cast %158 : vector<1x288x128xf32> to vector<288x128xf32>
    %160 = vector.shape_cast %157 : vector<288x128xf32> to vector<1x288x128xf32>
    tpu.vector_store %arg5[%c1_134, %c0_135, %c0_136], %160 {strides = array<i32>} : memref<2x288x128xf32, #tpu.memory_space<vmem>>, vector<1x288x128xf32>,
    %161 = vector.broadcast %3 : vector<288x1xf32> to vector<288x128xf32>
    %162 = arith.mulf %157, %161 : vector<288x128xf32>
    %c0_137 = arith.constant 0 : index
    %c0_138 = arith.constant 0 : index
    %163 = vector.load %arg6[%c0_137, %c0_138] : memref<1x128xf32, #tpu.memory_space<vmem>>, vector<1x128xf32>
    %cst_139 = arith.constant dense<0.000000e+00> : vector<128xf32>
    %164 = vector.multi_reduction <add>, %162, %cst_139 [0] : vector<288x128xf32> to vector<128xf32>
    %165 = vector.shape_cast %164 : vector<128xf32> to vector<1x128xf32>
    %166 = arith.addf %163, %165 : vector<1x128xf32>
    %c0_140 = arith.constant 0 : index
    %c0_141 = arith.constant 0 : index
    %167 = vector.load %arg6[%c0_140, %c0_141] : memref<1x128xf32, #tpu.memory_space<vmem>>, vector<1x128xf32>
    tpu.vector_store %arg6[%c0_140, %c0_141], %166 {strides = array<i32>} : memref<1x128xf32, #tpu.memory_space<vmem>>, vector<1x128xf32>,
    %c0_142 = arith.constant 0 : index
    %c0_143 = arith.constant 0 : index
    %168 = vector.load %arg7[%c0_142, %c0_143] : memref<1x128xf32, #tpu.memory_space<vmem>>, vector<1x128xf32>
    %169 = arith.mulf %162, %157 : vector<288x128xf32>
    %cst_144 = arith.constant dense<0.000000e+00> : vector<128xf32>
    %170 = vector.multi_reduction <add>, %169, %cst_144 [0] : vector<288x128xf32> to vector<128xf32>
    %171 = vector.shape_cast %170 : vector<128xf32> to vector<1x128xf32>
    %172 = arith.addf %168, %171 : vector<1x128xf32>
    %c0_145 = arith.constant 0 : index
    %c0_146 = arith.constant 0 : index
    %173 = vector.load %arg7[%c0_145, %c0_146] : memref<1x128xf32, #tpu.memory_space<vmem>>, vector<1x128xf32>
    tpu.vector_store %arg7[%c0_145, %c0_146], %172 {strides = array<i32>} : memref<1x128xf32, #tpu.memory_space<vmem>>, vector<1x128xf32>,
    return
  }
  func.func @transform_0(%arg0: i32) -> (i32, i32, i32) {
    %c0_i32 = arith.constant 0 : i32
    %c0_i32_0 = arith.constant 0 : i32
    %c0_i32_1 = arith.constant 0 : i32
    return %arg0, %c0_i32, %c0_i32_0 : i32, i32, i32
  }
  func.func @transform_1(%arg0: i32) -> (i32, i32, i32) {
    %c0_i32 = arith.constant 0 : i32
    %c0_i32_0 = arith.constant 0 : i32
    %c0_i32_1 = arith.constant 0 : i32
    %c0_i32_2 = arith.constant 0 : i32
    return %c0_i32, %c0_i32_0, %c0_i32_1 : i32, i32, i32
  }
  func.func @transform_2(%arg0: i32) -> (i32, i32) {
    %c0_i32 = arith.constant 0 : i32
    %c0_i32_0 = arith.constant 0 : i32
    %c0_i32_1 = arith.constant 0 : i32
    return %c0_i32, %c0_i32_0 : i32, i32
  }
  func.func @transform_3(%arg0: i32) -> (i32, i32) {
    %c0_i32 = arith.constant 0 : i32
    %c0_i32_0 = arith.constant 0 : i32
    %c0_i32_1 = arith.constant 0 : i32
    return %c0_i32, %c0_i32_0 : i32, i32
  }
  func.func @transform_4(%arg0: i32) -> (i32, i32, i32) {
    %c0_i32 = arith.constant 0 : i32
    %c0_i32_0 = arith.constant 0 : i32
    %c0_i32_1 = arith.constant 0 : i32
    return %arg0, %c0_i32, %c0_i32_0 : i32, i32, i32
  }
  func.func @transform_5(%arg0: i32) -> (i32, i32) {
    %c0_i32 = arith.constant 0 : i32
    %c0_i32_0 = arith.constant 0 : i32
    %c0_i32_1 = arith.constant 0 : i32
    return %c0_i32, %c0_i32_0 : i32, i32
  }
  func.func @transform_6(%arg0: i32) -> (i32, i32) {
    %c0_i32 = arith.constant 0 : i32
    %c0_i32_0 = arith.constant 0 : i32
    %c0_i32_1 = arith.constant 0 : i32
    return %c0_i32, %c0_i32_0 : i32, i32
  }
}

</mosaic_0001>

<llo_original>
// kernel: tpu_custom_call.1
$region0: #{tpu_custom_call.1}
  #allocation0 [shape = 'u32[]', space=smem, size = 0x4, offset = 0x4, fixed_abs, tag = 'smem constant byte address 0x4 - core index']
  #allocation1 [shape = 'u32[144,128]{1,0:T(1,128)}', space=vmem, size = 0x12000, scoped, tag = 'internal scratch']
  %s0 = inlined_call_operand.vmem [shape: f32[2,326,8], index: 0, kind: input, shape index: {}]
  %s1 = inlined_call_operand.vmem [shape: bf16[9,8,128], index: 1, kind: input, shape index: {}]
  %s2 = inlined_call_operand.vmem [shape: f32[1,128], index: 2, kind: input, shape index: {}]
  %s3 = inlined_call_operand.vmem [shape: f32[288,1], index: 3, kind: input, shape index: {}]
  %s4 = inlined_call_operand.hbm [shape: f32[2,288,128], index: 4, kind: output, shape index: {0}]
  %s5 = inlined_call_operand.hbm [shape: f32[1,128], index: 5, kind: output, shape index: {1}]
  %s6 = inlined_call_operand.hbm [shape: f32[1,128], index: 6, kind: output, shape index: {2}]
  %7 = xla_tuple %s4, %s5, %s6
  %s8 = sld [smem:[#allocation0]]
  $region46: #{tpu_custom_call.1} parent=0
    _
  %s10 = ssub.s32 1, %s8
  %s11 = scalar_select 0, %s10, %s8
  $region1: #{tpu_custom_call.1} parent=0
    #allocation2 [shape = 'u8[294912]{0}', space=vmem, size = 0x48000, scoped, tag = 'output window, operand 0, single buffered']
    #allocation3 [shape = 's32[1]{0}', space=sflag, size = 0x4, scoped, tag = 'scoped memory for tpu_custom_call.1']
    #allocation4 [shape = 'u8[512]{0}', space=vmem, size = 0x400, scoped, tag = 'output window, operand 1, single buffered']
    #allocation5 [shape = 's32[1]{0}', space=sflag, size = 0x4, scoped, tag = 'scoped memory for tpu_custom_call.1']
    #allocation6 [shape = 'u8[512]{0}', space=vmem, size = 0x400, scoped, tag = 'output window, operand 2, single buffered']
    %12 = vsyncpa [#allocation3], 0
    %13 = vsyncpa [#allocation5], 0
    // Predicated region
    $region2: #{tpu_custom_call.1} parent=1 // pred_check
      _
    $region3: #{tpu_custom_call.1} parent=1 // pred_check_branch
      %15 = sbr.rel (0) target = $region5
    $region4: #{tpu_custom_call.1} parent=1 // pred_region
      _
    $region5: #{tpu_custom_call.1} parent=1 // pred_fallthru
      _
    // Predicated region
    $region6: #{tpu_custom_call.1} parent=1 // pred_check
      _
    $region7: #{tpu_custom_call.1} parent=1 // pred_check_branch
      %17 = sbr.rel (0) target = $region9
    $region8: #{tpu_custom_call.1} parent=1 // pred_region
      _
    $region9: #{tpu_custom_call.1} parent=1 // pred_fallthru
      _
    // Predicated region
    $region10: #{tpu_custom_call.1} parent=1 // pred_check
      _
    $region11: #{tpu_custom_call.1} parent=1 // pred_check_branch
      %19 = sbr.rel (0) target = $region13
    $region12: #{tpu_custom_call.1} parent=1 // pred_region
      _
    $region13: #{tpu_custom_call.1} parent=1 // pred_fallthru
      _
    // Predicated region
    $region14: #{tpu_custom_call.1} parent=1 // pred_check
      _
    $region15: #{tpu_custom_call.1} parent=1 // pred_check_branch
      %21 = sbr.rel (0) target = $region17
    $region16: #{tpu_custom_call.1} parent=1 // pred_region
      _
    $region17: #{tpu_custom_call.1} parent=1 // pred_fallthru
      _
    %p23 = scmp.eq.s32.totalorder 0, 0
    // Predicated region
    $region18: #{tpu_custom_call.1} parent=1 // pred_check
      %p24 = pneg %p23
    $region19: #{tpu_custom_call.1} parent=1 // pred_check_branch
      %26 = sbr.rel (%p24) target = $region21
    $region20: #{tpu_custom_call.1} parent=1 // pred_region
      %27 = vst [vmem:[#allocation4] sm:$0x1] 0.0
      %28 = vst [vmem:[#allocation6] sm:$0x1] 0.0
    $region21: #{tpu_custom_call.1} parent=1 // pred_fallthru
      _
    %v29 = vld [vmem:[%s3] sm:$0xff]
    %v30 = vld [vmem:[%s3 + $0x8] sm:$0xff]
    %v31 = vld [vmem:[%s3 + $0x10] sm:$0xff]
    %v32 = vld [vmem:[%s3 + $0x18] sm:$0xff]
    %v33 = vld [vmem:[%s3 + $0x20] sm:$0xff]
    %v34 = vld [vmem:[%s3 + $0x28] sm:$0xff]
    %v35 = vld [vmem:[%s3 + $0x30] sm:$0xff]
    %v36 = vld [vmem:[%s3 + $0x38] sm:$0xff]
    %v37 = vld [vmem:[%s3 + $0x40] sm:$0xff]
    %v38 = vld [vmem:[%s3 + $0x48] sm:$0xff]
    %v39 = vld [vmem:[%s3 + $0x50] sm:$0xff]
    %v40 = vld [vmem:[%s3 + $0x58] sm:$0xff]
    %v41 = vld [vmem:[%s3 + $0x60] sm:$0xff]
    %v42 = vld [vmem:[%s3 + $0x68] sm:$0xff]
    %v43 = vld [vmem:[%s3 + $0x70] sm:$0xff]
    %v44 = vld [vmem:[%s3 + $0x78] sm:$0xff]
    %v45 = vld [vmem:[%s3 + $0x80] sm:$0xff]
    %v46 = vld [vmem:[%s3 + $0x88] sm:$0xff]
    %v47 = vld [vmem:[%s3 + $0x90] sm:$0xff]
    %v48 = vld [vmem:[%s3 + $0x98] sm:$0xff]
    %v49 = vld [vmem:[%s3 + $0xa0] sm:$0xff]
    %v50 = vld [vmem:[%s3 + $0xa8] sm:$0xff]
    %v51 = vld [vmem:[%s3 + $0xb0] sm:$0xff]
    %v52 = vld [vmem:[%s3 + $0xb8] sm:$0xff]
    %v53 = vld [vmem:[%s3 + $0xc0] sm:$0xff]
    %v54 = vld [vmem:[%s3 + $0xc8] sm:$0xff]
    %v55 = vld [vmem:[%s3 + $0xd0] sm:$0xff]
    %v56 = vld [vmem:[%s3 + $0xd8] sm:$0xff]
    %v57 = vld [vmem:[%s3 + $0xe0] sm:$0xff]
    %v58 = vld [vmem:[%s3 + $0xe8] sm:$0xff]
    %v59 = vld [vmem:[%s3 + $0xf0] sm:$0xff]
    %v60 = vld [vmem:[%s3 + $0xf8] sm:$0xff]
    %v61 = vld [vmem:[%s3 + $0x100] sm:$0xff]
    %v62 = vld [vmem:[%s3 + $0x108] sm:$0xff]
    %v63 = vld [vmem:[%s3 + $0x110] sm:$0xff]
    %v64 = vld [vmem:[%s3 + $0x118] sm:$0xff]
    %v65 = vld [vmem:[%s0] sm:$0xff]
    %v66 = vld [vmem:[%s0 + $0x8] sm:$0xff]
    %v67 = vld [vmem:[%s0 + $0x10] sm:$0xff]
    %v68 = vld [vmem:[%s0 + $0x18] sm:$0xff]
    %v69 = vld [vmem:[%s0 + $0x20] sm:$0xff]
    %v70 = vld [vmem:[%s0 + $0x28] sm:$0xff]
    %v71 = vld [vmem:[%s0 + $0x30] sm:$0xff]
    %v72 = vld [vmem:[%s0 + $0x38] sm:$0xff]
    %v73 = vld [vmem:[%s0 + $0x40] sm:$0xff]
    %v74 = vld [vmem:[%s0 + $0x48] sm:$0xff]
    %v75 = vld [vmem:[%s0 + $0x50] sm:$0xff]
    %v76 = vld [vmem:[%s0 + $0x58] sm:$0xff]
    %v77 = vld [vmem:[%s0 + $0x60] sm:$0xff]
    %v78 = vld [vmem:[%s0 + $0x68] sm:$0xff]
    %v79 = vld [vmem:[%s0 + $0x70] sm:$0xff]
    %v80 = vld [vmem:[%s0 + $0x78] sm:$0xff]
    %v81 = vld [vmem:[%s0 + $0x80] sm:$0xff]
    %v82 = vld [vmem:[%s0 + $0x88] sm:$0xff]
    %v83 = vld [vmem:[%s0 + $0x90] sm:$0xff]
    %v84 = vld [vmem:[%s0 + $0x98] sm:$0xff]
    %v85 = vld [vmem:[%s0 + $0xa0] sm:$0xff]
    %v86 = vld [vmem:[%s0 + $0xa8] sm:$0xff]
    %v87 = vld [vmem:[%s0 + $0xb0] sm:$0xff]
    %v88 = vld [vmem:[%s0 + $0xb8] sm:$0xff]
    %v89 = vld [vmem:[%s0 + $0xc0] sm:$0xff]
    %v90 = vld [vmem:[%s0 + $0xc8] sm:$0xff]
    %v91 = vld [vmem:[%s0 + $0xd0] sm:$0xff]
    %v92 = vld [vmem:[%s0 + $0xd8] sm:$0xff]
    %v93 = vld [vmem:[%s0 + $0xe0] sm:$0xff]
    %v94 = vld [vmem:[%s0 + $0xe8] sm:$0xff]
    %v95 = vld [vmem:[%s0 + $0xf0] sm:$0xff]
    %v96 = vld [vmem:[%s0 + $0xf8] sm:$0xff]
    %v97 = vld [vmem:[%s0 + $0x100] sm:$0xff]
    %v98 = vld [vmem:[%s0 + $0x108] sm:$0xff]
    %v99 = vld [vmem:[%s0 + $0x110] sm:$0xff]
    %v100 = vld [vmem:[%s0 + $0x118] sm:$0xff]
    %v101 = vpack.c.bf16 %v66, %v65
    %v102 = vpack.c.bf16 %v68, %v67
    %v103 = vpack.c.bf16 %v70, %v69
    %v104 = vpack.c.bf16 %v72, %v71
    %v105 = vpack.c.bf16 %v74, %v73
    %v106 = vpack.c.bf16 %v76, %v75
    %v107 = vpack.c.bf16 %v78, %v77
    %v108 = vpack.c.bf16 %v80, %v79
    %v109 = vpack.c.bf16 %v82, %v81
    %v110 = vpack.c.bf16 %v84, %v83
    %v111 = vpack.c.bf16 %v86, %v85
    %v112 = vpack.c.bf16 %v88, %v87
    %v113 = vpack.c.bf16 %v90, %v89
    %v114 = vpack.c.bf16 %v92, %v91
    %v115 = vpack.c.bf16 %v94, %v93
    %v116 = vpack.c.bf16 %v96, %v95
    %v117 = vpack.c.bf16 %v98, %v97
    %v118 = vpack.c.bf16 %v100, %v99
    %v119 = vld [vmem:[%s1] sm:$0xf]
    %v120 = vld [vmem:[%s0 + $0x1] sm:$0xff]
    %v121 = vld [vmem:[%s0 + $0x9] sm:$0xff]
    %v122 = vld [vmem:[%s0 + $0x11] sm:$0xff]
    %v123 = vld [vmem:[%s0 + $0x19] sm:$0xff]
    %v124 = vld [vmem:[%s0 + $0x21] sm:$0xff]
    %v125 = vld [vmem:[%s0 + $0x29] sm:$0xff]
    %v126 = vld [vmem:[%s0 + $0x31] sm:$0xff]
    %v127 = vld [vmem:[%s0 + $0x39] sm:$0xff]
    %v128 = vld [vmem:[%s0 + $0x41] sm:$0xff]
    %v129 = vld [vmem:[%s0 + $0x49] sm:$0xff]
    %v130 = vld [vmem:[%s0 + $0x51] sm:$0xff]
    %v131 = vld [vmem:[%s0 + $0x59] sm:$0xff]
    %v132 = vld [vmem:[%s0 + $0x61] sm:$0xff]
    %v133 = vld [vmem:[%s0 + $0x69] sm:$0xff]
    %v134 = vld [vmem:[%s0 + $0x71] sm:$0xff]
    %v135 = vld [vmem:[%s0 + $0x79] sm:$0xff]
    %v136 = vld [vmem:[%s0 + $0x81] sm:$0xff]
    %v137 = vld [vmem:[%s0 + $0x89] sm:$0xff]
    %v138 = vld [vmem:[%s0 + $0x91] sm:$0xff]
    %v139 = vld [vmem:[%s0 + $0x99] sm:$0xff]
    %v140 = vld [vmem:[%s0 + $0xa1] sm:$0xff]
    %v141 = vld [vmem:[%s0 + $0xa9] sm:$0xff]
    %v142 = vld [vmem:[%s0 + $0xb1] sm:$0xff]
    %v143 = vld [vmem:[%s0 + $0xb9] sm:$0xff]
    %v144 = vld [vmem:[%s0 + $0xc1] sm:$0xff]
    %v145 = vld [vmem:[%s0 + $0xc9] sm:$0xff]
    %v146 = vld [vmem:[%s0 + $0xd1] sm:$0xff]
    %v147 = vld [vmem:[%s0 + $0xd9] sm:$0xff]
    %v148 = vld [vmem:[%s0 + $0xe1] sm:$0xff]
    %v149 = vld [vmem:[%s0 + $0xe9] sm:$0xff]
    %v150 = vld [vmem:[%s0 + $0xf1] sm:$0xff]
    %v151 = vld [vmem:[%s0 + $0xf9] sm:$0xff]
    %v152 = vld [vmem:[%s0 + $0x101] sm:$0xff]
    %v153 = vld [vmem:[%s0 + $0x109] sm:$0xff]
    %v154 = vld [vmem:[%s0 + $0x111] sm:$0xff]
    %v155 = vld [vmem:[%s0 + $0x119] sm:$0xff]
    %v156 = vpack.c.bf16 %v121, %v120
    %v157 = vpack.c.bf16 %v123, %v122
    %v158 = vpack.c.bf16 %v125, %v124
    %v159 = vpack.c.bf16 %v127, %v126
    %v160 = vpack.c.bf16 %v129, %v128
    %v161 = vpack.c.bf16 %v131, %v130
    %v162 = vpack.c.bf16 %v133, %v132
    %v163 = vpack.c.bf16 %v135, %v134
    %v164 = vpack.c.bf16 %v137, %v136
    %v165 = vpack.c.bf16 %v139, %v138
    %v166 = vpack.c.bf16 %v141, %v140
    %v167 = vpack.c.bf16 %v143, %v142
    %v168 = vpack.c.bf16 %v145, %v144
    %v169 = vpack.c.bf16 %v147, %v146
    %v170 = vpack.c.bf16 %v149, %v148
    %v171 = vpack.c.bf16 %v151, %v150
    %v172 = vpack.c.bf16 %v153, %v152
    %v173 = vpack.c.bf16 %v155, %v154
    %s174 = scalar_lea.vmem %s1, 4
    %v175 = vld [vmem:[%s174] sm:$0xf]
    %vm176 = vcmask 64512
    %v178 = vsel %vm176, %v156, 0
    %v181 = vsel %vm176, %v157, 0
    %v184 = vsel %vm176, %v158, 0
    %v187 = vsel %vm176, %v159, 0
    %v190 = vsel %vm176, %v160, 0
    %v193 = vsel %vm176, %v161, 0
    %v196 = vsel %vm176, %v162, 0
    %v199 = vsel %vm176, %v163, 0
    %v202 = vsel %vm176, %v164, 0
    %v205 = vsel %vm176, %v165, 0
    %v208 = vsel %vm176, %v166, 0
    %v211 = vsel %vm176, %v167, 0
    %v214 = vsel %vm176, %v168, 0
    %v217 = vsel %vm176, %v169, 0
    %v220 = vsel %vm176, %v170, 0
    %v223 = vsel %vm176, %v171, 0
    %v226 = vsel %vm176, %v172, 0
    %v229 = vsel %vm176, %v173, 0
    %vm231 = vcmask 1043456
    %v233 = vsel %vm231, %v175, 0
    %235 = vmatprep.subr.bf16.mxu0 0
    %236 = vmatpush1.bf16.msra.mxu0 0
    %237 = vmatprep.subr.bf16.mxu0 0
    %238 = vmatpush1.bf16.msra.mxu0 0
    %239 = vmatprep.subr.bf16.mxu0 0
    %240 = vmatpush1.bf16.msra.mxu0 0
    %241 = vmatprep.subr.bf16.mxu0 0
    %242 = vmatpush1.bf16.msra.mxu0 0
    %243 = vmatprep.subr.bf16.mxu0 0
    %244 = vmatpush1.bf16.msra.mxu0 0
    %245 = vmatprep.subr.bf16.mxu0 0
    %246 = vmatpush1.bf16.msra.mxu0 0
    %247 = vmatprep.subr.bf16.mxu0 0
    %248 = vmatpush1.bf16.msra.mxu0 0
    %249 = vmatprep.subr.bf16.mxu0 0
    %250 = vmatpush1.bf16.msra.mxu0 %v233
    %251 = vmatprep.subr.bf16.mxu0 0
    %252 = vmatpush2.bf16.msra.mxu0 0
    %253 = vmatprep.subr.bf16.mxu0 0
    %254 = vmatpush2.bf16.msra.mxu0 0
    %255 = vmatprep.subr.bf16.mxu0 0
    %256 = vmatpush2.bf16.msra.mxu0 0
    %257 = vmatprep.subr.bf16.mxu0 0
    %258 = vmatpush2.bf16.msra.mxu0 0
    %259 = vmatprep.subr.bf16.mxu0 0
    %260 = vmatpush2.bf16.msra.mxu0 0
    %261 = vmatprep.subr.bf16.mxu0 0
    %262 = vmatpush2.bf16.msra.mxu0 0
    %263 = vmatprep.subr.bf16.mxu0 0
    %264 = vmatpush2.bf16.msra.mxu0 0
    %265 = vmatprep.subr.bf16.mxu0 0
    %266 = vmatpush2.bf16.msra.mxu0 0
    %267 = vmatprep.mubr.bf16.mxu0 0
    %268 = vmatmul.mubr.bf16.gmra.mxu0 %v178
    %v269 = vpop.f32.mrf.mxu0
    %v270 = vadd.f32 0.0, %v269
    %v271 = vpop.f32.mrf.mxu0
    %v272 = vpop.f32.mrf.mxu0
    %v273 = vadd.f32 0.0, %v272
    %v274 = vpop.f32.mrf.mxu0
    %275 = vmatprep.mubr.bf16.mxu0 0
    %276 = vmatmul.mubr.bf16.gmra.mxu0 %v181
    %v277 = vpop.f32.mrf.mxu0
    %v278 = vadd.f32 0.0, %v277
    %v279 = vpop.f32.mrf.mxu0
    %v280 = vpop.f32.mrf.mxu0
    %v281 = vadd.f32 0.0, %v280
    %v282 = vpop.f32.mrf.mxu0
    %283 = vmatprep.mubr.bf16.mxu0 0
    %284 = vmatmul.mubr.bf16.gmra.mxu0 %v184
    %v285 = vpop.f32.mrf.mxu0
    %v286 = vadd.f32 0.0, %v285
    %v287 = vpop.f32.mrf.mxu0
    %v288 = vpop.f32.mrf.mxu0
    %v289 = vadd.f32 0.0, %v288
    %v290 = vpop.f32.mrf.mxu0
    %291 = vmatprep.mubr.bf16.mxu0 0
    %292 = vmatmul.mubr.bf16.gmra.mxu0 %v187
    %v293 = vpop.f32.mrf.mxu0
    %v294 = vadd.f32 0.0, %v293
    %v295 = vpop.f32.mrf.mxu0
    %v296 = vpop.f32.mrf.mxu0
    %v297 = vadd.f32 0.0, %v296
    %v298 = vpop.f32.mrf.mxu0
    %299 = vmatprep.mubr.bf16.mxu0 0
    %300 = vmatmul.mubr.bf16.gmra.mxu0 %v190
    %v301 = vpop.f32.mrf.mxu0
    %v302 = vadd.f32 0.0, %v301
    %v303 = vpop.f32.mrf.mxu0
    %v304 = vpop.f32.mrf.mxu0
    %v305 = vadd.f32 0.0, %v304
    %v306 = vpop.f32.mrf.mxu0
    %307 = vmatprep.mubr.bf16.mxu0 0
    %308 = vmatmul.mubr.bf16.gmra.mxu0 %v193
    %v309 = vpop.f32.mrf.mxu0
    %v310 = vadd.f32 0.0, %v309
    %v311 = vpop.f32.mrf.mxu0
    %v312 = vpop.f32.mrf.mxu0
    %v313 = vadd.f32 0.0, %v312
    %v314 = vpop.f32.mrf.mxu0
    %315 = vmatprep.mubr.bf16.mxu0 0
    %316 = vmatmul.mubr.bf16.gmra.mxu0 %v196
    %v317 = vpop.f32.mrf.mxu0
    %v318 = vadd.f32 0.0, %v317
    %v319 = vpop.f32.mrf.mxu0
    %v320 = vpop.f32.mrf.mxu0
    %v321 = vadd.f32 0.0, %v320
    %v322 = vpop.f32.mrf.mxu0
    %323 = vmatprep.mubr.bf16.mxu0 0
    %324 = vmatmul.mubr.bf16.gmra.mxu0 %v199
    %v325 = vpop.f32.mrf.mxu0
    %v326 = vadd.f32 0.0, %v325
    %v327 = vpop.f32.mrf.mxu0
    %v328 = vpop.f32.mrf.mxu0
    %v329 = vadd.f32 0.0, %v328
    %v330 = vpop.f32.mrf.mxu0
    %331 = vmatprep.mubr.bf16.mxu0 0
    %332 = vmatmul.mubr.bf16.gmra.mxu0 %v202
    %v333 = vpop.f32.mrf.mxu0
    %v334 = vadd.f32 0.0, %v333
    %v335 = vpop.f32.mrf.mxu0
    %v336 = vpop.f32.mrf.mxu0
    %v337 = vadd.f32 0.0, %v336
    %v338 = vpop.f32.mrf.mxu0
    %339 = vmatprep.mubr.bf16.mxu0 0
    %340 = vmatmul.mubr.bf16.gmra.mxu0 %v205
    %v341 = vpop.f32.mrf.mxu0
    %v342 = vadd.f32 0.0, %v341
    %v343 = vpop.f32.mrf.mxu0
    %v344 = vpop.f32.mrf.mxu0
    %v345 = vadd.f32 0.0, %v344
    %v346 = vpop.f32.mrf.mxu0
    %347 = vmatprep.mubr.bf16.mxu0 0
    %348 = vmatmul.mubr.bf16.gmra.mxu0 %v208
    %v349 = vpop.f32.mrf.mxu0
    %v350 = vadd.f32 0.0, %v349
    %v351 = vpop.f32.mrf.mxu0
    %v352 = vpop.f32.mrf.mxu0
    %v353 = vadd.f32 0.0, %v352
    %v354 = vpop.f32.mrf.mxu0
    %355 = vmatprep.mubr.bf16.mxu0 0
    %356 = vmatmul.mubr.bf16.gmra.mxu0 %v211
    %v357 = vpop.f32.mrf.mxu0
    %v358 = vadd.f32 0.0, %v357
    %v359 = vpop.f32.mrf.mxu0
    %v360 = vpop.f32.mrf.mxu0
    %v361 = vadd.f32 0.0, %v360
    %v362 = vpop.f32.mrf.mxu0
    %363 = vmatprep.mubr.bf16.mxu0 0
    %364 = vmatmul.mubr.bf16.gmra.mxu0 %v214
    %v365 = vpop.f32.mrf.mxu0
    %v366 = vadd.f32 0.0, %v365
    %v367 = vpop.f32.mrf.mxu0
    %v368 = vpop.f32.mrf.mxu0
    %v369 = vadd.f32 0.0, %v368
    %v370 = vpop.f32.mrf.mxu0
    %371 = vmatprep.mubr.bf16.mxu0 0
    %372 = vmatmul.mubr.bf16.gmra.mxu0 %v217
    %v373 = vpop.f32.mrf.mxu0
    %v374 = vadd.f32 0.0, %v373
    %v375 = vpop.f32.mrf.mxu0
    %v376 = vpop.f32.mrf.mxu0
    %v377 = vadd.f32 0.0, %v376
    %v378 = vpop.f32.mrf.mxu0
    %379 = vmatprep.mubr.bf16.mxu0 0
    %380 = vmatmul.mubr.bf16.gmra.mxu0 %v220
    %v381 = vpop.f32.mrf.mxu0
    %v382 = vadd.f32 0.0, %v381
    %v383 = vpop.f32.mrf.mxu0
    %v384 = vpop.f32.mrf.mxu0
    %v385 = vadd.f32 0.0, %v384
    %v386 = vpop.f32.mrf.mxu0
    %387 = vmatprep.mubr.bf16.mxu0 0
    %388 = vmatmul.mubr.bf16.gmra.mxu0 %v223
    %v389 = vpop.f32.mrf.mxu0
    %v390 = vadd.f32 0.0, %v389
    %v391 = vpop.f32.mrf.mxu0
    %v392 = vpop.f32.mrf.mxu0
    %v393 = vadd.f32 0.0, %v392
    %v394 = vpop.f32.mrf.mxu0
    %395 = vmatprep.mubr.bf16.mxu0 0
    %396 = vmatmul.mubr.bf16.gmra.mxu0 %v226
    %v397 = vpop.f32.mrf.mxu0
    %v398 = vadd.f32 0.0, %v397
    %v399 = vpop.f32.mrf.mxu0
    %v400 = vpop.f32.mrf.mxu0
    %v401 = vadd.f32 0.0, %v400
    %v402 = vpop.f32.mrf.mxu0
    %403 = vmatprep.mubr.bf16.mxu0 0
    %404 = vmatmul.mubr.bf16.gmra.mxu0 %v229
    %v405 = vpop.f32.mrf.mxu0
    %v406 = vadd.f32 0.0, %v405
    %v407 = vpop.f32.mrf.mxu0
    %v408 = vpop.f32.mrf.mxu0
    %v409 = vadd.f32 0.0, %v408
    %v410 = vpop.f32.mrf.mxu0
    %411 = vdwg.mxu0
    %v413 = vsel %vm176, %v101, 0
    %v416 = vsel %vm176, %v102, 0
    %v419 = vsel %vm176, %v103, 0
    %v422 = vsel %vm176, %v104, 0
    %v425 = vsel %vm176, %v105, 0
    %v428 = vsel %vm176, %v106, 0
    %v431 = vsel %vm176, %v107, 0
    %v434 = vsel %vm176, %v108, 0
    %v437 = vsel %vm176, %v109, 0
    %v440 = vsel %vm176, %v110, 0
    %v443 = vsel %vm176, %v111, 0
    %v446 = vsel %vm176, %v112, 0
    %v449 = vsel %vm176, %v113, 0
    %v452 = vsel %vm176, %v114, 0
    %v455 = vsel %vm176, %v115, 0
    %v458 = vsel %vm176, %v116, 0
    %v461 = vsel %vm176, %v117, 0
    %v464 = vsel %vm176, %v118, 0
    %v467 = vsel %vm231, %v119, 0
    %469 = vmatprep.subr.bf16.mxu0 0
    %470 = vmatpush1.bf16.msra.mxu0 0
    %471 = vmatprep.subr.bf16.mxu0 0
    %472 = vmatpush1.bf16.msra.mxu0 0
    %473 = vmatprep.subr.bf16.mxu0 0
    %474 = vmatpush1.bf16.msra.mxu0 0
    %475 = vmatprep.subr.bf16.mxu0 0
    %476 = vmatpush1.bf16.msra.mxu0 0
    %477 = vmatprep.subr.bf16.mxu0 0
    %478 = vmatpush1.bf16.msra.mxu0 0
    %479 = vmatprep.subr.bf16.mxu0 0
    %480 = vmatpush1.bf16.msra.mxu0 0
    %481 = vmatprep.subr.bf16.mxu0 0
    %482 = vmatpush1.bf16.msra.mxu0 0
    %483 = vmatprep.subr.bf16.mxu0 0
    %484 = vmatpush1.bf16.msra.mxu0 %v467
    %485 = vmatprep.subr.bf16.mxu0 0
    %486 = vmatpush2.bf16.msra.mxu0 0
    %487 = vmatprep.subr.bf16.mxu0 0
    %488 = vmatpush2.bf16.msra.mxu0 0
    %489 = vmatprep.subr.bf16.mxu0 0
    %490 = vmatpush2.bf16.msra.mxu0 0
    %491 = vmatprep.subr.bf16.mxu0 0
    %492 = vmatpush2.bf16.msra.mxu0 0
    %493 = vmatprep.subr.bf16.mxu0 0
    %494 = vmatpush2.bf16.msra.mxu0 0
    %495 = vmatprep.subr.bf16.mxu0 0
    %496 = vmatpush2.bf16.msra.mxu0 0
    %497 = vmatprep.subr.bf16.mxu0 0
    %498 = vmatpush2.bf16.msra.mxu0 0
    %499 = vmatprep.subr.bf16.mxu0 0
    %500 = vmatpush2.bf16.msra.mxu0 0
    %501 = vmatprep.mubr.bf16.mxu0 0
    %502 = vmatmul.mubr.bf16.gmra.mxu0 %v413
    %v503 = vpop.f32.mrf.mxu0
    %v504 = vadd.f32 %v270, %v503
    %v505 = vpop.f32.mrf.mxu0
    %v506 = vpop.f32.mrf.mxu0
    %v507 = vadd.f32 %v273, %v506
    %v508 = vpop.f32.mrf.mxu0
    %509 = vmatprep.mubr.bf16.mxu0 0
    %510 = vmatmul.mubr.bf16.gmra.mxu0 %v416
    %v511 = vpop.f32.mrf.mxu0
    %v512 = vadd.f32 %v278, %v511
    %v513 = vpop.f32.mrf.mxu0
    %v514 = vpop.f32.mrf.mxu0
    %v515 = vadd.f32 %v281, %v514
    %v516 = vpop.f32.mrf.mxu0
    %517 = vmatprep.mubr.bf16.mxu0 0
    %518 = vmatmul.mubr.bf16.gmra.mxu0 %v419
    %v519 = vpop.f32.mrf.mxu0
    %v520 = vadd.f32 %v286, %v519
    %v521 = vpop.f32.mrf.mxu0
    %v522 = vpop.f32.mrf.mxu0
    %v523 = vadd.f32 %v289, %v522
    %v524 = vpop.f32.mrf.mxu0
    %525 = vmatprep.mubr.bf16.mxu0 0
    %526 = vmatmul.mubr.bf16.gmra.mxu0 %v422
    %v527 = vpop.f32.mrf.mxu0
    %v528 = vadd.f32 %v294, %v527
    %v529 = vpop.f32.mrf.mxu0
    %v530 = vpop.f32.mrf.mxu0
    %v531 = vadd.f32 %v297, %v530
    %v532 = vpop.f32.mrf.mxu0
    %533 = vmatprep.mubr.bf16.mxu0 0
    %534 = vmatmul.mubr.bf16.gmra.mxu0 %v425
    %v535 = vpop.f32.mrf.mxu0
    %v536 = vadd.f32 %v302, %v535
    %v537 = vpop.f32.mrf.mxu0
    %v538 = vpop.f32.mrf.mxu0
    %v539 = vadd.f32 %v305, %v538
    %v540 = vpop.f32.mrf.mxu0
    %541 = vmatprep.mubr.bf16.mxu0 0
    %542 = vmatmul.mubr.bf16.gmra.mxu0 %v428
    %v543 = vpop.f32.mrf.mxu0
    %v544 = vadd.f32 %v310, %v543
    %v545 = vpop.f32.mrf.mxu0
    %v546 = vpop.f32.mrf.mxu0
    %v547 = vadd.f32 %v313, %v546
    %v548 = vpop.f32.mrf.mxu0
    %549 = vmatprep.mubr.bf16.mxu0 0
    %550 = vmatmul.mubr.bf16.gmra.mxu0 %v431
    %v551 = vpop.f32.mrf.mxu0
    %v552 = vadd.f32 %v318, %v551
    %v553 = vpop.f32.mrf.mxu0
    %v554 = vpop.f32.mrf.mxu0
    %v555 = vadd.f32 %v321, %v554
    %v556 = vpop.f32.mrf.mxu0
    %557 = vmatprep.mubr.bf16.mxu0 0
    %558 = vmatmul.mubr.bf16.gmra.mxu0 %v434
    %v559 = vpop.f32.mrf.mxu0
    %v560 = vadd.f32 %v326, %v559
    %v561 = vpop.f32.mrf.mxu0
    %v562 = vpop.f32.mrf.mxu0
    %v563 = vadd.f32 %v329, %v562
    %v564 = vpop.f32.mrf.mxu0
    %565 = vmatprep.mubr.bf16.mxu0 0
    %566 = vmatmul.mubr.bf16.gmra.mxu0 %v437
    %v567 = vpop.f32.mrf.mxu0
    %v568 = vadd.f32 %v334, %v567
    %v569 = vpop.f32.mrf.mxu0
    %v570 = vpop.f32.mrf.mxu0
    %v571 = vadd.f32 %v337, %v570
    %v572 = vpop.f32.mrf.mxu0
    %573 = vmatprep.mubr.bf16.mxu0 0
    %574 = vmatmul.mubr.bf16.gmra.mxu0 %v440
    %v575 = vpop.f32.mrf.mxu0
    %v576 = vadd.f32 %v342, %v575
    %v577 = vpop.f32.mrf.mxu0
    %v578 = vpop.f32.mrf.mxu0
    %v579 = vadd.f32 %v345, %v578
    %v580 = vpop.f32.mrf.mxu0
    %581 = vmatprep.mubr.bf16.mxu0 0
    %582 = vmatmul.mubr.bf16.gmra.mxu0 %v443
    %v583 = vpop.f32.mrf.mxu0
    %v584 = vadd.f32 %v350, %v583
    %v585 = vpop.f32.mrf.mxu0
    %v586 = vpop.f32.mrf.mxu0
    %v587 = vadd.f32 %v353, %v586
    %v588 = vpop.f32.mrf.mxu0
    %589 = vmatprep.mubr.bf16.mxu0 0
    %590 = vmatmul.mubr.bf16.gmra.mxu0 %v446
    %v591 = vpop.f32.mrf.mxu0
    %v592 = vadd.f32 %v358, %v591
    %v593 = vpop.f32.mrf.mxu0
    %v594 = vpop.f32.mrf.mxu0
    %v595 = vadd.f32 %v361, %v594
    %v596 = vpop.f32.mrf.mxu0
    %597 = vmatprep.mubr.bf16.mxu0 0
    %598 = vmatmul.mubr.bf16.gmra.mxu0 %v449
    %v599 = vpop.f32.mrf.mxu0
    %v600 = vadd.f32 %v366, %v599
    %v601 = vpop.f32.mrf.mxu0
    %v602 = vpop.f32.mrf.mxu0
    %v603 = vadd.f32 %v369, %v602
    %v604 = vpop.f32.mrf.mxu0
    %605 = vmatprep.mubr.bf16.mxu0 0
    %606 = vmatmul.mubr.bf16.gmra.mxu0 %v452
    %v607 = vpop.f32.mrf.mxu0
    %v608 = vadd.f32 %v374, %v607
    %v609 = vpop.f32.mrf.mxu0
    %v610 = vpop.f32.mrf.mxu0
    %v611 = vadd.f32 %v377, %v610
    %v612 = vpop.f32.mrf.mxu0
    %613 = vmatprep.mubr.bf16.mxu0 0
    %614 = vmatmul.mubr.bf16.gmra.mxu0 %v455
    %v615 = vpop.f32.mrf.mxu0
    %v616 = vadd.f32 %v382, %v615
    %v617 = vpop.f32.mrf.mxu0
    %v618 = vpop.f32.mrf.mxu0
    %v619 = vadd.f32 %v385, %v618
    %v620 = vpop.f32.mrf.mxu0
    %621 = vmatprep.mubr.bf16.mxu0 0
    %622 = vmatmul.mubr.bf16.gmra.mxu0 %v458
    %v623 = vpop.f32.mrf.mxu0
    %v624 = vadd.f32 %v390, %v623
    %v625 = vpop.f32.mrf.mxu0
    %v626 = vpop.f32.mrf.mxu0
    %v627 = vadd.f32 %v393, %v626
    %v628 = vpop.f32.mrf.mxu0
    %629 = vmatprep.mubr.bf16.mxu0 0
    %630 = vmatmul.mubr.bf16.gmra.mxu0 %v461
    %v631 = vpop.f32.mrf.mxu0
    %v632 = vadd.f32 %v398, %v631
    %v633 = vpop.f32.mrf.mxu0
    %v634 = vpop.f32.mrf.mxu0
    %v635 = vadd.f32 %v401, %v634
    %v636 = vpop.f32.mrf.mxu0
    %637 = vmatprep.mubr.bf16.mxu0 0
    %638 = vmatmul.mubr.bf16.gmra.mxu0 %v464
    %v639 = vpop.f32.mrf.mxu0
    %v640 = vadd.f32 %v406, %v639
    %v641 = vpop.f32.mrf.mxu0
    %v642 = vpop.f32.mrf.mxu0
    %v643 = vadd.f32 %v409, %v642
    %v644 = vpop.f32.mrf.mxu0
    %645 = vdwg.mxu0
    %v646 = vld [vmem:[%s0 + $0x2] sm:$0xff]
    %v647 = vld [vmem:[%s0 + $0xa] sm:$0xff]
    %v648 = vld [vmem:[%s0 + $0x12] sm:$0xff]
    %v649 = vld [vmem:[%s0 + $0x1a] sm:$0xff]
    %v650 = vld [vmem:[%s0 + $0x22] sm:$0xff]
    %v651 = vld [vmem:[%s0 + $0x2a] sm:$0xff]
    %v652 = vld [vmem:[%s0 + $0x32] sm:$0xff]
    %v653 = vld [vmem:[%s0 + $0x3a] sm:$0xff]
    %v654 = vld [vmem:[%s0 + $0x42] sm:$0xff]
    %v655 = vld [vmem:[%s0 + $0x4a] sm:$0xff]
    %v656 = vld [vmem:[%s0 + $0x52] sm:$0xff]
    %v657 = vld [vmem:[%s0 + $0x5a] sm:$0xff]
    %v658 = vld [vmem:[%s0 + $0x62] sm:$0xff]
    %v659 = vld [vmem:[%s0 + $0x6a] sm:$0xff]
    %v660 = vld [vmem:[%s0 + $0x72] sm:$0xff]
    %v661 = vld [vmem:[%s0 + $0x7a] sm:$0xff]
    %v662 = vld [vmem:[%s0 + $0x82] sm:$0xff]
    %v663 = vld [vmem:[%s0 + $0x8a] sm:$0xff]
    %v664 = vld [vmem:[%s0 + $0x92] sm:$0xff]
    %v665 = vld [vmem:[%s0 + $0x9a] sm:$0xff]
    %v666 = vld [vmem:[%s0 + $0xa2] sm:$0xff]
    %v667 = vld [vmem:[%s0 + $0xaa] sm:$0xff]
    %v668 = vld [vmem:[%s0 + $0xb2] sm:$0xff]
    %v669 = vld [vmem:[%s0 + $0xba] sm:$0xff]
    %v670 = vld [vmem:[%s0 + $0xc2] sm:$0xff]
    %v671 = vld [vmem:[%s0 + $0xca] sm:$0xff]
    %v672 = vld [vmem:[%s0 + $0xd2] sm:$0xff]
    %v673 = vld [vmem:[%s0 + $0xda] sm:$0xff]
    %v674 = vld [vmem:[%s0 + $0xe2] sm:$0xff]
    %v675 = vld [vmem:[%s0 + $0xea] sm:$0xff]
    %v676 = vld [vmem:[%s0 + $0xf2] sm:$0xff]
    %v677 = vld [vmem:[%s0 + $0xfa] sm:$0xff]
    %v678 = vld [vmem:[%s0 + $0x102] sm:$0xff]
    %v679 = vld [vmem:[%s0 + $0x10a] sm:$0xff]
    %v680 = vld [vmem:[%s0 + $0x112] sm:$0xff]
    %v681 = vld [vmem:[%s0 + $0x11a] sm:$0xff]
    %v682 = vpack.c.bf16 %v647, %v646
    %v683 = vpack.c.bf16 %v649, %v648
    %v684 = vpack.c.bf16 %v651, %v650
    %v685 = vpack.c.bf16 %v653, %v652
    %v686 = vpack.c.bf16 %v655, %v654
    %v687 = vpack.c.bf16 %v657, %v656
    %v688 = vpack.c.bf16 %v659, %v658
    %v689 = vpack.c.bf16 %v661, %v660
    %v690 = vpack.c.bf16 %v663, %v662
    %v691 = vpack.c.bf16 %v665, %v664
    %v692 = vpack.c.bf16 %v667, %v666
    %v693 = vpack.c.bf16 %v669, %v668
    %v694 = vpack.c.bf16 %v671, %v670
    %v695 = vpack.c.bf16 %v673, %v672
    %v696 = vpack.c.bf16 %v675, %v674
    %v697 = vpack.c.bf16 %v677, %v676
    %v698 = vpack.c.bf16 %v679, %v678
    %v699 = vpack.c.bf16 %v681, %v680
    %s700 = scalar_lea.vmem %s1, 8
    %v701 = vld [vmem:[%s700] sm:$0xf]
    %v703 = vsel %vm176, %v682, 0
    %v706 = vsel %vm176, %v683, 0
    %v709 = vsel %vm176, %v684, 0
    %v712 = vsel %vm176, %v685, 0
    %v715 = vsel %vm176, %v686, 0
    %v718 = vsel %vm176, %v687, 0
    %v721 = vsel %vm176, %v688, 0
    %v724 = vsel %vm176, %v689, 0
    %v727 = vsel %vm176, %v690, 0
    %v730 = vsel %vm176, %v691, 0
    %v733 = vsel %vm176, %v692, 0
    %v736 = vsel %vm176, %v693, 0
    %v739 = vsel %vm176, %v694, 0
    %v742 = vsel %vm176, %v695, 0
    %v745 = vsel %vm176, %v696, 0
    %v748 = vsel %vm176, %v697, 0
    %v751 = vsel %vm176, %v698, 0
    %v754 = vsel %vm176, %v699, 0
    %v757 = vsel %vm231, %v701, 0
    %759 = vmatprep.subr.bf16.mxu0 0
    %760 = vmatpush1.bf16.msra.mxu0 0
    %761 = vmatprep.subr.bf16.mxu0 0
    %762 = vmatpush1.bf16.msra.mxu0 0
    %763 = vmatprep.subr.bf16.mxu0 0
    %764 = vmatpush1.bf16.msra.mxu0 0
    %765 = vmatprep.subr.bf16.mxu0 0
    %766 = vmatpush1.bf16.msra.mxu0 0
    %767 = vmatprep.subr.bf16.mxu0 0
    %768 = vmatpush1.bf16.msra.mxu0 0
    %769 = vmatprep.subr.bf16.mxu0 0
    %770 = vmatpush1.bf16.msra.mxu0 0
    %771 = vmatprep.subr.bf16.mxu0 0
    %772 = vmatpush1.bf16.msra.mxu0 0
    %773 = vmatprep.subr.bf16.mxu0 0
    %774 = vmatpush1.bf16.msra.mxu0 %v757
    %775 = vmatprep.subr.bf16.mxu0 0
    %776 = vmatpush2.bf16.msra.mxu0 0
    %777 = vmatprep.subr.bf16.mxu0 0
    %778 = vmatpush2.bf16.msra.mxu0 0
    %779 = vmatprep.subr.bf16.mxu0 0
    %780 = vmatpush2.bf16.msra.mxu0 0
    %781 = vmatprep.subr.bf16.mxu0 0
    %782 = vmatpush2.bf16.msra.mxu0 0
    %783 = vmatprep.subr.bf16.mxu0 0
    %784 = vmatpush2.bf16.msra.mxu0 0
    %785 = vmatprep.subr.bf16.mxu0 0
    %786 = vmatpush2.bf16.msra.mxu0 0
    %787 = vmatprep.subr.bf16.mxu0 0
    %788 = vmatpush2.bf16.msra.mxu0 0
    %789 = vmatprep.subr.bf16.mxu0 0
    %790 = vmatpush2.bf16.msra.mxu0 0
    %791 = vmatprep.mubr.bf16.mxu0 0
    %792 = vmatmul.mubr.bf16.gmra.mxu0 %v703
    %v793 = vpop.f32.mrf.mxu0
    %v794 = vadd.f32 0.0, %v793
    %v795 = vpop.f32.mrf.mxu0
    %v796 = vpop.f32.mrf.mxu0
    %v797 = vadd.f32 0.0, %v796
    %v798 = vpop.f32.mrf.mxu0
    %799 = vmatprep.mubr.bf16.mxu0 0
    %800 = vmatmul.mubr.bf16.gmra.mxu0 %v706
    %v801 = vpop.f32.mrf.mxu0
    %v802 = vadd.f32 0.0, %v801
    %v803 = vpop.f32.mrf.mxu0
    %v804 = vpop.f32.mrf.mxu0
    %v805 = vadd.f32 0.0, %v804
    %v806 = vpop.f32.mrf.mxu0
    %807 = vmatprep.mubr.bf16.mxu0 0
    %808 = vmatmul.mubr.bf16.gmra.mxu0 %v709
    %v809 = vpop.f32.mrf.mxu0
    %v810 = vadd.f32 0.0, %v809
    %v811 = vpop.f32.mrf.mxu0
    %v812 = vpop.f32.mrf.mxu0
    %v813 = vadd.f32 0.0, %v812
    %v814 = vpop.f32.mrf.mxu0
    %815 = vmatprep.mubr.bf16.mxu0 0
    %816 = vmatmul.mubr.bf16.gmra.mxu0 %v712
    %v817 = vpop.f32.mrf.mxu0
    %v818 = vadd.f32 0.0, %v817
    %v819 = vpop.f32.mrf.mxu0
    %v820 = vpop.f32.mrf.mxu0
    %v821 = vadd.f32 0.0, %v820
    %v822 = vpop.f32.mrf.mxu0
    %823 = vmatprep.mubr.bf16.mxu0 0
    %824 = vmatmul.mubr.bf16.gmra.mxu0 %v715
    %v825 = vpop.f32.mrf.mxu0
    %v826 = vadd.f32 0.0, %v825
    %v827 = vpop.f32.mrf.mxu0
    %v828 = vpop.f32.mrf.mxu0
    %v829 = vadd.f32 0.0, %v828
    %v830 = vpop.f32.mrf.mxu0
    %831 = vmatprep.mubr.bf16.mxu0 0
    %832 = vmatmul.mubr.bf16.gmra.mxu0 %v718
    %v833 = vpop.f32.mrf.mxu0
    %v834 = vadd.f32 0.0, %v833
    %v835 = vpop.f32.mrf.mxu0
    %v836 = vpop.f32.mrf.mxu0
    %v837 = vadd.f32 0.0, %v836
    %v838 = vpop.f32.mrf.mxu0
    %839 = vmatprep.mubr.bf16.mxu0 0
    %840 = vmatmul.mubr.bf16.gmra.mxu0 %v721
    %v841 = vpop.f32.mrf.mxu0
    %v842 = vadd.f32 0.0, %v841
    %v843 = vpop.f32.mrf.mxu0
    %v844 = vpop.f32.mrf.mxu0
    %v845 = vadd.f32 0.0, %v844
    %v846 = vpop.f32.mrf.mxu0
    %847 = vmatprep.mubr.bf16.mxu0 0
    %848 = vmatmul.mubr.bf16.gmra.mxu0 %v724
    %v849 = vpop.f32.mrf.mxu0
    %v850 = vadd.f32 0.0, %v849
    %v851 = vpop.f32.mrf.mxu0
    %v852 = vpop.f32.mrf.mxu0
    %v853 = vadd.f32 0.0, %v852
    %v854 = vpop.f32.mrf.mxu0
    %855 = vmatprep.mubr.bf16.mxu0 0
    %856 = vmatmul.mubr.bf16.gmra.mxu0 %v727
    %v857 = vpop.f32.mrf.mxu0
    %v858 = vadd.f32 0.0, %v857
    %v859 = vpop.f32.mrf.mxu0
    %v860 = vpop.f32.mrf.mxu0
    %v861 = vadd.f32 0.0, %v860
    %v862 = vpop.f32.mrf.mxu0
    %863 = vmatprep.mubr.bf16.mxu0 0
    %864 = vmatmul.mubr.bf16.gmra.mxu0 %v730
    %v865 = vpop.f32.mrf.mxu0
    %v866 = vadd.f32 0.0, %v865
    %v867 = vpop.f32.mrf.mxu0
    %v868 = vpop.f32.mrf.mxu0
    %v869 = vadd.f32 0.0, %v868
    %v870 = vpop.f32.mrf.mxu0
    %871 = vmatprep.mubr.bf16.mxu0 0
    %872 = vmatmul.mubr.bf16.gmra.mxu0 %v733
    %v873 = vpop.f32.mrf.mxu0
    %v874 = vadd.f32 0.0, %v873
    %v875 = vpop.f32.mrf.mxu0
    %v876 = vpop.f32.mrf.mxu0
    %v877 = vadd.f32 0.0, %v876
    %v878 = vpop.f32.mrf.mxu0
    %879 = vmatprep.mubr.bf16.mxu0 0
    %880 = vmatmul.mubr.bf16.gmra.mxu0 %v736
    %v881 = vpop.f32.mrf.mxu0
    %v882 = vadd.f32 0.0, %v881
    %v883 = vpop.f32.mrf.mxu0
    %v884 = vpop.f32.mrf.mxu0
    %v885 = vadd.f32 0.0, %v884
    %v886 = vpop.f32.mrf.mxu0
    %887 = vmatprep.mubr.bf16.mxu0 0
    %888 = vmatmul.mubr.bf16.gmra.mxu0 %v739
    %v889 = vpop.f32.mrf.mxu0
    %v890 = vadd.f32 0.0, %v889
    %v891 = vpop.f32.mrf.mxu0
    %v892 = vpop.f32.mrf.mxu0
    %v893 = vadd.f32 0.0, %v892
    %v894 = vpop.f32.mrf.mxu0
    %895 = vmatprep.mubr.bf16.mxu0 0
    %896 = vmatmul.mubr.bf16.gmra.mxu0 %v742
    %v897 = vpop.f32.mrf.mxu0
    %v898 = vadd.f32 0.0, %v897
    %v899 = vpop.f32.mrf.mxu0
    %v900 = vpop.f32.mrf.mxu0
    %v901 = vadd.f32 0.0, %v900
    %v902 = vpop.f32.mrf.mxu0
    %903 = vmatprep.mubr.bf16.mxu0 0
    %904 = vmatmul.mubr.bf16.gmra.mxu0 %v745
    %v905 = vpop.f32.mrf.mxu0
    %v906 = vadd.f32 0.0, %v905
    %v907 = vpop.f32.mrf.mxu0
    %v908 = vpop.f32.mrf.mxu0
    %v909 = vadd.f32 0.0, %v908
    %v910 = vpop.f32.mrf.mxu0
    %911 = vmatprep.mubr.bf16.mxu0 0
    %912 = vmatmul.mubr.bf16.gmra.mxu0 %v748
    %v913 = vpop.f32.mrf.mxu0
    %v914 = vadd.f32 0.0, %v913
    %v915 = vpop.f32.mrf.mxu0
    %v916 = vpop.f32.mrf.mxu0
    %v917 = vadd.f32 0.0, %v916
    %v918 = vpop.f32.mrf.mxu0
    %919 = vmatprep.mubr.bf16.mxu0 0
    %920 = vmatmul.mubr.bf16.gmra.mxu0 %v751
    %v921 = vpop.f32.mrf.mxu0
    %v922 = vadd.f32 0.0, %v921
    %v923 = vpop.f32.mrf.mxu0
    %v924 = vpop.f32.mrf.mxu0
    %v925 = vadd.f32 0.0, %v924
    %v926 = vpop.f32.mrf.mxu0
    %927 = vmatprep.mubr.bf16.mxu0 0
    %928 = vmatmul.mubr.bf16.gmra.mxu0 %v754
    %v929 = vpop.f32.mrf.mxu0
    %v930 = vadd.f32 0.0, %v929
    %v931 = vpop.f32.mrf.mxu0
    %v932 = vpop.f32.mrf.mxu0
    %v933 = vadd.f32 0.0, %v932
    %v934 = vpop.f32.mrf.mxu0
    %935 = vdwg.mxu0
    %v936 = vadd.f32 %v504, %v794
    %v937 = vadd.f32 %v507, %v797
    %v938 = vadd.f32 %v512, %v802
    %v939 = vadd.f32 %v515, %v805
    %v940 = vadd.f32 %v520, %v810
    %v941 = vadd.f32 %v523, %v813
    %v942 = vadd.f32 %v528, %v818
    %v943 = vadd.f32 %v531, %v821
    %v944 = vadd.f32 %v536, %v826
    %v945 = vadd.f32 %v539, %v829
    %v946 = vadd.f32 %v544, %v834
    %v947 = vadd.f32 %v547, %v837
    %v948 = vadd.f32 %v552, %v842
    %v949 = vadd.f32 %v555, %v845
    %v950 = vadd.f32 %v560, %v850
    %v951 = vadd.f32 %v563, %v853
    %v952 = vadd.f32 %v568, %v858
    %v953 = vadd.f32 %v571, %v861
    %v954 = vadd.f32 %v576, %v866
    %v955 = vadd.f32 %v579, %v869
    %v956 = vadd.f32 %v584, %v874
    %v957 = vadd.f32 %v587, %v877
    %v958 = vadd.f32 %v592, %v882
    %v959 = vadd.f32 %v595, %v885
    %v960 = vadd.f32 %v600, %v890
    %v961 = vadd.f32 %v603, %v893
    %v962 = vadd.f32 %v608, %v898
    %v963 = vadd.f32 %v611, %v901
    %v964 = vadd.f32 %v616, %v906
    %v965 = vadd.f32 %v619, %v909
    %v966 = vadd.f32 %v624, %v914
    %v967 = vadd.f32 %v627, %v917
    %v968 = vadd.f32 %v632, %v922
    %v969 = vadd.f32 %v635, %v925
    %v970 = vadd.f32 %v640, %v930
    %v971 = vadd.f32 %v643, %v933
    %v972 = vld [vmem:[%s0 + $0x12] sm:$0xff]
    %v973 = vld [vmem:[%s0 + $0x1a] sm:$0xff]
    %v974 = vld [vmem:[%s0 + $0x22] sm:$0xff]
    %v975 = vld [vmem:[%s0 + $0x2a] sm:$0xff]
    %v976 = vld [vmem:[%s0 + $0x32] sm:$0xff]
    %v977 = vld [vmem:[%s0 + $0x3a] sm:$0xff]
    %v978 = vld [vmem:[%s0 + $0x42] sm:$0xff]
    %v979 = vld [vmem:[%s0 + $0x4a] sm:$0xff]
    %v980 = vld [vmem:[%s0 + $0x52] sm:$0xff]
    %v981 = vld [vmem:[%s0 + $0x5a] sm:$0xff]
    %v982 = vld [vmem:[%s0 + $0x62] sm:$0xff]
    %v983 = vld [vmem:[%s0 + $0x6a] sm:$0xff]
    %v984 = vld [vmem:[%s0 + $0x72] sm:$0xff]
    %v985 = vld [vmem:[%s0 + $0x7a] sm:$0xff]
    %v986 = vld [vmem:[%s0 + $0x82] sm:$0xff]
    %v987 = vld [vmem:[%s0 + $0x8a] sm:$0xff]
    %v988 = vld [vmem:[%s0 + $0x92] sm:$0xff]
    %v989 = vld [vmem:[%s0 + $0x9a] sm:$0xff]
    %v990 = vld [vmem:[%s0 + $0xa2] sm:$0xff]
    %v991 = vld [vmem:[%s0 + $0xaa] sm:$0xff]
    %v992 = vld [vmem:[%s0 + $0xb2] sm:$0xff]
    %v993 = vld [vmem:[%s0 + $0xba] sm:$0xff]
    %v994 = vld [vmem:[%s0 + $0xc2] sm:$0xff]
    %v995 = vld [vmem:[%s0 + $0xca] sm:$0xff]
    %v996 = vld [vmem:[%s0 + $0xd2] sm:$0xff]
    %v997 = vld [vmem:[%s0 + $0xda] sm:$0xff]
    %v998 = vld [vmem:[%s0 + $0xe2] sm:$0xff]
    %v999 = vld [vmem:[%s0 + $0xea] sm:$0xff]
    %v1000 = vld [vmem:[%s0 + $0xf2] sm:$0xff]
    %v1001 = vld [vmem:[%s0 + $0xfa] sm:$0xff]
    %v1002 = vld [vmem:[%s0 + $0x102] sm:$0xff]
    %v1003 = vld [vmem:[%s0 + $0x10a] sm:$0xff]
    %v1004 = vld [vmem:[%s0 + $0x112] sm:$0xff]
    %v1005 = vld [vmem:[%s0 + $0x11a] sm:$0xff]
    %v1006 = vld [vmem:[%s0 + $0x122] sm:$0xff]
    %v1007 = vld [vmem:[%s0 + $0x12a] sm:$0xff]
    %v1008 = vpack.c.bf16 %v973, %v972
    %v1009 = vpack.c.bf16 %v975, %v974
    %v1010 = vpack.c.bf16 %v977, %v976
    %v1011 = vpack.c.bf16 %v979, %v978
    %v1012 = vpack.c.bf16 %v981, %v980
    %v1013 = vpack.c.bf16 %v983, %v982
    %v1014 = vpack.c.bf16 %v985, %v984
    %v1015 = vpack.c.bf16 %v987, %v986
    %v1016 = vpack.c.bf16 %v989, %v988
    %v1017 = vpack.c.bf16 %v991, %v990
    %v1018 = vpack.c.bf16 %v993, %v992
    %v1019 = vpack.c.bf16 %v995, %v994
    %v1020 = vpack.c.bf16 %v997, %v996
    %v1021 = vpack.c.bf16 %v999, %v998
    %v1022 = vpack.c.bf16 %v1001, %v1000
    %v1023 = vpack.c.bf16 %v1003, %v1002
    %v1024 = vpack.c.bf16 %v1005, %v1004
    %v1025 = vpack.c.bf16 %v1007, %v1006
    %s1026 = scalar_lea.vmem %s1, 12
    %v1027 = vld [vmem:[%s1026] sm:$0xf]
    %v1029 = vsel %vm176, %v1008, 0
    %v1032 = vsel %vm176, %v1009, 0
    %v1035 = vsel %vm176, %v1010, 0
    %v1038 = vsel %vm176, %v1011, 0
    %v1041 = vsel %vm176, %v1012, 0
    %v1044 = vsel %vm176, %v1013, 0
    %v1047 = vsel %vm176, %v1014, 0
    %v1050 = vsel %vm176, %v1015, 0
    %v1053 = vsel %vm176, %v1016, 0
    %v1056 = vsel %vm176, %v1017, 0
    %v1059 = vsel %vm176, %v1018, 0
    %v1062 = vsel %vm176, %v1019, 0
    %v1065 = vsel %vm176, %v1020, 0
    %v1068 = vsel %vm176, %v1021, 0
    %v1071 = vsel %vm176, %v1022, 0
    %v1074 = vsel %vm176, %v1023, 0
    %v1077 = vsel %vm176, %v1024, 0
    %v1080 = vsel %vm176, %v1025, 0
    %v1083 = vsel %vm231, %v1027, 0
    %1085 = vmatprep.subr.bf16.mxu0 0
    %1086 = vmatpush1.bf16.msra.mxu0 0
    %1087 = vmatprep.subr.bf16.mxu0 0
    %1088 = vmatpush1.bf16.msra.mxu0 0
    %1089 = vmatprep.subr.bf16.mxu0 0
    %1090 = vmatpush1.bf16.msra.mxu0 0
    %1091 = vmatprep.subr.bf16.mxu0 0
    %1092 = vmatpush1.bf16.msra.mxu0 0
    %1093 = vmatprep.subr.bf16.mxu0 0
    %1094 = vmatpush1.bf16.msra.mxu0 0
    %1095 = vmatprep.subr.bf16.mxu0 0
    %1096 = vmatpush1.bf16.msra.mxu0 0
    %1097 = vmatprep.subr.bf16.mxu0 0
    %1098 = vmatpush1.bf16.msra.mxu0 0
    %1099 = vmatprep.subr.bf16.mxu0 0
    %1100 = vmatpush1.bf16.msra.mxu0 %v1083
    %1101 = vmatprep.subr.bf16.mxu0 0
    %1102 = vmatpush2.bf16.msra.mxu0 0
    %1103 = vmatprep.subr.bf16.mxu0 0
    %1104 = vmatpush2.bf16.msra.mxu0 0
    %1105 = vmatprep.subr.bf16.mxu0 0
    %1106 = vmatpush2.bf16.msra.mxu0 0
    %1107 = vmatprep.subr.bf16.mxu0 0
    %1108 = vmatpush2.bf16.msra.mxu0 0
    %1109 = vmatprep.subr.bf16.mxu0 0
    %1110 = vmatpush2.bf16.msra.mxu0 0
    %1111 = vmatprep.subr.bf16.mxu0 0
    %1112 = vmatpush2.bf16.msra.mxu0 0
    %1113 = vmatprep.subr.bf16.mxu0 0
    %1114 = vmatpush2.bf16.msra.mxu0 0
    %1115 = vmatprep.subr.bf16.mxu0 0
    %1116 = vmatpush2.bf16.msra.mxu0 0
    %1117 = vmatprep.mubr.bf16.mxu0 0
    %1118 = vmatmul.mubr.bf16.gmra.mxu0 %v1029
    %v1119 = vpop.f32.mrf.mxu0
    %v1120 = vadd.f32 0.0, %v1119
    %v1121 = vpop.f32.mrf.mxu0
    %v1122 = vpop.f32.mrf.mxu0
    %v1123 = vadd.f32 0.0, %v1122
    %v1124 = vpop.f32.mrf.mxu0
    %1125 = vmatprep.mubr.bf16.mxu0 0
    %1126 = vmatmul.mubr.bf16.gmra.mxu0 %v1032
    %v1127 = vpop.f32.mrf.mxu0
    %v1128 = vadd.f32 0.0, %v1127
    %v1129 = vpop.f32.mrf.mxu0
    %v1130 = vpop.f32.mrf.mxu0
    %v1131 = vadd.f32 0.0, %v1130
    %v1132 = vpop.f32.mrf.mxu0
    %1133 = vmatprep.mubr.bf16.mxu0 0
    %1134 = vmatmul.mubr.bf16.gmra.mxu0 %v1035
    %v1135 = vpop.f32.mrf.mxu0
    %v1136 = vadd.f32 0.0, %v1135
    %v1137 = vpop.f32.mrf.mxu0
    %v1138 = vpop.f32.mrf.mxu0
    %v1139 = vadd.f32 0.0, %v1138
    %v1140 = vpop.f32.mrf.mxu0
    %1141 = vmatprep.mubr.bf16.mxu0 0
    %1142 = vmatmul.mubr.bf16.gmra.mxu0 %v1038
    %v1143 = vpop.f32.mrf.mxu0
    %v1144 = vadd.f32 0.0, %v1143
    %v1145 = vpop.f32.mrf.mxu0
    %v1146 = vpop.f32.mrf.mxu0
    %v1147 = vadd.f32 0.0, %v1146
    %v1148 = vpop.f32.mrf.mxu0
    %1149 = vmatprep.mubr.bf16.mxu0 0
    %1150 = vmatmul.mubr.bf16.gmra.mxu0 %v1041
    %v1151 = vpop.f32.mrf.mxu0
    %v1152 = vadd.f32 0.0, %v1151
    %v1153 = vpop.f32.mrf.mxu0
    %v1154 = vpop.f32.mrf.mxu0
    %v1155 = vadd.f32 0.0, %v1154
    %v1156 = vpop.f32.mrf.mxu0
    %1157 = vmatprep.mubr.bf16.mxu0 0
    %1158 = vmatmul.mubr.bf16.gmra.mxu0 %v1044
    %v1159 = vpop.f32.mrf.mxu0
    %v1160 = vadd.f32 0.0, %v1159
    %v1161 = vpop.f32.mrf.mxu0
    %v1162 = vpop.f32.mrf.mxu0
    %v1163 = vadd.f32 0.0, %v1162
    %v1164 = vpop.f32.mrf.mxu0
    %1165 = vmatprep.mubr.bf16.mxu0 0
    %1166 = vmatmul.mubr.bf16.gmra.mxu0 %v1047
    %v1167 = vpop.f32.mrf.mxu0
    %v1168 = vadd.f32 0.0, %v1167
    %v1169 = vpop.f32.mrf.mxu0
    %v1170 = vpop.f32.mrf.mxu0
    %v1171 = vadd.f32 0.0, %v1170
    %v1172 = vpop.f32.mrf.mxu0
    %1173 = vmatprep.mubr.bf16.mxu0 0
    %1174 = vmatmul.mubr.bf16.gmra.mxu0 %v1050
    %v1175 = vpop.f32.mrf.mxu0
    %v1176 = vadd.f32 0.0, %v1175
    %v1177 = vpop.f32.mrf.mxu0
    %v1178 = vpop.f32.mrf.mxu0
    %v1179 = vadd.f32 0.0, %v1178
    %v1180 = vpop.f32.mrf.mxu0
    %1181 = vmatprep.mubr.bf16.mxu0 0
    %1182 = vmatmul.mubr.bf16.gmra.mxu0 %v1053
    %v1183 = vpop.f32.mrf.mxu0
    %v1184 = vadd.f32 0.0, %v1183
    %v1185 = vpop.f32.mrf.mxu0
    %v1186 = vpop.f32.mrf.mxu0
    %v1187 = vadd.f32 0.0, %v1186
    %v1188 = vpop.f32.mrf.mxu0
    %1189 = vmatprep.mubr.bf16.mxu0 0
    %1190 = vmatmul.mubr.bf16.gmra.mxu0 %v1056
    %v1191 = vpop.f32.mrf.mxu0
    %v1192 = vadd.f32 0.0, %v1191
    %v1193 = vpop.f32.mrf.mxu0
    %v1194 = vpop.f32.mrf.mxu0
    %v1195 = vadd.f32 0.0, %v1194
    %v1196 = vpop.f32.mrf.mxu0
    %1197 = vmatprep.mubr.bf16.mxu0 0
    %1198 = vmatmul.mubr.bf16.gmra.mxu0 %v1059
    %v1199 = vpop.f32.mrf.mxu0
    %v1200 = vadd.f32 0.0, %v1199
    %v1201 = vpop.f32.mrf.mxu0
    %v1202 = vpop.f32.mrf.mxu0
    %v1203 = vadd.f32 0.0, %v1202
    %v1204 = vpop.f32.mrf.mxu0
    %1205 = vmatprep.mubr.bf16.mxu0 0
    %1206 = vmatmul.mubr.bf16.gmra.mxu0 %v1062
    %v1207 = vpop.f32.mrf.mxu0
    %v1208 = vadd.f32 0.0, %v1207
    %v1209 = vpop.f32.mrf.mxu0
    %v1210 = vpop.f32.mrf.mxu0
    %v1211 = vadd.f32 0.0, %v1210
    %v1212 = vpop.f32.mrf.mxu0
    %1213 = vmatprep.mubr.bf16.mxu0 0
    %1214 = vmatmul.mubr.bf16.gmra.mxu0 %v1065
    %v1215 = vpop.f32.mrf.mxu0
    %v1216 = vadd.f32 0.0, %v1215
    %v1217 = vpop.f32.mrf.mxu0
    %v1218 = vpop.f32.mrf.mxu0
    %v1219 = vadd.f32 0.0, %v1218
    %v1220 = vpop.f32.mrf.mxu0
    %1221 = vmatprep.mubr.bf16.mxu0 0
    %1222 = vmatmul.mubr.bf16.gmra.mxu0 %v1068
    %v1223 = vpop.f32.mrf.mxu0
    %v1224 = vadd.f32 0.0, %v1223
    %v1225 = vpop.f32.mrf.mxu0
    %v1226 = vpop.f32.mrf.mxu0
    %v1227 = vadd.f32 0.0, %v1226
    %v1228 = vpop.f32.mrf.mxu0
    %1229 = vmatprep.mubr.bf16.mxu0 0
    %1230 = vmatmul.mubr.bf16.gmra.mxu0 %v1071
    %v1231 = vpop.f32.mrf.mxu0
    %v1232 = vadd.f32 0.0, %v1231
    %v1233 = vpop.f32.mrf.mxu0
    %v1234 = vpop.f32.mrf.mxu0
    %v1235 = vadd.f32 0.0, %v1234
    %v1236 = vpop.f32.mrf.mxu0
    %1237 = vmatprep.mubr.bf16.mxu0 0
    %1238 = vmatmul.mubr.bf16.gmra.mxu0 %v1074
    %v1239 = vpop.f32.mrf.mxu0
    %v1240 = vadd.f32 0.0, %v1239
    %v1241 = vpop.f32.mrf.mxu0
    %v1242 = vpop.f32.mrf.mxu0
    %v1243 = vadd.f32 0.0, %v1242
    %v1244 = vpop.f32.mrf.mxu0
    %1245 = vmatprep.mubr.bf16.mxu0 0
    %1246 = vmatmul.mubr.bf16.gmra.mxu0 %v1077
    %v1247 = vpop.f32.mrf.mxu0
    %v1248 = vadd.f32 0.0, %v1247
    %v1249 = vpop.f32.mrf.mxu0
    %v1250 = vpop.f32.mrf.mxu0
    %v1251 = vadd.f32 0.0, %v1250
    %v1252 = vpop.f32.mrf.mxu0
    %1253 = vmatprep.mubr.bf16.mxu0 0
    %1254 = vmatmul.mubr.bf16.gmra.mxu0 %v1080
    %v1255 = vpop.f32.mrf.mxu0
    %v1256 = vadd.f32 0.0, %v1255
    %v1257 = vpop.f32.mrf.mxu0
    %v1258 = vpop.f32.mrf.mxu0
    %v1259 = vadd.f32 0.0, %v1258
    %v1260 = vpop.f32.mrf.mxu0
    %1261 = vdwg.mxu0
    %v1262 = vadd.f32 %v936, %v1120
    %v1263 = vadd.f32 %v937, %v1123
    %v1264 = vadd.f32 %v938, %v1128
    %v1265 = vadd.f32 %v939, %v1131
    %v1266 = vadd.f32 %v940, %v1136
    %v1267 = vadd.f32 %v941, %v1139
    %v1268 = vadd.f32 %v942, %v1144
    %v1269 = vadd.f32 %v943, %v1147
    %v1270 = vadd.f32 %v944, %v1152
    %v1271 = vadd.f32 %v945, %v1155
    %v1272 = vadd.f32 %v946, %v1160
    %v1273 = vadd.f32 %v947, %v1163
    %v1274 = vadd.f32 %v948, %v1168
    %v1275 = vadd.f32 %v949, %v1171
    %v1276 = vadd.f32 %v950, %v1176
    %v1277 = vadd.f32 %v951, %v1179
    %v1278 = vadd.f32 %v952, %v1184
    %v1279 = vadd.f32 %v953, %v1187
    %v1280 = vadd.f32 %v954, %v1192
    %v1281 = vadd.f32 %v955, %v1195
    %v1282 = vadd.f32 %v956, %v1200
    %v1283 = vadd.f32 %v957, %v1203
    %v1284 = vadd.f32 %v958, %v1208
    %v1285 = vadd.f32 %v959, %v1211
    %v1286 = vadd.f32 %v960, %v1216
    %v1287 = vadd.f32 %v961, %v1219
    %v1288 = vadd.f32 %v962, %v1224
    %v1289 = vadd.f32 %v963, %v1227
    %v1290 = vadd.f32 %v964, %v1232
    %v1291 = vadd.f32 %v965, %v1235
    %v1292 = vadd.f32 %v966, %v1240
    %v1293 = vadd.f32 %v967, %v1243
    %v1294 = vadd.f32 %v968, %v1248
    %v1295 = vadd.f32 %v969, %v1251
    %v1296 = vadd.f32 %v970, %v1256
    %v1297 = vadd.f32 %v971, %v1259
    %v1298 = vld [vmem:[%s0 + $0x13] sm:$0xff]
    %v1299 = vld [vmem:[%s0 + $0x1b] sm:$0xff]
    %v1300 = vld [vmem:[%s0 + $0x23] sm:$0xff]
    %v1301 = vld [vmem:[%s0 + $0x2b] sm:$0xff]
    %v1302 = vld [vmem:[%s0 + $0x33] sm:$0xff]
    %v1303 = vld [vmem:[%s0 + $0x3b] sm:$0xff]
    %v1304 = vld [vmem:[%s0 + $0x43] sm:$0xff]
    %v1305 = vld [vmem:[%s0 + $0x4b] sm:$0xff]
    %v1306 = vld [vmem:[%s0 + $0x53] sm:$0xff]
    %v1307 = vld [vmem:[%s0 + $0x5b] sm:$0xff]
    %v1308 = vld [vmem:[%s0 + $0x63] sm:$0xff]
    %v1309 = vld [vmem:[%s0 + $0x6b] sm:$0xff]
    %v1310 = vld [vmem:[%s0 + $0x73] sm:$0xff]
    %v1311 = vld [vmem:[%s0 + $0x7b] sm:$0xff]
    %v1312 = vld [vmem:[%s0 + $0x83] sm:$0xff]
    %v1313 = vld [vmem:[%s0 + $0x8b] sm:$0xff]
    %v1314 = vld [vmem:[%s0 + $0x93] sm:$0xff]
    %v1315 = vld [vmem:[%s0 + $0x9b] sm:$0xff]
    %v1316 = vld [vmem:[%s0 + $0xa3] sm:$0xff]
    %v1317 = vld [vmem:[%s0 + $0xab] sm:$0xff]
    %v1318 = vld [vmem:[%s0 + $0xb3] sm:$0xff]
    %v1319 = vld [vmem:[%s0 + $0xbb] sm:$0xff]
    %v1320 = vld [vmem:[%s0 + $0xc3] sm:$0xff]
    %v1321 = vld [vmem:[%s0 + $0xcb] sm:$0xff]
    %v1322 = vld [vmem:[%s0 + $0xd3] sm:$0xff]
    %v1323 = vld [vmem:[%s0 + $0xdb] sm:$0xff]
    %v1324 = vld [vmem:[%s0 + $0xe3] sm:$0xff]
    %v1325 = vld [vmem:[%s0 + $0xeb] sm:$0xff]
    %v1326 = vld [vmem:[%s0 + $0xf3] sm:$0xff]
    %v1327 = vld [vmem:[%s0 + $0xfb] sm:$0xff]
    %v1328 = vld [vmem:[%s0 + $0x103] sm:$0xff]
    %v1329 = vld [vmem:[%s0 + $0x10b] sm:$0xff]
    %v1330 = vld [vmem:[%s0 + $0x113] sm:$0xff]
    %v1331 = vld [vmem:[%s0 + $0x11b] sm:$0xff]
    %v1332 = vld [vmem:[%s0 + $0x123] sm:$0xff]
    %v1333 = vld [vmem:[%s0 + $0x12b] sm:$0xff]
    %v1334 = vpack.c.bf16 %v1299, %v1298
    %v1335 = vpack.c.bf16 %v1301, %v1300
    %v1336 = vpack.c.bf16 %v1303, %v1302
    %v1337 = vpack.c.bf16 %v1305, %v1304
    %v1338 = vpack.c.bf16 %v1307, %v1306
    %v1339 = vpack.c.bf16 %v1309, %v1308
    %v1340 = vpack.c.bf16 %v1311, %v1310
    %v1341 = vpack.c.bf16 %v1313, %v1312
    %v1342 = vpack.c.bf16 %v1315, %v1314
    %v1343 = vpack.c.bf16 %v1317, %v1316
    %v1344 = vpack.c.bf16 %v1319, %v1318
    %v1345 = vpack.c.bf16 %v1321, %v1320
    %v1346 = vpack.c.bf16 %v1323, %v1322
    %v1347 = vpack.c.bf16 %v1325, %v1324
    %v1348 = vpack.c.bf16 %v1327, %v1326
    %v1349 = vpack.c.bf16 %v1329, %v1328
    %v1350 = vpack.c.bf16 %v1331, %v1330
    %v1351 = vpack.c.bf16 %v1333, %v1332
    %s1352 = scalar_lea.vmem %s1, 16
    %v1353 = vld [vmem:[%s1352] sm:$0xf]
    %v1355 = vsel %vm176, %v1334, 0
    %v1358 = vsel %vm176, %v1335, 0
    %v1361 = vsel %vm176, %v1336, 0
    %v1364 = vsel %vm176, %v1337, 0
    %v1367 = vsel %vm176, %v1338, 0
    %v1370 = vsel %vm176, %v1339, 0
    %v1373 = vsel %vm176, %v1340, 0
    %v1376 = vsel %vm176, %v1341, 0
    %v1379 = vsel %vm176, %v1342, 0
    %v1382 = vsel %vm176, %v1343, 0
    %v1385 = vsel %vm176, %v1344, 0
    %v1388 = vsel %vm176, %v1345, 0
    %v1391 = vsel %vm176, %v1346, 0
    %v1394 = vsel %vm176, %v1347, 0
    %v1397 = vsel %vm176, %v1348, 0
    %v1400 = vsel %vm176, %v1349, 0
    %v1403 = vsel %vm176, %v1350, 0
    %v1406 = vsel %vm176, %v1351, 0
    %v1409 = vsel %vm231, %v1353, 0
    %1411 = vmatprep.subr.bf16.mxu0 0
    %1412 = vmatpush1.bf16.msra.mxu0 0
    %1413 = vmatprep.subr.bf16.mxu0 0
    %1414 = vmatpush1.bf16.msra.mxu0 0
    %1415 = vmatprep.subr.bf16.mxu0 0
    %1416 = vmatpush1.bf16.msra.mxu0 0
    %1417 = vmatprep.subr.bf16.mxu0 0
    %1418 = vmatpush1.bf16.msra.mxu0 0
    %1419 = vmatprep.subr.bf16.mxu0 0
    %1420 = vmatpush1.bf16.msra.mxu0 0
    %1421 = vmatprep.subr.bf16.mxu0 0
    %1422 = vmatpush1.bf16.msra.mxu0 0
    %1423 = vmatprep.subr.bf16.mxu0 0
    %1424 = vmatpush1.bf16.msra.mxu0 0
    %1425 = vmatprep.subr.bf16.mxu0 0
    %1426 = vmatpush1.bf16.msra.mxu0 %v1409
    %1427 = vmatprep.subr.bf16.mxu0 0
    %1428 = vmatpush2.bf16.msra.mxu0 0
    %1429 = vmatprep.subr.bf16.mxu0 0
    %1430 = vmatpush2.bf16.msra.mxu0 0
    %1431 = vmatprep.subr.bf16.mxu0 0
    %1432 = vmatpush2.bf16.msra.mxu0 0
    %1433 = vmatprep.subr.bf16.mxu0 0
    %1434 = vmatpush2.bf16.msra.mxu0 0
    %1435 = vmatprep.subr.bf16.mxu0 0
    %1436 = vmatpush2.bf16.msra.mxu0 0
    %1437 = vmatprep.subr.bf16.mxu0 0
    %1438 = vmatpush2.bf16.msra.mxu0 0
    %1439 = vmatprep.subr.bf16.mxu0 0
    %1440 = vmatpush2.bf16.msra.mxu0 0
    %1441 = vmatprep.subr.bf16.mxu0 0
    %1442 = vmatpush2.bf16.msra.mxu0 0
    %1443 = vmatprep.mubr.bf16.mxu0 0
    %1444 = vmatmul.mubr.bf16.gmra.mxu0 %v1355
    %v1445 = vpop.f32.mrf.mxu0
    %v1446 = vadd.f32 0.0, %v1445
    %v1447 = vpop.f32.mrf.mxu0
    %v1448 = vpop.f32.mrf.mxu0
    %v1449 = vadd.f32 0.0, %v1448
    %v1450 = vpop.f32.mrf.mxu0
    %1451 = vmatprep.mubr.bf16.mxu0 0
    %1452 = vmatmul.mubr.bf16.gmra.mxu0 %v1358
    %v1453 = vpop.f32.mrf.mxu0
    %v1454 = vadd.f32 0.0, %v1453
    %v1455 = vpop.f32.mrf.mxu0
    %v1456 = vpop.f32.mrf.mxu0
    %v1457 = vadd.f32 0.0, %v1456
    %v1458 = vpop.f32.mrf.mxu0
    %1459 = vmatprep.mubr.bf16.mxu0 0
    %1460 = vmatmul.mubr.bf16.gmra.mxu0 %v1361
    %v1461 = vpop.f32.mrf.mxu0
    %v1462 = vadd.f32 0.0, %v1461
    %v1463 = vpop.f32.mrf.mxu0
    %v1464 = vpop.f32.mrf.mxu0
    %v1465 = vadd.f32 0.0, %v1464
    %v1466 = vpop.f32.mrf.mxu0
    %1467 = vmatprep.mubr.bf16.mxu0 0
    %1468 = vmatmul.mubr.bf16.gmra.mxu0 %v1364
    %v1469 = vpop.f32.mrf.mxu0
    %v1470 = vadd.f32 0.0, %v1469
    %v1471 = vpop.f32.mrf.mxu0
    %v1472 = vpop.f32.mrf.mxu0
    %v1473 = vadd.f32 0.0, %v1472
    %v1474 = vpop.f32.mrf.mxu0
    %1475 = vmatprep.mubr.bf16.mxu0 0
    %1476 = vmatmul.mubr.bf16.gmra.mxu0 %v1367
    %v1477 = vpop.f32.mrf.mxu0
    %v1478 = vadd.f32 0.0, %v1477
    %v1479 = vpop.f32.mrf.mxu0
    %v1480 = vpop.f32.mrf.mxu0
    %v1481 = vadd.f32 0.0, %v1480
    %v1482 = vpop.f32.mrf.mxu0
    %1483 = vmatprep.mubr.bf16.mxu0 0
    %1484 = vmatmul.mubr.bf16.gmra.mxu0 %v1370
    %v1485 = vpop.f32.mrf.mxu0
    %v1486 = vadd.f32 0.0, %v1485
    %v1487 = vpop.f32.mrf.mxu0
    %v1488 = vpop.f32.mrf.mxu0
    %v1489 = vadd.f32 0.0, %v1488
    %v1490 = vpop.f32.mrf.mxu0
    %1491 = vmatprep.mubr.bf16.mxu0 0
    %1492 = vmatmul.mubr.bf16.gmra.mxu0 %v1373
    %v1493 = vpop.f32.mrf.mxu0
    %v1494 = vadd.f32 0.0, %v1493
    %v1495 = vpop.f32.mrf.mxu0
    %v1496 = vpop.f32.mrf.mxu0
    %v1497 = vadd.f32 0.0, %v1496
    %v1498 = vpop.f32.mrf.mxu0
    %1499 = vmatprep.mubr.bf16.mxu0 0
    %1500 = vmatmul.mubr.bf16.gmra.mxu0 %v1376
    %v1501 = vpop.f32.mrf.mxu0
    %v1502 = vadd.f32 0.0, %v1501
    %v1503 = vpop.f32.mrf.mxu0
    %v1504 = vpop.f32.mrf.mxu0
    %v1505 = vadd.f32 0.0, %v1504
    %v1506 = vpop.f32.mrf.mxu0
    %1507 = vmatprep.mubr.bf16.mxu0 0
    %1508 = vmatmul.mubr.bf16.gmra.mxu0 %v1379
    %v1509 = vpop.f32.mrf.mxu0
    %v1510 = vadd.f32 0.0, %v1509
    %v1511 = vpop.f32.mrf.mxu0
    %v1512 = vpop.f32.mrf.mxu0
    %v1513 = vadd.f32 0.0, %v1512
    %v1514 = vpop.f32.mrf.mxu0
    %1515 = vmatprep.mubr.bf16.mxu0 0
    %1516 = vmatmul.mubr.bf16.gmra.mxu0 %v1382
    %v1517 = vpop.f32.mrf.mxu0
    %v1518 = vadd.f32 0.0, %v1517
    %v1519 = vpop.f32.mrf.mxu0
    %v1520 = vpop.f32.mrf.mxu0
    %v1521 = vadd.f32 0.0, %v1520
    %v1522 = vpop.f32.mrf.mxu0
    %1523 = vmatprep.mubr.bf16.mxu0 0
    %1524 = vmatmul.mubr.bf16.gmra.mxu0 %v1385
    %v1525 = vpop.f32.mrf.mxu0
    %v1526 = vadd.f32 0.0, %v1525
    %v1527 = vpop.f32.mrf.mxu0
    %v1528 = vpop.f32.mrf.mxu0
    %v1529 = vadd.f32 0.0, %v1528
    %v1530 = vpop.f32.mrf.mxu0
    %1531 = vmatprep.mubr.bf16.mxu0 0
    %1532 = vmatmul.mubr.bf16.gmra.mxu0 %v1388
    %v1533 = vpop.f32.mrf.mxu0
    %v1534 = vadd.f32 0.0, %v1533
    %v1535 = vpop.f32.mrf.mxu0
    %v1536 = vpop.f32.mrf.mxu0
    %v1537 = vadd.f32 0.0, %v1536
    %v1538 = vpop.f32.mrf.mxu0
    %1539 = vmatprep.mubr.bf16.mxu0 0
    %1540 = vmatmul.mubr.bf16.gmra.mxu0 %v1391
    %v1541 = vpop.f32.mrf.mxu0
    %v1542 = vadd.f32 0.0, %v1541
    %v1543 = vpop.f32.mrf.mxu0
    %v1544 = vpop.f32.mrf.mxu0
    %v1545 = vadd.f32 0.0, %v1544
    %v1546 = vpop.f32.mrf.mxu0
    %1547 = vmatprep.mubr.bf16.mxu0 0
    %1548 = vmatmul.mubr.bf16.gmra.mxu0 %v1394
    %v1549 = vpop.f32.mrf.mxu0
    %v1550 = vadd.f32 0.0, %v1549
    %v1551 = vpop.f32.mrf.mxu0
    %v1552 = vpop.f32.mrf.mxu0
    %v1553 = vadd.f32 0.0, %v1552
    %v1554 = vpop.f32.mrf.mxu0
    %1555 = vmatprep.mubr.bf16.mxu0 0
    %1556 = vmatmul.mubr.bf16.gmra.mxu0 %v1397
    %v1557 = vpop.f32.mrf.mxu0
    %v1558 = vadd.f32 0.0, %v1557
    %v1559 = vpop.f32.mrf.mxu0
    %v1560 = vpop.f32.mrf.mxu0
    %v1561 = vadd.f32 0.0, %v1560
    %v1562 = vpop.f32.mrf.mxu0
    %1563 = vmatprep.mubr.bf16.mxu0 0
    %1564 = vmatmul.mubr.bf16.gmra.mxu0 %v1400
    %v1565 = vpop.f32.mrf.mxu0
    %v1566 = vadd.f32 0.0, %v1565
    %v1567 = vpop.f32.mrf.mxu0
    %v1568 = vpop.f32.mrf.mxu0
    %v1569 = vadd.f32 0.0, %v1568
    %v1570 = vpop.f32.mrf.mxu0
    %1571 = vmatprep.mubr.bf16.mxu0 0
    %1572 = vmatmul.mubr.bf16.gmra.mxu0 %v1403
    %v1573 = vpop.f32.mrf.mxu0
    %v1574 = vadd.f32 0.0, %v1573
    %v1575 = vpop.f32.mrf.mxu0
    %v1576 = vpop.f32.mrf.mxu0
    %v1577 = vadd.f32 0.0, %v1576
    %v1578 = vpop.f32.mrf.mxu0
    %1579 = vmatprep.mubr.bf16.mxu0 0
    %1580 = vmatmul.mubr.bf16.gmra.mxu0 %v1406
    %v1581 = vpop.f32.mrf.mxu0
    %v1582 = vadd.f32 0.0, %v1581
    %v1583 = vpop.f32.mrf.mxu0
    %v1584 = vpop.f32.mrf.mxu0
    %v1585 = vadd.f32 0.0, %v1584
    %v1586 = vpop.f32.mrf.mxu0
    %1587 = vdwg.mxu0
    %v1588 = vadd.f32 %v1262, %v1446
    %v1589 = vadd.f32 %v1263, %v1449
    %v1590 = vadd.f32 %v1264, %v1454
    %v1591 = vadd.f32 %v1265, %v1457
    %v1592 = vadd.f32 %v1266, %v1462
    %v1593 = vadd.f32 %v1267, %v1465
    %v1594 = vadd.f32 %v1268, %v1470
    %v1595 = vadd.f32 %v1269, %v1473
    %v1596 = vadd.f32 %v1270, %v1478
    %v1597 = vadd.f32 %v1271, %v1481
    %v1598 = vadd.f32 %v1272, %v1486
    %v1599 = vadd.f32 %v1273, %v1489
    %v1600 = vadd.f32 %v1274, %v1494
    %v1601 = vadd.f32 %v1275, %v1497
    %v1602 = vadd.f32 %v1276, %v1502
    %v1603 = vadd.f32 %v1277, %v1505
    %v1604 = vadd.f32 %v1278, %v1510
    %v1605 = vadd.f32 %v1279, %v1513
    %v1606 = vadd.f32 %v1280, %v1518
    %v1607 = vadd.f32 %v1281, %v1521
    %v1608 = vadd.f32 %v1282, %v1526
    %v1609 = vadd.f32 %v1283, %v1529
    %v1610 = vadd.f32 %v1284, %v1534
    %v1611 = vadd.f32 %v1285, %v1537
    %v1612 = vadd.f32 %v1286, %v1542
    %v1613 = vadd.f32 %v1287, %v1545
    %v1614 = vadd.f32 %v1288, %v1550
    %v1615 = vadd.f32 %v1289, %v1553
    %v1616 = vadd.f32 %v1290, %v1558
    %v1617 = vadd.f32 %v1291, %v1561
    %v1618 = vadd.f32 %v1292, %v1566
    %v1619 = vadd.f32 %v1293, %v1569
    %v1620 = vadd.f32 %v1294, %v1574
    %v1621 = vadd.f32 %v1295, %v1577
    %v1622 = vadd.f32 %v1296, %v1582
    %v1623 = vadd.f32 %v1297, %v1585
    %v1624 = vld [vmem:[%s0 + $0x14] sm:$0xff]
    %v1625 = vld [vmem:[%s0 + $0x1c] sm:$0xff]
    %v1626 = vld [vmem:[%s0 + $0x24] sm:$0xff]
    %v1627 = vld [vmem:[%s0 + $0x2c] sm:$0xff]
    %v1628 = vld [vmem:[%s0 + $0x34] sm:$0xff]
    %v1629 = vld [vmem:[%s0 + $0x3c] sm:$0xff]
    %v1630 = vld [vmem:[%s0 + $0x44] sm:$0xff]
    %v1631 = vld [vmem:[%s0 + $0x4c] sm:$0xff]
    %v1632 = vld [vmem:[%s0 + $0x54] sm:$0xff]
    %v1633 = vld [vmem:[%s0 + $0x5c] sm:$0xff]
    %v1634 = vld [vmem:[%s0 + $0x64] sm:$0xff]
    %v1635 = vld [vmem:[%s0 + $0x6c] sm:$0xff]
    %v1636 = vld [vmem:[%s0 + $0x74] sm:$0xff]
    %v1637 = vld [vmem:[%s0 + $0x7c] sm:$0xff]
    %v1638 = vld [vmem:[%s0 + $0x84] sm:$0xff]
    %v1639 = vld [vmem:[%s0 + $0x8c] sm:$0xff]
    %v1640 = vld [vmem:[%s0 + $0x94] sm:$0xff]
    %v1641 = vld [vmem:[%s0 + $0x9c] sm:$0xff]
    %v1642 = vld [vmem:[%s0 + $0xa4] sm:$0xff]
    %v1643 = vld [vmem:[%s0 + $0xac] sm:$0xff]
    %v1644 = vld [vmem:[%s0 + $0xb4] sm:$0xff]
    %v1645 = vld [vmem:[%s0 + $0xbc] sm:$0xff]
    %v1646 = vld [vmem:[%s0 + $0xc4] sm:$0xff]
    %v1647 = vld [vmem:[%s0 + $0xcc] sm:$0xff]
    %v1648 = vld [vmem:[%s0 + $0xd4] sm:$0xff]
    %v1649 = vld [vmem:[%s0 + $0xdc] sm:$0xff]
    %v1650 = vld [vmem:[%s0 + $0xe4] sm:$0xff]
    %v1651 = vld [vmem:[%s0 + $0xec] sm:$0xff]
    %v1652 = vld [vmem:[%s0 + $0xf4] sm:$0xff]
    %v1653 = vld [vmem:[%s0 + $0xfc] sm:$0xff]
    %v1654 = vld [vmem:[%s0 + $0x104] sm:$0xff]
    %v1655 = vld [vmem:[%s0 + $0x10c] sm:$0xff]
    %v1656 = vld [vmem:[%s0 + $0x114] sm:$0xff]
    %v1657 = vld [vmem:[%s0 + $0x11c] sm:$0xff]
    %v1658 = vld [vmem:[%s0 + $0x124] sm:$0xff]
    %v1659 = vld [vmem:[%s0 + $0x12c] sm:$0xff]
    %v1660 = vpack.c.bf16 %v1625, %v1624
    %v1661 = vpack.c.bf16 %v1627, %v1626
    %v1662 = vpack.c.bf16 %v1629, %v1628
    %v1663 = vpack.c.bf16 %v1631, %v1630
    %v1664 = vpack.c.bf16 %v1633, %v1632
    %v1665 = vpack.c.bf16 %v1635, %v1634
    %v1666 = vpack.c.bf16 %v1637, %v1636
    %v1667 = vpack.c.bf16 %v1639, %v1638
    %v1668 = vpack.c.bf16 %v1641, %v1640
    %v1669 = vpack.c.bf16 %v1643, %v1642
    %v1670 = vpack.c.bf16 %v1645, %v1644
    %v1671 = vpack.c.bf16 %v1647, %v1646
    %v1672 = vpack.c.bf16 %v1649, %v1648
    %v1673 = vpack.c.bf16 %v1651, %v1650
    %v1674 = vpack.c.bf16 %v1653, %v1652
    %v1675 = vpack.c.bf16 %v1655, %v1654
    %v1676 = vpack.c.bf16 %v1657, %v1656
    %v1677 = vpack.c.bf16 %v1659, %v1658
    %s1678 = scalar_lea.vmem %s1, 20
    %v1679 = vld [vmem:[%s1678] sm:$0xf]
    %v1681 = vsel %vm176, %v1660, 0
    %v1684 = vsel %vm176, %v1661, 0
    %v1687 = vsel %vm176, %v1662, 0
    %v1690 = vsel %vm176, %v1663, 0
    %v1693 = vsel %vm176, %v1664, 0
    %v1696 = vsel %vm176, %v1665, 0
    %v1699 = vsel %vm176, %v1666, 0
    %v1702 = vsel %vm176, %v1667, 0
    %v1705 = vsel %vm176, %v1668, 0
    %v1708 = vsel %vm176, %v1669, 0
    %v1711 = vsel %vm176, %v1670, 0
    %v1714 = vsel %vm176, %v1671, 0
    %v1717 = vsel %vm176, %v1672, 0
    %v1720 = vsel %vm176, %v1673, 0
    %v1723 = vsel %vm176, %v1674, 0
    %v1726 = vsel %vm176, %v1675, 0
    %v1729 = vsel %vm176, %v1676, 0
    %v1732 = vsel %vm176, %v1677, 0
    %v1735 = vsel %vm231, %v1679, 0
    %1737 = vmatprep.subr.bf16.mxu0 0
    %1738 = vmatpush1.bf16.msra.mxu0 0
    %1739 = vmatprep.subr.bf16.mxu0 0
    %1740 = vmatpush1.bf16.msra.mxu0 0
    %1741 = vmatprep.subr.bf16.mxu0 0
    %1742 = vmatpush1.bf16.msra.mxu0 0
    %1743 = vmatprep.subr.bf16.mxu0 0
    %1744 = vmatpush1.bf16.msra.mxu0 0
    %1745 = vmatprep.subr.bf16.mxu0 0
    %1746 = vmatpush1.bf16.msra.mxu0 0
    %1747 = vmatprep.subr.bf16.mxu0 0
    %1748 = vmatpush1.bf16.msra.mxu0 0
    %1749 = vmatprep.subr.bf16.mxu0 0
    %1750 = vmatpush1.bf16.msra.mxu0 0
    %1751 = vmatprep.subr.bf16.mxu0 0
    %1752 = vmatpush1.bf16.msra.mxu0 %v1735
    %1753 = vmatprep.subr.bf16.mxu0 0
    %1754 = vmatpush2.bf16.msra.mxu0 0
    %1755 = vmatprep.subr.bf16.mxu0 0
    %1756 = vmatpush2.bf16.msra.mxu0 0
    %1757 = vmatprep.subr.bf16.mxu0 0
    %1758 = vmatpush2.bf16.msra.mxu0 0
    %1759 = vmatprep.subr.bf16.mxu0 0
    %1760 = vmatpush2.bf16.msra.mxu0 0
    %1761 = vmatprep.subr.bf16.mxu0 0
    %1762 = vmatpush2.bf16.msra.mxu0 0
    %1763 = vmatprep.subr.bf16.mxu0 0
    %1764 = vmatpush2.bf16.msra.mxu0 0
    %1765 = vmatprep.subr.bf16.mxu0 0
    %1766 = vmatpush2.bf16.msra.mxu0 0
    %1767 = vmatprep.subr.bf16.mxu0 0
    %1768 = vmatpush2.bf16.msra.mxu0 0
    %1769 = vmatprep.mubr.bf16.mxu0 0
    %1770 = vmatmul.mubr.bf16.gmra.mxu0 %v1681
    %v1771 = vpop.f32.mrf.mxu0
    %v1772 = vadd.f32 0.0, %v1771
    %v1773 = vpop.f32.mrf.mxu0
    %v1774 = vpop.f32.mrf.mxu0
    %v1775 = vadd.f32 0.0, %v1774
    %v1776 = vpop.f32.mrf.mxu0
    %1777 = vmatprep.mubr.bf16.mxu0 0
    %1778 = vmatmul.mubr.bf16.gmra.mxu0 %v1684
    %v1779 = vpop.f32.mrf.mxu0
    %v1780 = vadd.f32 0.0, %v1779
    %v1781 = vpop.f32.mrf.mxu0
    %v1782 = vpop.f32.mrf.mxu0
    %v1783 = vadd.f32 0.0, %v1782
    %v1784 = vpop.f32.mrf.mxu0
    %1785 = vmatprep.mubr.bf16.mxu0 0
    %1786 = vmatmul.mubr.bf16.gmra.mxu0 %v1687
    %v1787 = vpop.f32.mrf.mxu0
    %v1788 = vadd.f32 0.0, %v1787
    %v1789 = vpop.f32.mrf.mxu0
    %v1790 = vpop.f32.mrf.mxu0
    %v1791 = vadd.f32 0.0, %v1790
    %v1792 = vpop.f32.mrf.mxu0
    %1793 = vmatprep.mubr.bf16.mxu0 0
    %1794 = vmatmul.mubr.bf16.gmra.mxu0 %v1690
    %v1795 = vpop.f32.mrf.mxu0
    %v1796 = vadd.f32 0.0, %v1795
    %v1797 = vpop.f32.mrf.mxu0
    %v1798 = vpop.f32.mrf.mxu0
    %v1799 = vadd.f32 0.0, %v1798
    %v1800 = vpop.f32.mrf.mxu0
    %1801 = vmatprep.mubr.bf16.mxu0 0
    %1802 = vmatmul.mubr.bf16.gmra.mxu0 %v1693
    %v1803 = vpop.f32.mrf.mxu0
    %v1804 = vadd.f32 0.0, %v1803
    %v1805 = vpop.f32.mrf.mxu0
    %v1806 = vpop.f32.mrf.mxu0
    %v1807 = vadd.f32 0.0, %v1806
    %v1808 = vpop.f32.mrf.mxu0
    %1809 = vmatprep.mubr.bf16.mxu0 0
    %1810 = vmatmul.mubr.bf16.gmra.mxu0 %v1696
    %v1811 = vpop.f32.mrf.mxu0
    %v1812 = vadd.f32 0.0, %v1811
    %v1813 = vpop.f32.mrf.mxu0
    %v1814 = vpop.f32.mrf.mxu0
    %v1815 = vadd.f32 0.0, %v1814
    %v1816 = vpop.f32.mrf.mxu0
    %1817 = vmatprep.mubr.bf16.mxu0 0
    %1818 = vmatmul.mubr.bf16.gmra.mxu0 %v1699
    %v1819 = vpop.f32.mrf.mxu0
    %v1820 = vadd.f32 0.0, %v1819
    %v1821 = vpop.f32.mrf.mxu0
    %v1822 = vpop.f32.mrf.mxu0
    %v1823 = vadd.f32 0.0, %v1822
    %v1824 = vpop.f32.mrf.mxu0
    %1825 = vmatprep.mubr.bf16.mxu0 0
    %1826 = vmatmul.mubr.bf16.gmra.mxu0 %v1702
    %v1827 = vpop.f32.mrf.mxu0
    %v1828 = vadd.f32 0.0, %v1827
    %v1829 = vpop.f32.mrf.mxu0
    %v1830 = vpop.f32.mrf.mxu0
    %v1831 = vadd.f32 0.0, %v1830
    %v1832 = vpop.f32.mrf.mxu0
    %1833 = vmatprep.mubr.bf16.mxu0 0
    %1834 = vmatmul.mubr.bf16.gmra.mxu0 %v1705
    %v1835 = vpop.f32.mrf.mxu0
    %v1836 = vadd.f32 0.0, %v1835
    %v1837 = vpop.f32.mrf.mxu0
    %v1838 = vpop.f32.mrf.mxu0
    %v1839 = vadd.f32 0.0, %v1838
    %v1840 = vpop.f32.mrf.mxu0
    %1841 = vmatprep.mubr.bf16.mxu0 0
    %1842 = vmatmul.mubr.bf16.gmra.mxu0 %v1708
    %v1843 = vpop.f32.mrf.mxu0
    %v1844 = vadd.f32 0.0, %v1843
    %v1845 = vpop.f32.mrf.mxu0
    %v1846 = vpop.f32.mrf.mxu0
    %v1847 = vadd.f32 0.0, %v1846
    %v1848 = vpop.f32.mrf.mxu0
    %1849 = vmatprep.mubr.bf16.mxu0 0
    %1850 = vmatmul.mubr.bf16.gmra.mxu0 %v1711
    %v1851 = vpop.f32.mrf.mxu0
    %v1852 = vadd.f32 0.0, %v1851
    %v1853 = vpop.f32.mrf.mxu0
    %v1854 = vpop.f32.mrf.mxu0
    %v1855 = vadd.f32 0.0, %v1854
    %v1856 = vpop.f32.mrf.mxu0
    %1857 = vmatprep.mubr.bf16.mxu0 0
    %1858 = vmatmul.mubr.bf16.gmra.mxu0 %v1714
    %v1859 = vpop.f32.mrf.mxu0
    %v1860 = vadd.f32 0.0, %v1859
    %v1861 = vpop.f32.mrf.mxu0
    %v1862 = vpop.f32.mrf.mxu0
    %v1863 = vadd.f32 0.0, %v1862
    %v1864 = vpop.f32.mrf.mxu0
    %1865 = vmatprep.mubr.bf16.mxu0 0
    %1866 = vmatmul.mubr.bf16.gmra.mxu0 %v1717
    %v1867 = vpop.f32.mrf.mxu0
    %v1868 = vadd.f32 0.0, %v1867
    %v1869 = vpop.f32.mrf.mxu0
    %v1870 = vpop.f32.mrf.mxu0
    %v1871 = vadd.f32 0.0, %v1870
    %v1872 = vpop.f32.mrf.mxu0
    %1873 = vmatprep.mubr.bf16.mxu0 0
    %1874 = vmatmul.mubr.bf16.gmra.mxu0 %v1720
    %v1875 = vpop.f32.mrf.mxu0
    %v1876 = vadd.f32 0.0, %v1875
    %v1877 = vpop.f32.mrf.mxu0
    %v1878 = vpop.f32.mrf.mxu0
    %v1879 = vadd.f32 0.0, %v1878
    %v1880 = vpop.f32.mrf.mxu0
    %1881 = vmatprep.mubr.bf16.mxu0 0
    %1882 = vmatmul.mubr.bf16.gmra.mxu0 %v1723
    %v1883 = vpop.f32.mrf.mxu0
    %v1884 = vadd.f32 0.0, %v1883
    %v1885 = vpop.f32.mrf.mxu0
    %v1886 = vpop.f32.mrf.mxu0
    %v1887 = vadd.f32 0.0, %v1886
    %v1888 = vpop.f32.mrf.mxu0
    %1889 = vmatprep.mubr.bf16.mxu0 0
    %1890 = vmatmul.mubr.bf16.gmra.mxu0 %v1726
    %v1891 = vpop.f32.mrf.mxu0
    %v1892 = vadd.f32 0.0, %v1891
    %v1893 = vpop.f32.mrf.mxu0
    %v1894 = vpop.f32.mrf.mxu0
    %v1895 = vadd.f32 0.0, %v1894
    %v1896 = vpop.f32.mrf.mxu0
    %1897 = vmatprep.mubr.bf16.mxu0 0
    %1898 = vmatmul.mubr.bf16.gmra.mxu0 %v1729
    %v1899 = vpop.f32.mrf.mxu0
    %v1900 = vadd.f32 0.0, %v1899
    %v1901 = vpop.f32.mrf.mxu0
    %v1902 = vpop.f32.mrf.mxu0
    %v1903 = vadd.f32 0.0, %v1902
    %v1904 = vpop.f32.mrf.mxu0
    %1905 = vmatprep.mubr.bf16.mxu0 0
    %1906 = vmatmul.mubr.bf16.gmra.mxu0 %v1732
    %v1907 = vpop.f32.mrf.mxu0
    %v1908 = vadd.f32 0.0, %v1907
    %v1909 = vpop.f32.mrf.mxu0
    %v1910 = vpop.f32.mrf.mxu0
    %v1911 = vadd.f32 0.0, %v1910
    %v1912 = vpop.f32.mrf.mxu0
    %1913 = vdwg.mxu0
    %v1914 = vadd.f32 %v1588, %v1772
    %v1915 = vadd.f32 %v1589, %v1775
    %v1916 = vadd.f32 %v1590, %v1780
    %v1917 = vadd.f32 %v1591, %v1783
    %v1918 = vadd.f32 %v1592, %v1788
    %v1919 = vadd.f32 %v1593, %v1791
    %v1920 = vadd.f32 %v1594, %v1796
    %v1921 = vadd.f32 %v1595, %v1799
    %v1922 = vadd.f32 %v1596, %v1804
    %v1923 = vadd.f32 %v1597, %v1807
    %v1924 = vadd.f32 %v1598, %v1812
    %v1925 = vadd.f32 %v1599, %v1815
    %v1926 = vadd.f32 %v1600, %v1820
    %v1927 = vadd.f32 %v1601, %v1823
    %v1928 = vadd.f32 %v1602, %v1828
    %v1929 = vadd.f32 %v1603, %v1831
    %v1930 = vadd.f32 %v1604, %v1836
    %v1931 = vadd.f32 %v1605, %v1839
    %v1932 = vadd.f32 %v1606, %v1844
    %v1933 = vadd.f32 %v1607, %v1847
    %v1934 = vadd.f32 %v1608, %v1852
    %v1935 = vadd.f32 %v1609, %v1855
    %v1936 = vadd.f32 %v1610, %v1860
    %v1937 = vadd.f32 %v1611, %v1863
    %v1938 = vadd.f32 %v1612, %v1868
    %v1939 = vadd.f32 %v1613, %v1871
    %v1940 = vadd.f32 %v1614, %v1876
    %v1941 = vadd.f32 %v1615, %v1879
    %v1942 = vadd.f32 %v1616, %v1884
    %v1943 = vadd.f32 %v1617, %v1887
    %v1944 = vadd.f32 %v1618, %v1892
    %v1945 = vadd.f32 %v1619, %v1895
    %v1946 = vadd.f32 %v1620, %v1900
    %v1947 = vadd.f32 %v1621, %v1903
    %v1948 = vadd.f32 %v1622, %v1908
    %v1949 = vadd.f32 %v1623, %v1911
    %v1950 = vld [vmem:[%s0 + $0x24] sm:$0xff]
    %v1951 = vld [vmem:[%s0 + $0x2c] sm:$0xff]
    %v1952 = vld [vmem:[%s0 + $0x34] sm:$0xff]
    %v1953 = vld [vmem:[%s0 + $0x3c] sm:$0xff]
    %v1954 = vld [vmem:[%s0 + $0x44] sm:$0xff]
    %v1955 = vld [vmem:[%s0 + $0x4c] sm:$0xff]
    %v1956 = vld [vmem:[%s0 + $0x54] sm:$0xff]
    %v1957 = vld [vmem:[%s0 + $0x5c] sm:$0xff]
    %v1958 = vld [vmem:[%s0 + $0x64] sm:$0xff]
    %v1959 = vld [vmem:[%s0 + $0x6c] sm:$0xff]
    %v1960 = vld [vmem:[%s0 + $0x74] sm:$0xff]
    %v1961 = vld [vmem:[%s0 + $0x7c] sm:$0xff]
    %v1962 = vld [vmem:[%s0 + $0x84] sm:$0xff]
    %v1963 = vld [vmem:[%s0 + $0x8c] sm:$0xff]
    %v1964 = vld [vmem:[%s0 + $0x94] sm:$0xff]
    %v1965 = vld [vmem:[%s0 + $0x9c] sm:$0xff]
    %v1966 = vld [vmem:[%s0 + $0xa4] sm:$0xff]
    %v1967 = vld [vmem:[%s0 + $0xac] sm:$0xff]
    %v1968 = vld [vmem:[%s0 + $0xb4] sm:$0xff]
    %v1969 = vld [vmem:[%s0 + $0xbc] sm:$0xff]
    %v1970 = vld [vmem:[%s0 + $0xc4] sm:$0xff]
    %v1971 = vld [vmem:[%s0 + $0xcc] sm:$0xff]
    %v1972 = vld [vmem:[%s0 + $0xd4] sm:$0xff]
    %v1973 = vld [vmem:[%s0 + $0xdc] sm:$0xff]
    %v1974 = vld [vmem:[%s0 + $0xe4] sm:$0xff]
    %v1975 = vld [vmem:[%s0 + $0xec] sm:$0xff]
    %v1976 = vld [vmem:[%s0 + $0xf4] sm:$0xff]
    %v1977 = vld [vmem:[%s0 + $0xfc] sm:$0xff]
    %v1978 = vld [vmem:[%s0 + $0x104] sm:$0xff]
    %v1979 = vld [vmem:[%s0 + $0x10c] sm:$0xff]
    %v1980 = vld [vmem:[%s0 + $0x114] sm:$0xff]
    %v1981 = vld [vmem:[%s0 + $0x11c] sm:$0xff]
    %v1982 = vld [vmem:[%s0 + $0x124] sm:$0xff]
    %v1983 = vld [vmem:[%s0 + $0x12c] sm:$0xff]
    %v1984 = vld [vmem:[%s0 + $0x134] sm:$0xff]
    %v1985 = vld [vmem:[%s0 + $0x13c] sm:$0xff]
    %v1986 = vpack.c.bf16 %v1951, %v1950
    %v1987 = vpack.c.bf16 %v1953, %v1952
    %v1988 = vpack.c.bf16 %v1955, %v1954
    %v1989 = vpack.c.bf16 %v1957, %v1956
    %v1990 = vpack.c.bf16 %v1959, %v1958
    %v1991 = vpack.c.bf16 %v1961, %v1960
    %v1992 = vpack.c.bf16 %v1963, %v1962
    %v1993 = vpack.c.bf16 %v1965, %v1964
    %v1994 = vpack.c.bf16 %v1967, %v1966
    %v1995 = vpack.c.bf16 %v1969, %v1968
    %v1996 = vpack.c.bf16 %v1971, %v1970
    %v1997 = vpack.c.bf16 %v1973, %v1972
    %v1998 = vpack.c.bf16 %v1975, %v1974
    %v1999 = vpack.c.bf16 %v1977, %v1976
    %v2000 = vpack.c.bf16 %v1979, %v1978
    %v2001 = vpack.c.bf16 %v1981, %v1980
    %v2002 = vpack.c.bf16 %v1983, %v1982
    %v2003 = vpack.c.bf16 %v1985, %v1984
    %s2004 = scalar_lea.vmem %s1, 24
    %v2005 = vld [vmem:[%s2004] sm:$0xf]
    %v2007 = vsel %vm176, %v1986, 0
    %v2010 = vsel %vm176, %v1987, 0
    %v2013 = vsel %vm176, %v1988, 0
    %v2016 = vsel %vm176, %v1989, 0
    %v2019 = vsel %vm176, %v1990, 0
    %v2022 = vsel %vm176, %v1991, 0
    %v2025 = vsel %vm176, %v1992, 0
    %v2028 = vsel %vm176, %v1993, 0
    %v2031 = vsel %vm176, %v1994, 0
    %v2034 = vsel %vm176, %v1995, 0
    %v2037 = vsel %vm176, %v1996, 0
    %v2040 = vsel %vm176, %v1997, 0
    %v2043 = vsel %vm176, %v1998, 0
    %v2046 = vsel %vm176, %v1999, 0
    %v2049 = vsel %vm176, %v2000, 0
    %v2052 = vsel %vm176, %v2001, 0
    %v2055 = vsel %vm176, %v2002, 0
    %v2058 = vsel %vm176, %v2003, 0
    %v2061 = vsel %vm231, %v2005, 0
    %2063 = vmatprep.subr.bf16.mxu0 0
    %2064 = vmatpush1.bf16.msra.mxu0 0
    %2065 = vmatprep.subr.bf16.mxu0 0
    %2066 = vmatpush1.bf16.msra.mxu0 0
    %2067 = vmatprep.subr.bf16.mxu0 0
    %2068 = vmatpush1.bf16.msra.mxu0 0
    %2069 = vmatprep.subr.bf16.mxu0 0
    %2070 = vmatpush1.bf16.msra.mxu0 0
    %2071 = vmatprep.subr.bf16.mxu0 0
    %2072 = vmatpush1.bf16.msra.mxu0 0
    %2073 = vmatprep.subr.bf16.mxu0 0
    %2074 = vmatpush1.bf16.msra.mxu0 0
    %2075 = vmatprep.subr.bf16.mxu0 0
    %2076 = vmatpush1.bf16.msra.mxu0 0
    %2077 = vmatprep.subr.bf16.mxu0 0
    %2078 = vmatpush1.bf16.msra.mxu0 %v2061
    %2079 = vmatprep.subr.bf16.mxu0 0
    %2080 = vmatpush2.bf16.msra.mxu0 0
    %2081 = vmatprep.subr.bf16.mxu0 0
    %2082 = vmatpush2.bf16.msra.mxu0 0
    %2083 = vmatprep.subr.bf16.mxu0 0
    %2084 = vmatpush2.bf16.msra.mxu0 0
    %2085 = vmatprep.subr.bf16.mxu0 0
    %2086 = vmatpush2.bf16.msra.mxu0 0
    %2087 = vmatprep.subr.bf16.mxu0 0
    %2088 = vmatpush2.bf16.msra.mxu0 0
    %2089 = vmatprep.subr.bf16.mxu0 0
    %2090 = vmatpush2.bf16.msra.mxu0 0
    %2091 = vmatprep.subr.bf16.mxu0 0
    %2092 = vmatpush2.bf16.msra.mxu0 0
    %2093 = vmatprep.subr.bf16.mxu0 0
    %2094 = vmatpush2.bf16.msra.mxu0 0
    %2095 = vmatprep.mubr.bf16.mxu0 0
    %2096 = vmatmul.mubr.bf16.gmra.mxu0 %v2007
    %v2097 = vpop.f32.mrf.mxu0
    %v2098 = vadd.f32 0.0, %v2097
    %v2099 = vpop.f32.mrf.mxu0
    %v2100 = vpop.f32.mrf.mxu0
    %v2101 = vadd.f32 0.0, %v2100
    %v2102 = vpop.f32.mrf.mxu0
    %2103 = vmatprep.mubr.bf16.mxu0 0
    %2104 = vmatmul.mubr.bf16.gmra.mxu0 %v2010
    %v2105 = vpop.f32.mrf.mxu0
    %v2106 = vadd.f32 0.0, %v2105
    %v2107 = vpop.f32.mrf.mxu0
    %v2108 = vpop.f32.mrf.mxu0
    %v2109 = vadd.f32 0.0, %v2108
    %v2110 = vpop.f32.mrf.mxu0
    %2111 = vmatprep.mubr.bf16.mxu0 0
    %2112 = vmatmul.mubr.bf16.gmra.mxu0 %v2013
    %v2113 = vpop.f32.mrf.mxu0
    %v2114 = vadd.f32 0.0, %v2113
    %v2115 = vpop.f32.mrf.mxu0
    %v2116 = vpop.f32.mrf.mxu0
    %v2117 = vadd.f32 0.0, %v2116
    %v2118 = vpop.f32.mrf.mxu0
    %2119 = vmatprep.mubr.bf16.mxu0 0
    %2120 = vmatmul.mubr.bf16.gmra.mxu0 %v2016
    %v2121 = vpop.f32.mrf.mxu0
    %v2122 = vadd.f32 0.0, %v2121
    %v2123 = vpop.f32.mrf.mxu0
    %v2124 = vpop.f32.mrf.mxu0
    %v2125 = vadd.f32 0.0, %v2124
    %v2126 = vpop.f32.mrf.mxu0
    %2127 = vmatprep.mubr.bf16.mxu0 0
    %2128 = vmatmul.mubr.bf16.gmra.mxu0 %v2019
    %v2129 = vpop.f32.mrf.mxu0
    %v2130 = vadd.f32 0.0, %v2129
    %v2131 = vpop.f32.mrf.mxu0
    %v2132 = vpop.f32.mrf.mxu0
    %v2133 = vadd.f32 0.0, %v2132
    %v2134 = vpop.f32.mrf.mxu0
    %2135 = vmatprep.mubr.bf16.mxu0 0
    %2136 = vmatmul.mubr.bf16.gmra.mxu0 %v2022
    %v2137 = vpop.f32.mrf.mxu0
    %v2138 = vadd.f32 0.0, %v2137
    %v2139 = vpop.f32.mrf.mxu0
    %v2140 = vpop.f32.mrf.mxu0
    %v2141 = vadd.f32 0.0, %v2140
    %v2142 = vpop.f32.mrf.mxu0
    %2143 = vmatprep.mubr.bf16.mxu0 0
    %2144 = vmatmul.mubr.bf16.gmra.mxu0 %v2025
    %v2145 = vpop.f32.mrf.mxu0
    %v2146 = vadd.f32 0.0, %v2145
    %v2147 = vpop.f32.mrf.mxu0
    %v2148 = vpop.f32.mrf.mxu0
    %v2149 = vadd.f32 0.0, %v2148
    %v2150 = vpop.f32.mrf.mxu0
    %2151 = vmatprep.mubr.bf16.mxu0 0
    %2152 = vmatmul.mubr.bf16.gmra.mxu0 %v2028
    %v2153 = vpop.f32.mrf.mxu0
    %v2154 = vadd.f32 0.0, %v2153
    %v2155 = vpop.f32.mrf.mxu0
    %v2156 = vpop.f32.mrf.mxu0
    %v2157 = vadd.f32 0.0, %v2156
    %v2158 = vpop.f32.mrf.mxu0
    %2159 = vmatprep.mubr.bf16.mxu0 0
    %2160 = vmatmul.mubr.bf16.gmra.mxu0 %v2031
    %v2161 = vpop.f32.mrf.mxu0
    %v2162 = vadd.f32 0.0, %v2161
    %v2163 = vpop.f32.mrf.mxu0
    %v2164 = vpop.f32.mrf.mxu0
    %v2165 = vadd.f32 0.0, %v2164
    %v2166 = vpop.f32.mrf.mxu0
    %2167 = vmatprep.mubr.bf16.mxu0 0
    %2168 = vmatmul.mubr.bf16.gmra.mxu0 %v2034
    %v2169 = vpop.f32.mrf.mxu0
    %v2170 = vadd.f32 0.0, %v2169
    %v2171 = vpop.f32.mrf.mxu0
    %v2172 = vpop.f32.mrf.mxu0
    %v2173 = vadd.f32 0.0, %v2172
    %v2174 = vpop.f32.mrf.mxu0
    %2175 = vmatprep.mubr.bf16.mxu0 0
    %2176 = vmatmul.mubr.bf16.gmra.mxu0 %v2037
    %v2177 = vpop.f32.mrf.mxu0
    %v2178 = vadd.f32 0.0, %v2177
    %v2179 = vpop.f32.mrf.mxu0
    %v2180 = vpop.f32.mrf.mxu0
    %v2181 = vadd.f32 0.0, %v2180
    %v2182 = vpop.f32.mrf.mxu0
    %2183 = vmatprep.mubr.bf16.mxu0 0
    %2184 = vmatmul.mubr.bf16.gmra.mxu0 %v2040
    %v2185 = vpop.f32.mrf.mxu0
    %v2186 = vadd.f32 0.0, %v2185
    %v2187 = vpop.f32.mrf.mxu0
    %v2188 = vpop.f32.mrf.mxu0
    %v2189 = vadd.f32 0.0, %v2188
    %v2190 = vpop.f32.mrf.mxu0
    %2191 = vmatprep.mubr.bf16.mxu0 0
    %2192 = vmatmul.mubr.bf16.gmra.mxu0 %v2043
    %v2193 = vpop.f32.mrf.mxu0
    %v2194 = vadd.f32 0.0, %v2193
    %v2195 = vpop.f32.mrf.mxu0
    %v2196 = vpop.f32.mrf.mxu0
    %v2197 = vadd.f32 0.0, %v2196
    %v2198 = vpop.f32.mrf.mxu0
    %2199 = vmatprep.mubr.bf16.mxu0 0
    %2200 = vmatmul.mubr.bf16.gmra.mxu0 %v2046
    %v2201 = vpop.f32.mrf.mxu0
    %v2202 = vadd.f32 0.0, %v2201
    %v2203 = vpop.f32.mrf.mxu0
    %v2204 = vpop.f32.mrf.mxu0
    %v2205 = vadd.f32 0.0, %v2204
    %v2206 = vpop.f32.mrf.mxu0
    %2207 = vmatprep.mubr.bf16.mxu0 0
    %2208 = vmatmul.mubr.bf16.gmra.mxu0 %v2049
    %v2209 = vpop.f32.mrf.mxu0
    %v2210 = vadd.f32 0.0, %v2209
    %v2211 = vpop.f32.mrf.mxu0
    %v2212 = vpop.f32.mrf.mxu0
    %v2213 = vadd.f32 0.0, %v2212
    %v2214 = vpop.f32.mrf.mxu0
    %2215 = vmatprep.mubr.bf16.mxu0 0
    %2216 = vmatmul.mubr.bf16.gmra.mxu0 %v2052
    %v2217 = vpop.f32.mrf.mxu0
    %v2218 = vadd.f32 0.0, %v2217
    %v2219 = vpop.f32.mrf.mxu0
    %v2220 = vpop.f32.mrf.mxu0
    %v2221 = vadd.f32 0.0, %v2220
    %v2222 = vpop.f32.mrf.mxu0
    %2223 = vmatprep.mubr.bf16.mxu0 0
    %2224 = vmatmul.mubr.bf16.gmra.mxu0 %v2055
    %v2225 = vpop.f32.mrf.mxu0
    %v2226 = vadd.f32 0.0, %v2225
    %v2227 = vpop.f32.mrf.mxu0
    %v2228 = vpop.f32.mrf.mxu0
    %v2229 = vadd.f32 0.0, %v2228
    %v2230 = vpop.f32.mrf.mxu0
    %2231 = vmatprep.mubr.bf16.mxu0 0
    %2232 = vmatmul.mubr.bf16.gmra.mxu0 %v2058
    %v2233 = vpop.f32.mrf.mxu0
    %v2234 = vadd.f32 0.0, %v2233
    %v2235 = vpop.f32.mrf.mxu0
    %v2236 = vpop.f32.mrf.mxu0
    %v2237 = vadd.f32 0.0, %v2236
    %v2238 = vpop.f32.mrf.mxu0
    %2239 = vdwg.mxu0
    %v2240 = vadd.f32 %v1914, %v2098
    %v2241 = vadd.f32 %v1915, %v2101
    %v2242 = vadd.f32 %v1916, %v2106
    %v2243 = vadd.f32 %v1917, %v2109
    %v2244 = vadd.f32 %v1918, %v2114
    %v2245 = vadd.f32 %v1919, %v2117
    %v2246 = vadd.f32 %v1920, %v2122
    %v2247 = vadd.f32 %v1921, %v2125
    %v2248 = vadd.f32 %v1922, %v2130
    %v2249 = vadd.f32 %v1923, %v2133
    %v2250 = vadd.f32 %v1924, %v2138
    %v2251 = vadd.f32 %v1925, %v2141
    %v2252 = vadd.f32 %v1926, %v2146
    %v2253 = vadd.f32 %v1927, %v2149
    %v2254 = vadd.f32 %v1928, %v2154
    %v2255 = vadd.f32 %v1929, %v2157
    %v2256 = vadd.f32 %v1930, %v2162
    %v2257 = vadd.f32 %v1931, %v2165
    %v2258 = vadd.f32 %v1932, %v2170
    %v2259 = vadd.f32 %v1933, %v2173
    %v2260 = vadd.f32 %v1934, %v2178
    %v2261 = vadd.f32 %v1935, %v2181
    %v2262 = vadd.f32 %v1936, %v2186
    %v2263 = vadd.f32 %v1937, %v2189
    %v2264 = vadd.f32 %v1938, %v2194
    %v2265 = vadd.f32 %v1939, %v2197
    %v2266 = vadd.f32 %v1940, %v2202
    %v2267 = vadd.f32 %v1941, %v2205
    %v2268 = vadd.f32 %v1942, %v2210
    %v2269 = vadd.f32 %v1943, %v2213
    %v2270 = vadd.f32 %v1944, %v2218
    %v2271 = vadd.f32 %v1945, %v2221
    %v2272 = vadd.f32 %v1946, %v2226
    %v2273 = vadd.f32 %v1947, %v2229
    %v2274 = vadd.f32 %v1948, %v2234
    %v2275 = vadd.f32 %v1949, %v2237
    %v2276 = vld [vmem:[%s0 + $0x25] sm:$0xff]
    %v2277 = vld [vmem:[%s0 + $0x2d] sm:$0xff]
    %v2278 = vld [vmem:[%s0 + $0x35] sm:$0xff]
    %v2279 = vld [vmem:[%s0 + $0x3d] sm:$0xff]
    %v2280 = vld [vmem:[%s0 + $0x45] sm:$0xff]
    %v2281 = vld [vmem:[%s0 + $0x4d] sm:$0xff]
    %v2282 = vld [vmem:[%s0 + $0x55] sm:$0xff]
    %v2283 = vld [vmem:[%s0 + $0x5d] sm:$0xff]
    %v2284 = vld [vmem:[%s0 + $0x65] sm:$0xff]
    %v2285 = vld [vmem:[%s0 + $0x6d] sm:$0xff]
    %v2286 = vld [vmem:[%s0 + $0x75] sm:$0xff]
    %v2287 = vld [vmem:[%s0 + $0x7d] sm:$0xff]
    %v2288 = vld [vmem:[%s0 + $0x85] sm:$0xff]
    %v2289 = vld [vmem:[%s0 + $0x8d] sm:$0xff]
    %v2290 = vld [vmem:[%s0 + $0x95] sm:$0xff]
    %v2291 = vld [vmem:[%s0 + $0x9d] sm:$0xff]
    %v2292 = vld [vmem:[%s0 + $0xa5] sm:$0xff]
    %v2293 = vld [vmem:[%s0 + $0xad] sm:$0xff]
    %v2294 = vld [vmem:[%s0 + $0xb5] sm:$0xff]
    %v2295 = vld [vmem:[%s0 + $0xbd] sm:$0xff]
    %v2296 = vld [vmem:[%s0 + $0xc5] sm:$0xff]
    %v2297 = vld [vmem:[%s0 + $0xcd] sm:$0xff]
    %v2298 = vld [vmem:[%s0 + $0xd5] sm:$0xff]
    %v2299 = vld [vmem:[%s0 + $0xdd] sm:$0xff]
    %v2300 = vld [vmem:[%s0 + $0xe5] sm:$0xff]
    %v2301 = vld [vmem:[%s0 + $0xed] sm:$0xff]
    %v2302 = vld [vmem:[%s0 + $0xf5] sm:$0xff]
    %v2303 = vld [vmem:[%s0 + $0xfd] sm:$0xff]
    %v2304 = vld [vmem:[%s0 + $0x105] sm:$0xff]
    %v2305 = vld [vmem:[%s0 + $0x10d] sm:$0xff]
    %v2306 = vld [vmem:[%s0 + $0x115] sm:$0xff]
    %v2307 = vld [vmem:[%s0 + $0x11d] sm:$0xff]
    %v2308 = vld [vmem:[%s0 + $0x125] sm:$0xff]
    %v2309 = vld [vmem:[%s0 + $0x12d] sm:$0xff]
    %v2310 = vld [vmem:[%s0 + $0x135] sm:$0xff]
    %v2311 = vld [vmem:[%s0 + $0x13d] sm:$0xff]
    %v2312 = vpack.c.bf16 %v2277, %v2276
    %v2313 = vpack.c.bf16 %v2279, %v2278
    %v2314 = vpack.c.bf16 %v2281, %v2280
    %v2315 = vpack.c.bf16 %v2283, %v2282
    %v2316 = vpack.c.bf16 %v2285, %v2284
    %v2317 = vpack.c.bf16 %v2287, %v2286
    %v2318 = vpack.c.bf16 %v2289, %v2288
    %v2319 = vpack.c.bf16 %v2291, %v2290
    %v2320 = vpack.c.bf16 %v2293, %v2292
    %v2321 = vpack.c.bf16 %v2295, %v2294
    %v2322 = vpack.c.bf16 %v2297, %v2296
    %v2323 = vpack.c.bf16 %v2299, %v2298
    %v2324 = vpack.c.bf16 %v2301, %v2300
    %v2325 = vpack.c.bf16 %v2303, %v2302
    %v2326 = vpack.c.bf16 %v2305, %v2304
    %v2327 = vpack.c.bf16 %v2307, %v2306
    %v2328 = vpack.c.bf16 %v2309, %v2308
    %v2329 = vpack.c.bf16 %v2311, %v2310
    %s2330 = scalar_lea.vmem %s1, 28
    %v2331 = vld [vmem:[%s2330] sm:$0xf]
    %v2333 = vsel %vm176, %v2312, 0
    %v2336 = vsel %vm176, %v2313, 0
    %v2339 = vsel %vm176, %v2314, 0
    %v2342 = vsel %vm176, %v2315, 0
    %v2345 = vsel %vm176, %v2316, 0
    %v2348 = vsel %vm176, %v2317, 0
    %v2351 = vsel %vm176, %v2318, 0
    %v2354 = vsel %vm176, %v2319, 0
    %v2357 = vsel %vm176, %v2320, 0
    %v2360 = vsel %vm176, %v2321, 0
    %v2363 = vsel %vm176, %v2322, 0
    %v2366 = vsel %vm176, %v2323, 0
    %v2369 = vsel %vm176, %v2324, 0
    %v2372 = vsel %vm176, %v2325, 0
    %v2375 = vsel %vm176, %v2326, 0
    %v2378 = vsel %vm176, %v2327, 0
    %v2381 = vsel %vm176, %v2328, 0
    %v2384 = vsel %vm176, %v2329, 0
    %v2387 = vsel %vm231, %v2331, 0
    %2389 = vmatprep.subr.bf16.mxu0 0
    %2390 = vmatpush1.bf16.msra.mxu0 0
    %2391 = vmatprep.subr.bf16.mxu0 0
    %2392 = vmatpush1.bf16.msra.mxu0 0
    %2393 = vmatprep.subr.bf16.mxu0 0
    %2394 = vmatpush1.bf16.msra.mxu0 0
    %2395 = vmatprep.subr.bf16.mxu0 0
    %2396 = vmatpush1.bf16.msra.mxu0 0
    %2397 = vmatprep.subr.bf16.mxu0 0
    %2398 = vmatpush1.bf16.msra.mxu0 0
    %2399 = vmatprep.subr.bf16.mxu0 0
    %2400 = vmatpush1.bf16.msra.mxu0 0
    %2401 = vmatprep.subr.bf16.mxu0 0
    %2402 = vmatpush1.bf16.msra.mxu0 0
    %2403 = vmatprep.subr.bf16.mxu0 0
    %2404 = vmatpush1.bf16.msra.mxu0 %v2387
    %2405 = vmatprep.subr.bf16.mxu0 0
    %2406 = vmatpush2.bf16.msra.mxu0 0
    %2407 = vmatprep.subr.bf16.mxu0 0
    %2408 = vmatpush2.bf16.msra.mxu0 0
    %2409 = vmatprep.subr.bf16.mxu0 0
    %2410 = vmatpush2.bf16.msra.mxu0 0
    %2411 = vmatprep.subr.bf16.mxu0 0
    %2412 = vmatpush2.bf16.msra.mxu0 0
    %2413 = vmatprep.subr.bf16.mxu0 0
    %2414 = vmatpush2.bf16.msra.mxu0 0
    %2415 = vmatprep.subr.bf16.mxu0 0
    %2416 = vmatpush2.bf16.msra.mxu0 0
    %2417 = vmatprep.subr.bf16.mxu0 0
    %2418 = vmatpush2.bf16.msra.mxu0 0
    %2419 = vmatprep.subr.bf16.mxu0 0
    %2420 = vmatpush2.bf16.msra.mxu0 0
    %2421 = vmatprep.mubr.bf16.mxu0 0
    %2422 = vmatmul.mubr.bf16.gmra.mxu0 %v2333
    %v2423 = vpop.f32.mrf.mxu0
    %v2424 = vadd.f32 0.0, %v2423
    %v2425 = vpop.f32.mrf.mxu0
    %v2426 = vpop.f32.mrf.mxu0
    %v2427 = vadd.f32 0.0, %v2426
    %v2428 = vpop.f32.mrf.mxu0
    %2429 = vmatprep.mubr.bf16.mxu0 0
    %2430 = vmatmul.mubr.bf16.gmra.mxu0 %v2336
    %v2431 = vpop.f32.mrf.mxu0
    %v2432 = vadd.f32 0.0, %v2431
    %v2433 = vpop.f32.mrf.mxu0
    %v2434 = vpop.f32.mrf.mxu0
    %v2435 = vadd.f32 0.0, %v2434
    %v2436 = vpop.f32.mrf.mxu0
    %2437 = vmatprep.mubr.bf16.mxu0 0
    %2438 = vmatmul.mubr.bf16.gmra.mxu0 %v2339
    %v2439 = vpop.f32.mrf.mxu0
    %v2440 = vadd.f32 0.0, %v2439
    %v2441 = vpop.f32.mrf.mxu0
    %v2442 = vpop.f32.mrf.mxu0
    %v2443 = vadd.f32 0.0, %v2442
    %v2444 = vpop.f32.mrf.mxu0
    %2445 = vmatprep.mubr.bf16.mxu0 0
    %2446 = vmatmul.mubr.bf16.gmra.mxu0 %v2342
    %v2447 = vpop.f32.mrf.mxu0
    %v2448 = vadd.f32 0.0, %v2447
    %v2449 = vpop.f32.mrf.mxu0
    %v2450 = vpop.f32.mrf.mxu0
    %v2451 = vadd.f32 0.0, %v2450
    %v2452 = vpop.f32.mrf.mxu0
    %2453 = vmatprep.mubr.bf16.mxu0 0
    %2454 = vmatmul.mubr.bf16.gmra.mxu0 %v2345
    %v2455 = vpop.f32.mrf.mxu0
    %v2456 = vadd.f32 0.0, %v2455
    %v2457 = vpop.f32.mrf.mxu0
    %v2458 = vpop.f32.mrf.mxu0
    %v2459 = vadd.f32 0.0, %v2458
    %v2460 = vpop.f32.mrf.mxu0
    %2461 = vmatprep.mubr.bf16.mxu0 0
    %2462 = vmatmul.mubr.bf16.gmra.mxu0 %v2348
    %v2463 = vpop.f32.mrf.mxu0
    %v2464 = vadd.f32 0.0, %v2463
    %v2465 = vpop.f32.mrf.mxu0
    %v2466 = vpop.f32.mrf.mxu0
    %v2467 = vadd.f32 0.0, %v2466
    %v2468 = vpop.f32.mrf.mxu0
    %2469 = vmatprep.mubr.bf16.mxu0 0
    %2470 = vmatmul.mubr.bf16.gmra.mxu0 %v2351
    %v2471 = vpop.f32.mrf.mxu0
    %v2472 = vadd.f32 0.0, %v2471
    %v2473 = vpop.f32.mrf.mxu0
    %v2474 = vpop.f32.mrf.mxu0
    %v2475 = vadd.f32 0.0, %v2474
    %v2476 = vpop.f32.mrf.mxu0
    %2477 = vmatprep.mubr.bf16.mxu0 0
    %2478 = vmatmul.mubr.bf16.gmra.mxu0 %v2354
    %v2479 = vpop.f32.mrf.mxu0
    %v2480 = vadd.f32 0.0, %v2479
    %v2481 = vpop.f32.mrf.mxu0
    %v2482 = vpop.f32.mrf.mxu0
    %v2483 = vadd.f32 0.0, %v2482
    %v2484 = vpop.f32.mrf.mxu0
    %2485 = vmatprep.mubr.bf16.mxu0 0
    %2486 = vmatmul.mubr.bf16.gmra.mxu0 %v2357
    %v2487 = vpop.f32.mrf.mxu0
    %v2488 = vadd.f32 0.0, %v2487
    %v2489 = vpop.f32.mrf.mxu0
    %v2490 = vpop.f32.mrf.mxu0
    %v2491 = vadd.f32 0.0, %v2490
    %v2492 = vpop.f32.mrf.mxu0
    %2493 = vmatprep.mubr.bf16.mxu0 0
    %2494 = vmatmul.mubr.bf16.gmra.mxu0 %v2360
    %v2495 = vpop.f32.mrf.mxu0
    %v2496 = vadd.f32 0.0, %v2495
    %v2497 = vpop.f32.mrf.mxu0
    %v2498 = vpop.f32.mrf.mxu0
    %v2499 = vadd.f32 0.0, %v2498
    %v2500 = vpop.f32.mrf.mxu0
    %2501 = vmatprep.mubr.bf16.mxu0 0
    %2502 = vmatmul.mubr.bf16.gmra.mxu0 %v2363
    %v2503 = vpop.f32.mrf.mxu0
    %v2504 = vadd.f32 0.0, %v2503
    %v2505 = vpop.f32.mrf.mxu0
    %v2506 = vpop.f32.mrf.mxu0
    %v2507 = vadd.f32 0.0, %v2506
    %v2508 = vpop.f32.mrf.mxu0
    %2509 = vmatprep.mubr.bf16.mxu0 0
    %2510 = vmatmul.mubr.bf16.gmra.mxu0 %v2366
    %v2511 = vpop.f32.mrf.mxu0
    %v2512 = vadd.f32 0.0, %v2511
    %v2513 = vpop.f32.mrf.mxu0
    %v2514 = vpop.f32.mrf.mxu0
    %v2515 = vadd.f32 0.0, %v2514
    %v2516 = vpop.f32.mrf.mxu0
    %2517 = vmatprep.mubr.bf16.mxu0 0
    %2518 = vmatmul.mubr.bf16.gmra.mxu0 %v2369
    %v2519 = vpop.f32.mrf.mxu0
    %v2520 = vadd.f32 0.0, %v2519
    %v2521 = vpop.f32.mrf.mxu0
    %v2522 = vpop.f32.mrf.mxu0
    %v2523 = vadd.f32 0.0, %v2522
    %v2524 = vpop.f32.mrf.mxu0
    %2525 = vmatprep.mubr.bf16.mxu0 0
    %2526 = vmatmul.mubr.bf16.gmra.mxu0 %v2372
    %v2527 = vpop.f32.mrf.mxu0
    %v2528 = vadd.f32 0.0, %v2527
    %v2529 = vpop.f32.mrf.mxu0
    %v2530 = vpop.f32.mrf.mxu0
    %v2531 = vadd.f32 0.0, %v2530
    %v2532 = vpop.f32.mrf.mxu0
    %2533 = vmatprep.mubr.bf16.mxu0 0
    %2534 = vmatmul.mubr.bf16.gmra.mxu0 %v2375
    %v2535 = vpop.f32.mrf.mxu0
    %v2536 = vadd.f32 0.0, %v2535
    %v2537 = vpop.f32.mrf.mxu0
    %v2538 = vpop.f32.mrf.mxu0
    %v2539 = vadd.f32 0.0, %v2538
    %v2540 = vpop.f32.mrf.mxu0
    %2541 = vmatprep.mubr.bf16.mxu0 0
    %2542 = vmatmul.mubr.bf16.gmra.mxu0 %v2378
    %v2543 = vpop.f32.mrf.mxu0
    %v2544 = vadd.f32 0.0, %v2543
    %v2545 = vpop.f32.mrf.mxu0
    %v2546 = vpop.f32.mrf.mxu0
    %v2547 = vadd.f32 0.0, %v2546
    %v2548 = vpop.f32.mrf.mxu0
    %2549 = vmatprep.mubr.bf16.mxu0 0
    %2550 = vmatmul.mubr.bf16.gmra.mxu0 %v2381
    %v2551 = vpop.f32.mrf.mxu0
    %v2552 = vadd.f32 0.0, %v2551
    %v2553 = vpop.f32.mrf.mxu0
    %v2554 = vpop.f32.mrf.mxu0
    %v2555 = vadd.f32 0.0, %v2554
    %v2556 = vpop.f32.mrf.mxu0
    %2557 = vmatprep.mubr.bf16.mxu0 0
    %2558 = vmatmul.mubr.bf16.gmra.mxu0 %v2384
    %v2559 = vpop.f32.mrf.mxu0
    %v2560 = vadd.f32 0.0, %v2559
    %v2561 = vpop.f32.mrf.mxu0
    %v2562 = vpop.f32.mrf.mxu0
    %v2563 = vadd.f32 0.0, %v2562
    %v2564 = vpop.f32.mrf.mxu0
    %2565 = vdwg.mxu0
    %v2566 = vadd.f32 %v2240, %v2424
    %v2567 = vadd.f32 %v2241, %v2427
    %v2568 = vadd.f32 %v2242, %v2432
    %v2569 = vadd.f32 %v2243, %v2435
    %v2570 = vadd.f32 %v2244, %v2440
    %v2571 = vadd.f32 %v2245, %v2443
    %v2572 = vadd.f32 %v2246, %v2448
    %v2573 = vadd.f32 %v2247, %v2451
    %v2574 = vadd.f32 %v2248, %v2456
    %v2575 = vadd.f32 %v2249, %v2459
    %v2576 = vadd.f32 %v2250, %v2464
    %v2577 = vadd.f32 %v2251, %v2467
    %v2578 = vadd.f32 %v2252, %v2472
    %v2579 = vadd.f32 %v2253, %v2475
    %v2580 = vadd.f32 %v2254, %v2480
    %v2581 = vadd.f32 %v2255, %v2483
    %v2582 = vadd.f32 %v2256, %v2488
    %v2583 = vadd.f32 %v2257, %v2491
    %v2584 = vadd.f32 %v2258, %v2496
    %v2585 = vadd.f32 %v2259, %v2499
    %v2586 = vadd.f32 %v2260, %v2504
    %v2587 = vadd.f32 %v2261, %v2507
    %v2588 = vadd.f32 %v2262, %v2512
    %v2589 = vadd.f32 %v2263, %v2515
    %v2590 = vadd.f32 %v2264, %v2520
    %v2591 = vadd.f32 %v2265, %v2523
    %v2592 = vadd.f32 %v2266, %v2528
    %v2593 = vadd.f32 %v2267, %v2531
    %v2594 = vadd.f32 %v2268, %v2536
    %v2595 = vadd.f32 %v2269, %v2539
    %v2596 = vadd.f32 %v2270, %v2544
    %v2597 = vadd.f32 %v2271, %v2547
    %v2598 = vadd.f32 %v2272, %v2552
    %v2599 = vadd.f32 %v2273, %v2555
    %v2600 = vadd.f32 %v2274, %v2560
    %v2601 = vadd.f32 %v2275, %v2563
    %v2602 = vld [vmem:[%s0 + $0x26] sm:$0xff]
    %v2603 = vld [vmem:[%s0 + $0x2e] sm:$0xff]
    %v2604 = vld [vmem:[%s0 + $0x36] sm:$0xff]
    %v2605 = vld [vmem:[%s0 + $0x3e] sm:$0xff]
    %v2606 = vld [vmem:[%s0 + $0x46] sm:$0xff]
    %v2607 = vld [vmem:[%s0 + $0x4e] sm:$0xff]
    %v2608 = vld [vmem:[%s0 + $0x56] sm:$0xff]
    %v2609 = vld [vmem:[%s0 + $0x5e] sm:$0xff]
    %v2610 = vld [vmem:[%s0 + $0x66] sm:$0xff]
    %v2611 = vld [vmem:[%s0 + $0x6e] sm:$0xff]
    %v2612 = vld [vmem:[%s0 + $0x76] sm:$0xff]
    %v2613 = vld [vmem:[%s0 + $0x7e] sm:$0xff]
    %v2614 = vld [vmem:[%s0 + $0x86] sm:$0xff]
    %v2615 = vld [vmem:[%s0 + $0x8e] sm:$0xff]
    %v2616 = vld [vmem:[%s0 + $0x96] sm:$0xff]
    %v2617 = vld [vmem:[%s0 + $0x9e] sm:$0xff]
    %v2618 = vld [vmem:[%s0 + $0xa6] sm:$0xff]
    %v2619 = vld [vmem:[%s0 + $0xae] sm:$0xff]
    %v2620 = vld [vmem:[%s0 + $0xb6] sm:$0xff]
    %v2621 = vld [vmem:[%s0 + $0xbe] sm:$0xff]
    %v2622 = vld [vmem:[%s0 + $0xc6] sm:$0xff]
    %v2623 = vld [vmem:[%s0 + $0xce] sm:$0xff]
    %v2624 = vld [vmem:[%s0 + $0xd6] sm:$0xff]
    %v2625 = vld [vmem:[%s0 + $0xde] sm:$0xff]
    %v2626 = vld [vmem:[%s0 + $0xe6] sm:$0xff]
    %v2627 = vld [vmem:[%s0 + $0xee] sm:$0xff]
    %v2628 = vld [vmem:[%s0 + $0xf6] sm:$0xff]
    %v2629 = vld [vmem:[%s0 + $0xfe] sm:$0xff]
    %v2630 = vld [vmem:[%s0 + $0x106] sm:$0xff]
    %v2631 = vld [vmem:[%s0 + $0x10e] sm:$0xff]
    %v2632 = vld [vmem:[%s0 + $0x116] sm:$0xff]
    %v2633 = vld [vmem:[%s0 + $0x11e] sm:$0xff]
    %v2634 = vld [vmem:[%s0 + $0x126] sm:$0xff]
    %v2635 = vld [vmem:[%s0 + $0x12e] sm:$0xff]
    %v2636 = vld [vmem:[%s0 + $0x136] sm:$0xff]
    %v2637 = vld [vmem:[%s0 + $0x13e] sm:$0xff]
    %v2638 = vpack.c.bf16 %v2603, %v2602
    %v2639 = vpack.c.bf16 %v2605, %v2604
    %v2640 = vpack.c.bf16 %v2607, %v2606
    %v2641 = vpack.c.bf16 %v2609, %v2608
    %v2642 = vpack.c.bf16 %v2611, %v2610
    %v2643 = vpack.c.bf16 %v2613, %v2612
    %v2644 = vpack.c.bf16 %v2615, %v2614
    %v2645 = vpack.c.bf16 %v2617, %v2616
    %v2646 = vpack.c.bf16 %v2619, %v2618
    %v2647 = vpack.c.bf16 %v2621, %v2620
    %v2648 = vpack.c.bf16 %v2623, %v2622
    %v2649 = vpack.c.bf16 %v2625, %v2624
    %v2650 = vpack.c.bf16 %v2627, %v2626
    %v2651 = vpack.c.bf16 %v2629, %v2628
    %v2652 = vpack.c.bf16 %v2631, %v2630
    %v2653 = vpack.c.bf16 %v2633, %v2632
    %v2654 = vpack.c.bf16 %v2635, %v2634
    %v2655 = vpack.c.bf16 %v2637, %v2636
    %s2656 = scalar_lea.vmem %s1, 32
    %v2657 = vld [vmem:[%s2656] sm:$0xf]
    %v2659 = vsel %vm176, %v2638, 0
    %v2662 = vsel %vm176, %v2639, 0
    %v2665 = vsel %vm176, %v2640, 0
    %v2668 = vsel %vm176, %v2641, 0
    %v2671 = vsel %vm176, %v2642, 0
    %v2674 = vsel %vm176, %v2643, 0
    %v2677 = vsel %vm176, %v2644, 0
    %v2680 = vsel %vm176, %v2645, 0
    %v2683 = vsel %vm176, %v2646, 0
    %v2686 = vsel %vm176, %v2647, 0
    %v2689 = vsel %vm176, %v2648, 0
    %v2692 = vsel %vm176, %v2649, 0
    %v2695 = vsel %vm176, %v2650, 0
    %v2698 = vsel %vm176, %v2651, 0
    %v2701 = vsel %vm176, %v2652, 0
    %v2704 = vsel %vm176, %v2653, 0
    %v2707 = vsel %vm176, %v2654, 0
    %v2710 = vsel %vm176, %v2655, 0
    %v2713 = vsel %vm231, %v2657, 0
    %2715 = vmatprep.subr.bf16.mxu0 0
    %2716 = vmatpush1.bf16.msra.mxu0 0
    %2717 = vmatprep.subr.bf16.mxu0 0
    %2718 = vmatpush1.bf16.msra.mxu0 0
    %2719 = vmatprep.subr.bf16.mxu0 0
    %2720 = vmatpush1.bf16.msra.mxu0 0
    %2721 = vmatprep.subr.bf16.mxu0 0
    %2722 = vmatpush1.bf16.msra.mxu0 0
    %2723 = vmatprep.subr.bf16.mxu0 0
    %2724 = vmatpush1.bf16.msra.mxu0 0
    %2725 = vmatprep.subr.bf16.mxu0 0
    %2726 = vmatpush1.bf16.msra.mxu0 0
    %2727 = vmatprep.subr.bf16.mxu0 0
    %2728 = vmatpush1.bf16.msra.mxu0 0
    %2729 = vmatprep.subr.bf16.mxu0 0
    %2730 = vmatpush1.bf16.msra.mxu0 %v2713
    %2731 = vmatprep.subr.bf16.mxu0 0
    %2732 = vmatpush2.bf16.msra.mxu0 0
    %2733 = vmatprep.subr.bf16.mxu0 0
    %2734 = vmatpush2.bf16.msra.mxu0 0
    %2735 = vmatprep.subr.bf16.mxu0 0
    %2736 = vmatpush2.bf16.msra.mxu0 0
    %2737 = vmatprep.subr.bf16.mxu0 0
    %2738 = vmatpush2.bf16.msra.mxu0 0
    %2739 = vmatprep.subr.bf16.mxu0 0
    %2740 = vmatpush2.bf16.msra.mxu0 0
    %2741 = vmatprep.subr.bf16.mxu0 0
    %2742 = vmatpush2.bf16.msra.mxu0 0
    %2743 = vmatprep.subr.bf16.mxu0 0
    %2744 = vmatpush2.bf16.msra.mxu0 0
    %2745 = vmatprep.subr.bf16.mxu0 0
    %2746 = vmatpush2.bf16.msra.mxu0 0
    %2747 = vmatprep.mubr.bf16.mxu0 0
    %2748 = vmatmul.mubr.bf16.gmra.mxu0 %v2659
    %v2749 = vpop.f32.mrf.mxu0
    %v2750 = vadd.f32 0.0, %v2749
    %v2751 = vpop.f32.mrf.mxu0
    %v2752 = vpop.f32.mrf.mxu0
    %v2753 = vadd.f32 0.0, %v2752
    %v2754 = vpop.f32.mrf.mxu0
    %2755 = vmatprep.mubr.bf16.mxu0 0
    %2756 = vmatmul.mubr.bf16.gmra.mxu0 %v2662
    %v2757 = vpop.f32.mrf.mxu0
    %v2758 = vadd.f32 0.0, %v2757
    %v2759 = vpop.f32.mrf.mxu0
    %v2760 = vpop.f32.mrf.mxu0
    %v2761 = vadd.f32 0.0, %v2760
    %v2762 = vpop.f32.mrf.mxu0
    %2763 = vmatprep.mubr.bf16.mxu0 0
    %2764 = vmatmul.mubr.bf16.gmra.mxu0 %v2665
    %v2765 = vpop.f32.mrf.mxu0
    %v2766 = vadd.f32 0.0, %v2765
    %v2767 = vpop.f32.mrf.mxu0
    %v2768 = vpop.f32.mrf.mxu0
    %v2769 = vadd.f32 0.0, %v2768
    %v2770 = vpop.f32.mrf.mxu0
    %2771 = vmatprep.mubr.bf16.mxu0 0
    %2772 = vmatmul.mubr.bf16.gmra.mxu0 %v2668
    %v2773 = vpop.f32.mrf.mxu0
    %v2774 = vadd.f32 0.0, %v2773
    %v2775 = vpop.f32.mrf.mxu0
    %v2776 = vpop.f32.mrf.mxu0
    %v2777 = vadd.f32 0.0, %v2776
    %v2778 = vpop.f32.mrf.mxu0
    %2779 = vmatprep.mubr.bf16.mxu0 0
    %2780 = vmatmul.mubr.bf16.gmra.mxu0 %v2671
    %v2781 = vpop.f32.mrf.mxu0
    %v2782 = vadd.f32 0.0, %v2781
    %v2783 = vpop.f32.mrf.mxu0
    %v2784 = vpop.f32.mrf.mxu0
    %v2785 = vadd.f32 0.0, %v2784
    %v2786 = vpop.f32.mrf.mxu0
    %2787 = vmatprep.mubr.bf16.mxu0 0
    %2788 = vmatmul.mubr.bf16.gmra.mxu0 %v2674
    %v2789 = vpop.f32.mrf.mxu0
    %v2790 = vadd.f32 0.0, %v2789
    %v2791 = vpop.f32.mrf.mxu0
    %v2792 = vpop.f32.mrf.mxu0
    %v2793 = vadd.f32 0.0, %v2792
    %v2794 = vpop.f32.mrf.mxu0
    %2795 = vmatprep.mubr.bf16.mxu0 0
    %2796 = vmatmul.mubr.bf16.gmra.mxu0 %v2677
    %v2797 = vpop.f32.mrf.mxu0
    %v2798 = vadd.f32 0.0, %v2797
    %v2799 = vpop.f32.mrf.mxu0
    %v2800 = vpop.f32.mrf.mxu0
    %v2801 = vadd.f32 0.0, %v2800
    %v2802 = vpop.f32.mrf.mxu0
    %2803 = vmatprep.mubr.bf16.mxu0 0
    %2804 = vmatmul.mubr.bf16.gmra.mxu0 %v2680
    %v2805 = vpop.f32.mrf.mxu0
    %v2806 = vadd.f32 0.0, %v2805
    %v2807 = vpop.f32.mrf.mxu0
    %v2808 = vpop.f32.mrf.mxu0
    %v2809 = vadd.f32 0.0, %v2808
    %v2810 = vpop.f32.mrf.mxu0
    %2811 = vmatprep.mubr.bf16.mxu0 0
    %2812 = vmatmul.mubr.bf16.gmra.mxu0 %v2683
    %v2813 = vpop.f32.mrf.mxu0
    %v2814 = vadd.f32 0.0, %v2813
    %v2815 = vpop.f32.mrf.mxu0
    %v2816 = vpop.f32.mrf.mxu0
    %v2817 = vadd.f32 0.0, %v2816
    %v2818 = vpop.f32.mrf.mxu0
    %2819 = vmatprep.mubr.bf16.mxu0 0
    %2820 = vmatmul.mubr.bf16.gmra.mxu0 %v2686
    %v2821 = vpop.f32.mrf.mxu0
    %v2822 = vadd.f32 0.0, %v2821
    %v2823 = vpop.f32.mrf.mxu0
    %v2824 = vpop.f32.mrf.mxu0
    %v2825 = vadd.f32 0.0, %v2824
    %v2826 = vpop.f32.mrf.mxu0
    %2827 = vmatprep.mubr.bf16.mxu0 0
    %2828 = vmatmul.mubr.bf16.gmra.mxu0 %v2689
    %v2829 = vpop.f32.mrf.mxu0
    %v2830 = vadd.f32 0.0, %v2829
    %v2831 = vpop.f32.mrf.mxu0
    %v2832 = vpop.f32.mrf.mxu0
    %v2833 = vadd.f32 0.0, %v2832
    %v2834 = vpop.f32.mrf.mxu0
    %2835 = vmatprep.mubr.bf16.mxu0 0
    %2836 = vmatmul.mubr.bf16.gmra.mxu0 %v2692
    %v2837 = vpop.f32.mrf.mxu0
    %v2838 = vadd.f32 0.0, %v2837
    %v2839 = vpop.f32.mrf.mxu0
    %v2840 = vpop.f32.mrf.mxu0
    %v2841 = vadd.f32 0.0, %v2840
    %v2842 = vpop.f32.mrf.mxu0
    %2843 = vmatprep.mubr.bf16.mxu0 0
    %2844 = vmatmul.mubr.bf16.gmra.mxu0 %v2695
    %v2845 = vpop.f32.mrf.mxu0
    %v2846 = vadd.f32 0.0, %v2845
    %v2847 = vpop.f32.mrf.mxu0
    %v2848 = vpop.f32.mrf.mxu0
    %v2849 = vadd.f32 0.0, %v2848
    %v2850 = vpop.f32.mrf.mxu0
    %2851 = vmatprep.mubr.bf16.mxu0 0
    %2852 = vmatmul.mubr.bf16.gmra.mxu0 %v2698
    %v2853 = vpop.f32.mrf.mxu0
    %v2854 = vadd.f32 0.0, %v2853
    %v2855 = vpop.f32.mrf.mxu0
    %v2856 = vpop.f32.mrf.mxu0
    %v2857 = vadd.f32 0.0, %v2856
    %v2858 = vpop.f32.mrf.mxu0
    %2859 = vmatprep.mubr.bf16.mxu0 0
    %2860 = vmatmul.mubr.bf16.gmra.mxu0 %v2701
    %v2861 = vpop.f32.mrf.mxu0
    %v2862 = vadd.f32 0.0, %v2861
    %v2863 = vpop.f32.mrf.mxu0
    %v2864 = vpop.f32.mrf.mxu0
    %v2865 = vadd.f32 0.0, %v2864
    %v2866 = vpop.f32.mrf.mxu0
    %2867 = vmatprep.mubr.bf16.mxu0 0
    %2868 = vmatmul.mubr.bf16.gmra.mxu0 %v2704
    %v2869 = vpop.f32.mrf.mxu0
    %v2870 = vadd.f32 0.0, %v2869
    %v2871 = vpop.f32.mrf.mxu0
    %v2872 = vpop.f32.mrf.mxu0
    %v2873 = vadd.f32 0.0, %v2872
    %v2874 = vpop.f32.mrf.mxu0
    %2875 = vmatprep.mubr.bf16.mxu0 0
    %2876 = vmatmul.mubr.bf16.gmra.mxu0 %v2707
    %v2877 = vpop.f32.mrf.mxu0
    %v2878 = vadd.f32 0.0, %v2877
    %v2879 = vpop.f32.mrf.mxu0
    %v2880 = vpop.f32.mrf.mxu0
    %v2881 = vadd.f32 0.0, %v2880
    %v2882 = vpop.f32.mrf.mxu0
    %2883 = vmatprep.mubr.bf16.mxu0 0
    %2884 = vmatmul.mubr.bf16.gmra.mxu0 %v2710
    %v2885 = vpop.f32.mrf.mxu0
    %v2886 = vadd.f32 0.0, %v2885
    %v2887 = vpop.f32.mrf.mxu0
    %v2888 = vpop.f32.mrf.mxu0
    %v2889 = vadd.f32 0.0, %v2888
    %v2890 = vpop.f32.mrf.mxu0
    %2891 = vdwg.mxu0
    %v2892 = vadd.f32 %v2566, %v2750
    %v2893 = vadd.f32 %v2567, %v2753
    %v2894 = vadd.f32 %v2568, %v2758
    %v2895 = vadd.f32 %v2569, %v2761
    %v2896 = vadd.f32 %v2570, %v2766
    %v2897 = vadd.f32 %v2571, %v2769
    %v2898 = vadd.f32 %v2572, %v2774
    %v2899 = vadd.f32 %v2573, %v2777
    %v2900 = vadd.f32 %v2574, %v2782
    %v2901 = vadd.f32 %v2575, %v2785
    %v2902 = vadd.f32 %v2576, %v2790
    %v2903 = vadd.f32 %v2577, %v2793
    %v2904 = vadd.f32 %v2578, %v2798
    %v2905 = vadd.f32 %v2579, %v2801
    %v2906 = vadd.f32 %v2580, %v2806
    %v2907 = vadd.f32 %v2581, %v2809
    %v2908 = vadd.f32 %v2582, %v2814
    %v2909 = vadd.f32 %v2583, %v2817
    %v2910 = vadd.f32 %v2584, %v2822
    %v2911 = vadd.f32 %v2585, %v2825
    %v2912 = vadd.f32 %v2586, %v2830
    %v2913 = vadd.f32 %v2587, %v2833
    %v2914 = vadd.f32 %v2588, %v2838
    %v2915 = vadd.f32 %v2589, %v2841
    %v2916 = vadd.f32 %v2590, %v2846
    %v2917 = vadd.f32 %v2591, %v2849
    %v2918 = vadd.f32 %v2592, %v2854
    %v2919 = vadd.f32 %v2593, %v2857
    %v2920 = vadd.f32 %v2594, %v2862
    %v2921 = vadd.f32 %v2595, %v2865
    %v2922 = vadd.f32 %v2596, %v2870
    %v2923 = vadd.f32 %v2597, %v2873
    %v2924 = vadd.f32 %v2598, %v2878
    %v2925 = vadd.f32 %v2599, %v2881
    %v2926 = vadd.f32 %v2600, %v2886
    %v2927 = vadd.f32 %v2601, %v2889
    %v2928 = vld [vmem:[%s2] sm:$0x1]
    %v2930 = vlaneseq
    %v2931 = vshrl.u32 %v2930, 7
    %v2932 = vsub.s32 0, %v2931
    %v2933 = vrot.slane %v2928, %v2932
    %v2935 = vadd.f32 %v2892, %v2933
    %v2936 = vadd.f32 %v2893, %v2933
    %v2937 = vadd.f32 %v2894, %v2933
    %v2938 = vadd.f32 %v2895, %v2933
    %v2939 = vadd.f32 %v2896, %v2933
    %v2940 = vadd.f32 %v2897, %v2933
    %v2941 = vadd.f32 %v2898, %v2933
    %v2942 = vadd.f32 %v2899, %v2933
    %v2943 = vadd.f32 %v2900, %v2933
    %v2944 = vadd.f32 %v2901, %v2933
    %v2945 = vadd.f32 %v2902, %v2933
    %v2946 = vadd.f32 %v2903, %v2933
    %v2947 = vadd.f32 %v2904, %v2933
    %v2948 = vadd.f32 %v2905, %v2933
    %v2949 = vadd.f32 %v2906, %v2933
    %v2950 = vadd.f32 %v2907, %v2933
    %v2951 = vadd.f32 %v2908, %v2933
    %v2952 = vadd.f32 %v2909, %v2933
    %v2953 = vadd.f32 %v2910, %v2933
    %v2954 = vadd.f32 %v2911, %v2933
    %v2955 = vadd.f32 %v2912, %v2933
    %v2956 = vadd.f32 %v2913, %v2933
    %v2957 = vadd.f32 %v2914, %v2933
    %v2958 = vadd.f32 %v2915, %v2933
    %v2959 = vadd.f32 %v2916, %v2933
    %v2960 = vadd.f32 %v2917, %v2933
    %v2961 = vadd.f32 %v2918, %v2933
    %v2962 = vadd.f32 %v2919, %v2933
    %v2963 = vadd.f32 %v2920, %v2933
    %v2964 = vadd.f32 %v2921, %v2933
    %v2965 = vadd.f32 %v2922, %v2933
    %v2966 = vadd.f32 %v2923, %v2933
    %v2967 = vadd.f32 %v2924, %v2933
    %v2968 = vadd.f32 %v2925, %v2933
    %v2969 = vadd.f32 %v2926, %v2933
    %v2970 = vadd.f32 %v2927, %v2933
    %v2971 = vmax.f32 %v2935, 0.0
    %v2972 = vmax.f32 %v2936, 0.0
    %v2973 = vmax.f32 %v2937, 0.0
    %v2974 = vmax.f32 %v2938, 0.0
    %v2975 = vmax.f32 %v2939, 0.0
    %v2976 = vmax.f32 %v2940, 0.0
    %v2977 = vmax.f32 %v2941, 0.0
    %v2978 = vmax.f32 %v2942, 0.0
    %v2979 = vmax.f32 %v2943, 0.0
    %v2980 = vmax.f32 %v2944, 0.0
    %v2981 = vmax.f32 %v2945, 0.0
    %v2982 = vmax.f32 %v2946, 0.0
    %v2983 = vmax.f32 %v2947, 0.0
    %v2984 = vmax.f32 %v2948, 0.0
    %v2985 = vmax.f32 %v2949, 0.0
    %v2986 = vmax.f32 %v2950, 0.0
    %v2987 = vmax.f32 %v2951, 0.0
    %v2988 = vmax.f32 %v2952, 0.0
    %v2989 = vmax.f32 %v2953, 0.0
    %v2990 = vmax.f32 %v2954, 0.0
    %v2991 = vmax.f32 %v2955, 0.0
    %v2992 = vmax.f32 %v2956, 0.0
    %v2993 = vmax.f32 %v2957, 0.0
    %v2994 = vmax.f32 %v2958, 0.0
    %v2995 = vmax.f32 %v2959, 0.0
    %v2996 = vmax.f32 %v2960, 0.0
    %v2997 = vmax.f32 %v2961, 0.0
    %v2998 = vmax.f32 %v2962, 0.0
    %v2999 = vmax.f32 %v2963, 0.0
    %v3000 = vmax.f32 %v2964, 0.0
    %v3001 = vmax.f32 %v2965, 0.0
    %v3002 = vmax.f32 %v2966, 0.0
    %v3003 = vmax.f32 %v2967, 0.0
    %v3004 = vmax.f32 %v2968, 0.0
    %v3005 = vmax.f32 %v2969, 0.0
    %v3006 = vmax.f32 %v2970, 0.0
    %3007 = vst [vmem:[#allocation2] sm:$0xff] %v2971
    %3008 = vst [vmem:[#allocation2 + $0x8] sm:$0xff] %v2972
    %3009 = vst [vmem:[#allocation2 + $0x10] sm:$0xff] %v2973
    %3010 = vst [vmem:[#allocation2 + $0x18] sm:$0xff] %v2974
    %3011 = vst [vmem:[#allocation2 + $0x20] sm:$0xff] %v2975
    %3012 = vst [vmem:[#allocation2 + $0x28] sm:$0xff] %v2976
    %3013 = vst [vmem:[#allocation2 + $0x30] sm:$0xff] %v2977
    %3014 = vst [vmem:[#allocation2 + $0x38] sm:$0xff] %v2978
    %3015 = vst [vmem:[#allocation2 + $0x40] sm:$0xff] %v2979
    %3016 = vst [vmem:[#allocation2 + $0x48] sm:$0xff] %v2980
    %3017 = vst [vmem:[#allocation2 + $0x50] sm:$0xff] %v2981
    %3018 = vst [vmem:[#allocation2 + $0x58] sm:$0xff] %v2982
    %3019 = vst [vmem:[#allocation2 + $0x60] sm:$0xff] %v2983
    %3020 = vst [vmem:[#allocation2 + $0x68] sm:$0xff] %v2984
    %3021 = vst [vmem:[#allocation2 + $0x70] sm:$0xff] %v2985
    %3022 = vst [vmem:[#allocation2 + $0x78] sm:$0xff] %v2986
    %3023 = vst [vmem:[#allocation2 + $0x80] sm:$0xff] %v2987
    %3024 = vst [vmem:[#allocation2 + $0x88] sm:$0xff] %v2988
    %3025 = vst [vmem:[#allocation2 + $0x90] sm:$0xff] %v2989
    %3026 = vst [vmem:[#allocation2 + $0x98] sm:$0xff] %v2990
    %3027 = vst [vmem:[#allocation2 + $0xa0] sm:$0xff] %v2991
    %3028 = vst [vmem:[#allocation2 + $0xa8] sm:$0xff] %v2992
    %3029 = vst [vmem:[#allocation2 + $0xb0] sm:$0xff] %v2993
    %3030 = vst [vmem:[#allocation2 + $0xb8] sm:$0xff] %v2994
    %3031 = vst [vmem:[#allocation2 + $0xc0] sm:$0xff] %v2995
    %3032 = vst [vmem:[#allocation2 + $0xc8] sm:$0xff] %v2996
    %3033 = vst [vmem:[#allocation2 + $0xd0] sm:$0xff] %v2997
    %3034 = vst [vmem:[#allocation2 + $0xd8] sm:$0xff] %v2998
    %3035 = vst [vmem:[#allocation2 + $0xe0] sm:$0xff] %v2999
    %3036 = vst [vmem:[#allocation2 + $0xe8] sm:$0xff] %v3000
    %3037 = vst [vmem:[#allocation2 + $0xf0] sm:$0xff] %v3001
    %3038 = vst [vmem:[#allocation2 + $0xf8] sm:$0xff] %v3002
    %3039 = vst [vmem:[#allocation2 + $0x100] sm:$0xff] %v3003
    %3040 = vst [vmem:[#allocation2 + $0x108] sm:$0xff] %v3004
    %3041 = vst [vmem:[#allocation2 + $0x110] sm:$0xff] %v3005
    %3042 = vst [vmem:[#allocation2 + $0x118] sm:$0xff] %v3006
    %3044 = vset.pattern.permute.xlu0 0
    %3045 = vperm.xlu0 %3044, %v29
    %v3046 = vpop.permute.xlu0 %3045
    %3049 = vset.pattern.permute.xlu0 0
    %3050 = vperm.xlu0 %3049, %v30
    %v3051 = vpop.permute.xlu0 %3050
    %3054 = vset.pattern.permute.xlu0 0
    %3055 = vperm.xlu0 %3054, %v31
    %v3056 = vpop.permute.xlu0 %3055
    %3059 = vset.pattern.permute.xlu0 0
    %3060 = vperm.xlu0 %3059, %v32
    %v3061 = vpop.permute.xlu0 %3060
    %3064 = vset.pattern.permute.xlu0 0
    %3065 = vperm.xlu0 %3064, %v33
    %v3066 = vpop.permute.xlu0 %3065
    %3069 = vset.pattern.permute.xlu0 0
    %3070 = vperm.xlu0 %3069, %v34
    %v3071 = vpop.permute.xlu0 %3070
    %3074 = vset.pattern.permute.xlu0 0
    %3075 = vperm.xlu0 %3074, %v35
    %v3076 = vpop.permute.xlu0 %3075
    %3079 = vset.pattern.permute.xlu0 0
    %3080 = vperm.xlu0 %3079, %v36
    %v3081 = vpop.permute.xlu0 %3080
    %3084 = vset.pattern.permute.xlu0 0
    %3085 = vperm.xlu0 %3084, %v37
    %v3086 = vpop.permute.xlu0 %3085
    %3089 = vset.pattern.permute.xlu0 0
    %3090 = vperm.xlu0 %3089, %v38
    %v3091 = vpop.permute.xlu0 %3090
    %3094 = vset.pattern.permute.xlu0 0
    %3095 = vperm.xlu0 %3094, %v39
    %v3096 = vpop.permute.xlu0 %3095
    %3099 = vset.pattern.permute.xlu0 0
    %3100 = vperm.xlu0 %3099, %v40
    %v3101 = vpop.permute.xlu0 %3100
    %3104 = vset.pattern.permute.xlu0 0
    %3105 = vperm.xlu0 %3104, %v41
    %v3106 = vpop.permute.xlu0 %3105
    %3109 = vset.pattern.permute.xlu0 0
    %3110 = vperm.xlu0 %3109, %v42
    %v3111 = vpop.permute.xlu0 %3110
    %3114 = vset.pattern.permute.xlu0 0
    %3115 = vperm.xlu0 %3114, %v43
    %v3116 = vpop.permute.xlu0 %3115
    %3119 = vset.pattern.permute.xlu0 0
    %3120 = vperm.xlu0 %3119, %v44
    %v3121 = vpop.permute.xlu0 %3120
    %3124 = vset.pattern.permute.xlu0 0
    %3125 = vperm.xlu0 %3124, %v45
    %v3126 = vpop.permute.xlu0 %3125
    %3129 = vset.pattern.permute.xlu0 0
    %3130 = vperm.xlu0 %3129, %v46
    %v3131 = vpop.permute.xlu0 %3130
    %3134 = vset.pattern.permute.xlu0 0
    %3135 = vperm.xlu0 %3134, %v47
    %v3136 = vpop.permute.xlu0 %3135
    %3139 = vset.pattern.permute.xlu0 0
    %3140 = vperm.xlu0 %3139, %v48
    %v3141 = vpop.permute.xlu0 %3140
    %3144 = vset.pattern.permute.xlu0 0
    %3145 = vperm.xlu0 %3144, %v49
    %v3146 = vpop.permute.xlu0 %3145
    %3149 = vset.pattern.permute.xlu0 0
    %3150 = vperm.xlu0 %3149, %v50
    %v3151 = vpop.permute.xlu0 %3150
    %3154 = vset.pattern.permute.xlu0 0
    %3155 = vperm.xlu0 %3154, %v51
    %v3156 = vpop.permute.xlu0 %3155
    %3159 = vset.pattern.permute.xlu0 0
    %3160 = vperm.xlu0 %3159, %v52
    %v3161 = vpop.permute.xlu0 %3160
    %3164 = vset.pattern.permute.xlu0 0
    %3165 = vperm.xlu0 %3164, %v53
    %v3166 = vpop.permute.xlu0 %3165
    %3169 = vset.pattern.permute.xlu0 0
    %3170 = vperm.xlu0 %3169, %v54
    %v3171 = vpop.permute.xlu0 %3170
    %3174 = vset.pattern.permute.xlu0 0
    %3175 = vperm.xlu0 %3174, %v55
    %v3176 = vpop.permute.xlu0 %3175
    %3179 = vset.pattern.permute.xlu0 0
    %3180 = vperm.xlu0 %3179, %v56
    %v3181 = vpop.permute.xlu0 %3180
    %3184 = vset.pattern.permute.xlu0 0
    %3185 = vperm.xlu0 %3184, %v57
    %v3186 = vpop.permute.xlu0 %3185
    %3189 = vset.pattern.permute.xlu0 0
    %3190 = vperm.xlu0 %3189, %v58
    %v3191 = vpop.permute.xlu0 %3190
    %3194 = vset.pattern.permute.xlu0 0
    %3195 = vperm.xlu0 %3194, %v59
    %v3196 = vpop.permute.xlu0 %3195
    %3199 = vset.pattern.permute.xlu0 0
    %3200 = vperm.xlu0 %3199, %v60
    %v3201 = vpop.permute.xlu0 %3200
    %3204 = vset.pattern.permute.xlu0 0
    %3205 = vperm.xlu0 %3204, %v61
    %v3206 = vpop.permute.xlu0 %3205
    %3209 = vset.pattern.permute.xlu0 0
    %3210 = vperm.xlu0 %3209, %v62
    %v3211 = vpop.permute.xlu0 %3210
    %3214 = vset.pattern.permute.xlu0 0
    %3215 = vperm.xlu0 %3214, %v63
    %v3216 = vpop.permute.xlu0 %3215
    %3219 = vset.pattern.permute.xlu0 0
    %3220 = vperm.xlu0 %3219, %v64
    %v3221 = vpop.permute.xlu0 %3220
    %v3223 = vmul.f32 %v2971, %v3046
    %v3224 = vmul.f32 %v2972, %v3051
    %v3225 = vmul.f32 %v2973, %v3056
    %v3226 = vmul.f32 %v2974, %v3061
    %v3227 = vmul.f32 %v2975, %v3066
    %v3228 = vmul.f32 %v2976, %v3071
    %v3229 = vmul.f32 %v2977, %v3076
    %v3230 = vmul.f32 %v2978, %v3081
    %v3231 = vmul.f32 %v2979, %v3086
    %v3232 = vmul.f32 %v2980, %v3091
    %v3233 = vmul.f32 %v2981, %v3096
    %v3234 = vmul.f32 %v2982, %v3101
    %v3235 = vmul.f32 %v2983, %v3106
    %v3236 = vmul.f32 %v2984, %v3111
    %v3237 = vmul.f32 %v2985, %v3116
    %v3238 = vmul.f32 %v2986, %v3121
    %v3239 = vmul.f32 %v2987, %v3126
    %v3240 = vmul.f32 %v2988, %v3131
    %v3241 = vmul.f32 %v2989, %v3136
    %v3242 = vmul.f32 %v2990, %v3141
    %v3243 = vmul.f32 %v2991, %v3146
    %v3244 = vmul.f32 %v2992, %v3151
    %v3245 = vmul.f32 %v2993, %v3156
    %v3246 = vmul.f32 %v2994, %v3161
    %v3247 = vmul.f32 %v2995, %v3166
    %v3248 = vmul.f32 %v2996, %v3171
    %v3249 = vmul.f32 %v2997, %v3176
    %v3250 = vmul.f32 %v2998, %v3181
    %v3251 = vmul.f32 %v2999, %v3186
    %v3252 = vmul.f32 %v3000, %v3191
    %v3253 = vmul.f32 %v3001, %v3196
    %v3254 = vmul.f32 %v3002, %v3201
    %v3255 = vmul.f32 %v3003, %v3206
    %v3256 = vmul.f32 %v3004, %v3211
    %v3257 = vmul.f32 %v3005, %v3216
    %v3258 = vmul.f32 %v3006, %v3221
    %v3259 = vld [vmem:[#allocation4] sm:$0x1]
    %v3260 = vadd.f32 %v3223, %v3224
    %v3261 = vadd.f32 %v3260, %v3225
    %v3262 = vadd.f32 %v3261, %v3226
    %v3263 = vadd.f32 %v3262, %v3227
    %v3264 = vadd.f32 %v3263, %v3228
    %v3265 = vadd.f32 %v3264, %v3229
    %v3266 = vadd.f32 %v3265, %v3230
    %v3267 = vadd.f32 %v3266, %v3231
    %v3268 = vadd.f32 %v3267, %v3232
    %v3269 = vadd.f32 %v3268, %v3233
    %v3270 = vadd.f32 %v3269, %v3234
    %v3271 = vadd.f32 %v3270, %v3235
    %v3272 = vadd.f32 %v3271, %v3236
    %v3273 = vadd.f32 %v3272, %v3237
    %v3274 = vadd.f32 %v3273, %v3238
    %v3275 = vadd.f32 %v3274, %v3239
    %v3276 = vadd.f32 %v3275, %v3240
    %v3277 = vadd.f32 %v3276, %v3241
    %v3278 = vadd.f32 %v3277, %v3242
    %v3279 = vadd.f32 %v3278, %v3243
    %v3280 = vadd.f32 %v3279, %v3244
    %v3281 = vadd.f32 %v3280, %v3245
    %v3282 = vadd.f32 %v3281, %v3246
    %v3283 = vadd.f32 %v3282, %v3247
    %v3284 = vadd.f32 %v3283, %v3248
    %v3285 = vadd.f32 %v3284, %v3249
    %v3286 = vadd.f32 %v3285, %v3250
    %v3287 = vadd.f32 %v3286, %v3251
    %v3288 = vadd.f32 %v3287, %v3252
    %v3289 = vadd.f32 %v3288, %v3253
    %v3290 = vadd.f32 %v3289, %v3254
    %v3291 = vadd.f32 %v3290, %v3255
    %v3292 = vadd.f32 %v3291, %v3256
    %v3293 = vadd.f32 %v3292, %v3257
    %v3294 = vadd.f32 %v3293, %v3258
    %v3295 = vrot.slane %v3294, 4
    %v3296 = vadd.f32 %v3294, %v3295
    %v3297 = vrot.slane %v3296, 2
    %v3298 = vadd.f32 %v3296, %v3297
    %v3299 = vrot.slane %v3298, 1
    %v3300 = vadd.f32 %v3298, %v3299
    %v3301 = vadd.f32 %v3259, %v3300
    %3302 = vst [vmem:[#allocation4] sm:$0x1] %v3301
    %v3303 = vld [vmem:[#allocation6] sm:$0x1]
    %v3304 = vmul.f32 %v3223, %v2971
    %v3305 = vmul.f32 %v3224, %v2972
    %v3306 = vmul.f32 %v3225, %v2973
    %v3307 = vmul.f32 %v3226, %v2974
    %v3308 = vmul.f32 %v3227, %v2975
    %v3309 = vmul.f32 %v3228, %v2976
    %v3310 = vmul.f32 %v3229, %v2977
    %v3311 = vmul.f32 %v3230, %v2978
    %v3312 = vmul.f32 %v3231, %v2979
    %v3313 = vmul.f32 %v3232, %v2980
    %v3314 = vmul.f32 %v3233, %v2981
    %v3315 = vmul.f32 %v3234, %v2982
    %v3316 = vmul.f32 %v3235, %v2983
    %v3317 = vmul.f32 %v3236, %v2984
    %v3318 = vmul.f32 %v3237, %v2985
    %v3319 = vmul.f32 %v3238, %v2986
    %v3320 = vmul.f32 %v3239, %v2987
    %v3321 = vmul.f32 %v3240, %v2988
    %v3322 = vmul.f32 %v3241, %v2989
    %v3323 = vmul.f32 %v3242, %v2990
    %v3324 = vmul.f32 %v3243, %v2991
    %v3325 = vmul.f32 %v3244, %v2992
    %v3326 = vmul.f32 %v3245, %v2993
    %v3327 = vmul.f32 %v3246, %v2994
    %v3328 = vmul.f32 %v3247, %v2995
    %v3329 = vmul.f32 %v3248, %v2996
    %v3330 = vmul.f32 %v3249, %v2997
    %v3331 = vmul.f32 %v3250, %v2998
    %v3332 = vmul.f32 %v3251, %v2999
    %v3333 = vmul.f32 %v3252, %v3000
    %v3334 = vmul.f32 %v3253, %v3001
    %v3335 = vmul.f32 %v3254, %v3002
    %v3336 = vmul.f32 %v3255, %v3003
    %v3337 = vmul.f32 %v3256, %v3004
    %v3338 = vmul.f32 %v3257, %v3005
    %v3339 = vmul.f32 %v3258, %v3006
    %v3340 = vadd.f32 %v3304, %v3305
    %v3341 = vadd.f32 %v3340, %v3306
    %v3342 = vadd.f32 %v3341, %v3307
    %v3343 = vadd.f32 %v3342, %v3308
    %v3344 = vadd.f32 %v3343, %v3309
    %v3345 = vadd.f32 %v3344, %v3310
    %v3346 = vadd.f32 %v3345, %v3311
    %v3347 = vadd.f32 %v3346, %v3312
    %v3348 = vadd.f32 %v3347, %v3313
    %v3349 = vadd.f32 %v3348, %v3314
    %v3350 = vadd.f32 %v3349, %v3315
    %v3351 = vadd.f32 %v3350, %v3316
    %v3352 = vadd.f32 %v3351, %v3317
    %v3353 = vadd.f32 %v3352, %v3318
    %v3354 = vadd.f32 %v3353, %v3319
    %v3355 = vadd.f32 %v3354, %v3320
    %v3356 = vadd.f32 %v3355, %v3321
    %v3357 = vadd.f32 %v3356, %v3322
    %v3358 = vadd.f32 %v3357, %v3323
    %v3359 = vadd.f32 %v3358, %v3324
    %v3360 = vadd.f32 %v3359, %v3325
    %v3361 = vadd.f32 %v3360, %v3326
    %v3362 = vadd.f32 %v3361, %v3327
    %v3363 = vadd.f32 %v3362, %v3328
    %v3364 = vadd.f32 %v3363, %v3329
    %v3365 = vadd.f32 %v3364, %v3330
    %v3366 = vadd.f32 %v3365, %v3331
    %v3367 = vadd.f32 %v3366, %v3332
    %v3368 = vadd.f32 %v3367, %v3333
    %v3369 = vadd.f32 %v3368, %v3334
    %v3370 = vadd.f32 %v3369, %v3335
    %v3371 = vadd.f32 %v3370, %v3336
    %v3372 = vadd.f32 %v3371, %v3337
    %v3373 = vadd.f32 %v3372, %v3338
    %v3374 = vadd.f32 %v3373, %v3339
    %v3375 = vrot.slane %v3374, 4
    %v3376 = vadd.f32 %v3374, %v3375
    %v3377 = vrot.slane %v3376, 2
    %v3378 = vadd.f32 %v3376, %v3377
    %v3379 = vrot.slane %v3378, 1
    %v3380 = vadd.f32 %v3378, %v3379
    %v3381 = vadd.f32 %v3303, %v3380
    %3382 = vst [vmem:[#allocation6] sm:$0x1] %v3381
    %s3383 = scalar_lea.vmem %s0, 328
    %v3384 = vld [vmem:[%s3383] sm:$0xff]
    %v3385 = vld [vmem:[%s3383 + $0x8] sm:$0xff]
    %v3386 = vld [vmem:[%s3383 + $0x10] sm:$0xff]
    %v3387 = vld [vmem:[%s3383 + $0x18] sm:$0xff]
    %v3388 = vld [vmem:[%s3383 + $0x20] sm:$0xff]
    %v3389 = vld [vmem:[%s3383 + $0x28] sm:$0xff]
    %v3390 = vld [vmem:[%s3383 + $0x30] sm:$0xff]
    %v3391 = vld [vmem:[%s3383 + $0x38] sm:$0xff]
    %v3392 = vld [vmem:[%s3383 + $0x40] sm:$0xff]
    %v3393 = vld [vmem:[%s3383 + $0x48] sm:$0xff]
    %v3394 = vld [vmem:[%s3383 + $0x50] sm:$0xff]
    %v3395 = vld [vmem:[%s3383 + $0x58] sm:$0xff]
    %v3396 = vld [vmem:[%s3383 + $0x60] sm:$0xff]
    %v3397 = vld [vmem:[%s3383 + $0x68] sm:$0xff]
    %v3398 = vld [vmem:[%s3383 + $0x70] sm:$0xff]
    %v3399 = vld [vmem:[%s3383 + $0x78] sm:$0xff]
    %v3400 = vld [vmem:[%s3383 + $0x80] sm:$0xff]
    %v3401 = vld [vmem:[%s3383 + $0x88] sm:$0xff]
    %v3402 = vld [vmem:[%s3383 + $0x90] sm:$0xff]
    %v3403 = vld [vmem:[%s3383 + $0x98] sm:$0xff]
    %v3404 = vld [vmem:[%s3383 + $0xa0] sm:$0xff]
    %v3405 = vld [vmem:[%s3383 + $0xa8] sm:$0xff]
    %v3406 = vld [vmem:[%s3383 + $0xb0] sm:$0xff]
    %v3407 = vld [vmem:[%s3383 + $0xb8] sm:$0xff]
    %v3408 = vld [vmem:[%s3383 + $0xc0] sm:$0xff]
    %v3409 = vld [vmem:[%s3383 + $0xc8] sm:$0xff]
    %v3410 = vld [vmem:[%s3383 + $0xd0] sm:$0xff]
    %v3411 = vld [vmem:[%s3383 + $0xd8] sm:$0xff]
    %v3412 = vld [vmem:[%s3383 + $0xe0] sm:$0xff]
    %v3413 = vld [vmem:[%s3383 + $0xe8] sm:$0xff]
    %v3414 = vld [vmem:[%s3383 + $0xf0] sm:$0xff]
    %v3415 = vld [vmem:[%s3383 + $0xf8] sm:$0xff]
    %v3416 = vld [vmem:[%s3383 + $0x100] sm:$0xff]
    %v3417 = vld [vmem:[%s3383 + $0x108] sm:$0xff]
    %v3418 = vld [vmem:[%s3383 + $0x110] sm:$0xff]
    %v3419 = vld [vmem:[%s3383 + $0x118] sm:$0xff]
    %v3420 = vpack.c.bf16 %v3385, %v3384
    %v3421 = vpack.c.bf16 %v3387, %v3386
    %v3422 = vpack.c.bf16 %v3389, %v3388
    %v3423 = vpack.c.bf16 %v3391, %v3390
    %v3424 = vpack.c.bf16 %v3393, %v3392
    %v3425 = vpack.c.bf16 %v3395, %v3394
    %v3426 = vpack.c.bf16 %v3397, %v3396
    %v3427 = vpack.c.bf16 %v3399, %v3398
    %v3428 = vpack.c.bf16 %v3401, %v3400
    %v3429 = vpack.c.bf16 %v3403, %v3402
    %v3430 = vpack.c.bf16 %v3405, %v3404
    %v3431 = vpack.c.bf16 %v3407, %v3406
    %v3432 = vpack.c.bf16 %v3409, %v3408
    %v3433 = vpack.c.bf16 %v3411, %v3410
    %v3434 = vpack.c.bf16 %v3413, %v3412
    %v3435 = vpack.c.bf16 %v3415, %v3414
    %v3436 = vpack.c.bf16 %v3417, %v3416
    %v3437 = vpack.c.bf16 %v3419, %v3418
    %v3438 = vld [vmem:[%s1] sm:$0xf]
    %v3439 = vld [vmem:[%s3383 + $0x1] sm:$0xff]
    %v3440 = vld [vmem:[%s3383 + $0x9] sm:$0xff]
    %v3441 = vld [vmem:[%s3383 + $0x11] sm:$0xff]
    %v3442 = vld [vmem:[%s3383 + $0x19] sm:$0xff]
    %v3443 = vld [vmem:[%s3383 + $0x21] sm:$0xff]
    %v3444 = vld [vmem:[%s3383 + $0x29] sm:$0xff]
    %v3445 = vld [vmem:[%s3383 + $0x31] sm:$0xff]
    %v3446 = vld [vmem:[%s3383 + $0x39] sm:$0xff]
    %v3447 = vld [vmem:[%s3383 + $0x41] sm:$0xff]
    %v3448 = vld [vmem:[%s3383 + $0x49] sm:$0xff]
    %v3449 = vld [vmem:[%s3383 + $0x51] sm:$0xff]
    %v3450 = vld [vmem:[%s3383 + $0x59] sm:$0xff]
    %v3451 = vld [vmem:[%s3383 + $0x61] sm:$0xff]
    %v3452 = vld [vmem:[%s3383 + $0x69] sm:$0xff]
    %v3453 = vld [vmem:[%s3383 + $0x71] sm:$0xff]
    %v3454 = vld [vmem:[%s3383 + $0x79] sm:$0xff]
    %v3455 = vld [vmem:[%s3383 + $0x81] sm:$0xff]
    %v3456 = vld [vmem:[%s3383 + $0x89] sm:$0xff]
    %v3457 = vld [vmem:[%s3383 + $0x91] sm:$0xff]
    %v3458 = vld [vmem:[%s3383 + $0x99] sm:$0xff]
    %v3459 = vld [vmem:[%s3383 + $0xa1] sm:$0xff]
    %v3460 = vld [vmem:[%s3383 + $0xa9] sm:$0xff]
    %v3461 = vld [vmem:[%s3383 + $0xb1] sm:$0xff]
    %v3462 = vld [vmem:[%s3383 + $0xb9] sm:$0xff]
    %v3463 = vld [vmem:[%s3383 + $0xc1] sm:$0xff]
    %v3464 = vld [vmem:[%s3383 + $0xc9] sm:$0xff]
    %v3465 = vld [vmem:[%s3383 + $0xd1] sm:$0xff]
    %v3466 = vld [vmem:[%s3383 + $0xd9] sm:$0xff]
    %v3467 = vld [vmem:[%s3383 + $0xe1] sm:$0xff]
    %v3468 = vld [vmem:[%s3383 + $0xe9] sm:$0xff]
    %v3469 = vld [vmem:[%s3383 + $0xf1] sm:$0xff]
    %v3470 = vld [vmem:[%s3383 + $0xf9] sm:$0xff]
    %v3471 = vld [vmem:[%s3383 + $0x101] sm:$0xff]
    %v3472 = vld [vmem:[%s3383 + $0x109] sm:$0xff]
    %v3473 = vld [vmem:[%s3383 + $0x111] sm:$0xff]
    %v3474 = vld [vmem:[%s3383 + $0x119] sm:$0xff]
    %v3475 = vpack.c.bf16 %v3440, %v3439
    %v3476 = vpack.c.bf16 %v3442, %v3441
    %v3477 = vpack.c.bf16 %v3444, %v3443
    %v3478 = vpack.c.bf16 %v3446, %v3445
    %v3479 = vpack.c.bf16 %v3448, %v3447
    %v3480 = vpack.c.bf16 %v3450, %v3449
    %v3481 = vpack.c.bf16 %v3452, %v3451
    %v3482 = vpack.c.bf16 %v3454, %v3453
    %v3483 = vpack.c.bf16 %v3456, %v3455
    %v3484 = vpack.c.bf16 %v3458, %v3457
    %v3485 = vpack.c.bf16 %v3460, %v3459
    %v3486 = vpack.c.bf16 %v3462, %v3461
    %v3487 = vpack.c.bf16 %v3464, %v3463
    %v3488 = vpack.c.bf16 %v3466, %v3465
    %v3489 = vpack.c.bf16 %v3468, %v3467
    %v3490 = vpack.c.bf16 %v3470, %v3469
    %v3491 = vpack.c.bf16 %v3472, %v3471
    %v3492 = vpack.c.bf16 %v3474, %v3473
    %v3493 = vld [vmem:[%s174] sm:$0xf]
    %v3495 = vsel %vm176, %v3475, 0
    %v3498 = vsel %vm176, %v3476, 0
    %v3501 = vsel %vm176, %v3477, 0
    %v3504 = vsel %vm176, %v3478, 0
    %v3507 = vsel %vm176, %v3479, 0
    %v3510 = vsel %vm176, %v3480, 0
    %v3513 = vsel %vm176, %v3481, 0
    %v3516 = vsel %vm176, %v3482, 0
    %v3519 = vsel %vm176, %v3483, 0
    %v3522 = vsel %vm176, %v3484, 0
    %v3525 = vsel %vm176, %v3485, 0
    %v3528 = vsel %vm176, %v3486, 0
    %v3531 = vsel %vm176, %v3487, 0
    %v3534 = vsel %vm176, %v3488, 0
    %v3537 = vsel %vm176, %v3489, 0
    %v3540 = vsel %vm176, %v3490, 0
    %v3543 = vsel %vm176, %v3491, 0
    %v3546 = vsel %vm176, %v3492, 0
    %v3549 = vsel %vm231, %v3493, 0
    %3551 = vmatprep.subr.bf16.mxu0 0
    %3552 = vmatpush1.bf16.msra.mxu0 0
    %3553 = vmatprep.subr.bf16.mxu0 0
    %3554 = vmatpush1.bf16.msra.mxu0 0
    %3555 = vmatprep.subr.bf16.mxu0 0
    %3556 = vmatpush1.bf16.msra.mxu0 0
    %3557 = vmatprep.subr.bf16.mxu0 0
    %3558 = vmatpush1.bf16.msra.mxu0 0
    %3559 = vmatprep.subr.bf16.mxu0 0
    %3560 = vmatpush1.bf16.msra.mxu0 0
    %3561 = vmatprep.subr.bf16.mxu0 0
    %3562 = vmatpush1.bf16.msra.mxu0 0
    %3563 = vmatprep.subr.bf16.mxu0 0
    %3564 = vmatpush1.bf16.msra.mxu0 0
    %3565 = vmatprep.subr.bf16.mxu0 0
    %3566 = vmatpush1.bf16.msra.mxu0 %v3549
    %3567 = vmatprep.subr.bf16.mxu0 0
    %3568 = vmatpush2.bf16.msra.mxu0 0
    %3569 = vmatprep.subr.bf16.mxu0 0
    %3570 = vmatpush2.bf16.msra.mxu0 0
    %3571 = vmatprep.subr.bf16.mxu0 0
    %3572 = vmatpush2.bf16.msra.mxu0 0
    %3573 = vmatprep.subr.bf16.mxu0 0
    %3574 = vmatpush2.bf16.msra.mxu0 0
    %3575 = vmatprep.subr.bf16.mxu0 0
    %3576 = vmatpush2.bf16.msra.mxu0 0
    %3577 = vmatprep.subr.bf16.mxu0 0
    %3578 = vmatpush2.bf16.msra.mxu0 0
    %3579 = vmatprep.subr.bf16.mxu0 0
    %3580 = vmatpush2.bf16.msra.mxu0 0
    %3581 = vmatprep.subr.bf16.mxu0 0
    %3582 = vmatpush2.bf16.msra.mxu0 0
    %3583 = vmatprep.mubr.bf16.mxu0 0
    %3584 = vmatmul.mubr.bf16.gmra.mxu0 %v3495
    %v3585 = vpop.f32.mrf.mxu0
    %v3586 = vadd.f32 0.0, %v3585
    %v3587 = vpop.f32.mrf.mxu0
    %v3588 = vpop.f32.mrf.mxu0
    %v3589 = vadd.f32 0.0, %v3588
    %v3590 = vpop.f32.mrf.mxu0
    %3591 = vmatprep.mubr.bf16.mxu0 0
    %3592 = vmatmul.mubr.bf16.gmra.mxu0 %v3498
    %v3593 = vpop.f32.mrf.mxu0
    %v3594 = vadd.f32 0.0, %v3593
    %v3595 = vpop.f32.mrf.mxu0
    %v3596 = vpop.f32.mrf.mxu0
    %v3597 = vadd.f32 0.0, %v3596
    %v3598 = vpop.f32.mrf.mxu0
    %3599 = vmatprep.mubr.bf16.mxu0 0
    %3600 = vmatmul.mubr.bf16.gmra.mxu0 %v3501
    %v3601 = vpop.f32.mrf.mxu0
    %v3602 = vadd.f32 0.0, %v3601
    %v3603 = vpop.f32.mrf.mxu0
    %v3604 = vpop.f32.mrf.mxu0
    %v3605 = vadd.f32 0.0, %v3604
    %v3606 = vpop.f32.mrf.mxu0
    %3607 = vmatprep.mubr.bf16.mxu0 0
    %3608 = vmatmul.mubr.bf16.gmra.mxu0 %v3504
    %v3609 = vpop.f32.mrf.mxu0
    %v3610 = vadd.f32 0.0, %v3609
    %v3611 = vpop.f32.mrf.mxu0
    %v3612 = vpop.f32.mrf.mxu0
    %v3613 = vadd.f32 0.0, %v3612
    %v3614 = vpop.f32.mrf.mxu0
    %3615 = vmatprep.mubr.bf16.mxu0 0
    %3616 = vmatmul.mubr.bf16.gmra.mxu0 %v3507
    %v3617 = vpop.f32.mrf.mxu0
    %v3618 = vadd.f32 0.0, %v3617
    %v3619 = vpop.f32.mrf.mxu0
    %v3620 = vpop.f32.mrf.mxu0
    %v3621 = vadd.f32 0.0, %v3620
    %v3622 = vpop.f32.mrf.mxu0
    %3623 = vmatprep.mubr.bf16.mxu0 0
    %3624 = vmatmul.mubr.bf16.gmra.mxu0 %v3510
    %v3625 = vpop.f32.mrf.mxu0
    %v3626 = vadd.f32 0.0, %v3625
    %v3627 = vpop.f32.mrf.mxu0
    %v3628 = vpop.f32.mrf.mxu0
    %v3629 = vadd.f32 0.0, %v3628
    %v3630 = vpop.f32.mrf.mxu0
    %3631 = vmatprep.mubr.bf16.mxu0 0
    %3632 = vmatmul.mubr.bf16.gmra.mxu0 %v3513
    %v3633 = vpop.f32.mrf.mxu0
    %v3634 = vadd.f32 0.0, %v3633
    %v3635 = vpop.f32.mrf.mxu0
    %v3636 = vpop.f32.mrf.mxu0
    %v3637 = vadd.f32 0.0, %v3636
    %v3638 = vpop.f32.mrf.mxu0
    %3639 = vmatprep.mubr.bf16.mxu0 0
    %3640 = vmatmul.mubr.bf16.gmra.mxu0 %v3516
    %v3641 = vpop.f32.mrf.mxu0
    %v3642 = vadd.f32 0.0, %v3641
    %v3643 = vpop.f32.mrf.mxu0
    %v3644 = vpop.f32.mrf.mxu0
    %v3645 = vadd.f32 0.0, %v3644
    %v3646 = vpop.f32.mrf.mxu0
    %3647 = vmatprep.mubr.bf16.mxu0 0
    %3648 = vmatmul.mubr.bf16.gmra.mxu0 %v3519
    %v3649 = vpop.f32.mrf.mxu0
    %v3650 = vadd.f32 0.0, %v3649
    %v3651 = vpop.f32.mrf.mxu0
    %v3652 = vpop.f32.mrf.mxu0
    %v3653 = vadd.f32 0.0, %v3652
    %v3654 = vpop.f32.mrf.mxu0
    %3655 = vmatprep.mubr.bf16.mxu0 0
    %3656 = vmatmul.mubr.bf16.gmra.mxu0 %v3522
    %v3657 = vpop.f32.mrf.mxu0
    %v3658 = vadd.f32 0.0, %v3657
    %v3659 = vpop.f32.mrf.mxu0
    %v3660 = vpop.f32.mrf.mxu0
    %v3661 = vadd.f32 0.0, %v3660
    %v3662 = vpop.f32.mrf.mxu0
    %3663 = vmatprep.mubr.bf16.mxu0 0
    %3664 = vmatmul.mubr.bf16.gmra.mxu0 %v3525
    %v3665 = vpop.f32.mrf.mxu0
    %v3666 = vadd.f32 0.0, %v3665
    %v3667 = vpop.f32.mrf.mxu0
    %v3668 = vpop.f32.mrf.mxu0
    %v3669 = vadd.f32 0.0, %v3668
    %v3670 = vpop.f32.mrf.mxu0
    %3671 = vmatprep.mubr.bf16.mxu0 0
    %3672 = vmatmul.mubr.bf16.gmra.mxu0 %v3528
    %v3673 = vpop.f32.mrf.mxu0
    %v3674 = vadd.f32 0.0, %v3673
    %v3675 = vpop.f32.mrf.mxu0
    %v3676 = vpop.f32.mrf.mxu0
    %v3677 = vadd.f32 0.0, %v3676
    %v3678 = vpop.f32.mrf.mxu0
    %3679 = vmatprep.mubr.bf16.mxu0 0
    %3680 = vmatmul.mubr.bf16.gmra.mxu0 %v3531
    %v3681 = vpop.f32.mrf.mxu0
    %v3682 = vadd.f32 0.0, %v3681
    %v3683 = vpop.f32.mrf.mxu0
    %v3684 = vpop.f32.mrf.mxu0
    %v3685 = vadd.f32 0.0, %v3684
    %v3686 = vpop.f32.mrf.mxu0
    %3687 = vmatprep.mubr.bf16.mxu0 0
    %3688 = vmatmul.mubr.bf16.gmra.mxu0 %v3534
    %v3689 = vpop.f32.mrf.mxu0
    %v3690 = vadd.f32 0.0, %v3689
    %v3691 = vpop.f32.mrf.mxu0
    %v3692 = vpop.f32.mrf.mxu0
    %v3693 = vadd.f32 0.0, %v3692
    %v3694 = vpop.f32.mrf.mxu0
    %3695 = vmatprep.mubr.bf16.mxu0 0
    %3696 = vmatmul.mubr.bf16.gmra.mxu0 %v3537
    %v3697 = vpop.f32.mrf.mxu0
    %v3698 = vadd.f32 0.0, %v3697
    %v3699 = vpop.f32.mrf.mxu0
    %v3700 = vpop.f32.mrf.mxu0
    %v3701 = vadd.f32 0.0, %v3700
    %v3702 = vpop.f32.mrf.mxu0
    %3703 = vmatprep.mubr.bf16.mxu0 0
    %3704 = vmatmul.mubr.bf16.gmra.mxu0 %v3540
    %v3705 = vpop.f32.mrf.mxu0
    %v3706 = vadd.f32 0.0, %v3705
    %v3707 = vpop.f32.mrf.mxu0
    %v3708 = vpop.f32.mrf.mxu0
    %v3709 = vadd.f32 0.0, %v3708
    %v3710 = vpop.f32.mrf.mxu0
    %3711 = vmatprep.mubr.bf16.mxu0 0
    %3712 = vmatmul.mubr.bf16.gmra.mxu0 %v3543
    %v3713 = vpop.f32.mrf.mxu0
    %v3714 = vadd.f32 0.0, %v3713
    %v3715 = vpop.f32.mrf.mxu0
    %v3716 = vpop.f32.mrf.mxu0
    %v3717 = vadd.f32 0.0, %v3716
    %v3718 = vpop.f32.mrf.mxu0
    %3719 = vmatprep.mubr.bf16.mxu0 0
    %3720 = vmatmul.mubr.bf16.gmra.mxu0 %v3546
    %v3721 = vpop.f32.mrf.mxu0
    %v3722 = vadd.f32 0.0, %v3721
    %v3723 = vpop.f32.mrf.mxu0
    %v3724 = vpop.f32.mrf.mxu0
    %v3725 = vadd.f32 0.0, %v3724
    %v3726 = vpop.f32.mrf.mxu0
    %3727 = vdwg.mxu0
    %v3729 = vsel %vm176, %v3420, 0
    %v3732 = vsel %vm176, %v3421, 0
    %v3735 = vsel %vm176, %v3422, 0
    %v3738 = vsel %vm176, %v3423, 0
    %v3741 = vsel %vm176, %v3424, 0
    %v3744 = vsel %vm176, %v3425, 0
    %v3747 = vsel %vm176, %v3426, 0
    %v3750 = vsel %vm176, %v3427, 0
    %v3753 = vsel %vm176, %v3428, 0
    %v3756 = vsel %vm176, %v3429, 0
    %v3759 = vsel %vm176, %v3430, 0
    %v3762 = vsel %vm176, %v3431, 0
    %v3765 = vsel %vm176, %v3432, 0
    %v3768 = vsel %vm176, %v3433, 0
    %v3771 = vsel %vm176, %v3434, 0
    %v3774 = vsel %vm176, %v3435, 0
    %v3777 = vsel %vm176, %v3436, 0
    %v3780 = vsel %vm176, %v3437, 0
    %v3783 = vsel %vm231, %v3438, 0
    %3785 = vmatprep.subr.bf16.mxu0 0
    %3786 = vmatpush1.bf16.msra.mxu0 0
    %3787 = vmatprep.subr.bf16.mxu0 0
    %3788 = vmatpush1.bf16.msra.mxu0 0
    %3789 = vmatprep.subr.bf16.mxu0 0
    %3790 = vmatpush1.bf16.msra.mxu0 0
    %3791 = vmatprep.subr.bf16.mxu0 0
    %3792 = vmatpush1.bf16.msra.mxu0 0
    %3793 = vmatprep.subr.bf16.mxu0 0
    %3794 = vmatpush1.bf16.msra.mxu0 0
    %3795 = vmatprep.subr.bf16.mxu0 0
    %3796 = vmatpush1.bf16.msra.mxu0 0
    %3797 = vmatprep.subr.bf16.mxu0 0
    %3798 = vmatpush1.bf16.msra.mxu0 0
    %3799 = vmatprep.subr.bf16.mxu0 0
    %3800 = vmatpush1.bf16.msra.mxu0 %v3783
    %3801 = vmatprep.subr.bf16.mxu0 0
    %3802 = vmatpush2.bf16.msra.mxu0 0
    %3803 = vmatprep.subr.bf16.mxu0 0
    %3804 = vmatpush2.bf16.msra.mxu0 0
    %3805 = vmatprep.subr.bf16.mxu0 0
    %3806 = vmatpush2.bf16.msra.mxu0 0
    %3807 = vmatprep.subr.bf16.mxu0 0
    %3808 = vmatpush2.bf16.msra.mxu0 0
    %3809 = vmatprep.subr.bf16.mxu0 0
    %3810 = vmatpush2.bf16.msra.mxu0 0
    %3811 = vmatprep.subr.bf16.mxu0 0
    %3812 = vmatpush2.bf16.msra.mxu0 0
    %3813 = vmatprep.subr.bf16.mxu0 0
    %3814 = vmatpush2.bf16.msra.mxu0 0
    %3815 = vmatprep.subr.bf16.mxu0 0
    %3816 = vmatpush2.bf16.msra.mxu0 0
    %3817 = vmatprep.mubr.bf16.mxu0 0
    %3818 = vmatmul.mubr.bf16.gmra.mxu0 %v3729
    %v3819 = vpop.f32.mrf.mxu0
    %v3820 = vadd.f32 %v3586, %v3819
    %v3821 = vpop.f32.mrf.mxu0
    %v3822 = vpop.f32.mrf.mxu0
    %v3823 = vadd.f32 %v3589, %v3822
    %v3824 = vpop.f32.mrf.mxu0
    %3825 = vmatprep.mubr.bf16.mxu0 0
    %3826 = vmatmul.mubr.bf16.gmra.mxu0 %v3732
    %v3827 = vpop.f32.mrf.mxu0
    %v3828 = vadd.f32 %v3594, %v3827
    %v3829 = vpop.f32.mrf.mxu0
    %v3830 = vpop.f32.mrf.mxu0
    %v3831 = vadd.f32 %v3597, %v3830
    %v3832 = vpop.f32.mrf.mxu0
    %3833 = vmatprep.mubr.bf16.mxu0 0
    %3834 = vmatmul.mubr.bf16.gmra.mxu0 %v3735
    %v3835 = vpop.f32.mrf.mxu0
    %v3836 = vadd.f32 %v3602, %v3835
    %v3837 = vpop.f32.mrf.mxu0
    %v3838 = vpop.f32.mrf.mxu0
    %v3839 = vadd.f32 %v3605, %v3838
    %v3840 = vpop.f32.mrf.mxu0
    %3841 = vmatprep.mubr.bf16.mxu0 0
    %3842 = vmatmul.mubr.bf16.gmra.mxu0 %v3738
    %v3843 = vpop.f32.mrf.mxu0
    %v3844 = vadd.f32 %v3610, %v3843
    %v3845 = vpop.f32.mrf.mxu0
    %v3846 = vpop.f32.mrf.mxu0
    %v3847 = vadd.f32 %v3613, %v3846
    %v3848 = vpop.f32.mrf.mxu0
    %3849 = vmatprep.mubr.bf16.mxu0 0
    %3850 = vmatmul.mubr.bf16.gmra.mxu0 %v3741
    %v3851 = vpop.f32.mrf.mxu0
    %v3852 = vadd.f32 %v3618, %v3851
    %v3853 = vpop.f32.mrf.mxu0
    %v3854 = vpop.f32.mrf.mxu0
    %v3855 = vadd.f32 %v3621, %v3854
    %v3856 = vpop.f32.mrf.mxu0
    %3857 = vmatprep.mubr.bf16.mxu0 0
    %3858 = vmatmul.mubr.bf16.gmra.mxu0 %v3744
    %v3859 = vpop.f32.mrf.mxu0
    %v3860 = vadd.f32 %v3626, %v3859
    %v3861 = vpop.f32.mrf.mxu0
    %v3862 = vpop.f32.mrf.mxu0
    %v3863 = vadd.f32 %v3629, %v3862
    %v3864 = vpop.f32.mrf.mxu0
    %3865 = vmatprep.mubr.bf16.mxu0 0
    %3866 = vmatmul.mubr.bf16.gmra.mxu0 %v3747
    %v3867 = vpop.f32.mrf.mxu0
    %v3868 = vadd.f32 %v3634, %v3867
    %v3869 = vpop.f32.mrf.mxu0
    %v3870 = vpop.f32.mrf.mxu0
    %v3871 = vadd.f32 %v3637, %v3870
    %v3872 = vpop.f32.mrf.mxu0
    %3873 = vmatprep.mubr.bf16.mxu0 0
    %3874 = vmatmul.mubr.bf16.gmra.mxu0 %v3750
    %v3875 = vpop.f32.mrf.mxu0
    %v3876 = vadd.f32 %v3642, %v3875
    %v3877 = vpop.f32.mrf.mxu0
    %v3878 = vpop.f32.mrf.mxu0
    %v3879 = vadd.f32 %v3645, %v3878
    %v3880 = vpop.f32.mrf.mxu0
    %3881 = vmatprep.mubr.bf16.mxu0 0
    %3882 = vmatmul.mubr.bf16.gmra.mxu0 %v3753
    %v3883 = vpop.f32.mrf.mxu0
    %v3884 = vadd.f32 %v3650, %v3883
    %v3885 = vpop.f32.mrf.mxu0
    %v3886 = vpop.f32.mrf.mxu0
    %v3887 = vadd.f32 %v3653, %v3886
    %v3888 = vpop.f32.mrf.mxu0
    %3889 = vmatprep.mubr.bf16.mxu0 0
    %3890 = vmatmul.mubr.bf16.gmra.mxu0 %v3756
    %v3891 = vpop.f32.mrf.mxu0
    %v3892 = vadd.f32 %v3658, %v3891
    %v3893 = vpop.f32.mrf.mxu0
    %v3894 = vpop.f32.mrf.mxu0
    %v3895 = vadd.f32 %v3661, %v3894
    %v3896 = vpop.f32.mrf.mxu0
    %3897 = vmatprep.mubr.bf16.mxu0 0
    %3898 = vmatmul.mubr.bf16.gmra.mxu0 %v3759
    %v3899 = vpop.f32.mrf.mxu0
    %v3900 = vadd.f32 %v3666, %v3899
    %v3901 = vpop.f32.mrf.mxu0
    %v3902 = vpop.f32.mrf.mxu0
    %v3903 = vadd.f32 %v3669, %v3902
    %v3904 = vpop.f32.mrf.mxu0
    %3905 = vmatprep.mubr.bf16.mxu0 0
    %3906 = vmatmul.mubr.bf16.gmra.mxu0 %v3762
    %v3907 = vpop.f32.mrf.mxu0
    %v3908 = vadd.f32 %v3674, %v3907
    %v3909 = vpop.f32.mrf.mxu0
    %v3910 = vpop.f32.mrf.mxu0
    %v3911 = vadd.f32 %v3677, %v3910
    %v3912 = vpop.f32.mrf.mxu0
    %3913 = vmatprep.mubr.bf16.mxu0 0
    %3914 = vmatmul.mubr.bf16.gmra.mxu0 %v3765
    %v3915 = vpop.f32.mrf.mxu0
    %v3916 = vadd.f32 %v3682, %v3915
    %v3917 = vpop.f32.mrf.mxu0
    %v3918 = vpop.f32.mrf.mxu0
    %v3919 = vadd.f32 %v3685, %v3918
    %v3920 = vpop.f32.mrf.mxu0
    %3921 = vmatprep.mubr.bf16.mxu0 0
    %3922 = vmatmul.mubr.bf16.gmra.mxu0 %v3768
    %v3923 = vpop.f32.mrf.mxu0
    %v3924 = vadd.f32 %v3690, %v3923
    %v3925 = vpop.f32.mrf.mxu0
    %v3926 = vpop.f32.mrf.mxu0
    %v3927 = vadd.f32 %v3693, %v3926
    %v3928 = vpop.f32.mrf.mxu0
    %3929 = vmatprep.mubr.bf16.mxu0 0
    %3930 = vmatmul.mubr.bf16.gmra.mxu0 %v3771
    %v3931 = vpop.f32.mrf.mxu0
    %v3932 = vadd.f32 %v3698, %v3931
    %v3933 = vpop.f32.mrf.mxu0
    %v3934 = vpop.f32.mrf.mxu0
    %v3935 = vadd.f32 %v3701, %v3934
    %v3936 = vpop.f32.mrf.mxu0
    %3937 = vmatprep.mubr.bf16.mxu0 0
    %3938 = vmatmul.mubr.bf16.gmra.mxu0 %v3774
    %v3939 = vpop.f32.mrf.mxu0
    %v3940 = vadd.f32 %v3706, %v3939
    %v3941 = vpop.f32.mrf.mxu0
    %v3942 = vpop.f32.mrf.mxu0
    %v3943 = vadd.f32 %v3709, %v3942
    %v3944 = vpop.f32.mrf.mxu0
    %3945 = vmatprep.mubr.bf16.mxu0 0
    %3946 = vmatmul.mubr.bf16.gmra.mxu0 %v3777
    %v3947 = vpop.f32.mrf.mxu0
    %v3948 = vadd.f32 %v3714, %v3947
    %v3949 = vpop.f32.mrf.mxu0
    %v3950 = vpop.f32.mrf.mxu0
    %v3951 = vadd.f32 %v3717, %v3950
    %v3952 = vpop.f32.mrf.mxu0
    %3953 = vmatprep.mubr.bf16.mxu0 0
    %3954 = vmatmul.mubr.bf16.gmra.mxu0 %v3780
    %v3955 = vpop.f32.mrf.mxu0
    %v3956 = vadd.f32 %v3722, %v3955
    %v3957 = vpop.f32.mrf.mxu0
    %v3958 = vpop.f32.mrf.mxu0
    %v3959 = vadd.f32 %v3725, %v3958
    %v3960 = vpop.f32.mrf.mxu0
    %3961 = vdwg.mxu0
    %v3962 = vld [vmem:[%s3383 + $0x2] sm:$0xff]
    %v3963 = vld [vmem:[%s3383 + $0xa] sm:$0xff]
    %v3964 = vld [vmem:[%s3383 + $0x12] sm:$0xff]
    %v3965 = vld [vmem:[%s3383 + $0x1a] sm:$0xff]
    %v3966 = vld [vmem:[%s3383 + $0x22] sm:$0xff]
    %v3967 = vld [vmem:[%s3383 + $0x2a] sm:$0xff]
    %v3968 = vld [vmem:[%s3383 + $0x32] sm:$0xff]
    %v3969 = vld [vmem:[%s3383 + $0x3a] sm:$0xff]
    %v3970 = vld [vmem:[%s3383 + $0x42] sm:$0xff]
    %v3971 = vld [vmem:[%s3383 + $0x4a] sm:$0xff]
    %v3972 = vld [vmem:[%s3383 + $0x52] sm:$0xff]
    %v3973 = vld [vmem:[%s3383 + $0x5a] sm:$0xff]
    %v3974 = vld [vmem:[%s3383 + $0x62] sm:$0xff]
    %v3975 = vld [vmem:[%s3383 + $0x6a] sm:$0xff]
    %v3976 = vld [vmem:[%s3383 + $0x72] sm:$0xff]
    %v3977 = vld [vmem:[%s3383 + $0x7a] sm:$0xff]
    %v3978 = vld [vmem:[%s3383 + $0x82] sm:$0xff]
    %v3979 = vld [vmem:[%s3383 + $0x8a] sm:$0xff]
    %v3980 = vld [vmem:[%s3383 + $0x92] sm:$0xff]
    %v3981 = vld [vmem:[%s3383 + $0x9a] sm:$0xff]
    %v3982 = vld [vmem:[%s3383 + $0xa2] sm:$0xff]
    %v3983 = vld [vmem:[%s3383 + $0xaa] sm:$0xff]
    %v3984 = vld [vmem:[%s3383 + $0xb2] sm:$0xff]
    %v3985 = vld [vmem:[%s3383 + $0xba] sm:$0xff]
    %v3986 = vld [vmem:[%s3383 + $0xc2] sm:$0xff]
    %v3987 = vld [vmem:[%s3383 + $0xca] sm:$0xff]
    %v3988 = vld [vmem:[%s3383 + $0xd2] sm:$0xff]
    %v3989 = vld [vmem:[%s3383 + $0xda] sm:$0xff]
    %v3990 = vld [vmem:[%s3383 + $0xe2] sm:$0xff]
    %v3991 = vld [vmem:[%s3383 + $0xea] sm:$0xff]
    %v3992 = vld [vmem:[%s3383 + $0xf2] sm:$0xff]
    %v3993 = vld [vmem:[%s3383 + $0xfa] sm:$0xff]
    %v3994 = vld [vmem:[%s3383 + $0x102] sm:$0xff]
    %v3995 = vld [vmem:[%s3383 + $0x10a] sm:$0xff]
    %v3996 = vld [vmem:[%s3383 + $0x112] sm:$0xff]
    %v3997 = vld [vmem:[%s3383 + $0x11a] sm:$0xff]
    %v3998 = vpack.c.bf16 %v3963, %v3962
    %v3999 = vpack.c.bf16 %v3965, %v3964
    %v4000 = vpack.c.bf16 %v3967, %v3966
    %v4001 = vpack.c.bf16 %v3969, %v3968
    %v4002 = vpack.c.bf16 %v3971, %v3970
    %v4003 = vpack.c.bf16 %v3973, %v3972
    %v4004 = vpack.c.bf16 %v3975, %v3974
    %v4005 = vpack.c.bf16 %v3977, %v3976
    %v4006 = vpack.c.bf16 %v3979, %v3978
    %v4007 = vpack.c.bf16 %v3981, %v3980
    %v4008 = vpack.c.bf16 %v3983, %v3982
    %v4009 = vpack.c.bf16 %v3985, %v3984
    %v4010 = vpack.c.bf16 %v3987, %v3986
    %v4011 = vpack.c.bf16 %v3989, %v3988
    %v4012 = vpack.c.bf16 %v3991, %v3990
    %v4013 = vpack.c.bf16 %v3993, %v3992
    %v4014 = vpack.c.bf16 %v3995, %v3994
    %v4015 = vpack.c.bf16 %v3997, %v3996
    %v4016 = vld [vmem:[%s700] sm:$0xf]
    %v4018 = vsel %vm176, %v3998, 0
    %v4021 = vsel %vm176, %v3999, 0
    %v4024 = vsel %vm176, %v4000, 0
    %v4027 = vsel %vm176, %v4001, 0
    %v4030 = vsel %vm176, %v4002, 0
    %v4033 = vsel %vm176, %v4003, 0
    %v4036 = vsel %vm176, %v4004, 0
    %v4039 = vsel %vm176, %v4005, 0
    %v4042 = vsel %vm176, %v4006, 0
    %v4045 = vsel %vm176, %v4007, 0
    %v4048 = vsel %vm176, %v4008, 0
    %v4051 = vsel %vm176, %v4009, 0
    %v4054 = vsel %vm176, %v4010, 0
    %v4057 = vsel %vm176, %v4011, 0
    %v4060 = vsel %vm176, %v4012, 0
    %v4063 = vsel %vm176, %v4013, 0
    %v4066 = vsel %vm176, %v4014, 0
    %v4069 = vsel %vm176, %v4015, 0
    %v4072 = vsel %vm231, %v4016, 0
    %4074 = vmatprep.subr.bf16.mxu0 0
    %4075 = vmatpush1.bf16.msra.mxu0 0
    %4076 = vmatprep.subr.bf16.mxu0 0
    %4077 = vmatpush1.bf16.msra.mxu0 0
    %4078 = vmatprep.subr.bf16.mxu0 0
    %4079 = vmatpush1.bf16.msra.mxu0 0
    %4080 = vmatprep.subr.bf16.mxu0 0
    %4081 = vmatpush1.bf16.msra.mxu0 0
    %4082 = vmatprep.subr.bf16.mxu0 0
    %4083 = vmatpush1.bf16.msra.mxu0 0
    %4084 = vmatprep.subr.bf16.mxu0 0
    %4085 = vmatpush1.bf16.msra.mxu0 0
    %4086 = vmatprep.subr.bf16.mxu0 0
    %4087 = vmatpush1.bf16.msra.mxu0 0
    %4088 = vmatprep.subr.bf16.mxu0 0
    %4089 = vmatpush1.bf16.msra.mxu0 %v4072
    %4090 = vmatprep.subr.bf16.mxu0 0
    %4091 = vmatpush2.bf16.msra.mxu0 0
    %4092 = vmatprep.subr.bf16.mxu0 0
    %4093 = vmatpush2.bf16.msra.mxu0 0
    %4094 = vmatprep.subr.bf16.mxu0 0
    %4095 = vmatpush2.bf16.msra.mxu0 0
    %4096 = vmatprep.subr.bf16.mxu0 0
    %4097 = vmatpush2.bf16.msra.mxu0 0
    %4098 = vmatprep.subr.bf16.mxu0 0
    %4099 = vmatpush2.bf16.msra.mxu0 0
    %4100 = vmatprep.subr.bf16.mxu0 0
    %4101 = vmatpush2.bf16.msra.mxu0 0
    %4102 = vmatprep.subr.bf16.mxu0 0
    %4103 = vmatpush2.bf16.msra.mxu0 0
    %4104 = vmatprep.subr.bf16.mxu0 0
    %4105 = vmatpush2.bf16.msra.mxu0 0
    %4106 = vmatprep.mubr.bf16.mxu0 0
    %4107 = vmatmul.mubr.bf16.gmra.mxu0 %v4018
    %v4108 = vpop.f32.mrf.mxu0
    %v4109 = vadd.f32 0.0, %v4108
    %v4110 = vpop.f32.mrf.mxu0
    %v4111 = vpop.f32.mrf.mxu0
    %v4112 = vadd.f32 0.0, %v4111
    %v4113 = vpop.f32.mrf.mxu0
    %4114 = vmatprep.mubr.bf16.mxu0 0
    %4115 = vmatmul.mubr.bf16.gmra.mxu0 %v4021
    %v4116 = vpop.f32.mrf.mxu0
    %v4117 = vadd.f32 0.0, %v4116
    %v4118 = vpop.f32.mrf.mxu0
    %v4119 = vpop.f32.mrf.mxu0
    %v4120 = vadd.f32 0.0, %v4119
    %v4121 = vpop.f32.mrf.mxu0
    %4122 = vmatprep.mubr.bf16.mxu0 0
    %4123 = vmatmul.mubr.bf16.gmra.mxu0 %v4024
    %v4124 = vpop.f32.mrf.mxu0
    %v4125 = vadd.f32 0.0, %v4124
    %v4126 = vpop.f32.mrf.mxu0
    %v4127 = vpop.f32.mrf.mxu0
    %v4128 = vadd.f32 0.0, %v4127
    %v4129 = vpop.f32.mrf.mxu0
    %4130 = vmatprep.mubr.bf16.mxu0 0
    %4131 = vmatmul.mubr.bf16.gmra.mxu0 %v4027
    %v4132 = vpop.f32.mrf.mxu0
    %v4133 = vadd.f32 0.0, %v4132
    %v4134 = vpop.f32.mrf.mxu0
    %v4135 = vpop.f32.mrf.mxu0
    %v4136 = vadd.f32 0.0, %v4135
    %v4137 = vpop.f32.mrf.mxu0
    %4138 = vmatprep.mubr.bf16.mxu0 0
    %4139 = vmatmul.mubr.bf16.gmra.mxu0 %v4030
    %v4140 = vpop.f32.mrf.mxu0
    %v4141 = vadd.f32 0.0, %v4140
    %v4142 = vpop.f32.mrf.mxu0
    %v4143 = vpop.f32.mrf.mxu0
    %v4144 = vadd.f32 0.0, %v4143
    %v4145 = vpop.f32.mrf.mxu0
    %4146 = vmatprep.mubr.bf16.mxu0 0
    %4147 = vmatmul.mubr.bf16.gmra.mxu0 %v4033
    %v4148 = vpop.f32.mrf.mxu0
    %v4149 = vadd.f32 0.0, %v4148
    %v4150 = vpop.f32.mrf.mxu0
    %v4151 = vpop.f32.mrf.mxu0
    %v4152 = vadd.f32 0.0, %v4151
    %v4153 = vpop.f32.mrf.mxu0
    %4154 = vmatprep.mubr.bf16.mxu0 0
    %4155 = vmatmul.mubr.bf16.gmra.mxu0 %v4036
    %v4156 = vpop.f32.mrf.mxu0
    %v4157 = vadd.f32 0.0, %v4156
    %v4158 = vpop.f32.mrf.mxu0
    %v4159 = vpop.f32.mrf.mxu0
    %v4160 = vadd.f32 0.0, %v4159
    %v4161 = vpop.f32.mrf.mxu0
    %4162 = vmatprep.mubr.bf16.mxu0 0
    %4163 = vmatmul.mubr.bf16.gmra.mxu0 %v4039
    %v4164 = vpop.f32.mrf.mxu0
    %v4165 = vadd.f32 0.0, %v4164
    %v4166 = vpop.f32.mrf.mxu0
    %v4167 = vpop.f32.mrf.mxu0
    %v4168 = vadd.f32 0.0, %v4167
    %v4169 = vpop.f32.mrf.mxu0
    %4170 = vmatprep.mubr.bf16.mxu0 0
    %4171 = vmatmul.mubr.bf16.gmra.mxu0 %v4042
    %v4172 = vpop.f32.mrf.mxu0
    %v4173 = vadd.f32 0.0, %v4172
    %v4174 = vpop.f32.mrf.mxu0
    %v4175 = vpop.f32.mrf.mxu0
    %v4176 = vadd.f32 0.0, %v4175
    %v4177 = vpop.f32.mrf.mxu0
    %4178 = vmatprep.mubr.bf16.mxu0 0
    %4179 = vmatmul.mubr.bf16.gmra.mxu0 %v4045
    %v4180 = vpop.f32.mrf.mxu0
    %v4181 = vadd.f32 0.0, %v4180
    %v4182 = vpop.f32.mrf.mxu0
    %v4183 = vpop.f32.mrf.mxu0
    %v4184 = vadd.f32 0.0, %v4183
    %v4185 = vpop.f32.mrf.mxu0
    %4186 = vmatprep.mubr.bf16.mxu0 0
    %4187 = vmatmul.mubr.bf16.gmra.mxu0 %v4048
    %v4188 = vpop.f32.mrf.mxu0
    %v4189 = vadd.f32 0.0, %v4188
    %v4190 = vpop.f32.mrf.mxu0
    %v4191 = vpop.f32.mrf.mxu0
    %v4192 = vadd.f32 0.0, %v4191
    %v4193 = vpop.f32.mrf.mxu0
    %4194 = vmatprep.mubr.bf16.mxu0 0
    %4195 = vmatmul.mubr.bf16.gmra.mxu0 %v4051
    %v4196 = vpop.f32.mrf.mxu0
    %v4197 = vadd.f32 0.0, %v4196
    %v4198 = vpop.f32.mrf.mxu0
    %v4199 = vpop.f32.mrf.mxu0
    %v4200 = vadd.f32 0.0, %v4199
    %v4201 = vpop.f32.mrf.mxu0
    %4202 = vmatprep.mubr.bf16.mxu0 0
    %4203 = vmatmul.mubr.bf16.gmra.mxu0 %v4054
    %v4204 = vpop.f32.mrf.mxu0
    %v4205 = vadd.f32 0.0, %v4204
    %v4206 = vpop.f32.mrf.mxu0
    %v4207 = vpop.f32.mrf.mxu0
    %v4208 = vadd.f32 0.0, %v4207
    %v4209 = vpop.f32.mrf.mxu0
    %4210 = vmatprep.mubr.bf16.mxu0 0
    %4211 = vmatmul.mubr.bf16.gmra.mxu0 %v4057
    %v4212 = vpop.f32.mrf.mxu0
    %v4213 = vadd.f32 0.0, %v4212
    %v4214 = vpop.f32.mrf.mxu0
    %v4215 = vpop.f32.mrf.mxu0
    %v4216 = vadd.f32 0.0, %v4215
    %v4217 = vpop.f32.mrf.mxu0
    %4218 = vmatprep.mubr.bf16.mxu0 0
    %4219 = vmatmul.mubr.bf16.gmra.mxu0 %v4060
    %v4220 = vpop.f32.mrf.mxu0
    %v4221 = vadd.f32 0.0, %v4220
    %v4222 = vpop.f32.mrf.mxu0
    %v4223 = vpop.f32.mrf.mxu0
    %v4224 = vadd.f32 0.0, %v4223
    %v4225 = vpop.f32.mrf.mxu0
    %4226 = vmatprep.mubr.bf16.mxu0 0
    %4227 = vmatmul.mubr.bf16.gmra.mxu0 %v4063
    %v4228 = vpop.f32.mrf.mxu0
    %v4229 = vadd.f32 0.0, %v4228
    %v4230 = vpop.f32.mrf.mxu0
    %v4231 = vpop.f32.mrf.mxu0
    %v4232 = vadd.f32 0.0, %v4231
    %v4233 = vpop.f32.mrf.mxu0
    %4234 = vmatprep.mubr.bf16.mxu0 0
    %4235 = vmatmul.mubr.bf16.gmra.mxu0 %v4066
    %v4236 = vpop.f32.mrf.mxu0
    %v4237 = vadd.f32 0.0, %v4236
    %v4238 = vpop.f32.mrf.mxu0
    %v4239 = vpop.f32.mrf.mxu0
    %v4240 = vadd.f32 0.0, %v4239
    %v4241 = vpop.f32.mrf.mxu0
    %4242 = vmatprep.mubr.bf16.mxu0 0
    %4243 = vmatmul.mubr.bf16.gmra.mxu0 %v4069
    %v4244 = vpop.f32.mrf.mxu0
    %v4245 = vadd.f32 0.0, %v4244
    %v4246 = vpop.f32.mrf.mxu0
    %v4247 = vpop.f32.mrf.mxu0
    %v4248 = vadd.f32 0.0, %v4247
    %v4249 = vpop.f32.mrf.mxu0
    %4250 = vdwg.mxu0
    %v4251 = vadd.f32 %v3820, %v4109
    %v4252 = vadd.f32 %v3823, %v4112
    %v4253 = vadd.f32 %v3828, %v4117
    %v4254 = vadd.f32 %v3831, %v4120
    %v4255 = vadd.f32 %v3836, %v4125
    %v4256 = vadd.f32 %v3839, %v4128
    %v4257 = vadd.f32 %v3844, %v4133
    %v4258 = vadd.f32 %v3847, %v4136
    %v4259 = vadd.f32 %v3852, %v4141
    %v4260 = vadd.f32 %v3855, %v4144
    %v4261 = vadd.f32 %v3860, %v4149
    %v4262 = vadd.f32 %v3863, %v4152
    %v4263 = vadd.f32 %v3868, %v4157
    %v4264 = vadd.f32 %v3871, %v4160
    %v4265 = vadd.f32 %v3876, %v4165
    %v4266 = vadd.f32 %v3879, %v4168
    %v4267 = vadd.f32 %v3884, %v4173
    %v4268 = vadd.f32 %v3887, %v4176
    %v4269 = vadd.f32 %v3892, %v4181
    %v4270 = vadd.f32 %v3895, %v4184
    %v4271 = vadd.f32 %v3900, %v4189
    %v4272 = vadd.f32 %v3903, %v4192
    %v4273 = vadd.f32 %v3908, %v4197
    %v4274 = vadd.f32 %v3911, %v4200
    %v4275 = vadd.f32 %v3916, %v4205
    %v4276 = vadd.f32 %v3919, %v4208
    %v4277 = vadd.f32 %v3924, %v4213
    %v4278 = vadd.f32 %v3927, %v4216
    %v4279 = vadd.f32 %v3932, %v4221
    %v4280 = vadd.f32 %v3935, %v4224
    %v4281 = vadd.f32 %v3940, %v4229
    %v4282 = vadd.f32 %v3943, %v4232
    %v4283 = vadd.f32 %v3948, %v4237
    %v4284 = vadd.f32 %v3951, %v4240
    %v4285 = vadd.f32 %v3956, %v4245
    %v4286 = vadd.f32 %v3959, %v4248
    %v4287 = vld [vmem:[%s3383 + $0x12] sm:$0xff]
    %v4288 = vld [vmem:[%s3383 + $0x1a] sm:$0xff]
    %v4289 = vld [vmem:[%s3383 + $0x22] sm:$0xff]
    %v4290 = vld [vmem:[%s3383 + $0x2a] sm:$0xff]
    %v4291 = vld [vmem:[%s3383 + $0x32] sm:$0xff]
    %v4292 = vld [vmem:[%s3383 + $0x3a] sm:$0xff]
    %v4293 = vld [vmem:[%s3383 + $0x42] sm:$0xff]
    %v4294 = vld [vmem:[%s3383 + $0x4a] sm:$0xff]
    %v4295 = vld [vmem:[%s3383 + $0x52] sm:$0xff]
    %v4296 = vld [vmem:[%s3383 + $0x5a] sm:$0xff]
    %v4297 = vld [vmem:[%s3383 + $0x62] sm:$0xff]
    %v4298 = vld [vmem:[%s3383 + $0x6a] sm:$0xff]
    %v4299 = vld [vmem:[%s3383 + $0x72] sm:$0xff]
    %v4300 = vld [vmem:[%s3383 + $0x7a] sm:$0xff]
    %v4301 = vld [vmem:[%s3383 + $0x82] sm:$0xff]
    %v4302 = vld [vmem:[%s3383 + $0x8a] sm:$0xff]
    %v4303 = vld [vmem:[%s3383 + $0x92] sm:$0xff]
    %v4304 = vld [vmem:[%s3383 + $0x9a] sm:$0xff]
    %v4305 = vld [vmem:[%s3383 + $0xa2] sm:$0xff]
    %v4306 = vld [vmem:[%s3383 + $0xaa] sm:$0xff]
    %v4307 = vld [vmem:[%s3383 + $0xb2] sm:$0xff]
    %v4308 = vld [vmem:[%s3383 + $0xba] sm:$0xff]
    %v4309 = vld [vmem:[%s3383 + $0xc2] sm:$0xff]
    %v4310 = vld [vmem:[%s3383 + $0xca] sm:$0xff]
    %v4311 = vld [vmem:[%s3383 + $0xd2] sm:$0xff]
    %v4312 = vld [vmem:[%s3383 + $0xda] sm:$0xff]
    %v4313 = vld [vmem:[%s3383 + $0xe2] sm:$0xff]
    %v4314 = vld [vmem:[%s3383 + $0xea] sm:$0xff]
    %v4315 = vld [vmem:[%s3383 + $0xf2] sm:$0xff]
    %v4316 = vld [vmem:[%s3383 + $0xfa] sm:$0xff]
    %v4317 = vld [vmem:[%s3383 + $0x102] sm:$0xff]
    %v4318 = vld [vmem:[%s3383 + $0x10a] sm:$0xff]
    %v4319 = vld [vmem:[%s3383 + $0x112] sm:$0xff]
    %v4320 = vld [vmem:[%s3383 + $0x11a] sm:$0xff]
    %v4321 = vld [vmem:[%s3383 + $0x122] sm:$0xff]
    %v4322 = vld [vmem:[%s3383 + $0x12a] sm:$0xff]
    %v4323 = vpack.c.bf16 %v4288, %v4287
    %v4324 = vpack.c.bf16 %v4290, %v4289
    %v4325 = vpack.c.bf16 %v4292, %v4291
    %v4326 = vpack.c.bf16 %v4294, %v4293
    %v4327 = vpack.c.bf16 %v4296, %v4295
    %v4328 = vpack.c.bf16 %v4298, %v4297
    %v4329 = vpack.c.bf16 %v4300, %v4299
    %v4330 = vpack.c.bf16 %v4302, %v4301
    %v4331 = vpack.c.bf16 %v4304, %v4303
    %v4332 = vpack.c.bf16 %v4306, %v4305
    %v4333 = vpack.c.bf16 %v4308, %v4307
    %v4334 = vpack.c.bf16 %v4310, %v4309
    %v4335 = vpack.c.bf16 %v4312, %v4311
    %v4336 = vpack.c.bf16 %v4314, %v4313
    %v4337 = vpack.c.bf16 %v4316, %v4315
    %v4338 = vpack.c.bf16 %v4318, %v4317
    %v4339 = vpack.c.bf16 %v4320, %v4319
    %v4340 = vpack.c.bf16 %v4322, %v4321
    %v4341 = vld [vmem:[%s1026] sm:$0xf]
    %v4343 = vsel %vm176, %v4323, 0
    %v4346 = vsel %vm176, %v4324, 0
    %v4349 = vsel %vm176, %v4325, 0
    %v4352 = vsel %vm176, %v4326, 0
    %v4355 = vsel %vm176, %v4327, 0
    %v4358 = vsel %vm176, %v4328, 0
    %v4361 = vsel %vm176, %v4329, 0
    %v4364 = vsel %vm176, %v4330, 0
    %v4367 = vsel %vm176, %v4331, 0
    %v4370 = vsel %vm176, %v4332, 0
    %v4373 = vsel %vm176, %v4333, 0
    %v4376 = vsel %vm176, %v4334, 0
    %v4379 = vsel %vm176, %v4335, 0
    %v4382 = vsel %vm176, %v4336, 0
    %v4385 = vsel %vm176, %v4337, 0
    %v4388 = vsel %vm176, %v4338, 0
    %v4391 = vsel %vm176, %v4339, 0
    %v4394 = vsel %vm176, %v4340, 0
    %v4397 = vsel %vm231, %v4341, 0
    %4399 = vmatprep.subr.bf16.mxu0 0
    %4400 = vmatpush1.bf16.msra.mxu0 0
    %4401 = vmatprep.subr.bf16.mxu0 0
    %4402 = vmatpush1.bf16.msra.mxu0 0
    %4403 = vmatprep.subr.bf16.mxu0 0
    %4404 = vmatpush1.bf16.msra.mxu0 0
    %4405 = vmatprep.subr.bf16.mxu0 0
    %4406 = vmatpush1.bf16.msra.mxu0 0
    %4407 = vmatprep.subr.bf16.mxu0 0
    %4408 = vmatpush1.bf16.msra.mxu0 0
    %4409 = vmatprep.subr.bf16.mxu0 0
    %4410 = vmatpush1.bf16.msra.mxu0 0
    %4411 = vmatprep.subr.bf16.mxu0 0
    %4412 = vmatpush1.bf16.msra.mxu0 0
    %4413 = vmatprep.subr.bf16.mxu0 0
    %4414 = vmatpush1.bf16.msra.mxu0 %v4397
    %4415 = vmatprep.subr.bf16.mxu0 0
    %4416 = vmatpush2.bf16.msra.mxu0 0
    %4417 = vmatprep.subr.bf16.mxu0 0
    %4418 = vmatpush2.bf16.msra.mxu0 0
    %4419 = vmatprep.subr.bf16.mxu0 0
    %4420 = vmatpush2.bf16.msra.mxu0 0
    %4421 = vmatprep.subr.bf16.mxu0 0
    %4422 = vmatpush2.bf16.msra.mxu0 0
    %4423 = vmatprep.subr.bf16.mxu0 0
    %4424 = vmatpush2.bf16.msra.mxu0 0
    %4425 = vmatprep.subr.bf16.mxu0 0
    %4426 = vmatpush2.bf16.msra.mxu0 0
    %4427 = vmatprep.subr.bf16.mxu0 0
    %4428 = vmatpush2.bf16.msra.mxu0 0
    %4429 = vmatprep.subr.bf16.mxu0 0
    %4430 = vmatpush2.bf16.msra.mxu0 0
    %4431 = vmatprep.mubr.bf16.mxu0 0
    %4432 = vmatmul.mubr.bf16.gmra.mxu0 %v4343
    %v4433 = vpop.f32.mrf.mxu0
    %v4434 = vadd.f32 0.0, %v4433
    %v4435 = vpop.f32.mrf.mxu0
    %v4436 = vpop.f32.mrf.mxu0
    %v4437 = vadd.f32 0.0, %v4436
    %v4438 = vpop.f32.mrf.mxu0
    %4439 = vmatprep.mubr.bf16.mxu0 0
    %4440 = vmatmul.mubr.bf16.gmra.mxu0 %v4346
    %v4441 = vpop.f32.mrf.mxu0
    %v4442 = vadd.f32 0.0, %v4441
    %v4443 = vpop.f32.mrf.mxu0
    %v4444 = vpop.f32.mrf.mxu0
    %v4445 = vadd.f32 0.0, %v4444
    %v4446 = vpop.f32.mrf.mxu0
    %4447 = vmatprep.mubr.bf16.mxu0 0
    %4448 = vmatmul.mubr.bf16.gmra.mxu0 %v4349
    %v4449 = vpop.f32.mrf.mxu0
    %v4450 = vadd.f32 0.0, %v4449
    %v4451 = vpop.f32.mrf.mxu0
    %v4452 = vpop.f32.mrf.mxu0
    %v4453 = vadd.f32 0.0, %v4452
    %v4454 = vpop.f32.mrf.mxu0
    %4455 = vmatprep.mubr.bf16.mxu0 0
    %4456 = vmatmul.mubr.bf16.gmra.mxu0 %v4352
    %v4457 = vpop.f32.mrf.mxu0
    %v4458 = vadd.f32 0.0, %v4457
    %v4459 = vpop.f32.mrf.mxu0
    %v4460 = vpop.f32.mrf.mxu0
    %v4461 = vadd.f32 0.0, %v4460
    %v4462 = vpop.f32.mrf.mxu0
    %4463 = vmatprep.mubr.bf16.mxu0 0
    %4464 = vmatmul.mubr.bf16.gmra.mxu0 %v4355
    %v4465 = vpop.f32.mrf.mxu0
    %v4466 = vadd.f32 0.0, %v4465
    %v4467 = vpop.f32.mrf.mxu0
    %v4468 = vpop.f32.mrf.mxu0
    %v4469 = vadd.f32 0.0, %v4468
    %v4470 = vpop.f32.mrf.mxu0
    %4471 = vmatprep.mubr.bf16.mxu0 0
    %4472 = vmatmul.mubr.bf16.gmra.mxu0 %v4358
    %v4473 = vpop.f32.mrf.mxu0
    %v4474 = vadd.f32 0.0, %v4473
    %v4475 = vpop.f32.mrf.mxu0
    %v4476 = vpop.f32.mrf.mxu0
    %v4477 = vadd.f32 0.0, %v4476
    %v4478 = vpop.f32.mrf.mxu0
    %4479 = vmatprep.mubr.bf16.mxu0 0
    %4480 = vmatmul.mubr.bf16.gmra.mxu0 %v4361
    %v4481 = vpop.f32.mrf.mxu0
    %v4482 = vadd.f32 0.0, %v4481
    %v4483 = vpop.f32.mrf.mxu0
    %v4484 = vpop.f32.mrf.mxu0
    %v4485 = vadd.f32 0.0, %v4484
    %v4486 = vpop.f32.mrf.mxu0
    %4487 = vmatprep.mubr.bf16.mxu0 0
    %4488 = vmatmul.mubr.bf16.gmra.mxu0 %v4364
    %v4489 = vpop.f32.mrf.mxu0
    %v4490 = vadd.f32 0.0, %v4489
    %v4491 = vpop.f32.mrf.mxu0
    %v4492 = vpop.f32.mrf.mxu0
    %v4493 = vadd.f32 0.0, %v4492
    %v4494 = vpop.f32.mrf.mxu0
    %4495 = vmatprep.mubr.bf16.mxu0 0
    %4496 = vmatmul.mubr.bf16.gmra.mxu0 %v4367
    %v4497 = vpop.f32.mrf.mxu0
    %v4498 = vadd.f32 0.0, %v4497
    %v4499 = vpop.f32.mrf.mxu0
    %v4500 = vpop.f32.mrf.mxu0
    %v4501 = vadd.f32 0.0, %v4500
    %v4502 = vpop.f32.mrf.mxu0
    %4503 = vmatprep.mubr.bf16.mxu0 0
    %4504 = vmatmul.mubr.bf16.gmra.mxu0 %v4370
    %v4505 = vpop.f32.mrf.mxu0
    %v4506 = vadd.f32 0.0, %v4505
    %v4507 = vpop.f32.mrf.mxu0
    %v4508 = vpop.f32.mrf.mxu0
    %v4509 = vadd.f32 0.0, %v4508
    %v4510 = vpop.f32.mrf.mxu0
    %4511 = vmatprep.mubr.bf16.mxu0 0
    %4512 = vmatmul.mubr.bf16.gmra.mxu0 %v4373
    %v4513 = vpop.f32.mrf.mxu0
    %v4514 = vadd.f32 0.0, %v4513
    %v4515 = vpop.f32.mrf.mxu0
    %v4516 = vpop.f32.mrf.mxu0
    %v4517 = vadd.f32 0.0, %v4516
    %v4518 = vpop.f32.mrf.mxu0
    %4519 = vmatprep.mubr.bf16.mxu0 0
    %4520 = vmatmul.mubr.bf16.gmra.mxu0 %v4376
    %v4521 = vpop.f32.mrf.mxu0
    %v4522 = vadd.f32 0.0, %v4521
    %v4523 = vpop.f32.mrf.mxu0
    %v4524 = vpop.f32.mrf.mxu0
    %v4525 = vadd.f32 0.0, %v4524
    %v4526 = vpop.f32.mrf.mxu0
    %4527 = vmatprep.mubr.bf16.mxu0 0
    %4528 = vmatmul.mubr.bf16.gmra.mxu0 %v4379
    %v4529 = vpop.f32.mrf.mxu0
    %v4530 = vadd.f32 0.0, %v4529
    %v4531 = vpop.f32.mrf.mxu0
    %v4532 = vpop.f32.mrf.mxu0
    %v4533 = vadd.f32 0.0, %v4532
    %v4534 = vpop.f32.mrf.mxu0
    %4535 = vmatprep.mubr.bf16.mxu0 0
    %4536 = vmatmul.mubr.bf16.gmra.mxu0 %v4382
    %v4537 = vpop.f32.mrf.mxu0
    %v4538 = vadd.f32 0.0, %v4537
    %v4539 = vpop.f32.mrf.mxu0
    %v4540 = vpop.f32.mrf.mxu0
    %v4541 = vadd.f32 0.0, %v4540
    %v4542 = vpop.f32.mrf.mxu0
    %4543 = vmatprep.mubr.bf16.mxu0 0
    %4544 = vmatmul.mubr.bf16.gmra.mxu0 %v4385
    %v4545 = vpop.f32.mrf.mxu0
    %v4546 = vadd.f32 0.0, %v4545
    %v4547 = vpop.f32.mrf.mxu0
    %v4548 = vpop.f32.mrf.mxu0
    %v4549 = vadd.f32 0.0, %v4548
    %v4550 = vpop.f32.mrf.mxu0
    %4551 = vmatprep.mubr.bf16.mxu0 0
    %4552 = vmatmul.mubr.bf16.gmra.mxu0 %v4388
    %v4553 = vpop.f32.mrf.mxu0
    %v4554 = vadd.f32 0.0, %v4553
    %v4555 = vpop.f32.mrf.mxu0
    %v4556 = vpop.f32.mrf.mxu0
    %v4557 = vadd.f32 0.0, %v4556
    %v4558 = vpop.f32.mrf.mxu0
    %4559 = vmatprep.mubr.bf16.mxu0 0
    %4560 = vmatmul.mubr.bf16.gmra.mxu0 %v4391
    %v4561 = vpop.f32.mrf.mxu0
    %v4562 = vadd.f32 0.0, %v4561
    %v4563 = vpop.f32.mrf.mxu0
    %v4564 = vpop.f32.mrf.mxu0
    %v4565 = vadd.f32 0.0, %v4564
    %v4566 = vpop.f32.mrf.mxu0
    %4567 = vmatprep.mubr.bf16.mxu0 0
    %4568 = vmatmul.mubr.bf16.gmra.mxu0 %v4394
    %v4569 = vpop.f32.mrf.mxu0
    %v4570 = vadd.f32 0.0, %v4569
    %v4571 = vpop.f32.mrf.mxu0
    %v4572 = vpop.f32.mrf.mxu0
    %v4573 = vadd.f32 0.0, %v4572
    %v4574 = vpop.f32.mrf.mxu0
    %4575 = vdwg.mxu0
    %v4576 = vadd.f32 %v4251, %v4434
    %v4577 = vadd.f32 %v4252, %v4437
    %v4578 = vadd.f32 %v4253, %v4442
    %v4579 = vadd.f32 %v4254, %v4445
    %v4580 = vadd.f32 %v4255, %v4450
    %v4581 = vadd.f32 %v4256, %v4453
    %v4582 = vadd.f32 %v4257, %v4458
    %v4583 = vadd.f32 %v4258, %v4461
    %v4584 = vadd.f32 %v4259, %v4466
    %v4585 = vadd.f32 %v4260, %v4469
    %v4586 = vadd.f32 %v4261, %v4474
    %v4587 = vadd.f32 %v4262, %v4477
    %v4588 = vadd.f32 %v4263, %v4482
    %v4589 = vadd.f32 %v4264, %v4485
    %v4590 = vadd.f32 %v4265, %v4490
    %v4591 = vadd.f32 %v4266, %v4493
    %v4592 = vadd.f32 %v4267, %v4498
    %v4593 = vadd.f32 %v4268, %v4501
    %v4594 = vadd.f32 %v4269, %v4506
    %v4595 = vadd.f32 %v4270, %v4509
    %v4596 = vadd.f32 %v4271, %v4514
    %v4597 = vadd.f32 %v4272, %v4517
    %v4598 = vadd.f32 %v4273, %v4522
    %v4599 = vadd.f32 %v4274, %v4525
    %v4600 = vadd.f32 %v4275, %v4530
    %v4601 = vadd.f32 %v4276, %v4533
    %v4602 = vadd.f32 %v4277, %v4538
    %v4603 = vadd.f32 %v4278, %v4541
    %v4604 = vadd.f32 %v4279, %v4546
    %v4605 = vadd.f32 %v4280, %v4549
    %v4606 = vadd.f32 %v4281, %v4554
    %v4607 = vadd.f32 %v4282, %v4557
    %v4608 = vadd.f32 %v4283, %v4562
    %v4609 = vadd.f32 %v4284, %v4565
    %v4610 = vadd.f32 %v4285, %v4570
    %v4611 = vadd.f32 %v4286, %v4573
    %v4612 = vld [vmem:[%s3383 + $0x13] sm:$0xff]
    %v4613 = vld [vmem:[%s3383 + $0x1b] sm:$0xff]
    %v4614 = vld [vmem:[%s3383 + $0x23] sm:$0xff]
    %v4615 = vld [vmem:[%s3383 + $0x2b] sm:$0xff]
    %v4616 = vld [vmem:[%s3383 + $0x33] sm:$0xff]
    %v4617 = vld [vmem:[%s3383 + $0x3b] sm:$0xff]
    %v4618 = vld [vmem:[%s3383 + $0x43] sm:$0xff]
    %v4619 = vld [vmem:[%s3383 + $0x4b] sm:$0xff]
    %v4620 = vld [vmem:[%s3383 + $0x53] sm:$0xff]
    %v4621 = vld [vmem:[%s3383 + $0x5b] sm:$0xff]
    %v4622 = vld [vmem:[%s3383 + $0x63] sm:$0xff]
    %v4623 = vld [vmem:[%s3383 + $0x6b] sm:$0xff]
    %v4624 = vld [vmem:[%s3383 + $0x73] sm:$0xff]
    %v4625 = vld [vmem:[%s3383 + $0x7b] sm:$0xff]
    %v4626 = vld [vmem:[%s3383 + $0x83] sm:$0xff]
    %v4627 = vld [vmem:[%s3383 + $0x8b] sm:$0xff]
    %v4628 = vld [vmem:[%s3383 + $0x93] sm:$0xff]
    %v4629 = vld [vmem:[%s3383 + $0x9b] sm:$0xff]
    %v4630 = vld [vmem:[%s3383 + $0xa3] sm:$0xff]
    %v4631 = vld [vmem:[%s3383 + $0xab] sm:$0xff]
    %v4632 = vld [vmem:[%s3383 + $0xb3] sm:$0xff]
    %v4633 = vld [vmem:[%s3383 + $0xbb] sm:$0xff]
    %v4634 = vld [vmem:[%s3383 + $0xc3] sm:$0xff]
    %v4635 = vld [vmem:[%s3383 + $0xcb] sm:$0xff]
    %v4636 = vld [vmem:[%s3383 + $0xd3] sm:$0xff]
    %v4637 = vld [vmem:[%s3383 + $0xdb] sm:$0xff]
    %v4638 = vld [vmem:[%s3383 + $0xe3] sm:$0xff]
    %v4639 = vld [vmem:[%s3383 + $0xeb] sm:$0xff]
    %v4640 = vld [vmem:[%s3383 + $0xf3] sm:$0xff]
    %v4641 = vld [vmem:[%s3383 + $0xfb] sm:$0xff]
    %v4642 = vld [vmem:[%s3383 + $0x103] sm:$0xff]
    %v4643 = vld [vmem:[%s3383 + $0x10b] sm:$0xff]
    %v4644 = vld [vmem:[%s3383 + $0x113] sm:$0xff]
    %v4645 = vld [vmem:[%s3383 + $0x11b] sm:$0xff]
    %v4646 = vld [vmem:[%s3383 + $0x123] sm:$0xff]
    %v4647 = vld [vmem:[%s3383 + $0x12b] sm:$0xff]
    %v4648 = vpack.c.bf16 %v4613, %v4612
    %v4649 = vpack.c.bf16 %v4615, %v4614
    %v4650 = vpack.c.bf16 %v4617, %v4616
    %v4651 = vpack.c.bf16 %v4619, %v4618
    %v4652 = vpack.c.bf16 %v4621, %v4620
    %v4653 = vpack.c.bf16 %v4623, %v4622
    %v4654 = vpack.c.bf16 %v4625, %v4624
    %v4655 = vpack.c.bf16 %v4627, %v4626
    %v4656 = vpack.c.bf16 %v4629, %v4628
    %v4657 = vpack.c.bf16 %v4631, %v4630
    %v4658 = vpack.c.bf16 %v4633, %v4632
    %v4659 = vpack.c.bf16 %v4635, %v4634
    %v4660 = vpack.c.bf16 %v4637, %v4636
    %v4661 = vpack.c.bf16 %v4639, %v4638
    %v4662 = vpack.c.bf16 %v4641, %v4640
    %v4663 = vpack.c.bf16 %v4643, %v4642
    %v4664 = vpack.c.bf16 %v4645, %v4644
    %v4665 = vpack.c.bf16 %v4647, %v4646
    %v4666 = vld [vmem:[%s1352] sm:$0xf]
    %v4668 = vsel %vm176, %v4648, 0
    %v4671 = vsel %vm176, %v4649, 0
    %v4674 = vsel %vm176, %v4650, 0
    %v4677 = vsel %vm176, %v4651, 0
    %v4680 = vsel %vm176, %v4652, 0
    %v4683 = vsel %vm176, %v4653, 0
    %v4686 = vsel %vm176, %v4654, 0
    %v4689 = vsel %vm176, %v4655, 0
    %v4692 = vsel %vm176, %v4656, 0
    %v4695 = vsel %vm176, %v4657, 0
    %v4698 = vsel %vm176, %v4658, 0
    %v4701 = vsel %vm176, %v4659, 0
    %v4704 = vsel %vm176, %v4660, 0
    %v4707 = vsel %vm176, %v4661, 0
    %v4710 = vsel %vm176, %v4662, 0
    %v4713 = vsel %vm176, %v4663, 0
    %v4716 = vsel %vm176, %v4664, 0
    %v4719 = vsel %vm176, %v4665, 0
    %v4722 = vsel %vm231, %v4666, 0
    %4724 = vmatprep.subr.bf16.mxu0 0
    %4725 = vmatpush1.bf16.msra.mxu0 0
    %4726 = vmatprep.subr.bf16.mxu0 0
    %4727 = vmatpush1.bf16.msra.mxu0 0
    %4728 = vmatprep.subr.bf16.mxu0 0
    %4729 = vmatpush1.bf16.msra.mxu0 0
    %4730 = vmatprep.subr.bf16.mxu0 0
    %4731 = vmatpush1.bf16.msra.mxu0 0
    %4732 = vmatprep.subr.bf16.mxu0 0
    %4733 = vmatpush1.bf16.msra.mxu0 0
    %4734 = vmatprep.subr.bf16.mxu0 0
    %4735 = vmatpush1.bf16.msra.mxu0 0
    %4736 = vmatprep.subr.bf16.mxu0 0
    %4737 = vmatpush1.bf16.msra.mxu0 0
    %4738 = vmatprep.subr.bf16.mxu0 0
    %4739 = vmatpush1.bf16.msra.mxu0 %v4722
    %4740 = vmatprep.subr.bf16.mxu0 0
    %4741 = vmatpush2.bf16.msra.mxu0 0
    %4742 = vmatprep.subr.bf16.mxu0 0
    %4743 = vmatpush2.bf16.msra.mxu0 0
    %4744 = vmatprep.subr.bf16.mxu0 0
    %4745 = vmatpush2.bf16.msra.mxu0 0
    %4746 = vmatprep.subr.bf16.mxu0 0
    %4747 = vmatpush2.bf16.msra.mxu0 0
    %4748 = vmatprep.subr.bf16.mxu0 0
    %4749 = vmatpush2.bf16.msra.mxu0 0
    %4750 = vmatprep.subr.bf16.mxu0 0
    %4751 = vmatpush2.bf16.msra.mxu0 0
    %4752 = vmatprep.subr.bf16.mxu0 0
    %4753 = vmatpush2.bf16.msra.mxu0 0
    %4754 = vmatprep.subr.bf16.mxu0 0
    %4755 = vmatpush2.bf16.msra.mxu0 0
    %4756 = vmatprep.mubr.bf16.mxu0 0
    %4757 = vmatmul.mubr.bf16.gmra.mxu0 %v4668
    %v4758 = vpop.f32.mrf.mxu0
    %v4759 = vadd.f32 0.0, %v4758
    %v4760 = vpop.f32.mrf.mxu0
    %v4761 = vpop.f32.mrf.mxu0
    %v4762 = vadd.f32 0.0, %v4761
    %v4763 = vpop.f32.mrf.mxu0
    %4764 = vmatprep.mubr.bf16.mxu0 0
    %4765 = vmatmul.mubr.bf16.gmra.mxu0 %v4671
    %v4766 = vpop.f32.mrf.mxu0
    %v4767 = vadd.f32 0.0, %v4766
    %v4768 = vpop.f32.mrf.mxu0
    %v4769 = vpop.f32.mrf.mxu0
    %v4770 = vadd.f32 0.0, %v4769
    %v4771 = vpop.f32.mrf.mxu0
    %4772 = vmatprep.mubr.bf16.mxu0 0
    %4773 = vmatmul.mubr.bf16.gmra.mxu0 %v4674
    %v4774 = vpop.f32.mrf.mxu0
    %v4775 = vadd.f32 0.0, %v4774
    %v4776 = vpop.f32.mrf.mxu0
    %v4777 = vpop.f32.mrf.mxu0
    %v4778 = vadd.f32 0.0, %v4777
    %v4779 = vpop.f32.mrf.mxu0
    %4780 = vmatprep.mubr.bf16.mxu0 0
    %4781 = vmatmul.mubr.bf16.gmra.mxu0 %v4677
    %v4782 = vpop.f32.mrf.mxu0
    %v4783 = vadd.f32 0.0, %v4782
    %v4784 = vpop.f32.mrf.mxu0
    %v4785 = vpop.f32.mrf.mxu0
    %v4786 = vadd.f32 0.0, %v4785
    %v4787 = vpop.f32.mrf.mxu0
    %4788 = vmatprep.mubr.bf16.mxu0 0
    %4789 = vmatmul.mubr.bf16.gmra.mxu0 %v4680
    %v4790 = vpop.f32.mrf.mxu0
    %v4791 = vadd.f32 0.0, %v4790
    %v4792 = vpop.f32.mrf.mxu0
    %v4793 = vpop.f32.mrf.mxu0
    %v4794 = vadd.f32 0.0, %v4793
    %v4795 = vpop.f32.mrf.mxu0
    %4796 = vmatprep.mubr.bf16.mxu0 0
    %4797 = vmatmul.mubr.bf16.gmra.mxu0 %v4683
    %v4798 = vpop.f32.mrf.mxu0
    %v4799 = vadd.f32 0.0, %v4798
    %v4800 = vpop.f32.mrf.mxu0
    %v4801 = vpop.f32.mrf.mxu0
    %v4802 = vadd.f32 0.0, %v4801
    %v4803 = vpop.f32.mrf.mxu0
    %4804 = vmatprep.mubr.bf16.mxu0 0
    %4805 = vmatmul.mubr.bf16.gmra.mxu0 %v4686
    %v4806 = vpop.f32.mrf.mxu0
    %v4807 = vadd.f32 0.0, %v4806
    %v4808 = vpop.f32.mrf.mxu0
    %v4809 = vpop.f32.mrf.mxu0
    %v4810 = vadd.f32 0.0, %v4809
    %v4811 = vpop.f32.mrf.mxu0
    %4812 = vmatprep.mubr.bf16.mxu0 0
    %4813 = vmatmul.mubr.bf16.gmra.mxu0 %v4689
    %v4814 = vpop.f32.mrf.mxu0
    %v4815 = vadd.f32 0.0, %v4814
    %v4816 = vpop.f32.mrf.mxu0
    %v4817 = vpop.f32.mrf.mxu0
    %v4818 = vadd.f32 0.0, %v4817
    %v4819 = vpop.f32.mrf.mxu0
    %4820 = vmatprep.mubr.bf16.mxu0 0
    %4821 = vmatmul.mubr.bf16.gmra.mxu0 %v4692
    %v4822 = vpop.f32.mrf.mxu0
    %v4823 = vadd.f32 0.0, %v4822
    %v4824 = vpop.f32.mrf.mxu0
    %v4825 = vpop.f32.mrf.mxu0
    %v4826 = vadd.f32 0.0, %v4825
    %v4827 = vpop.f32.mrf.mxu0
    %4828 = vmatprep.mubr.bf16.mxu0 0
    %4829 = vmatmul.mubr.bf16.gmra.mxu0 %v4695
    %v4830 = vpop.f32.mrf.mxu0
    %v4831 = vadd.f32 0.0, %v4830
    %v4832 = vpop.f32.mrf.mxu0
    %v4833 = vpop.f32.mrf.mxu0
    %v4834 = vadd.f32 0.0, %v4833
    %v4835 = vpop.f32.mrf.mxu0
    %4836 = vmatprep.mubr.bf16.mxu0 0
    %4837 = vmatmul.mubr.bf16.gmra.mxu0 %v4698
    %v4838 = vpop.f32.mrf.mxu0
    %v4839 = vadd.f32 0.0, %v4838
    %v4840 = vpop.f32.mrf.mxu0
    %v4841 = vpop.f32.mrf.mxu0
    %v4842 = vadd.f32 0.0, %v4841
    %v4843 = vpop.f32.mrf.mxu0
    %4844 = vmatprep.mubr.bf16.mxu0 0
    %4845 = vmatmul.mubr.bf16.gmra.mxu0 %v4701
    %v4846 = vpop.f32.mrf.mxu0
    %v4847 = vadd.f32 0.0, %v4846
    %v4848 = vpop.f32.mrf.mxu0
    %v4849 = vpop.f32.mrf.mxu0
    %v4850 = vadd.f32 0.0, %v4849
    %v4851 = vpop.f32.mrf.mxu0
    %4852 = vmatprep.mubr.bf16.mxu0 0
    %4853 = vmatmul.mubr.bf16.gmra.mxu0 %v4704
    %v4854 = vpop.f32.mrf.mxu0
    %v4855 = vadd.f32 0.0, %v4854
    %v4856 = vpop.f32.mrf.mxu0
    %v4857 = vpop.f32.mrf.mxu0
    %v4858 = vadd.f32 0.0, %v4857
    %v4859 = vpop.f32.mrf.mxu0
    %4860 = vmatprep.mubr.bf16.mxu0 0
    %4861 = vmatmul.mubr.bf16.gmra.mxu0 %v4707
    %v4862 = vpop.f32.mrf.mxu0
    %v4863 = vadd.f32 0.0, %v4862
    %v4864 = vpop.f32.mrf.mxu0
    %v4865 = vpop.f32.mrf.mxu0
    %v4866 = vadd.f32 0.0, %v4865
    %v4867 = vpop.f32.mrf.mxu0
    %4868 = vmatprep.mubr.bf16.mxu0 0
    %4869 = vmatmul.mubr.bf16.gmra.mxu0 %v4710
    %v4870 = vpop.f32.mrf.mxu0
    %v4871 = vadd.f32 0.0, %v4870
    %v4872 = vpop.f32.mrf.mxu0
    %v4873 = vpop.f32.mrf.mxu0
    %v4874 = vadd.f32 0.0, %v4873
    %v4875 = vpop.f32.mrf.mxu0
    %4876 = vmatprep.mubr.bf16.mxu0 0
    %4877 = vmatmul.mubr.bf16.gmra.mxu0 %v4713
    %v4878 = vpop.f32.mrf.mxu0
    %v4879 = vadd.f32 0.0, %v4878
    %v4880 = vpop.f32.mrf.mxu0
    %v4881 = vpop.f32.mrf.mxu0
    %v4882 = vadd.f32 0.0, %v4881
    %v4883 = vpop.f32.mrf.mxu0
    %4884 = vmatprep.mubr.bf16.mxu0 0
    %4885 = vmatmul.mubr.bf16.gmra.mxu0 %v4716
    %v4886 = vpop.f32.mrf.mxu0
    %v4887 = vadd.f32 0.0, %v4886
    %v4888 = vpop.f32.mrf.mxu0
    %v4889 = vpop.f32.mrf.mxu0
    %v4890 = vadd.f32 0.0, %v4889
    %v4891 = vpop.f32.mrf.mxu0
    %4892 = vmatprep.mubr.bf16.mxu0 0
    %4893 = vmatmul.mubr.bf16.gmra.mxu0 %v4719
    %v4894 = vpop.f32.mrf.mxu0
    %v4895 = vadd.f32 0.0, %v4894
    %v4896 = vpop.f32.mrf.mxu0
    %v4897 = vpop.f32.mrf.mxu0
    %v4898 = vadd.f32 0.0, %v4897
    %v4899 = vpop.f32.mrf.mxu0
    %4900 = vdwg.mxu0
    %v4901 = vadd.f32 %v4576, %v4759
    %v4902 = vadd.f32 %v4577, %v4762
    %v4903 = vadd.f32 %v4578, %v4767
    %v4904 = vadd.f32 %v4579, %v4770
    %v4905 = vadd.f32 %v4580, %v4775
    %v4906 = vadd.f32 %v4581, %v4778
    %v4907 = vadd.f32 %v4582, %v4783
    %v4908 = vadd.f32 %v4583, %v4786
    %v4909 = vadd.f32 %v4584, %v4791
    %v4910 = vadd.f32 %v4585, %v4794
    %v4911 = vadd.f32 %v4586, %v4799
    %v4912 = vadd.f32 %v4587, %v4802
    %v4913 = vadd.f32 %v4588, %v4807
    %v4914 = vadd.f32 %v4589, %v4810
    %v4915 = vadd.f32 %v4590, %v4815
    %v4916 = vadd.f32 %v4591, %v4818
    %v4917 = vadd.f32 %v4592, %v4823
    %v4918 = vadd.f32 %v4593, %v4826
    %v4919 = vadd.f32 %v4594, %v4831
    %v4920 = vadd.f32 %v4595, %v4834
    %v4921 = vadd.f32 %v4596, %v4839
    %v4922 = vadd.f32 %v4597, %v4842
    %v4923 = vadd.f32 %v4598, %v4847
    %v4924 = vadd.f32 %v4599, %v4850
    %v4925 = vadd.f32 %v4600, %v4855
    %v4926 = vadd.f32 %v4601, %v4858
    %v4927 = vadd.f32 %v4602, %v4863
    %v4928 = vadd.f32 %v4603, %v4866
    %v4929 = vadd.f32 %v4604, %v4871
    %v4930 = vadd.f32 %v4605, %v4874
    %v4931 = vadd.f32 %v4606, %v4879
    %v4932 = vadd.f32 %v4607, %v4882
    %v4933 = vadd.f32 %v4608, %v4887
    %v4934 = vadd.f32 %v4609, %v4890
    %v4935 = vadd.f32 %v4610, %v4895
    %v4936 = vadd.f32 %v4611, %v4898
    %v4937 = vld [vmem:[%s3383 + $0x14] sm:$0xff]
    %v4938 = vld [vmem:[%s3383 + $0x1c] sm:$0xff]
    %v4939 = vld [vmem:[%s3383 + $0x24] sm:$0xff]
    %v4940 = vld [vmem:[%s3383 + $0x2c] sm:$0xff]
    %v4941 = vld [vmem:[%s3383 + $0x34] sm:$0xff]
    %v4942 = vld [vmem:[%s3383 + $0x3c] sm:$0xff]
    %v4943 = vld [vmem:[%s3383 + $0x44] sm:$0xff]
    %v4944 = vld [vmem:[%s3383 + $0x4c] sm:$0xff]
    %v4945 = vld [vmem:[%s3383 + $0x54] sm:$0xff]
    %v4946 = vld [vmem:[%s3383 + $0x5c] sm:$0xff]
    %v4947 = vld [vmem:[%s3383 + $0x64] sm:$0xff]
    %v4948 = vld [vmem:[%s3383 + $0x6c] sm:$0xff]
    %v4949 = vld [vmem:[%s3383 + $0x74] sm:$0xff]
    %v4950 = vld [vmem:[%s3383 + $0x7c] sm:$0xff]
    %v4951 = vld [vmem:[%s3383 + $0x84] sm:$0xff]
    %v4952 = vld [vmem:[%s3383 + $0x8c] sm:$0xff]
    %v4953 = vld [vmem:[%s3383 + $0x94] sm:$0xff]
    %v4954 = vld [vmem:[%s3383 + $0x9c] sm:$0xff]
    %v4955 = vld [vmem:[%s3383 + $0xa4] sm:$0xff]
    %v4956 = vld [vmem:[%s3383 + $0xac] sm:$0xff]
    %v4957 = vld [vmem:[%s3383 + $0xb4] sm:$0xff]
    %v4958 = vld [vmem:[%s3383 + $0xbc] sm:$0xff]
    %v4959 = vld [vmem:[%s3383 + $0xc4] sm:$0xff]
    %v4960 = vld [vmem:[%s3383 + $0xcc] sm:$0xff]
    %v4961 = vld [vmem:[%s3383 + $0xd4] sm:$0xff]
    %v4962 = vld [vmem:[%s3383 + $0xdc] sm:$0xff]
    %v4963 = vld [vmem:[%s3383 + $0xe4] sm:$0xff]
    %v4964 = vld [vmem:[%s3383 + $0xec] sm:$0xff]
    %v4965 = vld [vmem:[%s3383 + $0xf4] sm:$0xff]
    %v4966 = vld [vmem:[%s3383 + $0xfc] sm:$0xff]
    %v4967 = vld [vmem:[%s3383 + $0x104] sm:$0xff]
    %v4968 = vld [vmem:[%s3383 + $0x10c] sm:$0xff]
    %v4969 = vld [vmem:[%s3383 + $0x114] sm:$0xff]
    %v4970 = vld [vmem:[%s3383 + $0x11c] sm:$0xff]
    %v4971 = vld [vmem:[%s3383 + $0x124] sm:$0xff]
    %v4972 = vld [vmem:[%s3383 + $0x12c] sm:$0xff]
    %v4973 = vpack.c.bf16 %v4938, %v4937
    %v4974 = vpack.c.bf16 %v4940, %v4939
    %v4975 = vpack.c.bf16 %v4942, %v4941
    %v4976 = vpack.c.bf16 %v4944, %v4943
    %v4977 = vpack.c.bf16 %v4946, %v4945
    %v4978 = vpack.c.bf16 %v4948, %v4947
    %v4979 = vpack.c.bf16 %v4950, %v4949
    %v4980 = vpack.c.bf16 %v4952, %v4951
    %v4981 = vpack.c.bf16 %v4954, %v4953
    %v4982 = vpack.c.bf16 %v4956, %v4955
    %v4983 = vpack.c.bf16 %v4958, %v4957
    %v4984 = vpack.c.bf16 %v4960, %v4959
    %v4985 = vpack.c.bf16 %v4962, %v4961
    %v4986 = vpack.c.bf16 %v4964, %v4963
    %v4987 = vpack.c.bf16 %v4966, %v4965
    %v4988 = vpack.c.bf16 %v4968, %v4967
    %v4989 = vpack.c.bf16 %v4970, %v4969
    %v4990 = vpack.c.bf16 %v4972, %v4971
    %v4991 = vld [vmem:[%s1678] sm:$0xf]
    %v4993 = vsel %vm176, %v4973, 0
    %v4996 = vsel %vm176, %v4974, 0
    %v4999 = vsel %vm176, %v4975, 0
    %v5002 = vsel %vm176, %v4976, 0
    %v5005 = vsel %vm176, %v4977, 0
    %v5008 = vsel %vm176, %v4978, 0
    %v5011 = vsel %vm176, %v4979, 0
    %v5014 = vsel %vm176, %v4980, 0
    %v5017 = vsel %vm176, %v4981, 0
    %v5020 = vsel %vm176, %v4982, 0
    %v5023 = vsel %vm176, %v4983, 0
    %v5026 = vsel %vm176, %v4984, 0
    %v5029 = vsel %vm176, %v4985, 0
    %v5032 = vsel %vm176, %v4986, 0
    %v5035 = vsel %vm176, %v4987, 0
    %v5038 = vsel %vm176, %v4988, 0
    %v5041 = vsel %vm176, %v4989, 0
    %v5044 = vsel %vm176, %v4990, 0
    %v5047 = vsel %vm231, %v4991, 0
    %5049 = vmatprep.subr.bf16.mxu0 0
    %5050 = vmatpush1.bf16.msra.mxu0 0
    %5051 = vmatprep.subr.bf16.mxu0 0
    %5052 = vmatpush1.bf16.msra.mxu0 0
    %5053 = vmatprep.subr.bf16.mxu0 0
    %5054 = vmatpush1.bf16.msra.mxu0 0
    %5055 = vmatprep.subr.bf16.mxu0 0
    %5056 = vmatpush1.bf16.msra.mxu0 0
    %5057 = vmatprep.subr.bf16.mxu0 0
    %5058 = vmatpush1.bf16.msra.mxu0 0
    %5059 = vmatprep.subr.bf16.mxu0 0
    %5060 = vmatpush1.bf16.msra.mxu0 0
    %5061 = vmatprep.subr.bf16.mxu0 0
    %5062 = vmatpush1.bf16.msra.mxu0 0
    %5063 = vmatprep.subr.bf16.mxu0 0
    %5064 = vmatpush1.bf16.msra.mxu0 %v5047
    %5065 = vmatprep.subr.bf16.mxu0 0
    %5066 = vmatpush2.bf16.msra.mxu0 0
    %5067 = vmatprep.subr.bf16.mxu0 0
    %5068 = vmatpush2.bf16.msra.mxu0 0
    %5069 = vmatprep.subr.bf16.mxu0 0
    %5070 = vmatpush2.bf16.msra.mxu0 0
    %5071 = vmatprep.subr.bf16.mxu0 0
    %5072 = vmatpush2.bf16.msra.mxu0 0
    %5073 = vmatprep.subr.bf16.mxu0 0
    %5074 = vmatpush2.bf16.msra.mxu0 0
    %5075 = vmatprep.subr.bf16.mxu0 0
    %5076 = vmatpush2.bf16.msra.mxu0 0
    %5077 = vmatprep.subr.bf16.mxu0 0
    %5078 = vmatpush2.bf16.msra.mxu0 0
    %5079 = vmatprep.subr.bf16.mxu0 0
    %5080 = vmatpush2.bf16.msra.mxu0 0
    %5081 = vmatprep.mubr.bf16.mxu0 0
    %5082 = vmatmul.mubr.bf16.gmra.mxu0 %v4993
    %v5083 = vpop.f32.mrf.mxu0
    %v5084 = vadd.f32 0.0, %v5083
    %v5085 = vpop.f32.mrf.mxu0
    %v5086 = vpop.f32.mrf.mxu0
    %v5087 = vadd.f32 0.0, %v5086
    %v5088 = vpop.f32.mrf.mxu0
    %5089 = vmatprep.mubr.bf16.mxu0 0
    %5090 = vmatmul.mubr.bf16.gmra.mxu0 %v4996
    %v5091 = vpop.f32.mrf.mxu0
    %v5092 = vadd.f32 0.0, %v5091
    %v5093 = vpop.f32.mrf.mxu0
    %v5094 = vpop.f32.mrf.mxu0
    %v5095 = vadd.f32 0.0, %v5094
    %v5096 = vpop.f32.mrf.mxu0
    %5097 = vmatprep.mubr.bf16.mxu0 0
    %5098 = vmatmul.mubr.bf16.gmra.mxu0 %v4999
    %v5099 = vpop.f32.mrf.mxu0
    %v5100 = vadd.f32 0.0, %v5099
    %v5101 = vpop.f32.mrf.mxu0
    %v5102 = vpop.f32.mrf.mxu0
    %v5103 = vadd.f32 0.0, %v5102
    %v5104 = vpop.f32.mrf.mxu0
    %5105 = vmatprep.mubr.bf16.mxu0 0
    %5106 = vmatmul.mubr.bf16.gmra.mxu0 %v5002
    %v5107 = vpop.f32.mrf.mxu0
    %v5108 = vadd.f32 0.0, %v5107
    %v5109 = vpop.f32.mrf.mxu0
    %v5110 = vpop.f32.mrf.mxu0
    %v5111 = vadd.f32 0.0, %v5110
    %v5112 = vpop.f32.mrf.mxu0
    %5113 = vmatprep.mubr.bf16.mxu0 0
    %5114 = vmatmul.mubr.bf16.gmra.mxu0 %v5005
    %v5115 = vpop.f32.mrf.mxu0
    %v5116 = vadd.f32 0.0, %v5115
    %v5117 = vpop.f32.mrf.mxu0
    %v5118 = vpop.f32.mrf.mxu0
    %v5119 = vadd.f32 0.0, %v5118
    %v5120 = vpop.f32.mrf.mxu0
    %5121 = vmatprep.mubr.bf16.mxu0 0
    %5122 = vmatmul.mubr.bf16.gmra.mxu0 %v5008
    %v5123 = vpop.f32.mrf.mxu0
    %v5124 = vadd.f32 0.0, %v5123
    %v5125 = vpop.f32.mrf.mxu0
    %v5126 = vpop.f32.mrf.mxu0
    %v5127 = vadd.f32 0.0, %v5126
    %v5128 = vpop.f32.mrf.mxu0
    %5129 = vmatprep.mubr.bf16.mxu0 0
    %5130 = vmatmul.mubr.bf16.gmra.mxu0 %v5011
    %v5131 = vpop.f32.mrf.mxu0
    %v5132 = vadd.f32 0.0, %v5131
    %v5133 = vpop.f32.mrf.mxu0
    %v5134 = vpop.f32.mrf.mxu0
    %v5135 = vadd.f32 0.0, %v5134
    %v5136 = vpop.f32.mrf.mxu0
    %5137 = vmatprep.mubr.bf16.mxu0 0
    %5138 = vmatmul.mubr.bf16.gmra.mxu0 %v5014
    %v5139 = vpop.f32.mrf.mxu0
    %v5140 = vadd.f32 0.0, %v5139
    %v5141 = vpop.f32.mrf.mxu0
    %v5142 = vpop.f32.mrf.mxu0
    %v5143 = vadd.f32 0.0, %v5142
    %v5144 = vpop.f32.mrf.mxu0
    %5145 = vmatprep.mubr.bf16.mxu0 0
    %5146 = vmatmul.mubr.bf16.gmra.mxu0 %v5017
    %v5147 = vpop.f32.mrf.mxu0
    %v5148 = vadd.f32 0.0, %v5147
    %v5149 = vpop.f32.mrf.mxu0
    %v5150 = vpop.f32.mrf.mxu0
    %v5151 = vadd.f32 0.0, %v5150
    %v5152 = vpop.f32.mrf.mxu0
    %5153 = vmatprep.mubr.bf16.mxu0 0
    %5154 = vmatmul.mubr.bf16.gmra.mxu0 %v5020
    %v5155 = vpop.f32.mrf.mxu0
    %v5156 = vadd.f32 0.0, %v5155
    %v5157 = vpop.f32.mrf.mxu0
    %v5158 = vpop.f32.mrf.mxu0
    %v5159 = vadd.f32 0.0, %v5158
    %v5160 = vpop.f32.mrf.mxu0
    %5161 = vmatprep.mubr.bf16.mxu0 0
    %5162 = vmatmul.mubr.bf16.gmra.mxu0 %v5023
    %v5163 = vpop.f32.mrf.mxu0
    %v5164 = vadd.f32 0.0, %v5163
    %v5165 = vpop.f32.mrf.mxu0
    %v5166 = vpop.f32.mrf.mxu0
    %v5167 = vadd.f32 0.0, %v5166
    %v5168 = vpop.f32.mrf.mxu0
    %5169 = vmatprep.mubr.bf16.mxu0 0
    %5170 = vmatmul.mubr.bf16.gmra.mxu0 %v5026
    %v5171 = vpop.f32.mrf.mxu0
    %v5172 = vadd.f32 0.0, %v5171
    %v5173 = vpop.f32.mrf.mxu0
    %v5174 = vpop.f32.mrf.mxu0
    %v5175 = vadd.f32 0.0, %v5174
    %v5176 = vpop.f32.mrf.mxu0
    %5177 = vmatprep.mubr.bf16.mxu0 0
    %5178 = vmatmul.mubr.bf16.gmra.mxu0 %v5029
    %v5179 = vpop.f32.mrf.mxu0
    %v5180 = vadd.f32 0.0, %v5179
    %v5181 = vpop.f32.mrf.mxu0
    %v5182 = vpop.f32.mrf.mxu0
    %v5183 = vadd.f32 0.0, %v5182
    %v5184 = vpop.f32.mrf.mxu0
    %5185 = vmatprep.mubr.bf16.mxu0 0
    %5186 = vmatmul.mubr.bf16.gmra.mxu0 %v5032
    %v5187 = vpop.f32.mrf.mxu0
    %v5188 = vadd.f32 0.0, %v5187
    %v5189 = vpop.f32.mrf.mxu0
    %v5190 = vpop.f32.mrf.mxu0
    %v5191 = vadd.f32 0.0, %v5190
    %v5192 = vpop.f32.mrf.mxu0
    %5193 = vmatprep.mubr.bf16.mxu0 0
    %5194 = vmatmul.mubr.bf16.gmra.mxu0 %v5035
    %v5195 = vpop.f32.mrf.mxu0
    %v5196 = vadd.f32 0.0, %v5195
    %v5197 = vpop.f32.mrf.mxu0
    %v5198 = vpop.f32.mrf.mxu0
    %v5199 = vadd.f32 0.0, %v5198
    %v5200 = vpop.f32.mrf.mxu0
    %5201 = vmatprep.mubr.bf16.mxu0 0
    %5202 = vmatmul.mubr.bf16.gmra.mxu0 %v5038
    %v5203 = vpop.f32.mrf.mxu0
    %v5204 = vadd.f32 0.0, %v5203
    %v5205 = vpop.f32.mrf.mxu0
    %v5206 = vpop.f32.mrf.mxu0
    %v5207 = vadd.f32 0.0, %v5206
    %v5208 = vpop.f32.mrf.mxu0
    %5209 = vmatprep.mubr.bf16.mxu0 0
    %5210 = vmatmul.mubr.bf16.gmra.mxu0 %v5041
    %v5211 = vpop.f32.mrf.mxu0
    %v5212 = vadd.f32 0.0, %v5211
    %v5213 = vpop.f32.mrf.mxu0
    %v5214 = vpop.f32.mrf.mxu0
    %v5215 = vadd.f32 0.0, %v5214
    %v5216 = vpop.f32.mrf.mxu0
    %5217 = vmatprep.mubr.bf16.mxu0 0
    %5218 = vmatmul.mubr.bf16.gmra.mxu0 %v5044
    %v5219 = vpop.f32.mrf.mxu0
    %v5220 = vadd.f32 0.0, %v5219
    %v5221 = vpop.f32.mrf.mxu0
    %v5222 = vpop.f32.mrf.mxu0
    %v5223 = vadd.f32 0.0, %v5222
    %v5224 = vpop.f32.mrf.mxu0
    %5225 = vdwg.mxu0
    %v5226 = vadd.f32 %v4901, %v5084
    %v5227 = vadd.f32 %v4902, %v5087
    %v5228 = vadd.f32 %v4903, %v5092
    %v5229 = vadd.f32 %v4904, %v5095
    %v5230 = vadd.f32 %v4905, %v5100
    %v5231 = vadd.f32 %v4906, %v5103
    %v5232 = vadd.f32 %v4907, %v5108
    %v5233 = vadd.f32 %v4908, %v5111
    %v5234 = vadd.f32 %v4909, %v5116
    %v5235 = vadd.f32 %v4910, %v5119
    %v5236 = vadd.f32 %v4911, %v5124
    %v5237 = vadd.f32 %v4912, %v5127
    %v5238 = vadd.f32 %v4913, %v5132
    %v5239 = vadd.f32 %v4914, %v5135
    %v5240 = vadd.f32 %v4915, %v5140
    %v5241 = vadd.f32 %v4916, %v5143
    %v5242 = vadd.f32 %v4917, %v5148
    %v5243 = vadd.f32 %v4918, %v5151
    %v5244 = vadd.f32 %v4919, %v5156
    %v5245 = vadd.f32 %v4920, %v5159
    %v5246 = vadd.f32 %v4921, %v5164
    %v5247 = vadd.f32 %v4922, %v5167
    %v5248 = vadd.f32 %v4923, %v5172
    %v5249 = vadd.f32 %v4924, %v5175
    %v5250 = vadd.f32 %v4925, %v5180
    %v5251 = vadd.f32 %v4926, %v5183
    %v5252 = vadd.f32 %v4927, %v5188
    %v5253 = vadd.f32 %v4928, %v5191
    %v5254 = vadd.f32 %v4929, %v5196
    %v5255 = vadd.f32 %v4930, %v5199
    %v5256 = vadd.f32 %v4931, %v5204
    %v5257 = vadd.f32 %v4932, %v5207
    %v5258 = vadd.f32 %v4933, %v5212
    %v5259 = vadd.f32 %v4934, %v5215
    %v5260 = vadd.f32 %v4935, %v5220
    %v5261 = vadd.f32 %v4936, %v5223
    %v5262 = vld [vmem:[%s3383 + $0x24] sm:$0xff]
    %v5263 = vld [vmem:[%s3383 + $0x2c] sm:$0xff]
    %v5264 = vld [vmem:[%s3383 + $0x34] sm:$0xff]
    %v5265 = vld [vmem:[%s3383 + $0x3c] sm:$0xff]
    %v5266 = vld [vmem:[%s3383 + $0x44] sm:$0xff]
    %v5267 = vld [vmem:[%s3383 + $0x4c] sm:$0xff]
    %v5268 = vld [vmem:[%s3383 + $0x54] sm:$0xff]
    %v5269 = vld [vmem:[%s3383 + $0x5c] sm:$0xff]
    %v5270 = vld [vmem:[%s3383 + $0x64] sm:$0xff]
    %v5271 = vld [vmem:[%s3383 + $0x6c] sm:$0xff]
    %v5272 = vld [vmem:[%s3383 + $0x74] sm:$0xff]
    %v5273 = vld [vmem:[%s3383 + $0x7c] sm:$0xff]
    %v5274 = vld [vmem:[%s3383 + $0x84] sm:$0xff]
    %v5275 = vld [vmem:[%s3383 + $0x8c] sm:$0xff]
    %v5276 = vld [vmem:[%s3383 + $0x94] sm:$0xff]
    %v5277 = vld [vmem:[%s3383 + $0x9c] sm:$0xff]
    %v5278 = vld [vmem:[%s3383 + $0xa4] sm:$0xff]
    %v5279 = vld [vmem:[%s3383 + $0xac] sm:$0xff]
    %v5280 = vld [vmem:[%s3383 + $0xb4] sm:$0xff]
    %v5281 = vld [vmem:[%s3383 + $0xbc] sm:$0xff]
    %v5282 = vld [vmem:[%s3383 + $0xc4] sm:$0xff]
    %v5283 = vld [vmem:[%s3383 + $0xcc] sm:$0xff]
    %v5284 = vld [vmem:[%s3383 + $0xd4] sm:$0xff]
    %v5285 = vld [vmem:[%s3383 + $0xdc] sm:$0xff]
    %v5286 = vld [vmem:[%s3383 + $0xe4] sm:$0xff]
    %v5287 = vld [vmem:[%s3383 + $0xec] sm:$0xff]
    %v5288 = vld [vmem:[%s3383 + $0xf4] sm:$0xff]
    %v5289 = vld [vmem:[%s3383 + $0xfc] sm:$0xff]
    %v5290 = vld [vmem:[%s3383 + $0x104] sm:$0xff]
    %v5291 = vld [vmem:[%s3383 + $0x10c] sm:$0xff]
    %v5292 = vld [vmem:[%s3383 + $0x114] sm:$0xff]
    %v5293 = vld [vmem:[%s3383 + $0x11c] sm:$0xff]
    %v5294 = vld [vmem:[%s3383 + $0x124] sm:$0xff]
    %v5295 = vld [vmem:[%s3383 + $0x12c] sm:$0xff]
    %v5296 = vld [vmem:[%s3383 + $0x134] sm:$0xff]
    %v5297 = vld [vmem:[%s3383 + $0x13c] sm:$0xff]
    %v5298 = vpack.c.bf16 %v5263, %v5262
    %v5299 = vpack.c.bf16 %v5265, %v5264
    %v5300 = vpack.c.bf16 %v5267, %v5266
    %v5301 = vpack.c.bf16 %v5269, %v5268
    %v5302 = vpack.c.bf16 %v5271, %v5270
    %v5303 = vpack.c.bf16 %v5273, %v5272
    %v5304 = vpack.c.bf16 %v5275, %v5274
    %v5305 = vpack.c.bf16 %v5277, %v5276
    %v5306 = vpack.c.bf16 %v5279, %v5278
    %v5307 = vpack.c.bf16 %v5281, %v5280
    %v5308 = vpack.c.bf16 %v5283, %v5282
    %v5309 = vpack.c.bf16 %v5285, %v5284
    %v5310 = vpack.c.bf16 %v5287, %v5286
    %v5311 = vpack.c.bf16 %v5289, %v5288
    %v5312 = vpack.c.bf16 %v5291, %v5290
    %v5313 = vpack.c.bf16 %v5293, %v5292
    %v5314 = vpack.c.bf16 %v5295, %v5294
    %v5315 = vpack.c.bf16 %v5297, %v5296
    %v5316 = vld [vmem:[%s2004] sm:$0xf]
    %v5318 = vsel %vm176, %v5298, 0
    %v5321 = vsel %vm176, %v5299, 0
    %v5324 = vsel %vm176, %v5300, 0
    %v5327 = vsel %vm176, %v5301, 0
    %v5330 = vsel %vm176, %v5302, 0
    %v5333 = vsel %vm176, %v5303, 0
    %v5336 = vsel %vm176, %v5304, 0
    %v5339 = vsel %vm176, %v5305, 0
    %v5342 = vsel %vm176, %v5306, 0
    %v5345 = vsel %vm176, %v5307, 0
    %v5348 = vsel %vm176, %v5308, 0
    %v5351 = vsel %vm176, %v5309, 0
    %v5354 = vsel %vm176, %v5310, 0
    %v5357 = vsel %vm176, %v5311, 0
    %v5360 = vsel %vm176, %v5312, 0
    %v5363 = vsel %vm176, %v5313, 0
    %v5366 = vsel %vm176, %v5314, 0
    %v5369 = vsel %vm176, %v5315, 0
    %v5372 = vsel %vm231, %v5316, 0
    %5374 = vmatprep.subr.bf16.mxu0 0
    %5375 = vmatpush1.bf16.msra.mxu0 0
    %5376 = vmatprep.subr.bf16.mxu0 0
    %5377 = vmatpush1.bf16.msra.mxu0 0
    %5378 = vmatprep.subr.bf16.mxu0 0
    %5379 = vmatpush1.bf16.msra.mxu0 0
    %5380 = vmatprep.subr.bf16.mxu0 0
    %5381 = vmatpush1.bf16.msra.mxu0 0
    %5382 = vmatprep.subr.bf16.mxu0 0
    %5383 = vmatpush1.bf16.msra.mxu0 0
    %5384 = vmatprep.subr.bf16.mxu0 0
    %5385 = vmatpush1.bf16.msra.mxu0 0
    %5386 = vmatprep.subr.bf16.mxu0 0
    %5387 = vmatpush1.bf16.msra.mxu0 0
    %5388 = vmatprep.subr.bf16.mxu0 0
    %5389 = vmatpush1.bf16.msra.mxu0 %v5372
    %5390 = vmatprep.subr.bf16.mxu0 0
    %5391 = vmatpush2.bf16.msra.mxu0 0
    %5392 = vmatprep.subr.bf16.mxu0 0
    %5393 = vmatpush2.bf16.msra.mxu0 0
    %5394 = vmatprep.subr.bf16.mxu0 0
    %5395 = vmatpush2.bf16.msra.mxu0 0
    %5396 = vmatprep.subr.bf16.mxu0 0
    %5397 = vmatpush2.bf16.msra.mxu0 0
    %5398 = vmatprep.subr.bf16.mxu0 0
    %5399 = vmatpush2.bf16.msra.mxu0 0
    %5400 = vmatprep.subr.bf16.mxu0 0
    %5401 = vmatpush2.bf16.msra.mxu0 0
    %5402 = vmatprep.subr.bf16.mxu0 0
    %5403 = vmatpush2.bf16.msra.mxu0 0
    %5404 = vmatprep.subr.bf16.mxu0 0
    %5405 = vmatpush2.bf16.msra.mxu0 0
    %5406 = vmatprep.mubr.bf16.mxu0 0
    %5407 = vmatmul.mubr.bf16.gmra.mxu0 %v5318
    %v5408 = vpop.f32.mrf.mxu0
    %v5409 = vadd.f32 0.0, %v5408
    %v5410 = vpop.f32.mrf.mxu0
    %v5411 = vpop.f32.mrf.mxu0
    %v5412 = vadd.f32 0.0, %v5411
    %v5413 = vpop.f32.mrf.mxu0
    %5414 = vmatprep.mubr.bf16.mxu0 0
    %5415 = vmatmul.mubr.bf16.gmra.mxu0 %v5321
    %v5416 = vpop.f32.mrf.mxu0
    %v5417 = vadd.f32 0.0, %v5416
    %v5418 = vpop.f32.mrf.mxu0
    %v5419 = vpop.f32.mrf.mxu0
    %v5420 = vadd.f32 0.0, %v5419
    %v5421 = vpop.f32.mrf.mxu0
    %5422 = vmatprep.mubr.bf16.mxu0 0
    %5423 = vmatmul.mubr.bf16.gmra.mxu0 %v5324
    %v5424 = vpop.f32.mrf.mxu0
    %v5425 = vadd.f32 0.0, %v5424
    %v5426 = vpop.f32.mrf.mxu0
    %v5427 = vpop.f32.mrf.mxu0
    %v5428 = vadd.f32 0.0, %v5427
    %v5429 = vpop.f32.mrf.mxu0
    %5430 = vmatprep.mubr.bf16.mxu0 0
    %5431 = vmatmul.mubr.bf16.gmra.mxu0 %v5327
    %v5432 = vpop.f32.mrf.mxu0
    %v5433 = vadd.f32 0.0, %v5432
    %v5434 = vpop.f32.mrf.mxu0
    %v5435 = vpop.f32.mrf.mxu0
    %v5436 = vadd.f32 0.0, %v5435
    %v5437 = vpop.f32.mrf.mxu0
    %5438 = vmatprep.mubr.bf16.mxu0 0
    %5439 = vmatmul.mubr.bf16.gmra.mxu0 %v5330
    %v5440 = vpop.f32.mrf.mxu0
    %v5441 = vadd.f32 0.0, %v5440
    %v5442 = vpop.f32.mrf.mxu0
    %v5443 = vpop.f32.mrf.mxu0
    %v5444 = vadd.f32 0.0, %v5443
    %v5445 = vpop.f32.mrf.mxu0
    %5446 = vmatprep.mubr.bf16.mxu0 0
    %5447 = vmatmul.mubr.bf16.gmra.mxu0 %v5333
    %v5448 = vpop.f32.mrf.mxu0
    %v5449 = vadd.f32 0.0, %v5448
    %v5450 = vpop.f32.mrf.mxu0
    %v5451 = vpop.f32.mrf.mxu0
    %v5452 = vadd.f32 0.0, %v5451
    %v5453 = vpop.f32.mrf.mxu0
    %5454 = vmatprep.mubr.bf16.mxu0 0
    %5455 = vmatmul.mubr.bf16.gmra.mxu0 %v5336
    %v5456 = vpop.f32.mrf.mxu0
    %v5457 = vadd.f32 0.0, %v5456
    %v5458 = vpop.f32.mrf.mxu0
    %v5459 = vpop.f32.mrf.mxu0
    %v5460 = vadd.f32 0.0, %v5459
    %v5461 = vpop.f32.mrf.mxu0
    %5462 = vmatprep.mubr.bf16.mxu0 0
    %5463 = vmatmul.mubr.bf16.gmra.mxu0 %v5339
    %v5464 = vpop.f32.mrf.mxu0
    %v5465 = vadd.f32 0.0, %v5464
    %v5466 = vpop.f32.mrf.mxu0
    %v5467 = vpop.f32.mrf.mxu0
    %v5468 = vadd.f32 0.0, %v5467
    %v5469 = vpop.f32.mrf.mxu0
    %5470 = vmatprep.mubr.bf16.mxu0 0
    %5471 = vmatmul.mubr.bf16.gmra.mxu0 %v5342
    %v5472 = vpop.f32.mrf.mxu0
    %v5473 = vadd.f32 0.0, %v5472
    %v5474 = vpop.f32.mrf.mxu0
    %v5475 = vpop.f32.mrf.mxu0
    %v5476 = vadd.f32 0.0, %v5475
    %v5477 = vpop.f32.mrf.mxu0
    %5478 = vmatprep.mubr.bf16.mxu0 0
    %5479 = vmatmul.mubr.bf16.gmra.mxu0 %v5345
    %v5480 = vpop.f32.mrf.mxu0
    %v5481 = vadd.f32 0.0, %v5480
    %v5482 = vpop.f32.mrf.mxu0
    %v5483 = vpop.f32.mrf.mxu0
    %v5484 = vadd.f32 0.0, %v5483
    %v5485 = vpop.f32.mrf.mxu0
    %5486 = vmatprep.mubr.bf16.mxu0 0
    %5487 = vmatmul.mubr.bf16.gmra.mxu0 %v5348
    %v5488 = vpop.f32.mrf.mxu0
    %v5489 = vadd.f32 0.0, %v5488
    %v5490 = vpop.f32.mrf.mxu0
    %v5491 = vpop.f32.mrf.mxu0
    %v5492 = vadd.f32 0.0, %v5491
    %v5493 = vpop.f32.mrf.mxu0
    %5494 = vmatprep.mubr.bf16.mxu0 0
    %5495 = vmatmul.mubr.bf16.gmra.mxu0 %v5351
    %v5496 = vpop.f32.mrf.mxu0
    %v5497 = vadd.f32 0.0, %v5496
    %v5498 = vpop.f32.mrf.mxu0
    %v5499 = vpop.f32.mrf.mxu0
    %v5500 = vadd.f32 0.0, %v5499
    %v5501 = vpop.f32.mrf.mxu0
    %5502 = vmatprep.mubr.bf16.mxu0 0
    %5503 = vmatmul.mubr.bf16.gmra.mxu0 %v5354
    %v5504 = vpop.f32.mrf.mxu0
    %v5505 = vadd.f32 0.0, %v5504
    %v5506 = vpop.f32.mrf.mxu0
    %v5507 = vpop.f32.mrf.mxu0
    %v5508 = vadd.f32 0.0, %v5507
    %v5509 = vpop.f32.mrf.mxu0
    %5510 = vmatprep.mubr.bf16.mxu0 0
    %5511 = vmatmul.mubr.bf16.gmra.mxu0 %v5357
    %v5512 = vpop.f32.mrf.mxu0
    %v5513 = vadd.f32 0.0, %v5512
    %v5514 = vpop.f32.mrf.mxu0
    %v5515 = vpop.f32.mrf.mxu0
    %v5516 = vadd.f32 0.0, %v5515
    %v5517 = vpop.f32.mrf.mxu0
    %5518 = vmatprep.mubr.bf16.mxu0 0
    %5519 = vmatmul.mubr.bf16.gmra.mxu0 %v5360
    %v5520 = vpop.f32.mrf.mxu0
    %v5521 = vadd.f32 0.0, %v5520
    %v5522 = vpop.f32.mrf.mxu0
    %v5523 = vpop.f32.mrf.mxu0
    %v5524 = vadd.f32 0.0, %v5523
    %v5525 = vpop.f32.mrf.mxu0
    %5526 = vmatprep.mubr.bf16.mxu0 0
    %5527 = vmatmul.mubr.bf16.gmra.mxu0 %v5363
    %v5528 = vpop.f32.mrf.mxu0
    %v5529 = vadd.f32 0.0, %v5528
    %v5530 = vpop.f32.mrf.mxu0
    %v5531 = vpop.f32.mrf.mxu0
    %v5532 = vadd.f32 0.0, %v5531
    %v5533 = vpop.f32.mrf.mxu0
    %5534 = vmatprep.mubr.bf16.mxu0 0
    %5535 = vmatmul.mubr.bf16.gmra.mxu0 %v5366
    %v5536 = vpop.f32.mrf.mxu0
    %v5537 = vadd.f32 0.0, %v5536
    %v5538 = vpop.f32.mrf.mxu0
    %v5539 = vpop.f32.mrf.mxu0
    %v5540 = vadd.f32 0.0, %v5539
    %v5541 = vpop.f32.mrf.mxu0
    %5542 = vmatprep.mubr.bf16.mxu0 0
    %5543 = vmatmul.mubr.bf16.gmra.mxu0 %v5369
    %v5544 = vpop.f32.mrf.mxu0
    %v5545 = vadd.f32 0.0, %v5544
    %v5546 = vpop.f32.mrf.mxu0
    %v5547 = vpop.f32.mrf.mxu0
    %v5548 = vadd.f32 0.0, %v5547
    %v5549 = vpop.f32.mrf.mxu0
    %5550 = vdwg.mxu0
    %v5551 = vadd.f32 %v5226, %v5409
    %v5552 = vadd.f32 %v5227, %v5412
    %v5553 = vadd.f32 %v5228, %v5417
    %v5554 = vadd.f32 %v5229, %v5420
    %v5555 = vadd.f32 %v5230, %v5425
    %v5556 = vadd.f32 %v5231, %v5428
    %v5557 = vadd.f32 %v5232, %v5433
    %v5558 = vadd.f32 %v5233, %v5436
    %v5559 = vadd.f32 %v5234, %v5441
    %v5560 = vadd.f32 %v5235, %v5444
    %v5561 = vadd.f32 %v5236, %v5449
    %v5562 = vadd.f32 %v5237, %v5452
    %v5563 = vadd.f32 %v5238, %v5457
    %v5564 = vadd.f32 %v5239, %v5460
    %v5565 = vadd.f32 %v5240, %v5465
    %v5566 = vadd.f32 %v5241, %v5468
    %v5567 = vadd.f32 %v5242, %v5473
    %v5568 = vadd.f32 %v5243, %v5476
    %v5569 = vadd.f32 %v5244, %v5481
    %v5570 = vadd.f32 %v5245, %v5484
    %v5571 = vadd.f32 %v5246, %v5489
    %v5572 = vadd.f32 %v5247, %v5492
    %v5573 = vadd.f32 %v5248, %v5497
    %v5574 = vadd.f32 %v5249, %v5500
    %v5575 = vadd.f32 %v5250, %v5505
    %v5576 = vadd.f32 %v5251, %v5508
    %v5577 = vadd.f32 %v5252, %v5513
    %v5578 = vadd.f32 %v5253, %v5516
    %v5579 = vadd.f32 %v5254, %v5521
    %v5580 = vadd.f32 %v5255, %v5524
    %v5581 = vadd.f32 %v5256, %v5529
    %v5582 = vadd.f32 %v5257, %v5532
    %v5583 = vadd.f32 %v5258, %v5537
    %v5584 = vadd.f32 %v5259, %v5540
    %v5585 = vadd.f32 %v5260, %v5545
    %v5586 = vadd.f32 %v5261, %v5548
    %v5587 = vld [vmem:[%s3383 + $0x25] sm:$0xff]
    %v5588 = vld [vmem:[%s3383 + $0x2d] sm:$0xff]
    %v5589 = vld [vmem:[%s3383 + $0x35] sm:$0xff]
    %v5590 = vld [vmem:[%s3383 + $0x3d] sm:$0xff]
    %v5591 = vld [vmem:[%s3383 + $0x45] sm:$0xff]
    %v5592 = vld [vmem:[%s3383 + $0x4d] sm:$0xff]
    %v5593 = vld [vmem:[%s3383 + $0x55] sm:$0xff]
    %v5594 = vld [vmem:[%s3383 + $0x5d] sm:$0xff]
    %v5595 = vld [vmem:[%s3383 + $0x65] sm:$0xff]
    %v5596 = vld [vmem:[%s3383 + $0x6d] sm:$0xff]
    %v5597 = vld [vmem:[%s3383 + $0x75] sm:$0xff]
    %v5598 = vld [vmem:[%s3383 + $0x7d] sm:$0xff]
    %v5599 = vld [vmem:[%s3383 + $0x85] sm:$0xff]
    %v5600 = vld [vmem:[%s3383 + $0x8d] sm:$0xff]
    %v5601 = vld [vmem:[%s3383 + $0x95] sm:$0xff]
    %v5602 = vld [vmem:[%s3383 + $0x9d] sm:$0xff]
    %v5603 = vld [vmem:[%s3383 + $0xa5] sm:$0xff]
    %v5604 = vld [vmem:[%s3383 + $0xad] sm:$0xff]
    %v5605 = vld [vmem:[%s3383 + $0xb5] sm:$0xff]
    %v5606 = vld [vmem:[%s3383 + $0xbd] sm:$0xff]
    %v5607 = vld [vmem:[%s3383 + $0xc5] sm:$0xff]
    %v5608 = vld [vmem:[%s3383 + $0xcd] sm:$0xff]
    %v5609 = vld [vmem:[%s3383 + $0xd5] sm:$0xff]
    %v5610 = vld [vmem:[%s3383 + $0xdd] sm:$0xff]
    %v5611 = vld [vmem:[%s3383 + $0xe5] sm:$0xff]
    %v5612 = vld [vmem:[%s3383 + $0xed] sm:$0xff]
    %v5613 = vld [vmem:[%s3383 + $0xf5] sm:$0xff]
    %v5614 = vld [vmem:[%s3383 + $0xfd] sm:$0xff]
    %v5615 = vld [vmem:[%s3383 + $0x105] sm:$0xff]
    %v5616 = vld [vmem:[%s3383 + $0x10d] sm:$0xff]
    %v5617 = vld [vmem:[%s3383 + $0x115] sm:$0xff]
    %v5618 = vld [vmem:[%s3383 + $0x11d] sm:$0xff]
    %v5619 = vld [vmem:[%s3383 + $0x125] sm:$0xff]
    %v5620 = vld [vmem:[%s3383 + $0x12d] sm:$0xff]
    %v5621 = vld [vmem:[%s3383 + $0x135] sm:$0xff]
    %v5622 = vld [vmem:[%s3383 + $0x13d] sm:$0xff]
    %v5623 = vpack.c.bf16 %v5588, %v5587
    %v5624 = vpack.c.bf16 %v5590, %v5589
    %v5625 = vpack.c.bf16 %v5592, %v5591
    %v5626 = vpack.c.bf16 %v5594, %v5593
    %v5627 = vpack.c.bf16 %v5596, %v5595
    %v5628 = vpack.c.bf16 %v5598, %v5597
    %v5629 = vpack.c.bf16 %v5600, %v5599
    %v5630 = vpack.c.bf16 %v5602, %v5601
    %v5631 = vpack.c.bf16 %v5604, %v5603
    %v5632 = vpack.c.bf16 %v5606, %v5605
    %v5633 = vpack.c.bf16 %v5608, %v5607
    %v5634 = vpack.c.bf16 %v5610, %v5609
    %v5635 = vpack.c.bf16 %v5612, %v5611
    %v5636 = vpack.c.bf16 %v5614, %v5613
    %v5637 = vpack.c.bf16 %v5616, %v5615
    %v5638 = vpack.c.bf16 %v5618, %v5617
    %v5639 = vpack.c.bf16 %v5620, %v5619
    %v5640 = vpack.c.bf16 %v5622, %v5621
    %v5641 = vld [vmem:[%s2330] sm:$0xf]
    %v5643 = vsel %vm176, %v5623, 0
    %v5646 = vsel %vm176, %v5624, 0
    %v5649 = vsel %vm176, %v5625, 0
    %v5652 = vsel %vm176, %v5626, 0
    %v5655 = vsel %vm176, %v5627, 0
    %v5658 = vsel %vm176, %v5628, 0
    %v5661 = vsel %vm176, %v5629, 0
    %v5664 = vsel %vm176, %v5630, 0
    %v5667 = vsel %vm176, %v5631, 0
    %v5670 = vsel %vm176, %v5632, 0
    %v5673 = vsel %vm176, %v5633, 0
    %v5676 = vsel %vm176, %v5634, 0
    %v5679 = vsel %vm176, %v5635, 0
    %v5682 = vsel %vm176, %v5636, 0
    %v5685 = vsel %vm176, %v5637, 0
    %v5688 = vsel %vm176, %v5638, 0
    %v5691 = vsel %vm176, %v5639, 0
    %v5694 = vsel %vm176, %v5640, 0
    %v5697 = vsel %vm231, %v5641, 0
    %5699 = vmatprep.subr.bf16.mxu0 0
    %5700 = vmatpush1.bf16.msra.mxu0 0
    %5701 = vmatprep.subr.bf16.mxu0 0
    %5702 = vmatpush1.bf16.msra.mxu0 0
    %5703 = vmatprep.subr.bf16.mxu0 0
    %5704 = vmatpush1.bf16.msra.mxu0 0
    %5705 = vmatprep.subr.bf16.mxu0 0
    %5706 = vmatpush1.bf16.msra.mxu0 0
    %5707 = vmatprep.subr.bf16.mxu0 0
    %5708 = vmatpush1.bf16.msra.mxu0 0
    %5709 = vmatprep.subr.bf16.mxu0 0
    %5710 = vmatpush1.bf16.msra.mxu0 0
    %5711 = vmatprep.subr.bf16.mxu0 0
    %5712 = vmatpush1.bf16.msra.mxu0 0
    %5713 = vmatprep.subr.bf16.mxu0 0
    %5714 = vmatpush1.bf16.msra.mxu0 %v5697
    %5715 = vmatprep.subr.bf16.mxu0 0
    %5716 = vmatpush2.bf16.msra.mxu0 0
    %5717 = vmatprep.subr.bf16.mxu0 0
    %5718 = vmatpush2.bf16.msra.mxu0 0
    %5719 = vmatprep.subr.bf16.mxu0 0
    %5720 = vmatpush2.bf16.msra.mxu0 0
    %5721 = vmatprep.subr.bf16.mxu0 0
    %5722 = vmatpush2.bf16.msra.mxu0 0
    %5723 = vmatprep.subr.bf16.mxu0 0
    %5724 = vmatpush2.bf16.msra.mxu0 0
    %5725 = vmatprep.subr.bf16.mxu0 0
    %5726 = vmatpush2.bf16.msra.mxu0 0
    %5727 = vmatprep.subr.bf16.mxu0 0
    %5728 = vmatpush2.bf16.msra.mxu0 0
    %5729 = vmatprep.subr.bf16.mxu0 0
    %5730 = vmatpush2.bf16.msra.mxu0 0
    %5731 = vmatprep.mubr.bf16.mxu0 0
    %5732 = vmatmul.mubr.bf16.gmra.mxu0 %v5643
    %v5733 = vpop.f32.mrf.mxu0
    %v5734 = vadd.f32 0.0, %v5733
    %v5735 = vpop.f32.mrf.mxu0
    %v5736 = vpop.f32.mrf.mxu0
    %v5737 = vadd.f32 0.0, %v5736
    %v5738 = vpop.f32.mrf.mxu0
    %5739 = vmatprep.mubr.bf16.mxu0 0
    %5740 = vmatmul.mubr.bf16.gmra.mxu0 %v5646
    %v5741 = vpop.f32.mrf.mxu0
    %v5742 = vadd.f32 0.0, %v5741
    %v5743 = vpop.f32.mrf.mxu0
    %v5744 = vpop.f32.mrf.mxu0
    %v5745 = vadd.f32 0.0, %v5744
    %v5746 = vpop.f32.mrf.mxu0
    %5747 = vmatprep.mubr.bf16.mxu0 0
    %5748 = vmatmul.mubr.bf16.gmra.mxu0 %v5649
    %v5749 = vpop.f32.mrf.mxu0
    %v5750 = vadd.f32 0.0, %v5749
    %v5751 = vpop.f32.mrf.mxu0
    %v5752 = vpop.f32.mrf.mxu0
    %v5753 = vadd.f32 0.0, %v5752
    %v5754 = vpop.f32.mrf.mxu0
    %5755 = vmatprep.mubr.bf16.mxu0 0
    %5756 = vmatmul.mubr.bf16.gmra.mxu0 %v5652
    %v5757 = vpop.f32.mrf.mxu0
    %v5758 = vadd.f32 0.0, %v5757
    %v5759 = vpop.f32.mrf.mxu0
    %v5760 = vpop.f32.mrf.mxu0
    %v5761 = vadd.f32 0.0, %v5760
    %v5762 = vpop.f32.mrf.mxu0
    %5763 = vmatprep.mubr.bf16.mxu0 0
    %5764 = vmatmul.mubr.bf16.gmra.mxu0 %v5655
    %v5765 = vpop.f32.mrf.mxu0
    %v5766 = vadd.f32 0.0, %v5765
    %v5767 = vpop.f32.mrf.mxu0
    %v5768 = vpop.f32.mrf.mxu0
    %v5769 = vadd.f32 0.0, %v5768
    %v5770 = vpop.f32.mrf.mxu0
    %5771 = vmatprep.mubr.bf16.mxu0 0
    %5772 = vmatmul.mubr.bf16.gmra.mxu0 %v5658
    %v5773 = vpop.f32.mrf.mxu0
    %v5774 = vadd.f32 0.0, %v5773
    %v5775 = vpop.f32.mrf.mxu0
    %v5776 = vpop.f32.mrf.mxu0
    %v5777 = vadd.f32 0.0, %v5776
    %v5778 = vpop.f32.mrf.mxu0
    %5779 = vmatprep.mubr.bf16.mxu0 0
    %5780 = vmatmul.mubr.bf16.gmra.mxu0 %v5661
    %v5781 = vpop.f32.mrf.mxu0
    %v5782 = vadd.f32 0.0, %v5781
    %v5783 = vpop.f32.mrf.mxu0
    %v5784 = vpop.f32.mrf.mxu0
    %v5785 = vadd.f32 0.0, %v5784
    %v5786 = vpop.f32.mrf.mxu0
    %5787 = vmatprep.mubr.bf16.mxu0 0
    %5788 = vmatmul.mubr.bf16.gmra.mxu0 %v5664
    %v5789 = vpop.f32.mrf.mxu0
    %v5790 = vadd.f32 0.0, %v5789
    %v5791 = vpop.f32.mrf.mxu0
    %v5792 = vpop.f32.mrf.mxu0
    %v5793 = vadd.f32 0.0, %v5792
    %v5794 = vpop.f32.mrf.mxu0
    %5795 = vmatprep.mubr.bf16.mxu0 0
    %5796 = vmatmul.mubr.bf16.gmra.mxu0 %v5667
    %v5797 = vpop.f32.mrf.mxu0
    %v5798 = vadd.f32 0.0, %v5797
    %v5799 = vpop.f32.mrf.mxu0
    %v5800 = vpop.f32.mrf.mxu0
    %v5801 = vadd.f32 0.0, %v5800
    %v5802 = vpop.f32.mrf.mxu0
    %5803 = vmatprep.mubr.bf16.mxu0 0
    %5804 = vmatmul.mubr.bf16.gmra.mxu0 %v5670
    %v5805 = vpop.f32.mrf.mxu0
    %v5806 = vadd.f32 0.0, %v5805
    %v5807 = vpop.f32.mrf.mxu0
    %v5808 = vpop.f32.mrf.mxu0
    %v5809 = vadd.f32 0.0, %v5808
    %v5810 = vpop.f32.mrf.mxu0
    %5811 = vmatprep.mubr.bf16.mxu0 0
    %5812 = vmatmul.mubr.bf16.gmra.mxu0 %v5673
    %v5813 = vpop.f32.mrf.mxu0
    %v5814 = vadd.f32 0.0, %v5813
    %v5815 = vpop.f32.mrf.mxu0
    %v5816 = vpop.f32.mrf.mxu0
    %v5817 = vadd.f32 0.0, %v5816
    %v5818 = vpop.f32.mrf.mxu0
    %5819 = vmatprep.mubr.bf16.mxu0 0
    %5820 = vmatmul.mubr.bf16.gmra.mxu0 %v5676
    %v5821 = vpop.f32.mrf.mxu0
    %v5822 = vadd.f32 0.0, %v5821
    %v5823 = vpop.f32.mrf.mxu0
    %v5824 = vpop.f32.mrf.mxu0
    %v5825 = vadd.f32 0.0, %v5824
    %v5826 = vpop.f32.mrf.mxu0
    %5827 = vmatprep.mubr.bf16.mxu0 0
    %5828 = vmatmul.mubr.bf16.gmra.mxu0 %v5679
    %v5829 = vpop.f32.mrf.mxu0
    %v5830 = vadd.f32 0.0, %v5829
    %v5831 = vpop.f32.mrf.mxu0
    %v5832 = vpop.f32.mrf.mxu0
    %v5833 = vadd.f32 0.0, %v5832
    %v5834 = vpop.f32.mrf.mxu0
    %5835 = vmatprep.mubr.bf16.mxu0 0
    %5836 = vmatmul.mubr.bf16.gmra.mxu0 %v5682
    %v5837 = vpop.f32.mrf.mxu0
    %v5838 = vadd.f32 0.0, %v5837
    %v5839 = vpop.f32.mrf.mxu0
    %v5840 = vpop.f32.mrf.mxu0
    %v5841 = vadd.f32 0.0, %v5840
    %v5842 = vpop.f32.mrf.mxu0
    %5843 = vmatprep.mubr.bf16.mxu0 0
    %5844 = vmatmul.mubr.bf16.gmra.mxu0 %v5685
    %v5845 = vpop.f32.mrf.mxu0
    %v5846 = vadd.f32 0.0, %v5845
    %v5847 = vpop.f32.mrf.mxu0
    %v5848 = vpop.f32.mrf.mxu0
    %v5849 = vadd.f32 0.0, %v5848
    %v5850 = vpop.f32.mrf.mxu0
    %5851 = vmatprep.mubr.bf16.mxu0 0
    %5852 = vmatmul.mubr.bf16.gmra.mxu0 %v5688
    %v5853 = vpop.f32.mrf.mxu0
    %v5854 = vadd.f32 0.0, %v5853
    %v5855 = vpop.f32.mrf.mxu0
    %v5856 = vpop.f32.mrf.mxu0
    %v5857 = vadd.f32 0.0, %v5856
    %v5858 = vpop.f32.mrf.mxu0
    %5859 = vmatprep.mubr.bf16.mxu0 0
    %5860 = vmatmul.mubr.bf16.gmra.mxu0 %v5691
    %v5861 = vpop.f32.mrf.mxu0
    %v5862 = vadd.f32 0.0, %v5861
    %v5863 = vpop.f32.mrf.mxu0
    %v5864 = vpop.f32.mrf.mxu0
    %v5865 = vadd.f32 0.0, %v5864
    %v5866 = vpop.f32.mrf.mxu0
    %5867 = vmatprep.mubr.bf16.mxu0 0
    %5868 = vmatmul.mubr.bf16.gmra.mxu0 %v5694
    %v5869 = vpop.f32.mrf.mxu0
    %v5870 = vadd.f32 0.0, %v5869
    %v5871 = vpop.f32.mrf.mxu0
    %v5872 = vpop.f32.mrf.mxu0
    %v5873 = vadd.f32 0.0, %v5872
    %v5874 = vpop.f32.mrf.mxu0
    %5875 = vdwg.mxu0
    %v5876 = vadd.f32 %v5551, %v5734
    %v5877 = vadd.f32 %v5552, %v5737
    %v5878 = vadd.f32 %v5553, %v5742
    %v5879 = vadd.f32 %v5554, %v5745
    %v5880 = vadd.f32 %v5555, %v5750
    %v5881 = vadd.f32 %v5556, %v5753
    %v5882 = vadd.f32 %v5557, %v5758
    %v5883 = vadd.f32 %v5558, %v5761
    %v5884 = vadd.f32 %v5559, %v5766
    %v5885 = vadd.f32 %v5560, %v5769
    %v5886 = vadd.f32 %v5561, %v5774
    %v5887 = vadd.f32 %v5562, %v5777
    %v5888 = vadd.f32 %v5563, %v5782
    %v5889 = vadd.f32 %v5564, %v5785
    %v5890 = vadd.f32 %v5565, %v5790
    %v5891 = vadd.f32 %v5566, %v5793
    %v5892 = vadd.f32 %v5567, %v5798
    %v5893 = vadd.f32 %v5568, %v5801
    %v5894 = vadd.f32 %v5569, %v5806
    %v5895 = vadd.f32 %v5570, %v5809
    %v5896 = vadd.f32 %v5571, %v5814
    %v5897 = vadd.f32 %v5572, %v5817
    %v5898 = vadd.f32 %v5573, %v5822
    %v5899 = vadd.f32 %v5574, %v5825
    %v5900 = vadd.f32 %v5575, %v5830
    %v5901 = vadd.f32 %v5576, %v5833
    %v5902 = vadd.f32 %v5577, %v5838
    %v5903 = vadd.f32 %v5578, %v5841
    %v5904 = vadd.f32 %v5579, %v5846
    %v5905 = vadd.f32 %v5580, %v5849
    %v5906 = vadd.f32 %v5581, %v5854
    %v5907 = vadd.f32 %v5582, %v5857
    %v5908 = vadd.f32 %v5583, %v5862
    %v5909 = vadd.f32 %v5584, %v5865
    %v5910 = vadd.f32 %v5585, %v5870
    %v5911 = vadd.f32 %v5586, %v5873
    %v5912 = vld [vmem:[%s3383 + $0x26] sm:$0xff]
    %v5913 = vld [vmem:[%s3383 + $0x2e] sm:$0xff]
    %v5914 = vld [vmem:[%s3383 + $0x36] sm:$0xff]
    %v5915 = vld [vmem:[%s3383 + $0x3e] sm:$0xff]
    %v5916 = vld [vmem:[%s3383 + $0x46] sm:$0xff]
    %v5917 = vld [vmem:[%s3383 + $0x4e] sm:$0xff]
    %v5918 = vld [vmem:[%s3383 + $0x56] sm:$0xff]
    %v5919 = vld [vmem:[%s3383 + $0x5e] sm:$0xff]
    %v5920 = vld [vmem:[%s3383 + $0x66] sm:$0xff]
    %v5921 = vld [vmem:[%s3383 + $0x6e] sm:$0xff]
    %v5922 = vld [vmem:[%s3383 + $0x76] sm:$0xff]
    %v5923 = vld [vmem:[%s3383 + $0x7e] sm:$0xff]
    %v5924 = vld [vmem:[%s3383 + $0x86] sm:$0xff]
    %v5925 = vld [vmem:[%s3383 + $0x8e] sm:$0xff]
    %v5926 = vld [vmem:[%s3383 + $0x96] sm:$0xff]
    %v5927 = vld [vmem:[%s3383 + $0x9e] sm:$0xff]
    %v5928 = vld [vmem:[%s3383 + $0xa6] sm:$0xff]
    %v5929 = vld [vmem:[%s3383 + $0xae] sm:$0xff]
    %v5930 = vld [vmem:[%s3383 + $0xb6] sm:$0xff]
    %v5931 = vld [vmem:[%s3383 + $0xbe] sm:$0xff]
    %v5932 = vld [vmem:[%s3383 + $0xc6] sm:$0xff]
    %v5933 = vld [vmem:[%s3383 + $0xce] sm:$0xff]
    %v5934 = vld [vmem:[%s3383 + $0xd6] sm:$0xff]
    %v5935 = vld [vmem:[%s3383 + $0xde] sm:$0xff]
    %v5936 = vld [vmem:[%s3383 + $0xe6] sm:$0xff]
    %v5937 = vld [vmem:[%s3383 + $0xee] sm:$0xff]
    %v5938 = vld [vmem:[%s3383 + $0xf6] sm:$0xff]
    %v5939 = vld [vmem:[%s3383 + $0xfe] sm:$0xff]
    %v5940 = vld [vmem:[%s3383 + $0x106] sm:$0xff]
    %v5941 = vld [vmem:[%s3383 + $0x10e] sm:$0xff]
    %v5942 = vld [vmem:[%s3383 + $0x116] sm:$0xff]
    %v5943 = vld [vmem:[%s3383 + $0x11e] sm:$0xff]
    %v5944 = vld [vmem:[%s3383 + $0x126] sm:$0xff]
    %v5945 = vld [vmem:[%s3383 + $0x12e] sm:$0xff]
    %v5946 = vld [vmem:[%s3383 + $0x136] sm:$0xff]
    %v5947 = vld [vmem:[%s3383 + $0x13e] sm:$0xff]
    %v5948 = vpack.c.bf16 %v5913, %v5912
    %v5949 = vpack.c.bf16 %v5915, %v5914
    %v5950 = vpack.c.bf16 %v5917, %v5916
    %v5951 = vpack.c.bf16 %v5919, %v5918
    %v5952 = vpack.c.bf16 %v5921, %v5920
    %v5953 = vpack.c.bf16 %v5923, %v5922
    %v5954 = vpack.c.bf16 %v5925, %v5924
    %v5955 = vpack.c.bf16 %v5927, %v5926
    %v5956 = vpack.c.bf16 %v5929, %v5928
    %v5957 = vpack.c.bf16 %v5931, %v5930
    %v5958 = vpack.c.bf16 %v5933, %v5932
    %v5959 = vpack.c.bf16 %v5935, %v5934
    %v5960 = vpack.c.bf16 %v5937, %v5936
    %v5961 = vpack.c.bf16 %v5939, %v5938
    %v5962 = vpack.c.bf16 %v5941, %v5940
    %v5963 = vpack.c.bf16 %v5943, %v5942
    %v5964 = vpack.c.bf16 %v5945, %v5944
    %v5965 = vpack.c.bf16 %v5947, %v5946
    %v5966 = vld [vmem:[%s2656] sm:$0xf]
    %v5968 = vsel %vm176, %v5948, 0
    %v5971 = vsel %vm176, %v5949, 0
    %v5974 = vsel %vm176, %v5950, 0
    %v5977 = vsel %vm176, %v5951, 0
    %v5980 = vsel %vm176, %v5952, 0
    %v5983 = vsel %vm176, %v5953, 0
    %v5986 = vsel %vm176, %v5954, 0
    %v5989 = vsel %vm176, %v5955, 0
    %v5992 = vsel %vm176, %v5956, 0
    %v5995 = vsel %vm176, %v5957, 0
    %v5998 = vsel %vm176, %v5958, 0
    %v6001 = vsel %vm176, %v5959, 0
    %v6004 = vsel %vm176, %v5960, 0
    %v6007 = vsel %vm176, %v5961, 0
    %v6010 = vsel %vm176, %v5962, 0
    %v6013 = vsel %vm176, %v5963, 0
    %v6016 = vsel %vm176, %v5964, 0
    %v6019 = vsel %vm176, %v5965, 0
    %v6022 = vsel %vm231, %v5966, 0
    %6024 = vmatprep.subr.bf16.mxu0 0
    %6025 = vmatpush1.bf16.msra.mxu0 0
    %6026 = vmatprep.subr.bf16.mxu0 0
    %6027 = vmatpush1.bf16.msra.mxu0 0
    %6028 = vmatprep.subr.bf16.mxu0 0
    %6029 = vmatpush1.bf16.msra.mxu0 0
    %6030 = vmatprep.subr.bf16.mxu0 0
    %6031 = vmatpush1.bf16.msra.mxu0 0
    %6032 = vmatprep.subr.bf16.mxu0 0
    %6033 = vmatpush1.bf16.msra.mxu0 0
    %6034 = vmatprep.subr.bf16.mxu0 0
    %6035 = vmatpush1.bf16.msra.mxu0 0
    %6036 = vmatprep.subr.bf16.mxu0 0
    %6037 = vmatpush1.bf16.msra.mxu0 0
    %6038 = vmatprep.subr.bf16.mxu0 0
    %6039 = vmatpush1.bf16.msra.mxu0 %v6022
    %6040 = vmatprep.subr.bf16.mxu0 0
    %6041 = vmatpush2.bf16.msra.mxu0 0
    %6042 = vmatprep.subr.bf16.mxu0 0
    %6043 = vmatpush2.bf16.msra.mxu0 0
    %6044 = vmatprep.subr.bf16.mxu0 0
    %6045 = vmatpush2.bf16.msra.mxu0 0
    %6046 = vmatprep.subr.bf16.mxu0 0
    %6047 = vmatpush2.bf16.msra.mxu0 0
    %6048 = vmatprep.subr.bf16.mxu0 0
    %6049 = vmatpush2.bf16.msra.mxu0 0
    %6050 = vmatprep.subr.bf16.mxu0 0
    %6051 = vmatpush2.bf16.msra.mxu0 0
    %6052 = vmatprep.subr.bf16.mxu0 0
    %6053 = vmatpush2.bf16.msra.mxu0 0
    %6054 = vmatprep.subr.bf16.mxu0 0
    %6055 = vmatpush2.bf16.msra.mxu0 0
    %6056 = vmatprep.mubr.bf16.mxu0 0
    %6057 = vmatmul.mubr.bf16.gmra.mxu0 %v5968
    %v6058 = vpop.f32.mrf.mxu0
    %v6059 = vadd.f32 0.0, %v6058
    %v6060 = vpop.f32.mrf.mxu0
    %v6061 = vpop.f32.mrf.mxu0
    %v6062 = vadd.f32 0.0, %v6061
    %v6063 = vpop.f32.mrf.mxu0
    %6064 = vmatprep.mubr.bf16.mxu0 0
    %6065 = vmatmul.mubr.bf16.gmra.mxu0 %v5971
    %v6066 = vpop.f32.mrf.mxu0
    %v6067 = vadd.f32 0.0, %v6066
    %v6068 = vpop.f32.mrf.mxu0
    %v6069 = vpop.f32.mrf.mxu0
    %v6070 = vadd.f32 0.0, %v6069
    %v6071 = vpop.f32.mrf.mxu0
    %6072 = vmatprep.mubr.bf16.mxu0 0
    %6073 = vmatmul.mubr.bf16.gmra.mxu0 %v5974
    %v6074 = vpop.f32.mrf.mxu0
    %v6075 = vadd.f32 0.0, %v6074
    %v6076 = vpop.f32.mrf.mxu0
    %v6077 = vpop.f32.mrf.mxu0
    %v6078 = vadd.f32 0.0, %v6077
    %v6079 = vpop.f32.mrf.mxu0
    %6080 = vmatprep.mubr.bf16.mxu0 0
    %6081 = vmatmul.mubr.bf16.gmra.mxu0 %v5977
    %v6082 = vpop.f32.mrf.mxu0
    %v6083 = vadd.f32 0.0, %v6082
    %v6084 = vpop.f32.mrf.mxu0
    %v6085 = vpop.f32.mrf.mxu0
    %v6086 = vadd.f32 0.0, %v6085
    %v6087 = vpop.f32.mrf.mxu0
    %6088 = vmatprep.mubr.bf16.mxu0 0
    %6089 = vmatmul.mubr.bf16.gmra.mxu0 %v5980
    %v6090 = vpop.f32.mrf.mxu0
    %v6091 = vadd.f32 0.0, %v6090
    %v6092 = vpop.f32.mrf.mxu0
    %v6093 = vpop.f32.mrf.mxu0
    %v6094 = vadd.f32 0.0, %v6093
    %v6095 = vpop.f32.mrf.mxu0
    %6096 = vmatprep.mubr.bf16.mxu0 0
    %6097 = vmatmul.mubr.bf16.gmra.mxu0 %v5983
    %v6098 = vpop.f32.mrf.mxu0
    %v6099 = vadd.f32 0.0, %v6098
    %v6100 = vpop.f32.mrf.mxu0
    %v6101 = vpop.f32.mrf.mxu0
    %v6102 = vadd.f32 0.0, %v6101
    %v6103 = vpop.f32.mrf.mxu0
    %6104 = vmatprep.mubr.bf16.mxu0 0
    %6105 = vmatmul.mubr.bf16.gmra.mxu0 %v5986
    %v6106 = vpop.f32.mrf.mxu0
    %v6107 = vadd.f32 0.0, %v6106
    %v6108 = vpop.f32.mrf.mxu0
    %v6109 = vpop.f32.mrf.mxu0
    %v6110 = vadd.f32 0.0, %v6109
    %v6111 = vpop.f32.mrf.mxu0
    %6112 = vmatprep.mubr.bf16.mxu0 0
    %6113 = vmatmul.mubr.bf16.gmra.mxu0 %v5989
    %v6114 = vpop.f32.mrf.mxu0
    %v6115 = vadd.f32 0.0, %v6114
    %v6116 = vpop.f32.mrf.mxu0
    %v6117 = vpop.f32.mrf.mxu0
    %v6118 = vadd.f32 0.0, %v6117
    %v6119 = vpop.f32.mrf.mxu0
    %6120 = vmatprep.mubr.bf16.mxu0 0
    %6121 = vmatmul.mubr.bf16.gmra.mxu0 %v5992
    %v6122 = vpop.f32.mrf.mxu0
    %v6123 = vadd.f32 0.0, %v6122
    %v6124 = vpop.f32.mrf.mxu0
    %v6125 = vpop.f32.mrf.mxu0
    %v6126 = vadd.f32 0.0, %v6125
    %v6127 = vpop.f32.mrf.mxu0
    %6128 = vmatprep.mubr.bf16.mxu0 0
    %6129 = vmatmul.mubr.bf16.gmra.mxu0 %v5995
    %v6130 = vpop.f32.mrf.mxu0
    %v6131 = vadd.f32 0.0, %v6130
    %v6132 = vpop.f32.mrf.mxu0
    %v6133 = vpop.f32.mrf.mxu0
    %v6134 = vadd.f32 0.0, %v6133
    %v6135 = vpop.f32.mrf.mxu0
    %6136 = vmatprep.mubr.bf16.mxu0 0
    %6137 = vmatmul.mubr.bf16.gmra.mxu0 %v5998
    %v6138 = vpop.f32.mrf.mxu0
    %v6139 = vadd.f32 0.0, %v6138
    %v6140 = vpop.f32.mrf.mxu0
    %v6141 = vpop.f32.mrf.mxu0
    %v6142 = vadd.f32 0.0, %v6141
    %v6143 = vpop.f32.mrf.mxu0
    %6144 = vmatprep.mubr.bf16.mxu0 0
    %6145 = vmatmul.mubr.bf16.gmra.mxu0 %v6001
    %v6146 = vpop.f32.mrf.mxu0
    %v6147 = vadd.f32 0.0, %v6146
    %v6148 = vpop.f32.mrf.mxu0
    %v6149 = vpop.f32.mrf.mxu0
    %v6150 = vadd.f32 0.0, %v6149
    %v6151 = vpop.f32.mrf.mxu0
    %6152 = vmatprep.mubr.bf16.mxu0 0
    %6153 = vmatmul.mubr.bf16.gmra.mxu0 %v6004
    %v6154 = vpop.f32.mrf.mxu0
    %v6155 = vadd.f32 0.0, %v6154
    %v6156 = vpop.f32.mrf.mxu0
    %v6157 = vpop.f32.mrf.mxu0
    %v6158 = vadd.f32 0.0, %v6157
    %v6159 = vpop.f32.mrf.mxu0
    %6160 = vmatprep.mubr.bf16.mxu0 0
    %6161 = vmatmul.mubr.bf16.gmra.mxu0 %v6007
    %v6162 = vpop.f32.mrf.mxu0
    %v6163 = vadd.f32 0.0, %v6162
    %v6164 = vpop.f32.mrf.mxu0
    %v6165 = vpop.f32.mrf.mxu0
    %v6166 = vadd.f32 0.0, %v6165
    %v6167 = vpop.f32.mrf.mxu0
    %6168 = vmatprep.mubr.bf16.mxu0 0
    %6169 = vmatmul.mubr.bf16.gmra.mxu0 %v6010
    %v6170 = vpop.f32.mrf.mxu0
    %v6171 = vadd.f32 0.0, %v6170
    %v6172 = vpop.f32.mrf.mxu0
    %v6173 = vpop.f32.mrf.mxu0
    %v6174 = vadd.f32 0.0, %v6173
    %v6175 = vpop.f32.mrf.mxu0
    %6176 = vmatprep.mubr.bf16.mxu0 0
    %6177 = vmatmul.mubr.bf16.gmra.mxu0 %v6013
    %v6178 = vpop.f32.mrf.mxu0
    %v6179 = vadd.f32 0.0, %v6178
    %v6180 = vpop.f32.mrf.mxu0
    %v6181 = vpop.f32.mrf.mxu0
    %v6182 = vadd.f32 0.0, %v6181
    %v6183 = vpop.f32.mrf.mxu0
    %6184 = vmatprep.mubr.bf16.mxu0 0
    %6185 = vmatmul.mubr.bf16.gmra.mxu0 %v6016
    %v6186 = vpop.f32.mrf.mxu0
    %v6187 = vadd.f32 0.0, %v6186
    %v6188 = vpop.f32.mrf.mxu0
    %v6189 = vpop.f32.mrf.mxu0
    %v6190 = vadd.f32 0.0, %v6189
    %v6191 = vpop.f32.mrf.mxu0
    %6192 = vmatprep.mubr.bf16.mxu0 0
    %6193 = vmatmul.mubr.bf16.gmra.mxu0 %v6019
    %v6194 = vpop.f32.mrf.mxu0
    %v6195 = vadd.f32 0.0, %v6194
    %v6196 = vpop.f32.mrf.mxu0
    %v6197 = vpop.f32.mrf.mxu0
    %v6198 = vadd.f32 0.0, %v6197
    %v6199 = vpop.f32.mrf.mxu0
    %6200 = vdwg.mxu0
    %v6201 = vadd.f32 %v5876, %v6059
    %v6202 = vadd.f32 %v5877, %v6062
    %v6203 = vadd.f32 %v5878, %v6067
    %v6204 = vadd.f32 %v5879, %v6070
    %v6205 = vadd.f32 %v5880, %v6075
    %v6206 = vadd.f32 %v5881, %v6078
    %v6207 = vadd.f32 %v5882, %v6083
    %v6208 = vadd.f32 %v5883, %v6086
    %v6209 = vadd.f32 %v5884, %v6091
    %v6210 = vadd.f32 %v5885, %v6094
    %v6211 = vadd.f32 %v5886, %v6099
    %v6212 = vadd.f32 %v5887, %v6102
    %v6213 = vadd.f32 %v5888, %v6107
    %v6214 = vadd.f32 %v5889, %v6110
    %v6215 = vadd.f32 %v5890, %v6115
    %v6216 = vadd.f32 %v5891, %v6118
    %v6217 = vadd.f32 %v5892, %v6123
    %v6218 = vadd.f32 %v5893, %v6126
    %v6219 = vadd.f32 %v5894, %v6131
    %v6220 = vadd.f32 %v5895, %v6134
    %v6221 = vadd.f32 %v5896, %v6139
    %v6222 = vadd.f32 %v5897, %v6142
    %v6223 = vadd.f32 %v5898, %v6147
    %v6224 = vadd.f32 %v5899, %v6150
    %v6225 = vadd.f32 %v5900, %v6155
    %v6226 = vadd.f32 %v5901, %v6158
    %v6227 = vadd.f32 %v5902, %v6163
    %v6228 = vadd.f32 %v5903, %v6166
    %v6229 = vadd.f32 %v5904, %v6171
    %v6230 = vadd.f32 %v5905, %v6174
    %v6231 = vadd.f32 %v5906, %v6179
    %v6232 = vadd.f32 %v5907, %v6182
    %v6233 = vadd.f32 %v5908, %v6187
    %v6234 = vadd.f32 %v5909, %v6190
    %v6235 = vadd.f32 %v5910, %v6195
    %v6236 = vadd.f32 %v5911, %v6198
    %v6237 = vld [vmem:[%s2] sm:$0x1]
    %v6239 = vlaneseq
    %v6240 = vshrl.u32 %v6239, 7
    %v6241 = vsub.s32 0, %v6240
    %v6242 = vrot.slane %v6237, %v6241
    %v6244 = vadd.f32 %v6201, %v6242
    %v6245 = vadd.f32 %v6202, %v6242
    %v6246 = vadd.f32 %v6203, %v6242
    %v6247 = vadd.f32 %v6204, %v6242
    %v6248 = vadd.f32 %v6205, %v6242
    %v6249 = vadd.f32 %v6206, %v6242
    %v6250 = vadd.f32 %v6207, %v6242
    %v6251 = vadd.f32 %v6208, %v6242
    %v6252 = vadd.f32 %v6209, %v6242
    %v6253 = vadd.f32 %v6210, %v6242
    %v6254 = vadd.f32 %v6211, %v6242
    %v6255 = vadd.f32 %v6212, %v6242
    %v6256 = vadd.f32 %v6213, %v6242
    %v6257 = vadd.f32 %v6214, %v6242
    %v6258 = vadd.f32 %v6215, %v6242
    %v6259 = vadd.f32 %v6216, %v6242
    %v6260 = vadd.f32 %v6217, %v6242
    %v6261 = vadd.f32 %v6218, %v6242
    %v6262 = vadd.f32 %v6219, %v6242
    %v6263 = vadd.f32 %v6220, %v6242
    %v6264 = vadd.f32 %v6221, %v6242
    %v6265 = vadd.f32 %v6222, %v6242
    %v6266 = vadd.f32 %v6223, %v6242
    %v6267 = vadd.f32 %v6224, %v6242
    %v6268 = vadd.f32 %v6225, %v6242
    %v6269 = vadd.f32 %v6226, %v6242
    %v6270 = vadd.f32 %v6227, %v6242
    %v6271 = vadd.f32 %v6228, %v6242
    %v6272 = vadd.f32 %v6229, %v6242
    %v6273 = vadd.f32 %v6230, %v6242
    %v6274 = vadd.f32 %v6231, %v6242
    %v6275 = vadd.f32 %v6232, %v6242
    %v6276 = vadd.f32 %v6233, %v6242
    %v6277 = vadd.f32 %v6234, %v6242
    %v6278 = vadd.f32 %v6235, %v6242
    %v6279 = vadd.f32 %v6236, %v6242
    %v6280 = vmax.f32 %v6244, 0.0
    %v6281 = vmax.f32 %v6245, 0.0
    %v6282 = vmax.f32 %v6246, 0.0
    %v6283 = vmax.f32 %v6247, 0.0
    %v6284 = vmax.f32 %v6248, 0.0
    %v6285 = vmax.f32 %v6249, 0.0
    %v6286 = vmax.f32 %v6250, 0.0
    %v6287 = vmax.f32 %v6251, 0.0
    %v6288 = vmax.f32 %v6252, 0.0
    %v6289 = vmax.f32 %v6253, 0.0
    %v6290 = vmax.f32 %v6254, 0.0
    %v6291 = vmax.f32 %v6255, 0.0
    %v6292 = vmax.f32 %v6256, 0.0
    %v6293 = vmax.f32 %v6257, 0.0
    %v6294 = vmax.f32 %v6258, 0.0
    %v6295 = vmax.f32 %v6259, 0.0
    %v6296 = vmax.f32 %v6260, 0.0
    %v6297 = vmax.f32 %v6261, 0.0
    %v6298 = vmax.f32 %v6262, 0.0
    %v6299 = vmax.f32 %v6263, 0.0
    %v6300 = vmax.f32 %v6264, 0.0
    %v6301 = vmax.f32 %v6265, 0.0
    %v6302 = vmax.f32 %v6266, 0.0
    %v6303 = vmax.f32 %v6267, 0.0
    %v6304 = vmax.f32 %v6268, 0.0
    %v6305 = vmax.f32 %v6269, 0.0
    %v6306 = vmax.f32 %v6270, 0.0
    %v6307 = vmax.f32 %v6271, 0.0
    %v6308 = vmax.f32 %v6272, 0.0
    %v6309 = vmax.f32 %v6273, 0.0
    %v6310 = vmax.f32 %v6274, 0.0
    %v6311 = vmax.f32 %v6275, 0.0
    %v6312 = vmax.f32 %v6276, 0.0
    %v6313 = vmax.f32 %v6277, 0.0
    %v6314 = vmax.f32 %v6278, 0.0
    %v6315 = vmax.f32 %v6279, 0.0
    %s6316 = scalar_lea.vmem [#allocation2], 288
    %6317 = vst [vmem:[%s6316] sm:$0xff] %v6280
    %6318 = vst [vmem:[%s6316 + $0x8] sm:$0xff] %v6281
    %6319 = vst [vmem:[%s6316 + $0x10] sm:$0xff] %v6282
    %6320 = vst [vmem:[%s6316 + $0x18] sm:$0xff] %v6283
    %6321 = vst [vmem:[%s6316 + $0x20] sm:$0xff] %v6284
    %6322 = vst [vmem:[%s6316 + $0x28] sm:$0xff] %v6285
    %6323 = vst [vmem:[%s6316 + $0x30] sm:$0xff] %v6286
    %6324 = vst [vmem:[%s6316 + $0x38] sm:$0xff] %v6287
    %6325 = vst [vmem:[%s6316 + $0x40] sm:$0xff] %v6288
    %6326 = vst [vmem:[%s6316 + $0x48] sm:$0xff] %v6289
    %6327 = vst [vmem:[%s6316 + $0x50] sm:$0xff] %v6290
    %6328 = vst [vmem:[%s6316 + $0x58] sm:$0xff] %v6291
    %6329 = vst [vmem:[%s6316 + $0x60] sm:$0xff] %v6292
    %6330 = vst [vmem:[%s6316 + $0x68] sm:$0xff] %v6293
    %6331 = vst [vmem:[%s6316 + $0x70] sm:$0xff] %v6294
    %6332 = vst [vmem:[%s6316 + $0x78] sm:$0xff] %v6295
    %6333 = vst [vmem:[%s6316 + $0x80] sm:$0xff] %v6296
    %6334 = vst [vmem:[%s6316 + $0x88] sm:$0xff] %v6297
    %6335 = vst [vmem:[%s6316 + $0x90] sm:$0xff] %v6298
    %6336 = vst [vmem:[%s6316 + $0x98] sm:$0xff] %v6299
    %6337 = vst [vmem:[%s6316 + $0xa0] sm:$0xff] %v6300
    %6338 = vst [vmem:[%s6316 + $0xa8] sm:$0xff] %v6301
    %6339 = vst [vmem:[%s6316 + $0xb0] sm:$0xff] %v6302
    %6340 = vst [vmem:[%s6316 + $0xb8] sm:$0xff] %v6303
    %6341 = vst [vmem:[%s6316 + $0xc0] sm:$0xff] %v6304
    %6342 = vst [vmem:[%s6316 + $0xc8] sm:$0xff] %v6305
    %6343 = vst [vmem:[%s6316 + $0xd0] sm:$0xff] %v6306
    %6344 = vst [vmem:[%s6316 + $0xd8] sm:$0xff] %v6307
    %6345 = vst [vmem:[%s6316 + $0xe0] sm:$0xff] %v6308
    %6346 = vst [vmem:[%s6316 + $0xe8] sm:$0xff] %v6309
    %6347 = vst [vmem:[%s6316 + $0xf0] sm:$0xff] %v6310
    %6348 = vst [vmem:[%s6316 + $0xf8] sm:$0xff] %v6311
    %6349 = vst [vmem:[%s6316 + $0x100] sm:$0xff] %v6312
    %6350 = vst [vmem:[%s6316 + $0x108] sm:$0xff] %v6313
    %6351 = vst [vmem:[%s6316 + $0x110] sm:$0xff] %v6314
    %6352 = vst [vmem:[%s6316 + $0x118] sm:$0xff] %v6315
    %v6353 = vmul.f32 %v6280, %v3046
    %v6354 = vmul.f32 %v6281, %v3051
    %v6355 = vmul.f32 %v6282, %v3056
    %v6356 = vmul.f32 %v6283, %v3061
    %v6357 = vmul.f32 %v6284, %v3066
    %v6358 = vmul.f32 %v6285, %v3071
    %v6359 = vmul.f32 %v6286, %v3076
    %v6360 = vmul.f32 %v6287, %v3081
    %v6361 = vmul.f32 %v6288, %v3086
    %v6362 = vmul.f32 %v6289, %v3091
    %v6363 = vmul.f32 %v6290, %v3096
    %v6364 = vmul.f32 %v6291, %v3101
    %v6365 = vmul.f32 %v6292, %v3106
    %v6366 = vmul.f32 %v6293, %v3111
    %v6367 = vmul.f32 %v6294, %v3116
    %v6368 = vmul.f32 %v6295, %v3121
    %v6369 = vmul.f32 %v6296, %v3126
    %v6370 = vmul.f32 %v6297, %v3131
    %v6371 = vmul.f32 %v6298, %v3136
    %v6372 = vmul.f32 %v6299, %v3141
    %v6373 = vmul.f32 %v6300, %v3146
    %v6374 = vmul.f32 %v6301, %v3151
    %v6375 = vmul.f32 %v6302, %v3156
    %v6376 = vmul.f32 %v6303, %v3161
    %v6377 = vmul.f32 %v6304, %v3166
    %v6378 = vmul.f32 %v6305, %v3171
    %v6379 = vmul.f32 %v6306, %v3176
    %v6380 = vmul.f32 %v6307, %v3181
    %v6381 = vmul.f32 %v6308, %v3186
    %v6382 = vmul.f32 %v6309, %v3191
    %v6383 = vmul.f32 %v6310, %v3196
    %v6384 = vmul.f32 %v6311, %v3201
    %v6385 = vmul.f32 %v6312, %v3206
    %v6386 = vmul.f32 %v6313, %v3211
    %v6387 = vmul.f32 %v6314, %v3216
    %v6388 = vmul.f32 %v6315, %v3221
    %v6389 = vld [vmem:[#allocation4] sm:$0x1]
    %v6390 = vadd.f32 %v6353, %v6354
    %v6391 = vadd.f32 %v6390, %v6355
    %v6392 = vadd.f32 %v6391, %v6356
    %v6393 = vadd.f32 %v6392, %v6357
    %v6394 = vadd.f32 %v6393, %v6358
    %v6395 = vadd.f32 %v6394, %v6359
    %v6396 = vadd.f32 %v6395, %v6360
    %v6397 = vadd.f32 %v6396, %v6361
    %v6398 = vadd.f32 %v6397, %v6362
    %v6399 = vadd.f32 %v6398, %v6363
    %v6400 = vadd.f32 %v6399, %v6364
    %v6401 = vadd.f32 %v6400, %v6365
    %v6402 = vadd.f32 %v6401, %v6366
    %v6403 = vadd.f32 %v6402, %v6367
    %v6404 = vadd.f32 %v6403, %v6368
    %v6405 = vadd.f32 %v6404, %v6369
    %v6406 = vadd.f32 %v6405, %v6370
    %v6407 = vadd.f32 %v6406, %v6371
    %v6408 = vadd.f32 %v6407, %v6372
    %v6409 = vadd.f32 %v6408, %v6373
    %v6410 = vadd.f32 %v6409, %v6374
    %v6411 = vadd.f32 %v6410, %v6375
    %v6412 = vadd.f32 %v6411, %v6376
    %v6413 = vadd.f32 %v6412, %v6377
    %v6414 = vadd.f32 %v6413, %v6378
    %v6415 = vadd.f32 %v6414, %v6379
    %v6416 = vadd.f32 %v6415, %v6380
    %v6417 = vadd.f32 %v6416, %v6381
    %v6418 = vadd.f32 %v6417, %v6382
    %v6419 = vadd.f32 %v6418, %v6383
    %v6420 = vadd.f32 %v6419, %v6384
    %v6421 = vadd.f32 %v6420, %v6385
    %v6422 = vadd.f32 %v6421, %v6386
    %v6423 = vadd.f32 %v6422, %v6387
    %v6424 = vadd.f32 %v6423, %v6388
    %v6425 = vrot.slane %v6424, 4
    %v6426 = vadd.f32 %v6424, %v6425
    %v6427 = vrot.slane %v6426, 2
    %v6428 = vadd.f32 %v6426, %v6427
    %v6429 = vrot.slane %v6428, 1
    %v6430 = vadd.f32 %v6428, %v6429
    %v6431 = vadd.f32 %v6389, %v6430
    %6432 = vst [vmem:[#allocation4] sm:$0x1] %v6431
    %v6433 = vld [vmem:[#allocation6] sm:$0x1]
    %v6434 = vmul.f32 %v6353, %v6280
    %v6435 = vmul.f32 %v6354, %v6281
    %v6436 = vmul.f32 %v6355, %v6282
    %v6437 = vmul.f32 %v6356, %v6283
    %v6438 = vmul.f32 %v6357, %v6284
    %v6439 = vmul.f32 %v6358, %v6285
    %v6440 = vmul.f32 %v6359, %v6286
    %v6441 = vmul.f32 %v6360, %v6287
    %v6442 = vmul.f32 %v6361, %v6288
    %v6443 = vmul.f32 %v6362, %v6289
    %v6444 = vmul.f32 %v6363, %v6290
    %v6445 = vmul.f32 %v6364, %v6291
    %v6446 = vmul.f32 %v6365, %v6292
    %v6447 = vmul.f32 %v6366, %v6293
    %v6448 = vmul.f32 %v6367, %v6294
    %v6449 = vmul.f32 %v6368, %v6295
    %v6450 = vmul.f32 %v6369, %v6296
    %v6451 = vmul.f32 %v6370, %v6297
    %v6452 = vmul.f32 %v6371, %v6298
    %v6453 = vmul.f32 %v6372, %v6299
    %v6454 = vmul.f32 %v6373, %v6300
    %v6455 = vmul.f32 %v6374, %v6301
    %v6456 = vmul.f32 %v6375, %v6302
    %v6457 = vmul.f32 %v6376, %v6303
    %v6458 = vmul.f32 %v6377, %v6304
    %v6459 = vmul.f32 %v6378, %v6305
    %v6460 = vmul.f32 %v6379, %v6306
    %v6461 = vmul.f32 %v6380, %v6307
    %v6462 = vmul.f32 %v6381, %v6308
    %v6463 = vmul.f32 %v6382, %v6309
    %v6464 = vmul.f32 %v6383, %v6310
    %v6465 = vmul.f32 %v6384, %v6311
    %v6466 = vmul.f32 %v6385, %v6312
    %v6467 = vmul.f32 %v6386, %v6313
    %v6468 = vmul.f32 %v6387, %v6314
    %v6469 = vmul.f32 %v6388, %v6315
    %v6470 = vadd.f32 %v6434, %v6435
    %v6471 = vadd.f32 %v6470, %v6436
    %v6472 = vadd.f32 %v6471, %v6437
    %v6473 = vadd.f32 %v6472, %v6438
    %v6474 = vadd.f32 %v6473, %v6439
    %v6475 = vadd.f32 %v6474, %v6440
    %v6476 = vadd.f32 %v6475, %v6441
    %v6477 = vadd.f32 %v6476, %v6442
    %v6478 = vadd.f32 %v6477, %v6443
    %v6479 = vadd.f32 %v6478, %v6444
    %v6480 = vadd.f32 %v6479, %v6445
    %v6481 = vadd.f32 %v6480, %v6446
    %v6482 = vadd.f32 %v6481, %v6447
    %v6483 = vadd.f32 %v6482, %v6448
    %v6484 = vadd.f32 %v6483, %v6449
    %v6485 = vadd.f32 %v6484, %v6450
    %v6486 = vadd.f32 %v6485, %v6451
    %v6487 = vadd.f32 %v6486, %v6452
    %v6488 = vadd.f32 %v6487, %v6453
    %v6489 = vadd.f32 %v6488, %v6454
    %v6490 = vadd.f32 %v6489, %v6455
    %v6491 = vadd.f32 %v6490, %v6456
    %v6492 = vadd.f32 %v6491, %v6457
    %v6493 = vadd.f32 %v6492, %v6458
    %v6494 = vadd.f32 %v6493, %v6459
    %v6495 = vadd.f32 %v6494, %v6460
    %v6496 = vadd.f32 %v6495, %v6461
    %v6497 = vadd.f32 %v6496, %v6462
    %v6498 = vadd.f32 %v6497, %v6463
    %v6499 = vadd.f32 %v6498, %v6464
    %v6500 = vadd.f32 %v6499, %v6465
    %v6501 = vadd.f32 %v6500, %v6466
    %v6502 = vadd.f32 %v6501, %v6467
    %v6503 = vadd.f32 %v6502, %v6468
    %v6504 = vadd.f32 %v6503, %v6469
    %v6505 = vrot.slane %v6504, 4
    %v6506 = vadd.f32 %v6504, %v6505
    %v6507 = vrot.slane %v6506, 2
    %v6508 = vadd.f32 %v6506, %v6507
    %v6509 = vrot.slane %v6508, 1
    %v6510 = vadd.f32 %v6508, %v6509
    %v6511 = vadd.f32 %v6433, %v6510
    %6512 = vst [vmem:[#allocation6] sm:$0x1] %v6511
    // Predicated region
    $region22: #{tpu_custom_call.1} parent=1 // pred_check
      _
    $region23: #{tpu_custom_call.1} parent=1 // pred_check_branch
      %6514 = sbr.rel (0) target = $region25
    $region24: #{tpu_custom_call.1} parent=1 // pred_region
      %s6516 = ssub.s32 9216, 9216
      %6517 = vsyncadd [#allocation3], %s6516
      %s6518 = sshll.u32 [#allocation2], 4
      %s6519 = int_to_ptr.vmem [resolvable:$true] %s6518
      %6524 = dma.vmem_to_hbm [thread:$0]  %s6519, 9216, %s4, [#allocation3], 128, 128, 8
    $region25: #{tpu_custom_call.1} parent=1 // pred_fallthru
      _
    // Predicated region
    $region26: #{tpu_custom_call.1} parent=1 // pred_check
      _
    $region27: #{tpu_custom_call.1} parent=1 // pred_check_branch
      %6526 = sbr.rel (0) target = $region29
    $region28: #{tpu_custom_call.1} parent=1 // pred_region
      %s6528 = ssub.s32 16, 16
      %6529 = vsyncadd [#allocation5], %s6528
      %s6531 = sshll.u32 [#allocation4], 4
      %s6532 = int_to_ptr.vmem [resolvable:$true] %s6531
      %6534 = dma.vmem_to_hbm [thread:$0]  %s6532, 16, %s5, [#allocation5]
    $region29: #{tpu_custom_call.1} parent=1 // pred_fallthru
      _
    // Predicated region
    $region30: #{tpu_custom_call.1} parent=1 // pred_check
      _
    $region31: #{tpu_custom_call.1} parent=1 // pred_check_branch
      %6536 = sbr.rel (0) target = $region33
    $region32: #{tpu_custom_call.1} parent=1 // pred_region
      %s6538 = ssub.s32 16, 16
      %6539 = vsyncadd [#allocation5], %s6538
      %s6541 = sshll.u32 [#allocation6], 4
      %s6542 = int_to_ptr.vmem [resolvable:$true] %s6541
      %6544 = dma.vmem_to_hbm [thread:$0]  %s6542, 16, %s6, [#allocation5]
    $region33: #{tpu_custom_call.1} parent=1 // pred_fallthru
      _
    // Predicated region
    $region34: #{tpu_custom_call.1} parent=1 // pred_check
      _
    $region35: #{tpu_custom_call.1} parent=1 // pred_check_branch
      %6546 = sbr.rel (0) target = $region37
    $region36: #{tpu_custom_call.1} parent=1 // pred_region
      %6547 = dma.done [#allocation3], 9216
    $region37: #{tpu_custom_call.1} parent=1 // pred_fallthru
      _
    // Predicated region
    $region38: #{tpu_custom_call.1} parent=1 // pred_check
      _
    $region39: #{tpu_custom_call.1} parent=1 // pred_check_branch
      %6549 = sbr.rel (0) target = $region41
    $region40: #{tpu_custom_call.1} parent=1 // pred_region
      %6550 = dma.done [#allocation5], 16
    $region41: #{tpu_custom_call.1} parent=1 // pred_fallthru
      _
    // Predicated region
    $region42: #{tpu_custom_call.1} parent=1 // pred_check
      _
    $region43: #{tpu_custom_call.1} parent=1 // pred_check_branch
      %6552 = sbr.rel (0) target = $region45
    $region44: #{tpu_custom_call.1} parent=1 // pred_region
      %6553 = dma.done [#allocation5], 16
    $region45: #{tpu_custom_call.1} parent=1 // pred_fallthru
      _
    %6554 = vsyncpa [#allocation3], 1
    %6555 = vsyncpa [#allocation5], 1

</llo_original>
